<compile_context>
chip_gen: v5e
topology: v5e:2x2
jax: 0.10.0
libtpu: 0.0.40
codegen_flags: <defaults>
</compile_context>

<pallas_src>
import functools

import jax
import jax.numpy as jnp
from jax.experimental import pallas as pl
from jax.experimental.pallas import tpu as pltpu


def _round_up(x, m):
    return (x + m - 1) // m * m


def _pick_tiling(M, max_tile=512, align=16):
    """Pick an M-tile (multiple of `align`, bf16-friendly) minimizing padding."""
    n_tiles = -(-M // max_tile)                      # cdiv
    tm = _round_up(-(-M // n_tiles), align)
    return tm, tm * n_tiles


# --------------------------------------------------------------------------
# Fused conv layer kernel:  pre = patches @ W  (full K, f32 accumulate)
#   phase 0 : GEMM tile -> resident VMEM pre-activation, accumulate per-channel
#             sum / sum-of-squares
#   phase 1 : compute folded BN scale/shift once, apply scale/shift + ReLU and
#             write the bf16 activation tile to HBM.
# --------------------------------------------------------------------------
def _conv_bn_relu_kernel(p_ref, w_ref, g_ref, b_ref, o_ref,
                         pre_ref, sum_ref, sq_ref, sc_ref, sh_ref,
                         *, n_valid, eps, tm):
    phase = pl.program_id(0)
    i = pl.program_id(1)
    row0 = pl.multiple_of(i * tm, tm)

    @pl.when(jnp.logical_and(phase == 0, i == 0))
    def _():
        sum_ref[...] = jnp.zeros_like(sum_ref)
        sq_ref[...] = jnp.zeros_like(sq_ref)

    @pl.when(phase == 0)
    def _():
        pre = jnp.dot(p_ref[...], w_ref[...],
                      preferred_element_type=jnp.float32)
        pre_ref[pl.ds(row0, tm), :] = pre
        sum_ref[...] += jnp.sum(pre, axis=0, keepdims=True)
        sq_ref[...] += jnp.sum(pre * pre, axis=0, keepdims=True)

    @pl.when(jnp.logical_and(phase == 1, i == 0))
    def _():
        mean = sum_ref[...] / n_valid
        var = sq_ref[...] / n_valid - mean * mean      # biased variance
        scale = g_ref[...] * jax.lax.rsqrt(var + eps)
        sc_ref[...] = scale
        sh_ref[...] = b_ref[...] - mean * scale

    @pl.when(phase == 1)
    def _():
        pre = pre_ref[pl.ds(row0, tm), :]
        y = jnp.maximum(pre * sc_ref[...] + sh_ref[...], 0.0)
        o_ref[...] = y.astype(o_ref.dtype)


def conv_bn_relu(patches, w, gamma, beta, *, eps=1e-5):
    """patches: [M, K] bf16 (im2col rows), w: [K, C] bf16, gamma/beta: [1, C] f32.
    Returns relu(batchnorm(patches @ w)) as [M, C] bf16 (training-mode BN)."""
    M, K = patches.shape
    _, C = w.shape
    tm, Mp = _pick_tiling(M)
    if Mp != M:
        # zero rows are exactly neutral: conv bias is dropped, so padded rows
        # produce pre-activation 0 and do not perturb sum / sumsq.
        patches = jnp.zeros((Mp, K), patches.dtype).at[:M].set(patches)
    n_tiles = Mp // tm

    out = pl.pallas_call(
        functools.partial(_conv_bn_relu_kernel,
                          n_valid=float(M), eps=eps, tm=tm),
        out_shape=jax.ShapeDtypeStruct((Mp, C), jnp.bfloat16),
        grid_spec=pltpu.PrefetchScalarGridSpec(
            num_scalar_prefetch=0,
            grid=(2, n_tiles),                       # (phase, M-tile)
            in_specs=[
                # patches are only needed in phase 0; keep index 0 in phase 1
                # so they are not re-streamed.
                pl.BlockSpec((tm, K), lambda p, i: (i * (1 - p), 0)),
                pl.BlockSpec((K, C), lambda p, i: (0, 0)),   # resident weight
                pl.BlockSpec((1, C), lambda p, i: (0, 0)),
                pl.BlockSpec((1, C), lambda p, i: (0, 0)),
            ],
            # output blocks are only written in phase 1; index 0 in phase 0 so
            # no garbage flush happens (block index changes only in phase 1).
            out_specs=pl.BlockSpec((tm, C), lambda p, i: (i * p, 0)),
            scratch_shapes=[
                pltpu.VMEM((Mp, C), jnp.float32),    # resident pre-activation
                pltpu.VMEM((1, C), jnp.float32),     # sum
                pltpu.VMEM((1, C), jnp.float32),     # sum of squares
                pltpu.VMEM((1, C), jnp.float32),     # folded scale
                pltpu.VMEM((1, C), jnp.float32),     # folded shift
            ],
        ),
        compiler_params=pltpu.CompilerParams(
            dimension_semantics=("arbitrary", "arbitrary")),
    )(patches, w, gamma, beta)
    return out[:M]


# --------------------------------------------------------------------------
# Fused FC head kernel:  q = relu(flat @ W1 + b1) @ W2p + b2p
# W2/b2 pre-padded to 128 output columns -> lane-dense stores; sliced outside.
# --------------------------------------------------------------------------
def _head_kernel(x_ref, w1_ref, b1_ref, w2_ref, b2_ref, o_ref):
    h = jnp.dot(x_ref[...], w1_ref[...], preferred_element_type=jnp.float32)
    h = jnp.maximum(h + b1_ref[...], 0.0)
    q = jnp.dot(h.astype(w2_ref.dtype), w2_ref[...],
                preferred_element_type=jnp.float32)
    o_ref[...] = q + b2_ref[...]


def head(flat, w1, b1, w2p, b2p, num_actions):
    M, K = flat.shape            # K = 5184 (full-K panel, no padding)
    H = w1.shape[1]              # 512
    NP = w2p.shape[1]            # 128 (lane-dense padded action dim)
    tm, Mp = _pick_tiling(M, max_tile=256)
    if Mp != M:
        flat = jnp.zeros((Mp, K), flat.dtype).at[:M].set(flat)

    out = pl.pallas_call(
        _head_kernel,
        out_shape=jax.ShapeDtypeStruct((Mp, NP), jnp.float32),
        grid_spec=pltpu.PrefetchScalarGridSpec(
            num_scalar_prefetch=0,
            grid=(Mp // tm,),
            in_specs=[
                pl.BlockSpec((tm, K), lambda i: (i, 0)),
                pl.BlockSpec((K, H), lambda i: (0, 0)),
                pl.BlockSpec((1, H), lambda i: (0, 0)),
                pl.BlockSpec((H, NP), lambda i: (0, 0)),
                pl.BlockSpec((1, NP), lambda i: (0, 0)),
            ],
            out_specs=pl.BlockSpec((tm, NP), lambda i: (i, 0)),
        ),
        compiler_params=pltpu.CompilerParams(
            dimension_semantics=("parallel",)),
    )(flat, w1, b1, w2p, b2p)
    return out[:M, :num_actions]


# --------------------------------------------------------------------------
# Glue: im2col patch extraction (NHWC -> [B*OH*OW, C*KH*KW], cols = (c,kh,kw))
# --------------------------------------------------------------------------
def im2col(x, kh, kw, stride):
    B, H, W, C = x.shape
    OH = (H - kh) // stride + 1
    OW = (W - kw) // stride + 1
    cols = []
    for i in range(kh):
        for j in range(kw):
            cols.append(x[:, i:i + stride * OH:stride, j:j + stride * OW:stride, :])
    p = jnp.stack(cols, axis=3).reshape(B, OH, OW, kh, kw, C)
    p = jnp.transpose(p, (0, 1, 2, 5, 3, 4))          # (b, oh, ow, c, kh, kw)
    return p.reshape(B * OH * OW, C * kh * kw), OH, OW


# --------------------------------------------------------------------------
# One-time parameter preparation (transposes / casts / pads hoisted here)
# --------------------------------------------------------------------------
def prepare_params(raw, num_actions):
    # Conv biases are intentionally dropped: training-mode BatchNorm subtracts
    # the batch mean, so the bias cancels exactly in the forward output.
    np_pad = _round_up(max(num_actions, 1), 128)
    w2p = jnp.zeros((512, np_pad), jnp.bfloat16).at[:, :num_actions].set(
        raw["l2_w"].T.astype(jnp.bfloat16))
    b2p = jnp.zeros((1, np_pad), jnp.float32).at[0, :num_actions].set(
        raw["l2_b"].astype(jnp.float32))
    return {
        "w1": raw["conv1_w"].reshape(32, -1).T.astype(jnp.bfloat16),    # [256, 32]
        "bn1_g": raw["bn1_g"].reshape(1, 32).astype(jnp.float32),
        "bn1_b": raw["bn1_b"].reshape(1, 32).astype(jnp.float32),
        "w2": raw["conv2_w"].reshape(64, -1).T.astype(jnp.bfloat16),    # [512, 64]
        "bn2_g": raw["bn2_g"].reshape(1, 64).astype(jnp.float32),
        "bn2_b": raw["bn2_b"].reshape(1, 64).astype(jnp.float32),
        "l1_w_t": raw["l1_w"].T.astype(jnp.bfloat16),                   # [5184, 512]
        "l1_b": raw["l1_b"].reshape(1, 512).astype(jnp.float32),
        "l2_w_pad": w2p,
        "l2_b_pad": b2p,
    }


# --------------------------------------------------------------------------
# Full DQN forward
# --------------------------------------------------------------------------
def dqn_forward(x_nchw, params, num_actions):
    B = x_nchw.shape[0]
    x = jnp.transpose(x_nchw, (0, 2, 3, 1)).astype(jnp.bfloat16)   # NHWC bf16

    # conv1 (4->32, k=8, s=4) + bn1 + relu, fused in one kernel
    p1, oh1, ow1 = im2col(x, 8, 8, 4)                              # [B*20*20, 256]
    a1 = conv_bn_relu(p1, params["w1"], params["bn1_g"], params["bn1_b"])
    a1 = a1.reshape(B, oh1, ow1, 32)

    # conv2 (32->64, k=4, s=2) + bn2 + relu, fused in one kernel
    p2, oh2, ow2 = im2col(a1, 4, 4, 2)                             # [B*9*9, 512]
    a2 = conv_bn_relu(p2, params["w2"], params["bn2_g"], params["bn2_b"])
    a2 = a2.reshape(B, oh2, ow2, 64)

    # flatten in PyTorch NCHW order -> 64*9*9 = 5184
    flat = jnp.transpose(a2, (0, 3, 1, 2)).reshape(B, -1)          # [B, 5184] bf16

    # fused l1 (5184->512) + relu + l2 (512->num_actions)
    return head(flat, params["l1_w_t"], params["l1_b"],
                params["l2_w_pad"], params["l2_b_pad"], num_actions)


if __name__ == "__main__":
    num_actions = 6
    key = jax.random.PRNGKey(0)
    ks = jax.random.split(key, 9)
    raw_params = {
        "conv1_w": 0.05 * jax.random.normal(ks[0], (32, 4, 8, 8), jnp.float32),
        "conv1_b": 0.05 * jax.random.normal(ks[1], (32,), jnp.float32),  # cancelled by BN
        "bn1_g": jnp.ones((32,), jnp.float32),
        "bn1_b": jnp.zeros((32,), jnp.float32),
        "conv2_w": 0.05 * jax.random.normal(ks[2], (64, 32, 4, 4), jnp.float32),
        "conv2_b": 0.05 * jax.random.normal(ks[3], (64,), jnp.float32),  # cancelled by BN
        "bn2_g": jnp.ones((64,), jnp.float32),
        "bn2_b": jnp.zeros((64,), jnp.float32),
        "l1_w": 0.02 * jax.random.normal(ks[4], (512, 5184), jnp.float32),
        "l1_b": 0.02 * jax.random.normal(ks[5], (512,), jnp.float32),
        "l2_w": 0.02 * jax.random.normal(ks[6], (num_actions, 512), jnp.float32),
        "l2_b": 0.02 * jax.random.normal(ks[7], (num_actions,), jnp.float32),
    }
    params = prepare_params(raw_params, num_actions)

    # batch=2 kept small; spatial must be 84x84 so the flatten size is 5184.
    x = jax.random.normal(ks[8], (2, 4, 84, 84), jnp.float32)

    fwd = jax.jit(functools.partial(dqn_forward, num_actions=num_actions))
    q = fwd(x, params)
    jax.block_until_ready(q)
    assert q.shape == (2, num_actions) and q.dtype == jnp.float32
    print("KERNEL_OK")
</pallas_src>

<mosaic_0001>
module attributes {stable_mosaic.version = 11 : i64} {
  func.func @_conv_bn_relu_kernel(%arg0: i32, %arg1: i32, %arg2: memref<400x256xbf16, #tpu.memory_space<vmem>>, %arg3: memref<256x32xbf16, #tpu.memory_space<vmem>>, %arg4: memref<1x32xf32, #tpu.memory_space<vmem>>, %arg5: memref<1x32xf32, #tpu.memory_space<vmem>>, %arg6: memref<400x32xbf16, #tpu.memory_space<vmem>>, %arg7: memref<800x32xf32, #tpu.memory_space<vmem>>, %arg8: memref<1x32xf32, #tpu.memory_space<vmem>>, %arg9: memref<1x32xf32, #tpu.memory_space<vmem>>, %arg10: memref<1x32xf32, #tpu.memory_space<vmem>>, %arg11: memref<1x32xf32, #tpu.memory_space<vmem>>) attributes {dimension_semantics = [#tpu.dimension_semantics<arbitrary>, #tpu.dimension_semantics<arbitrary>], iteration_bounds = array<i64: 2, 2>, scalar_prefetch = 0 : i64, scratch_operands = 5 : i64, tpu.core_type = #tpu.core_type<tc>, window_params = [{transform_indices = @transform_0, window_bounds = array<i64: 400, 256>}, {pipeline_mode = #tpu.pipeline_mode<synchronous>, transform_indices = @transform_1, window_bounds = array<i64: 256, 32>}, {pipeline_mode = #tpu.pipeline_mode<synchronous>, transform_indices = @transform_2, window_bounds = array<i64: 1, 32>}, {pipeline_mode = #tpu.pipeline_mode<synchronous>, transform_indices = @transform_3, window_bounds = array<i64: 1, 32>}, {transform_indices = @transform_4, window_bounds = array<i64: 400, 32>}]} {
    %c400_i32 = arith.constant 400 : i32
    %0 = arith.muli %arg1, %c400_i32 : i32
    %1 = tpu.assume_multiple %0, 400 : i32
    %c0_i32 = arith.constant 0 : i32
    %2 = arith.cmpi eq, %arg0, %c0_i32 : i32
    %c0_i32_0 = arith.constant 0 : i32
    %3 = arith.cmpi eq, %arg1, %c0_i32_0 : i32
    %4 = arith.andi %2, %3 : i1
    %5 = arith.extui %4 : i1 to i32
    %c0_i32_1 = arith.constant 0 : i32
    %6 = arith.cmpi ne, %5, %c0_i32_1 : i32
    scf.if %6 {
      %cst = arith.constant 0.000000e+00 : f32
      %18 = vector.broadcast %cst : f32 to vector<1x32xf32>
      %c0 = arith.constant 0 : index
      %c0_8 = arith.constant 0 : index
      %19 = vector.load %arg8[%c0, %c0_8] : memref<1x32xf32, #tpu.memory_space<vmem>>, vector<1x32xf32>
      tpu.vector_store %arg8[%c0, %c0_8], %18 {strides = array<i32>} : memref<1x32xf32, #tpu.memory_space<vmem>>, vector<1x32xf32>,
      %cst_9 = arith.constant 0.000000e+00 : f32
      %20 = vector.broadcast %cst_9 : f32 to vector<1x32xf32>
      %c0_10 = arith.constant 0 : index
      %c0_11 = arith.constant 0 : index
      %21 = vector.load %arg9[%c0_10, %c0_11] : memref<1x32xf32, #tpu.memory_space<vmem>>, vector<1x32xf32>
      tpu.vector_store %arg9[%c0_10, %c0_11], %20 {strides = array<i32>} : memref<1x32xf32, #tpu.memory_space<vmem>>, vector<1x32xf32>,
    } else {
    }
    %c0_i32_2 = arith.constant 0 : i32
    %7 = arith.cmpi eq, %arg0, %c0_i32_2 : i32
    %8 = arith.extui %7 : i1 to i32
    %c0_i32_3 = arith.constant 0 : i32
    %9 = arith.cmpi ne, %8, %c0_i32_3 : i32
    scf.if %9 {
      %c0 = arith.constant 0 : index
      %c0_8 = arith.constant 0 : index
      %18 = vector.load %arg2[%c0, %c0_8] : memref<400x256xbf16, #tpu.memory_space<vmem>>, vector<400x256xbf16>
      %c0_9 = arith.constant 0 : index
      %c0_10 = arith.constant 0 : index
      %19 = vector.load %arg3[%c0_9, %c0_10] : memref<256x32xbf16, #tpu.memory_space<vmem>>, vector<256x32xbf16>
      %cst = arith.constant dense<0.000000e+00> : vector<400x32xf32>
      %20 = tpu.matmul %18, %19, %cst {dimension_numbers = #tpu.dot_dimension_numbers<[1], [0], [0], [1], [0, 0, 1, 1], [], []>} : vector<400x256xbf16>, vector<256x32xbf16>, vector<400x32xf32> -> vector<400x32xf32>
      %21 = arith.index_cast %1 : i32 to index
      %c0_11 = arith.constant 0 : index
      %22 = vector.load %arg7[%21, %c0_11] : memref<800x32xf32, #tpu.memory_space<vmem>>, vector<400x32xf32>
      tpu.vector_store %arg7[%21, %c0_11], %20 {strides = array<i32>} : memref<800x32xf32, #tpu.memory_space<vmem>>, vector<400x32xf32>,
      %c0_12 = arith.constant 0 : index
      %c0_13 = arith.constant 0 : index
      %23 = vector.load %arg8[%c0_12, %c0_13] : memref<1x32xf32, #tpu.memory_space<vmem>>, vector<1x32xf32>
      %cst_14 = arith.constant dense<0.000000e+00> : vector<32xf32>
      %24 = vector.multi_reduction <add>, %20, %cst_14 [0] : vector<400x32xf32> to vector<32xf32>
      %25 = vector.shape_cast %24 : vector<32xf32> to vector<1x32xf32>
      %26 = arith.addf %23, %25 : vector<1x32xf32>
      %c0_15 = arith.constant 0 : index
      %c0_16 = arith.constant 0 : index
      %27 = vector.load %arg8[%c0_15, %c0_16] : memref<1x32xf32, #tpu.memory_space<vmem>>, vector<1x32xf32>
      tpu.vector_store %arg8[%c0_15, %c0_16], %26 {strides = array<i32>} : memref<1x32xf32, #tpu.memory_space<vmem>>, vector<1x32xf32>,
      %c0_17 = arith.constant 0 : index
      %c0_18 = arith.constant 0 : index
      %28 = vector.load %arg9[%c0_17, %c0_18] : memref<1x32xf32, #tpu.memory_space<vmem>>, vector<1x32xf32>
      %29 = arith.mulf %20, %20 : vector<400x32xf32>
      %cst_19 = arith.constant dense<0.000000e+00> : vector<32xf32>
      %30 = vector.multi_reduction <add>, %29, %cst_19 [0] : vector<400x32xf32> to vector<32xf32>
      %31 = vector.shape_cast %30 : vector<32xf32> to vector<1x32xf32>
      %32 = arith.addf %28, %31 : vector<1x32xf32>
      %c0_20 = arith.constant 0 : index
      %c0_21 = arith.constant 0 : index
      %33 = vector.load %arg9[%c0_20, %c0_21] : memref<1x32xf32, #tpu.memory_space<vmem>>, vector<1x32xf32>
      tpu.vector_store %arg9[%c0_20, %c0_21], %32 {strides = array<i32>} : memref<1x32xf32, #tpu.memory_space<vmem>>, vector<1x32xf32>,
    } else {
    }
    %c1_i32 = arith.constant 1 : i32
    %10 = arith.cmpi eq, %arg0, %c1_i32 : i32
    %c0_i32_4 = arith.constant 0 : i32
    %11 = arith.cmpi eq, %arg1, %c0_i32_4 : i32
    %12 = arith.andi %10, %11 : i1
    %13 = arith.extui %12 : i1 to i32
    %c0_i32_5 = arith.constant 0 : i32
    %14 = arith.cmpi ne, %13, %c0_i32_5 : i32
    scf.if %14 {
      %c0 = arith.constant 0 : index
      %c0_8 = arith.constant 0 : index
      %18 = vector.load %arg8[%c0, %c0_8] : memref<1x32xf32, #tpu.memory_space<vmem>>, vector<1x32xf32>
      %cst = arith.constant 8.000000e+02 : f32
      %19 = vector.broadcast %cst : f32 to vector<1x32xf32>
      %20 = arith.divf %18, %19 : vector<1x32xf32>
      %c0_9 = arith.constant 0 : index
      %c0_10 = arith.constant 0 : index
      %21 = vector.load %arg9[%c0_9, %c0_10] : memref<1x32xf32, #tpu.memory_space<vmem>>, vector<1x32xf32>
      %cst_11 = arith.constant 8.000000e+02 : f32
      %22 = vector.broadcast %cst_11 : f32 to vector<1x32xf32>
      %23 = arith.divf %21, %22 : vector<1x32xf32>
      %24 = arith.mulf %20, %20 : vector<1x32xf32>
      %25 = arith.subf %23, %24 : vector<1x32xf32>
      %c0_12 = arith.constant 0 : index
      %c0_13 = arith.constant 0 : index
      %26 = vector.load %arg4[%c0_12, %c0_13] : memref<1x32xf32, #tpu.memory_space<vmem>>, vector<1x32xf32>
      %cst_14 = arith.constant 9.99999974E-6 : f32
      %27 = vector.broadcast %cst_14 : f32 to vector<1x32xf32>
      %28 = arith.addf %25, %27 : vector<1x32xf32>
      %29 = math.rsqrt %28 : vector<1x32xf32>
      %30 = arith.mulf %26, %29 : vector<1x32xf32>
      %c0_15 = arith.constant 0 : index
      %c0_16 = arith.constant 0 : index
      %31 = vector.load %arg10[%c0_15, %c0_16] : memref<1x32xf32, #tpu.memory_space<vmem>>, vector<1x32xf32>
      tpu.vector_store %arg10[%c0_15, %c0_16], %30 {strides = array<i32>} : memref<1x32xf32, #tpu.memory_space<vmem>>, vector<1x32xf32>,
      %c0_17 = arith.constant 0 : index
      %c0_18 = arith.constant 0 : index
      %32 = vector.load %arg5[%c0_17, %c0_18] : memref<1x32xf32, #tpu.memory_space<vmem>>, vector<1x32xf32>
      %33 = arith.mulf %20, %30 : vector<1x32xf32>
      %34 = arith.subf %32, %33 : vector<1x32xf32>
      %c0_19 = arith.constant 0 : index
      %c0_20 = arith.constant 0 : index
      %35 = vector.load %arg11[%c0_19, %c0_20] : memref<1x32xf32, #tpu.memory_space<vmem>>, vector<1x32xf32>
      tpu.vector_store %arg11[%c0_19, %c0_20], %34 {strides = array<i32>} : memref<1x32xf32, #tpu.memory_space<vmem>>, vector<1x32xf32>,
    } else {
    }
    %c1_i32_6 = arith.constant 1 : i32
    %15 = arith.cmpi eq, %arg0, %c1_i32_6 : i32
    %16 = arith.extui %15 : i1 to i32
    %c0_i32_7 = arith.constant 0 : i32
    %17 = arith.cmpi ne, %16, %c0_i32_7 : i32
    scf.if %17 {
      %18 = arith.index_cast %1 : i32 to index
      %c0 = arith.constant 0 : index
      %19 = vector.load %arg7[%18, %c0] : memref<800x32xf32, #tpu.memory_space<vmem>>, vector<400x32xf32>
      %c0_8 = arith.constant 0 : index
      %c0_9 = arith.constant 0 : index
      %20 = vector.load %arg10[%c0_8, %c0_9] : memref<1x32xf32, #tpu.memory_space<vmem>>, vector<1x32xf32>
      %21 = vector.broadcast %20 : vector<1x32xf32> to vector<400x32xf32>
      %22 = arith.mulf %19, %21 : vector<400x32xf32>
      %c0_10 = arith.constant 0 : index
      %c0_11 = arith.constant 0 : index
      %23 = vector.load %arg11[%c0_10, %c0_11] : memref<1x32xf32, #tpu.memory_space<vmem>>, vector<1x32xf32>
      %24 = vector.broadcast %23 : vector<1x32xf32> to vector<400x32xf32>
      %25 = arith.addf %22, %24 : vector<400x32xf32>
      %cst = arith.constant 0.000000e+00 : f32
      %26 = vector.broadcast %cst : f32 to vector<400x32xf32>
      %27 = arith.maximumf %25, %26 : vector<400x32xf32>
      %28 = arith.truncf %27 : vector<400x32xf32> to vector<400x32xbf16>
      %c0_12 = arith.constant 0 : index
      %c0_13 = arith.constant 0 : index
      %29 = vector.load %arg6[%c0_12, %c0_13] : memref<400x32xbf16, #tpu.memory_space<vmem>>, vector<400x32xbf16>
      tpu.vector_store %arg6[%c0_12, %c0_13], %28 {strides = array<i32>} : memref<400x32xbf16, #tpu.memory_space<vmem>>, vector<400x32xbf16>,
    } else {
    }
    return
  }
  func.func @transform_0(%arg0: i32, %arg1: i32) -> (i32, i32) {
    %c1_i32 = arith.constant 1 : i32
    %0 = arith.subi %c1_i32, %arg0 : i32
    %1 = arith.muli %arg1, %0 : i32
    %c0_i32 = arith.constant 0 : i32
    %c0_i32_0 = arith.constant 0 : i32
    return %1, %c0_i32 : i32, i32
  }
  func.func @transform_1(%arg0: i32, %arg1: i32) -> (i32, i32) {
    %c0_i32 = arith.constant 0 : i32
    %c0_i32_0 = arith.constant 0 : i32
    %c0_i32_1 = arith.constant 0 : i32
    return %c0_i32, %c0_i32_0 : i32, i32
  }
  func.func @transform_2(%arg0: i32, %arg1: i32) -> (i32, i32) {
    %c0_i32 = arith.constant 0 : i32
    %c0_i32_0 = arith.constant 0 : i32
    %c0_i32_1 = arith.constant 0 : i32
    return %c0_i32, %c0_i32_0 : i32, i32
  }
  func.func @transform_3(%arg0: i32, %arg1: i32) -> (i32, i32) {
    %c0_i32 = arith.constant 0 : i32
    %c0_i32_0 = arith.constant 0 : i32
    %c0_i32_1 = arith.constant 0 : i32
    return %c0_i32, %c0_i32_0 : i32, i32
  }
  func.func @transform_4(%arg0: i32, %arg1: i32) -> (i32, i32) {
    %0 = arith.muli %arg1, %arg0 : i32
    %c0_i32 = arith.constant 0 : i32
    %c0_i32_0 = arith.constant 0 : i32
    return %0, %c0_i32 : i32, i32
  }
}

module attributes {stable_mosaic.version = 11 : i64} {
  func.func @_conv_bn_relu_kernel(%arg0: i32, %arg1: i32, %arg2: memref<176x512xbf16, #tpu.memory_space<vmem>>, %arg3: memref<512x64xbf16, #tpu.memory_space<vmem>>, %arg4: memref<1x64xf32, #tpu.memory_space<vmem>>, %arg5: memref<1x64xf32, #tpu.memory_space<vmem>>, %arg6: memref<176x64xbf16, #tpu.memory_space<vmem>>, %arg7: memref<176x64xf32, #tpu.memory_space<vmem>>, %arg8: memref<1x64xf32, #tpu.memory_space<vmem>>, %arg9: memref<1x64xf32, #tpu.memory_space<vmem>>, %arg10: memref<1x64xf32, #tpu.memory_space<vmem>>, %arg11: memref<1x64xf32, #tpu.memory_space<vmem>>) attributes {dimension_semantics = [#tpu.dimension_semantics<arbitrary>, #tpu.dimension_semantics<arbitrary>], iteration_bounds = array<i64: 2, 1>, scalar_prefetch = 0 : i64, scratch_operands = 5 : i64, tpu.core_type = #tpu.core_type<tc>, window_params = [{transform_indices = @transform_0, window_bounds = array<i64: 176, 512>}, {pipeline_mode = #tpu.pipeline_mode<synchronous>, transform_indices = @transform_1, window_bounds = array<i64: 512, 64>}, {pipeline_mode = #tpu.pipeline_mode<synchronous>, transform_indices = @transform_2, window_bounds = array<i64: 1, 64>}, {pipeline_mode = #tpu.pipeline_mode<synchronous>, transform_indices = @transform_3, window_bounds = array<i64: 1, 64>}, {transform_indices = @transform_4, window_bounds = array<i64: 176, 64>}]} {
    %c176_i32 = arith.constant 176 : i32
    %0 = arith.muli %arg1, %c176_i32 : i32
    %1 = tpu.assume_multiple %0, 176 : i32
    %c0_i32 = arith.constant 0 : i32
    %2 = arith.cmpi eq, %arg0, %c0_i32 : i32
    %c0_i32_0 = arith.constant 0 : i32
    %3 = arith.cmpi eq, %arg1, %c0_i32_0 : i32
    %4 = arith.andi %2, %3 : i1
    %5 = arith.extui %4 : i1 to i32
    %c0_i32_1 = arith.constant 0 : i32
    %6 = arith.cmpi ne, %5, %c0_i32_1 : i32
    scf.if %6 {
      %cst = arith.constant 0.000000e+00 : f32
      %18 = vector.broadcast %cst : f32 to vector<1x64xf32>
      %c0 = arith.constant 0 : index
      %c0_8 = arith.constant 0 : index
      %19 = vector.load %arg8[%c0, %c0_8] : memref<1x64xf32, #tpu.memory_space<vmem>>, vector<1x64xf32>
      tpu.vector_store %arg8[%c0, %c0_8], %18 {strides = array<i32>} : memref<1x64xf32, #tpu.memory_space<vmem>>, vector<1x64xf32>,
      %cst_9 = arith.constant 0.000000e+00 : f32
      %20 = vector.broadcast %cst_9 : f32 to vector<1x64xf32>
      %c0_10 = arith.constant 0 : index
      %c0_11 = arith.constant 0 : index
      %21 = vector.load %arg9[%c0_10, %c0_11] : memref<1x64xf32, #tpu.memory_space<vmem>>, vector<1x64xf32>
      tpu.vector_store %arg9[%c0_10, %c0_11], %20 {strides = array<i32>} : memref<1x64xf32, #tpu.memory_space<vmem>>, vector<1x64xf32>,
    } else {
    }
    %c0_i32_2 = arith.constant 0 : i32
    %7 = arith.cmpi eq, %arg0, %c0_i32_2 : i32
    %8 = arith.extui %7 : i1 to i32
    %c0_i32_3 = arith.constant 0 : i32
    %9 = arith.cmpi ne, %8, %c0_i32_3 : i32
    scf.if %9 {
      %c0 = arith.constant 0 : index
      %c0_8 = arith.constant 0 : index
      %18 = vector.load %arg2[%c0, %c0_8] : memref<176x512xbf16, #tpu.memory_space<vmem>>, vector<176x512xbf16>
      %c0_9 = arith.constant 0 : index
      %c0_10 = arith.constant 0 : index
      %19 = vector.load %arg3[%c0_9, %c0_10] : memref<512x64xbf16, #tpu.memory_space<vmem>>, vector<512x64xbf16>
      %cst = arith.constant dense<0.000000e+00> : vector<176x64xf32>
      %20 = tpu.matmul %18, %19, %cst {dimension_numbers = #tpu.dot_dimension_numbers<[1], [0], [0], [1], [0, 0, 1, 1], [], []>} : vector<176x512xbf16>, vector<512x64xbf16>, vector<176x64xf32> -> vector<176x64xf32>
      %21 = arith.index_cast %1 : i32 to index
      %c0_11 = arith.constant 0 : index
      %22 = vector.load %arg7[%21, %c0_11] : memref<176x64xf32, #tpu.memory_space<vmem>>, vector<176x64xf32>
      tpu.vector_store %arg7[%21, %c0_11], %20 {strides = array<i32>} : memref<176x64xf32, #tpu.memory_space<vmem>>, vector<176x64xf32>,
      %c0_12 = arith.constant 0 : index
      %c0_13 = arith.constant 0 : index
      %23 = vector.load %arg8[%c0_12, %c0_13] : memref<1x64xf32, #tpu.memory_space<vmem>>, vector<1x64xf32>
      %cst_14 = arith.constant dense<0.000000e+00> : vector<64xf32>
      %24 = vector.multi_reduction <add>, %20, %cst_14 [0] : vector<176x64xf32> to vector<64xf32>
      %25 = vector.shape_cast %24 : vector<64xf32> to vector<1x64xf32>
      %26 = arith.addf %23, %25 : vector<1x64xf32>
      %c0_15 = arith.constant 0 : index
      %c0_16 = arith.constant 0 : index
      %27 = vector.load %arg8[%c0_15, %c0_16] : memref<1x64xf32, #tpu.memory_space<vmem>>, vector<1x64xf32>
      tpu.vector_store %arg8[%c0_15, %c0_16], %26 {strides = array<i32>} : memref<1x64xf32, #tpu.memory_space<vmem>>, vector<1x64xf32>,
      %c0_17 = arith.constant 0 : index
      %c0_18 = arith.constant 0 : index
      %28 = vector.load %arg9[%c0_17, %c0_18] : memref<1x64xf32, #tpu.memory_space<vmem>>, vector<1x64xf32>
      %29 = arith.mulf %20, %20 : vector<176x64xf32>
      %cst_19 = arith.constant dense<0.000000e+00> : vector<64xf32>
      %30 = vector.multi_reduction <add>, %29, %cst_19 [0] : vector<176x64xf32> to vector<64xf32>
      %31 = vector.shape_cast %30 : vector<64xf32> to vector<1x64xf32>
      %32 = arith.addf %28, %31 : vector<1x64xf32>
      %c0_20 = arith.constant 0 : index
      %c0_21 = arith.constant 0 : index
      %33 = vector.load %arg9[%c0_20, %c0_21] : memref<1x64xf32, #tpu.memory_space<vmem>>, vector<1x64xf32>
      tpu.vector_store %arg9[%c0_20, %c0_21], %32 {strides = array<i32>} : memref<1x64xf32, #tpu.memory_space<vmem>>, vector<1x64xf32>,
    } else {
    }
    %c1_i32 = arith.constant 1 : i32
    %10 = arith.cmpi eq, %arg0, %c1_i32 : i32
    %c0_i32_4 = arith.constant 0 : i32
    %11 = arith.cmpi eq, %arg1, %c0_i32_4 : i32
    %12 = arith.andi %10, %11 : i1
    %13 = arith.extui %12 : i1 to i32
    %c0_i32_5 = arith.constant 0 : i32
    %14 = arith.cmpi ne, %13, %c0_i32_5 : i32
    scf.if %14 {
      %c0 = arith.constant 0 : index
      %c0_8 = arith.constant 0 : index
      %18 = vector.load %arg8[%c0, %c0_8] : memref<1x64xf32, #tpu.memory_space<vmem>>, vector<1x64xf32>
      %cst = arith.constant 1.620000e+02 : f32
      %19 = vector.broadcast %cst : f32 to vector<1x64xf32>
      %20 = arith.divf %18, %19 : vector<1x64xf32>
      %c0_9 = arith.constant 0 : index
      %c0_10 = arith.constant 0 : index
      %21 = vector.load %arg9[%c0_9, %c0_10] : memref<1x64xf32, #tpu.memory_space<vmem>>, vector<1x64xf32>
      %cst_11 = arith.constant 1.620000e+02 : f32
      %22 = vector.broadcast %cst_11 : f32 to vector<1x64xf32>
      %23 = arith.divf %21, %22 : vector<1x64xf32>
      %24 = arith.mulf %20, %20 : vector<1x64xf32>
      %25 = arith.subf %23, %24 : vector<1x64xf32>
      %c0_12 = arith.constant 0 : index
      %c0_13 = arith.constant 0 : index
      %26 = vector.load %arg4[%c0_12, %c0_13] : memref<1x64xf32, #tpu.memory_space<vmem>>, vector<1x64xf32>
      %cst_14 = arith.constant 9.99999974E-6 : f32
      %27 = vector.broadcast %cst_14 : f32 to vector<1x64xf32>
      %28 = arith.addf %25, %27 : vector<1x64xf32>
      %29 = math.rsqrt %28 : vector<1x64xf32>
      %30 = arith.mulf %26, %29 : vector<1x64xf32>
      %c0_15 = arith.constant 0 : index
      %c0_16 = arith.constant 0 : index
      %31 = vector.load %arg10[%c0_15, %c0_16] : memref<1x64xf32, #tpu.memory_space<vmem>>, vector<1x64xf32>
      tpu.vector_store %arg10[%c0_15, %c0_16], %30 {strides = array<i32>} : memref<1x64xf32, #tpu.memory_space<vmem>>, vector<1x64xf32>,
      %c0_17 = arith.constant 0 : index
      %c0_18 = arith.constant 0 : index
      %32 = vector.load %arg5[%c0_17, %c0_18] : memref<1x64xf32, #tpu.memory_space<vmem>>, vector<1x64xf32>
      %33 = arith.mulf %20, %30 : vector<1x64xf32>
      %34 = arith.subf %32, %33 : vector<1x64xf32>
      %c0_19 = arith.constant 0 : index
      %c0_20 = arith.constant 0 : index
      %35 = vector.load %arg11[%c0_19, %c0_20] : memref<1x64xf32, #tpu.memory_space<vmem>>, vector<1x64xf32>
      tpu.vector_store %arg11[%c0_19, %c0_20], %34 {strides = array<i32>} : memref<1x64xf32, #tpu.memory_space<vmem>>, vector<1x64xf32>,
    } else {
    }
    %c1_i32_6 = arith.constant 1 : i32
    %15 = arith.cmpi eq, %arg0, %c1_i32_6 : i32
    %16 = arith.extui %15 : i1 to i32
    %c0_i32_7 = arith.constant 0 : i32
    %17 = arith.cmpi ne, %16, %c0_i32_7 : i32
    scf.if %17 {
      %18 = arith.index_cast %1 : i32 to index
      %c0 = arith.constant 0 : index
      %19 = vector.load %arg7[%18, %c0] : memref<176x64xf32, #tpu.memory_space<vmem>>, vector<176x64xf32>
      %c0_8 = arith.constant 0 : index
      %c0_9 = arith.constant 0 : index
      %20 = vector.load %arg10[%c0_8, %c0_9] : memref<1x64xf32, #tpu.memory_space<vmem>>, vector<1x64xf32>
      %21 = vector.broadcast %20 : vector<1x64xf32> to vector<176x64xf32>
      %22 = arith.mulf %19, %21 : vector<176x64xf32>
      %c0_10 = arith.constant 0 : index
      %c0_11 = arith.constant 0 : index
      %23 = vector.load %arg11[%c0_10, %c0_11] : memref<1x64xf32, #tpu.memory_space<vmem>>, vector<1x64xf32>
      %24 = vector.broadcast %23 : vector<1x64xf32> to vector<176x64xf32>
      %25 = arith.addf %22, %24 : vector<176x64xf32>
      %cst = arith.constant 0.000000e+00 : f32
      %26 = vector.broadcast %cst : f32 to vector<176x64xf32>
      %27 = arith.maximumf %25, %26 : vector<176x64xf32>
      %28 = arith.truncf %27 : vector<176x64xf32> to vector<176x64xbf16>
      %c0_12 = arith.constant 0 : index
      %c0_13 = arith.constant 0 : index
      %29 = vector.load %arg6[%c0_12, %c0_13] : memref<176x64xbf16, #tpu.memory_space<vmem>>, vector<176x64xbf16>
      tpu.vector_store %arg6[%c0_12, %c0_13], %28 {strides = array<i32>} : memref<176x64xbf16, #tpu.memory_space<vmem>>, vector<176x64xbf16>,
    } else {
    }
    return
  }
  func.func @transform_0(%arg0: i32, %arg1: i32) -> (i32, i32) {
    %c1_i32 = arith.constant 1 : i32
    %0 = arith.subi %c1_i32, %arg0 : i32
    %1 = arith.muli %arg1, %0 : i32
    %c0_i32 = arith.constant 0 : i32
    %c0_i32_0 = arith.constant 0 : i32
    return %1, %c0_i32 : i32, i32
  }
  func.func @transform_1(%arg0: i32, %arg1: i32) -> (i32, i32) {
    %c0_i32 = arith.constant 0 : i32
    %c0_i32_0 = arith.constant 0 : i32
    %c0_i32_1 = arith.constant 0 : i32
    return %c0_i32, %c0_i32_0 : i32, i32
  }
  func.func @transform_2(%arg0: i32, %arg1: i32) -> (i32, i32) {
    %c0_i32 = arith.constant 0 : i32
    %c0_i32_0 = arith.constant 0 : i32
    %c0_i32_1 = arith.constant 0 : i32
    return %c0_i32, %c0_i32_0 : i32, i32
  }
  func.func @transform_3(%arg0: i32, %arg1: i32) -> (i32, i32) {
    %c0_i32 = arith.constant 0 : i32
    %c0_i32_0 = arith.constant 0 : i32
    %c0_i32_1 = arith.constant 0 : i32
    return %c0_i32, %c0_i32_0 : i32, i32
  }
  func.func @transform_4(%arg0: i32, %arg1: i32) -> (i32, i32) {
    %0 = arith.muli %arg1, %arg0 : i32
    %c0_i32 = arith.constant 0 : i32
    %c0_i32_0 = arith.constant 0 : i32
    return %0, %c0_i32 : i32, i32
  }
}

module attributes {stable_mosaic.version = 11 : i64} {
  func.func @_head_kernel(%arg0: i32, %arg1: memref<16x5184xbf16, #tpu.memory_space<vmem>>, %arg2: memref<5184x512xbf16, #tpu.memory_space<vmem>>, %arg3: memref<1x512xf32, #tpu.memory_space<vmem>>, %arg4: memref<512x128xbf16, #tpu.memory_space<vmem>>, %arg5: memref<1x128xf32, #tpu.memory_space<vmem>>, %arg6: memref<16x128xf32, #tpu.memory_space<vmem>>) attributes {dimension_semantics = [#tpu.dimension_semantics<parallel>], iteration_bounds = array<i64: 1>, scalar_prefetch = 0 : i64, scratch_operands = 0 : i64, tpu.core_type = #tpu.core_type<tc>, window_params = [{transform_indices = @transform_0, window_bounds = array<i64: 16, 5184>}, {pipeline_mode = #tpu.pipeline_mode<synchronous>, transform_indices = @transform_1, window_bounds = array<i64: 5184, 512>}, {pipeline_mode = #tpu.pipeline_mode<synchronous>, transform_indices = @transform_2, window_bounds = array<i64: 1, 512>}, {pipeline_mode = #tpu.pipeline_mode<synchronous>, transform_indices = @transform_3, window_bounds = array<i64: 512, 128>}, {pipeline_mode = #tpu.pipeline_mode<synchronous>, transform_indices = @transform_4, window_bounds = array<i64: 1, 128>}, {transform_indices = @transform_5, window_bounds = array<i64: 16, 128>}]} {
    %c0 = arith.constant 0 : index
    %c0_0 = arith.constant 0 : index
    %0 = vector.load %arg1[%c0, %c0_0] : memref<16x5184xbf16, #tpu.memory_space<vmem>>, vector<16x5184xbf16>
    %c0_1 = arith.constant 0 : index
    %c0_2 = arith.constant 0 : index
    %1 = vector.load %arg2[%c0_1, %c0_2] : memref<5184x512xbf16, #tpu.memory_space<vmem>>, vector<5184x512xbf16>
    %cst = arith.constant dense<0.000000e+00> : vector<16x512xf32>
    %2 = tpu.matmul %0, %1, %cst {dimension_numbers = #tpu.dot_dimension_numbers<[1], [0], [0], [1], [0, 0, 1, 1], [], []>} : vector<16x5184xbf16>, vector<5184x512xbf16>, vector<16x512xf32> -> vector<16x512xf32>
    %c0_3 = arith.constant 0 : index
    %c0_4 = arith.constant 0 : index
    %3 = vector.load %arg3[%c0_3, %c0_4] : memref<1x512xf32, #tpu.memory_space<vmem>>, vector<1x512xf32>
    %4 = vector.broadcast %3 : vector<1x512xf32> to vector<16x512xf32>
    %5 = arith.addf %2, %4 : vector<16x512xf32>
    %cst_5 = arith.constant 0.000000e+00 : f32
    %6 = vector.broadcast %cst_5 : f32 to vector<16x512xf32>
    %7 = arith.maximumf %5, %6 : vector<16x512xf32>
    %8 = arith.truncf %7 : vector<16x512xf32> to vector<16x512xbf16>
    %c0_6 = arith.constant 0 : index
    %c0_7 = arith.constant 0 : index
    %9 = vector.load %arg4[%c0_6, %c0_7] : memref<512x128xbf16, #tpu.memory_space<vmem>>, vector<512x128xbf16>
    %cst_8 = arith.constant dense<0.000000e+00> : vector<16x128xf32>
    %10 = tpu.matmul %8, %9, %cst_8 {dimension_numbers = #tpu.dot_dimension_numbers<[1], [0], [0], [1], [0, 0, 1, 1], [], []>} : vector<16x512xbf16>, vector<512x128xbf16>, vector<16x128xf32> -> vector<16x128xf32>
    %c0_9 = arith.constant 0 : index
    %c0_10 = arith.constant 0 : index
    %11 = vector.load %arg5[%c0_9, %c0_10] : memref<1x128xf32, #tpu.memory_space<vmem>>, vector<1x128xf32>
    %12 = vector.broadcast %11 : vector<1x128xf32> to vector<16x128xf32>
    %13 = arith.addf %10, %12 : vector<16x128xf32>
    %c0_11 = arith.constant 0 : index
    %c0_12 = arith.constant 0 : index
    %14 = vector.load %arg6[%c0_11, %c0_12] : memref<16x128xf32, #tpu.memory_space<vmem>>, vector<16x128xf32>
    tpu.vector_store %arg6[%c0_11, %c0_12], %13 {strides = array<i32>} : memref<16x128xf32, #tpu.memory_space<vmem>>, vector<16x128xf32>,
    return
  }
  func.func @transform_0(%arg0: i32) -> (i32, i32) {
    %c0_i32 = arith.constant 0 : i32
    %c0_i32_0 = arith.constant 0 : i32
    return %arg0, %c0_i32 : i32, i32
  }
  func.func @transform_1(%arg0: i32) -> (i32, i32) {
    %c0_i32 = arith.constant 0 : i32
    %c0_i32_0 = arith.constant 0 : i32
    %c0_i32_1 = arith.constant 0 : i32
    return %c0_i32, %c0_i32_0 : i32, i32
  }
  func.func @transform_2(%arg0: i32) -> (i32, i32) {
    %c0_i32 = arith.constant 0 : i32
    %c0_i32_0 = arith.constant 0 : i32
    %c0_i32_1 = arith.constant 0 : i32
    return %c0_i32, %c0_i32_0 : i32, i32
  }
  func.func @transform_3(%arg0: i32) -> (i32, i32) {
    %c0_i32 = arith.constant 0 : i32
    %c0_i32_0 = arith.constant 0 : i32
    %c0_i32_1 = arith.constant 0 : i32
    return %c0_i32, %c0_i32_0 : i32, i32
  }
  func.func @transform_4(%arg0: i32) -> (i32, i32) {
    %c0_i32 = arith.constant 0 : i32
    %c0_i32_0 = arith.constant 0 : i32
    %c0_i32_1 = arith.constant 0 : i32
    return %c0_i32, %c0_i32_0 : i32, i32
  }
  func.func @transform_5(%arg0: i32) -> (i32, i32) {
    %c0_i32 = arith.constant 0 : i32
    %c0_i32_0 = arith.constant 0 : i32
    return %arg0, %c0_i32 : i32, i32
  }
}

</mosaic_0001>

<llo_original>
// kernel: dqn_forward.3
$region0: #{dqn_forward.3}
  #allocation0 [shape = 'u32[]', space=smem, size = 0x4, offset = 0x4, fixed_abs, tag = 'smem constant byte address 0x4 - core index']
  #allocation1 [shape = 'u32[72,128]{1,0:T(1,128)}', space=vmem, size = 0x9000, scoped, tag = 'internal scratch']
  #allocation2 [shape = 'f32[800,32]{1,0:T(8,128)}', space=vmem, size = 0x64000, scoped, tag = 'scratch operand']
  #allocation3 [shape = 'f32[1,32]{1,0:T(1,128)}', space=vmem, size = 0x200, scoped, tag = 'scratch operand']
  #allocation4 [shape = 'f32[1,32]{1,0:T(1,128)}', space=vmem, size = 0x200, scoped, tag = 'scratch operand']
  #allocation5 [shape = 'f32[1,32]{1,0:T(1,128)}', space=vmem, size = 0x200, scoped, tag = 'scratch operand']
  #allocation6 [shape = 'f32[1,32]{1,0:T(1,128)}', space=vmem, size = 0x200, scoped, tag = 'scratch operand']
  %s0 = inlined_call_operand.vmem [shape: bf16[800,256], index: 0, kind: input, shape index: {}]
  %s1 = inlined_call_operand.vmem [shape: bf16[256,32], index: 1, kind: input, shape index: {}]
  %s2 = inlined_call_operand.vmem [shape: f32[1,32], index: 2, kind: input, shape index: {}]
  %s3 = inlined_call_operand.vmem [shape: f32[1,32], index: 3, kind: input, shape index: {}]
  %s4 = inlined_call_operand.vmem [shape: bf16[800,32], index: 4, kind: output, shape index: {}]
  %s5 = sld [smem:[#allocation0]]
  $region65: #{dqn_forward.3} parent=0
    _
  %s7 = ssub.s32 1, %s5
  %s8 = scalar_select 0, %s7, %s5
  loop: start=0, step=1, limit=6
  $region2: #{dqn_forward.3} parent=0 // loop_pre_header
    _
  $region3: #{dqn_forward.3} parent=0 // loop_header
    %s10 = sphi 0, %s14
    %p11 = scmp.ge.s32.totalorder %s10, 6
    %s17 = sphi 0, %s29
    %s18 = sphi 0, %s25
    %s19 = sphi 0, %s17
    %s20 = sphi 0, %s18
    %s21 = sphi 0, %s19
    %s22 = sphi 0, %s20
    %s36 = sphi 0, %s38
    %s39 = sphi 0, %s36
    %s40 = sphi 0, %s39
    %s56 = sphi 0, %s40
    %s60 = sphi 0, %s60
    %s62 = sphi 0, %s60
    %s63 = sphi 0, %s62
    %s77 = sphi 0, %s63
    %s81 = sphi 0, %s81
    %s83 = sphi 0, %s81
    %s84 = sphi 0, %s83
    %s98 = sphi 0, %s84
    %s102 = sphi 0, %s102
    %s104 = sphi 0, %s102
    %s105 = sphi 0, %s104
    %s119 = sphi 0, %s105
    %s127 = sphi 0, %s129
    %s130 = sphi 0, %s127
    %s131 = sphi 0, %s130
    %s147 = sphi 0, %s131
  $region4: #{dqn_forward.3} parent=0 // loop_header_branch
    %13 = sbr.rel (%p11) target = $region8
  $region5: #{dqn_forward.3} parent=0 // loop_body
    %s15 = ssub.s32 %s10, 1
    %s16 = ssub.s32 %s10, 2
    %s23 = sadd.s32 1, %s18
    %p24 = scmp.ge.s32.totalorder %s23, 2
    %s25 = scalar_select %p24, 0, %s23
    %s26 = sadd.s32 1, %s17
    %s27 = scalar_select %p24, %s26, %s17
    %p28 = scmp.ge.s32.totalorder %s27, 2
    %s29 = scalar_select %p28, 0, %s27
    %s30 = ssub.s32 1, %s17
    %s31 = smul.u32 %s18, %s30
    %s32 = ssub.s32 1, %s29
    %s33 = smul.u32 %s25, %s32
    %s34 = ssub.s32 %s31, %s33
    %p35 = scmp.eq.s32.totalorder %s34, 0
    %s37 = sadd.s32 %s36, 1
    %s38 = scalar_select %p35, %s36, %s37
    %p41 = pneg %p35
    %p42 = scmp.eq.s32.totalorder %s10, 3
    %p43 = por %p41, %p42
    %p44 = scmp.ne.s32.totalorder %s36, %s39
    %p45 = scmp.eq.s32.totalorder %s10, 0
    %p46 = por %p44, %p45
    %p47 = scmp.ne.s32.totalorder %s36, %s39
    %p48 = scmp.eq.s32.totalorder %s15, 3
    %p49 = por %p47, %p48
    %p50 = scmp.ne.s32.totalorder %s39, %s40
    %p51 = scmp.eq.s32.totalorder %s15, 0
    %p52 = por %p50, %p51
    %p53 = scmp.ne.s32.totalorder %s39, %s40
    %p54 = scmp.eq.s32.totalorder %s16, 3
    %p55 = por %p53, %p54
    %p57 = scmp.ne.s32.totalorder %s40, %s56
    %p58 = scmp.eq.s32.totalorder %s16, 0
    %p59 = por %p57, %p58
    %s61 = sadd.s32 %s60, 1
    %p64 = scmp.eq.s32.totalorder %s10, 3
    %p65 = scmp.ne.s32.totalorder %s60, %s62
    %p66 = scmp.eq.s32.totalorder %s10, 0
    %p67 = por %p65, %p66
    %p68 = scmp.ne.s32.totalorder %s60, %s62
    %p69 = scmp.eq.s32.totalorder %s15, 3
    %p70 = por %p68, %p69
    %p71 = scmp.ne.s32.totalorder %s62, %s63
    %p72 = scmp.eq.s32.totalorder %s15, 0
    %p73 = por %p71, %p72
    %p74 = scmp.ne.s32.totalorder %s62, %s63
    %p75 = scmp.eq.s32.totalorder %s16, 3
    %p76 = por %p74, %p75
    %p78 = scmp.ne.s32.totalorder %s63, %s77
    %p79 = scmp.eq.s32.totalorder %s16, 0
    %p80 = por %p78, %p79
    %s82 = sadd.s32 %s81, 1
    %p85 = scmp.eq.s32.totalorder %s10, 3
    %p86 = scmp.ne.s32.totalorder %s81, %s83
    %p87 = scmp.eq.s32.totalorder %s10, 0
    %p88 = por %p86, %p87
    %p89 = scmp.ne.s32.totalorder %s81, %s83
    %p90 = scmp.eq.s32.totalorder %s15, 3
    %p91 = por %p89, %p90
    %p92 = scmp.ne.s32.totalorder %s83, %s84
    %p93 = scmp.eq.s32.totalorder %s15, 0
    %p94 = por %p92, %p93
    %p95 = scmp.ne.s32.totalorder %s83, %s84
    %p96 = scmp.eq.s32.totalorder %s16, 3
    %p97 = por %p95, %p96
    %p99 = scmp.ne.s32.totalorder %s84, %s98
    %p100 = scmp.eq.s32.totalorder %s16, 0
    %p101 = por %p99, %p100
    %s103 = sadd.s32 %s102, 1
    %p106 = scmp.eq.s32.totalorder %s10, 3
    %p107 = scmp.ne.s32.totalorder %s102, %s104
    %p108 = scmp.eq.s32.totalorder %s10, 0
    %p109 = por %p107, %p108
    %p110 = scmp.ne.s32.totalorder %s102, %s104
    %p111 = scmp.eq.s32.totalorder %s15, 3
    %p112 = por %p110, %p111
    %p113 = scmp.ne.s32.totalorder %s104, %s105
    %p114 = scmp.eq.s32.totalorder %s15, 0
    %p115 = por %p113, %p114
    %p116 = scmp.ne.s32.totalorder %s104, %s105
    %p117 = scmp.eq.s32.totalorder %s16, 3
    %p118 = por %p116, %p117
    %p120 = scmp.ne.s32.totalorder %s105, %s119
    %p121 = scmp.eq.s32.totalorder %s16, 0
    %p122 = por %p120, %p121
    %s123 = smul.u32 %s18, %s17
    %s124 = smul.u32 %s25, %s29
    %s125 = ssub.s32 %s123, %s124
    %p126 = scmp.eq.s32.totalorder %s125, 0
    %s128 = sadd.s32 %s127, 1
    %s129 = scalar_select %p126, %s127, %s128
    %p132 = pneg %p126
    %p133 = scmp.eq.s32.totalorder %s10, 3
    %p134 = por %p132, %p133
    %p135 = scmp.ne.s32.totalorder %s127, %s130
    %p136 = scmp.eq.s32.totalorder %s10, 0
    %p137 = por %p135, %p136
    %p138 = scmp.ne.s32.totalorder %s127, %s130
    %p139 = scmp.eq.s32.totalorder %s15, 3
    %p140 = por %p138, %p139
    %p141 = scmp.ne.s32.totalorder %s130, %s131
    %p142 = scmp.eq.s32.totalorder %s15, 0
    %p143 = por %p141, %p142
    %p144 = scmp.ne.s32.totalorder %s130, %s131
    %p145 = scmp.eq.s32.totalorder %s16, 3
    %p146 = por %p144, %p145
    %p148 = scmp.ne.s32.totalorder %s131, %s147
    %p149 = scmp.eq.s32.totalorder %s16, 0
    %p150 = por %p148, %p149
    %p151 = scmp.le.s32.totalorder 1, %s10
    %p152 = scmp.lt.s32.totalorder %s10, 5
    %p153 = pnand %p151, %p152
    %p154 = pneg %p153
    // Predicated region
    $region9: #{dqn_forward.3} parent=5 // pred_check
      _
    $region10: #{dqn_forward.3} parent=5 // pred_check_branch
      %156 = sbr.rel (%p153) target = $region12
    $region11: #{dqn_forward.3} parent=5 // pred_region
      %s157 = ssub.s32 %s10, 1
      // Predicated region
      $region13: #{dqn_forward.3} parent=11 // pred_check
        %p158 = pneg %p73
      $region14: #{dqn_forward.3} parent=11 // pred_check_branch
        %160 = sbr.rel (%p158) target = $region16
      $region15: #{dqn_forward.3} parent=11 // pred_region
        _
      $region16: #{dqn_forward.3} parent=11 // pred_fallthru
        _
      // Predicated region
      $region17: #{dqn_forward.3} parent=11 // pred_check
        %p161 = pneg %p94
      $region18: #{dqn_forward.3} parent=11 // pred_check_branch
        %163 = sbr.rel (%p161) target = $region20
      $region19: #{dqn_forward.3} parent=11 // pred_region
        _
      $region20: #{dqn_forward.3} parent=11 // pred_fallthru
        _
      // Predicated region
      $region21: #{dqn_forward.3} parent=11 // pred_check
        %p164 = pneg %p115
      $region22: #{dqn_forward.3} parent=11 // pred_check_branch
        %166 = sbr.rel (%p164) target = $region24
      $region23: #{dqn_forward.3} parent=11 // pred_region
        _
      $region24: #{dqn_forward.3} parent=11 // pred_fallthru
        _
    $region12: #{dqn_forward.3} parent=5 // pred_fallthru
      _
    %p167 = scmp.lt.s32.totalorder %s10, 4
    // Predicated region
    $region25: #{dqn_forward.3} parent=5 // pred_check
      %p168 = pneg %p167
    $region26: #{dqn_forward.3} parent=5 // pred_check_branch
      %170 = sbr.rel (%p168) target = $region28
    $region27: #{dqn_forward.3} parent=5 // pred_region
      // Predicated region
      $region29: #{dqn_forward.3} parent=27 // pred_check
        %p171 = pneg %p46
      $region30: #{dqn_forward.3} parent=27 // pred_check_branch
        %173 = sbr.rel (%p171) target = $region32
      $region31: #{dqn_forward.3} parent=27 // pred_region
        %s174 = ssub.s32 1, %s17
        %s175 = smul.u32 %s18, %s174
        %s176 = smul.u32 50, %s175
        %p177 = scmp.lt.s32.totalorder %s176, 99
        %s178 = scalar_select %p177, %s176, 99
        %s179 = smul.addr %s178, 2
        %s180 = smul.addr %s179, 4
        %s181 = scalar_lea.vmem %s0, %s180
        %s182 = ssub.s32 1, %s17
        %s183 = smul.u32 %s18, %s182
        %s184 = smul.u32 50, %s183
      $region32: #{dqn_forward.3} parent=27 // pred_fallthru
        _
    $region28: #{dqn_forward.3} parent=5 // pred_fallthru
      _
    %p185 = scmp.le.s32.totalorder 1, %s10
    %p186 = scmp.lt.s32.totalorder %s10, 5
    %p187 = pnand %p185, %p186
    %p188 = pneg %p187
    // Predicated region
    $region33: #{dqn_forward.3} parent=5 // pred_check
      _
    $region34: #{dqn_forward.3} parent=5 // pred_check_branch
      %190 = sbr.rel (%p187) target = $region36
    $region35: #{dqn_forward.3} parent=5 // pred_region
      %s191 = ssub.s32 %s10, 1
      %s192 = ssub.s32 1, %s19
      %s193 = smul.u32 %s20, %s192
      %s194 = smul.u32 50, %s193
      %p195 = scmp.lt.s32.totalorder %s194, 99
      %s196 = scalar_select %p195, %s194, 99
      %s197 = smul.addr %s196, 2
      %s198 = smul.addr %s197, 4
      %s199 = scalar_lea.vmem %s0, %s198
      %p200 = pneg %p52
      %p201 = pneg %p49
      %p202 = pneg %p73
      %p203 = pneg %p70
      %p204 = pneg %p94
      %p205 = pneg %p91
      %p206 = pneg %p115
      %p207 = pneg %p112
      %p208 = pneg %p143
      %p209 = pneg %p140
      %s210 = smul.u32 %s20, %s19
      %s211 = smul.u32 50, %s210
      %p212 = scmp.lt.s32.totalorder %s211, 99
      %s213 = scalar_select %p212, %s211, 99
      %s214 = smul.addr %s213, 4
      %s215 = scalar_lea.vmem %s4, %s214
      %s216 = ssub.s32 1, %s19
      %s217 = smul.u32 %s20, %s216
      %s218 = smul.u32 50, %s217
      %p219 = scmp.lt.s32.totalorder %s218, 99
      %s220 = scalar_select %p219, %s218, 99
      %s221 = smul.addr %s220, 2
      %s222 = smul.addr %s221, 4
      %s223 = scalar_lea.vmem %s0, %s222
      %s224 = ssub.s32 1, %s19
      %s225 = smul.u32 %s20, %s224
      %s226 = smul.u32 50, %s225
      %s227 = smul.u32 %s20, %s19
      %s228 = smul.u32 50, %s227
      %p229 = scmp.lt.s32.totalorder %s228, 99
      %s230 = scalar_select %p229, %s228, 99
      %s231 = smul.addr %s230, 4
      %s232 = scalar_lea.vmem %s4, %s231
      %s233 = smul.u32 %s20, %s19
      %s234 = smul.u32 50, %s233
      %s235 = smul.u32 %s20, 400
      %p236 = scmp.eq.s32.totalorder %s19, 0
      %p237 = scmp.eq.s32.totalorder %s20, 0
      %p238 = pnand %p236, %p237
      %p239 = pneg %p238
      // Predicated region
      $region37: #{dqn_forward.3} parent=35 // pred_check
        _
      $region38: #{dqn_forward.3} parent=35 // pred_check_branch
        %241 = sbr.rel (%p238) target = $region40
      $region39: #{dqn_forward.3} parent=35 // pred_region
        %vm242 = vcmask 253952
        %243 = vst.msk [vmem:[#allocation3] sm:$0x1] %vm242, 0.0
        %244 = vst.msk [vmem:[#allocation4] sm:$0x1] %vm242, 0.0
      $region40: #{dqn_forward.3} parent=35 // pred_fallthru
        _
      // Predicated region
      $region41: #{dqn_forward.3} parent=35 // pred_check
        %p245 = pneg %p236
      $region42: #{dqn_forward.3} parent=35 // pred_check_branch
        %247 = sbr.rel (%p245) target = $region44
      $region43: #{dqn_forward.3} parent=35 // pred_region
        %v248 = vld [vmem:[%s223] sm:$0xff]
        %v249 = vld [vmem:[%s223 + $0x8] sm:$0xff]
        %v250 = vld [vmem:[%s223 + $0x10] sm:$0xff]
        %v251 = vld [vmem:[%s223 + $0x18] sm:$0xff]
        %v252 = vld [vmem:[%s223 + $0x20] sm:$0xff]
        %v253 = vld [vmem:[%s223 + $0x28] sm:$0xff]
        %v254 = vld [vmem:[%s223 + $0x30] sm:$0xff]
        %v255 = vld [vmem:[%s223 + $0x38] sm:$0xff]
        %v256 = vld [vmem:[%s223 + $0x40] sm:$0xff]
        %v257 = vld [vmem:[%s223 + $0x48] sm:$0xff]
        %v258 = vld [vmem:[%s223 + $0x50] sm:$0xff]
        %v259 = vld [vmem:[%s223 + $0x58] sm:$0xff]
        %v260 = vld [vmem:[%s223 + $0x60] sm:$0xff]
        %v261 = vld [vmem:[%s223 + $0x68] sm:$0xff]
        %v262 = vld [vmem:[%s223 + $0x70] sm:$0xff]
        %v263 = vld [vmem:[%s223 + $0x78] sm:$0xff]
        %v264 = vld [vmem:[%s223 + $0x80] sm:$0xff]
        %v265 = vld [vmem:[%s223 + $0x88] sm:$0xff]
        %v266 = vld [vmem:[%s223 + $0x90] sm:$0xff]
        %v267 = vld [vmem:[%s223 + $0x98] sm:$0xff]
        %v268 = vld [vmem:[%s223 + $0xa0] sm:$0xff]
        %v269 = vld [vmem:[%s223 + $0xa8] sm:$0xff]
        %v270 = vld [vmem:[%s223 + $0xb0] sm:$0xff]
        %v271 = vld [vmem:[%s223 + $0xb8] sm:$0xff]
        %v272 = vld [vmem:[%s223 + $0xc0] sm:$0xff]
        %v273 = vld [vmem:[%s223 + $0xc8] sm:$0xff]
        %v274 = vld [vmem:[%s223 + $0xd0] sm:$0xff]
        %v275 = vld [vmem:[%s223 + $0xd8] sm:$0xff]
        %v276 = vld [vmem:[%s223 + $0xe0] sm:$0xff]
        %v277 = vld [vmem:[%s223 + $0xe8] sm:$0xff]
        %v278 = vld [vmem:[%s223 + $0xf0] sm:$0xff]
        %v279 = vld [vmem:[%s223 + $0xf8] sm:$0xff]
        %v280 = vld [vmem:[%s223 + $0x100] sm:$0xff]
        %v281 = vld [vmem:[%s223 + $0x108] sm:$0xff]
        %v282 = vld [vmem:[%s223 + $0x110] sm:$0xff]
        %v283 = vld [vmem:[%s223 + $0x118] sm:$0xff]
        %v284 = vld [vmem:[%s223 + $0x120] sm:$0xff]
        %v285 = vld [vmem:[%s223 + $0x128] sm:$0xff]
        %v286 = vld [vmem:[%s223 + $0x130] sm:$0xff]
        %v287 = vld [vmem:[%s223 + $0x138] sm:$0xff]
        %v288 = vld [vmem:[%s223 + $0x140] sm:$0xff]
        %v289 = vld [vmem:[%s223 + $0x148] sm:$0xff]
        %v290 = vld [vmem:[%s223 + $0x150] sm:$0xff]
        %v291 = vld [vmem:[%s223 + $0x158] sm:$0xff]
        %v292 = vld [vmem:[%s223 + $0x160] sm:$0xff]
        %v293 = vld [vmem:[%s223 + $0x168] sm:$0xff]
        %v294 = vld [vmem:[%s223 + $0x170] sm:$0xff]
        %v295 = vld [vmem:[%s223 + $0x178] sm:$0xff]
        %v296 = vld [vmem:[%s223 + $0x180] sm:$0xff]
        %v297 = vld [vmem:[%s223 + $0x188] sm:$0xff]
        %v298 = vld [vmem:[%s1] sm:$0xf]
        %v299 = vld [vmem:[%s1 + $0x4] sm:$0xf]
        %v300 = vld [vmem:[%s1 + $0x8] sm:$0xf]
        %v301 = vld [vmem:[%s1 + $0xc] sm:$0xf]
        %v302 = vld [vmem:[%s1 + $0x10] sm:$0xf]
        %v303 = vld [vmem:[%s1 + $0x14] sm:$0xf]
        %v304 = vld [vmem:[%s1 + $0x18] sm:$0xf]
        %v305 = vld [vmem:[%s1 + $0x1c] sm:$0xf]
        %v306 = vld [vmem:[%s1 + $0x20] sm:$0xf]
        %v307 = vld [vmem:[%s1 + $0x24] sm:$0xf]
        %v308 = vld [vmem:[%s1 + $0x28] sm:$0xf]
        %v309 = vld [vmem:[%s1 + $0x2c] sm:$0xf]
        %v310 = vld [vmem:[%s1 + $0x30] sm:$0xf]
        %v311 = vld [vmem:[%s1 + $0x34] sm:$0xf]
        %v312 = vld [vmem:[%s1 + $0x38] sm:$0xf]
        %v313 = vld [vmem:[%s1 + $0x3c] sm:$0xf]
        %v314 = vld [vmem:[%s1 + $0x40] sm:$0xf]
        %v315 = vld [vmem:[%s1 + $0x44] sm:$0xf]
        %v316 = vld [vmem:[%s1 + $0x48] sm:$0xf]
        %v317 = vld [vmem:[%s1 + $0x4c] sm:$0xf]
        %v318 = vld [vmem:[%s1 + $0x50] sm:$0xf]
        %v319 = vld [vmem:[%s1 + $0x54] sm:$0xf]
        %v320 = vld [vmem:[%s1 + $0x58] sm:$0xf]
        %v321 = vld [vmem:[%s1 + $0x5c] sm:$0xf]
        %v322 = vld [vmem:[%s1 + $0x60] sm:$0xf]
        %v323 = vld [vmem:[%s1 + $0x64] sm:$0xf]
        %v324 = vld [vmem:[%s1 + $0x68] sm:$0xf]
        %v325 = vld [vmem:[%s1 + $0x6c] sm:$0xf]
        %v326 = vld [vmem:[%s1 + $0x70] sm:$0xf]
        %v327 = vld [vmem:[%s1 + $0x74] sm:$0xf]
        %v328 = vld [vmem:[%s1 + $0x78] sm:$0xf]
        %v329 = vld [vmem:[%s1 + $0x7c] sm:$0xf]
        %v380 = vunpack.c.l.b16 %v248
        %v381 = vunpack.c.h.b16 %v248
        %v382 = vunpack.c.l.b16 %v249
        %v383 = vunpack.c.h.b16 %v249
        %v384 = vunpack.c.l.b16 %v250
        %v385 = vunpack.c.h.b16 %v250
        %v386 = vunpack.c.l.b16 %v251
        %v387 = vunpack.c.h.b16 %v251
        %v388 = vunpack.c.l.b16 %v252
        %v389 = vunpack.c.h.b16 %v252
        %v390 = vunpack.c.l.b16 %v253
        %v391 = vunpack.c.h.b16 %v253
        %v392 = vunpack.c.l.b16 %v254
        %v393 = vunpack.c.h.b16 %v254
        %v394 = vunpack.c.l.b16 %v255
        %v395 = vunpack.c.h.b16 %v255
        %v396 = vunpack.c.l.b16 %v256
        %v397 = vunpack.c.h.b16 %v256
        %v398 = vunpack.c.l.b16 %v257
        %v399 = vunpack.c.h.b16 %v257
        %v400 = vunpack.c.l.b16 %v258
        %v401 = vunpack.c.h.b16 %v258
        %v402 = vunpack.c.l.b16 %v259
        %v403 = vunpack.c.h.b16 %v259
        %v404 = vunpack.c.l.b16 %v260
        %v405 = vunpack.c.h.b16 %v260
        %v406 = vunpack.c.l.b16 %v261
        %v407 = vunpack.c.h.b16 %v261
        %v408 = vunpack.c.l.b16 %v262
        %v409 = vunpack.c.h.b16 %v262
        %v410 = vunpack.c.l.b16 %v263
        %v411 = vunpack.c.h.b16 %v263
        %v412 = vunpack.c.l.b16 %v264
        %v413 = vunpack.c.h.b16 %v264
        %v414 = vunpack.c.l.b16 %v265
        %v415 = vunpack.c.h.b16 %v265
        %v416 = vunpack.c.l.b16 %v266
        %v417 = vunpack.c.h.b16 %v266
        %v418 = vunpack.c.l.b16 %v267
        %v419 = vunpack.c.h.b16 %v267
        %v420 = vunpack.c.l.b16 %v268
        %v421 = vunpack.c.h.b16 %v268
        %v422 = vunpack.c.l.b16 %v269
        %v423 = vunpack.c.h.b16 %v269
        %v424 = vunpack.c.l.b16 %v270
        %v425 = vunpack.c.h.b16 %v270
        %v426 = vunpack.c.l.b16 %v271
        %v427 = vunpack.c.h.b16 %v271
        %v428 = vunpack.c.l.b16 %v272
        %v429 = vunpack.c.h.b16 %v272
        %v430 = vunpack.c.l.b16 %v273
        %v431 = vunpack.c.h.b16 %v273
        %v432 = vunpack.c.l.b16 %v274
        %v433 = vunpack.c.h.b16 %v274
        %v434 = vunpack.c.l.b16 %v275
        %v435 = vunpack.c.h.b16 %v275
        %v436 = vunpack.c.l.b16 %v276
        %v437 = vunpack.c.h.b16 %v276
        %v438 = vunpack.c.l.b16 %v277
        %v439 = vunpack.c.h.b16 %v277
        %v440 = vunpack.c.l.b16 %v278
        %v441 = vunpack.c.h.b16 %v278
        %v442 = vunpack.c.l.b16 %v279
        %v443 = vunpack.c.h.b16 %v279
        %v444 = vunpack.c.l.b16 %v280
        %v445 = vunpack.c.h.b16 %v280
        %v446 = vunpack.c.l.b16 %v281
        %v447 = vunpack.c.h.b16 %v281
        %v448 = vunpack.c.l.b16 %v282
        %v449 = vunpack.c.h.b16 %v282
        %v450 = vunpack.c.l.b16 %v283
        %v451 = vunpack.c.h.b16 %v283
        %v452 = vunpack.c.l.b16 %v284
        %v453 = vunpack.c.h.b16 %v284
        %v454 = vunpack.c.l.b16 %v285
        %v455 = vunpack.c.h.b16 %v285
        %v456 = vunpack.c.l.b16 %v286
        %v457 = vunpack.c.h.b16 %v286
        %v458 = vunpack.c.l.b16 %v287
        %v459 = vunpack.c.h.b16 %v287
        %v460 = vunpack.c.l.b16 %v288
        %v461 = vunpack.c.h.b16 %v288
        %v462 = vunpack.c.l.b16 %v289
        %v463 = vunpack.c.h.b16 %v289
        %v464 = vunpack.c.l.b16 %v290
        %v465 = vunpack.c.h.b16 %v290
        %v466 = vunpack.c.l.b16 %v291
        %v467 = vunpack.c.h.b16 %v291
        %v468 = vunpack.c.l.b16 %v292
        %v469 = vunpack.c.h.b16 %v292
        %v470 = vunpack.c.l.b16 %v293
        %v471 = vunpack.c.h.b16 %v293
        %v472 = vunpack.c.l.b16 %v294
        %v473 = vunpack.c.h.b16 %v294
        %v474 = vunpack.c.l.b16 %v295
        %v475 = vunpack.c.h.b16 %v295
        %v476 = vunpack.c.l.b16 %v296
        %v477 = vunpack.c.h.b16 %v296
        %v478 = vunpack.c.l.b16 %v297
        %v479 = vunpack.c.h.b16 %v297
        %v480 = vpack.c.b16 %v382, %v380
        %v481 = vpack.c.b16 %v383, %v381
        %v482 = vpack.c.b16 %v386, %v384
        %v483 = vpack.c.b16 %v387, %v385
        %v484 = vpack.c.b16 %v390, %v388
        %v485 = vpack.c.b16 %v391, %v389
        %v486 = vpack.c.b16 %v394, %v392
        %v487 = vpack.c.b16 %v395, %v393
        %v488 = vpack.c.b16 %v398, %v396
        %v489 = vpack.c.b16 %v399, %v397
        %v490 = vpack.c.b16 %v402, %v400
        %v491 = vpack.c.b16 %v403, %v401
        %v492 = vpack.c.b16 %v406, %v404
        %v493 = vpack.c.b16 %v407, %v405
        %v494 = vpack.c.b16 %v410, %v408
        %v495 = vpack.c.b16 %v411, %v409
        %v496 = vpack.c.b16 %v414, %v412
        %v497 = vpack.c.b16 %v415, %v413
        %v498 = vpack.c.b16 %v418, %v416
        %v499 = vpack.c.b16 %v419, %v417
        %v500 = vpack.c.b16 %v422, %v420
        %v501 = vpack.c.b16 %v423, %v421
        %v502 = vpack.c.b16 %v426, %v424
        %v503 = vpack.c.b16 %v427, %v425
        %v504 = vpack.c.b16 %v430, %v428
        %v505 = vpack.c.b16 %v431, %v429
        %v506 = vpack.c.b16 %v434, %v432
        %v507 = vpack.c.b16 %v435, %v433
        %v508 = vpack.c.b16 %v438, %v436
        %v509 = vpack.c.b16 %v439, %v437
        %v510 = vpack.c.b16 %v442, %v440
        %v511 = vpack.c.b16 %v443, %v441
        %v512 = vpack.c.b16 %v446, %v444
        %v513 = vpack.c.b16 %v447, %v445
        %v514 = vpack.c.b16 %v450, %v448
        %v515 = vpack.c.b16 %v451, %v449
        %v516 = vpack.c.b16 %v454, %v452
        %v517 = vpack.c.b16 %v455, %v453
        %v518 = vpack.c.b16 %v458, %v456
        %v519 = vpack.c.b16 %v459, %v457
        %v520 = vpack.c.b16 %v462, %v460
        %v521 = vpack.c.b16 %v463, %v461
        %v522 = vpack.c.b16 %v466, %v464
        %v523 = vpack.c.b16 %v467, %v465
        %v524 = vpack.c.b16 %v470, %v468
        %v525 = vpack.c.b16 %v471, %v469
        %v526 = vpack.c.b16 %v474, %v472
        %v527 = vpack.c.b16 %v475, %v473
        %v528 = vpack.c.b16 %v478, %v476
        %v529 = vpack.c.b16 %v479, %v477
        %v612 = vunpack.c.l.b16 %v298
        %v613 = vunpack.c.l.b16 %v299
        %v614 = vunpack.c.l.b16 %v300
        %v615 = vunpack.c.l.b16 %v301
        %v616 = vunpack.c.l.b16 %v302
        %v617 = vunpack.c.l.b16 %v303
        %v618 = vunpack.c.l.b16 %v304
        %v619 = vunpack.c.l.b16 %v305
        %v620 = vunpack.c.l.b16 %v306
        %v621 = vunpack.c.l.b16 %v307
        %v622 = vunpack.c.l.b16 %v308
        %v623 = vunpack.c.l.b16 %v309
        %v624 = vunpack.c.l.b16 %v310
        %v625 = vunpack.c.l.b16 %v311
        %v626 = vunpack.c.l.b16 %v312
        %v627 = vunpack.c.l.b16 %v313
        %v628 = vunpack.c.l.b16 %v314
        %v629 = vunpack.c.l.b16 %v315
        %v630 = vunpack.c.l.b16 %v316
        %v631 = vunpack.c.l.b16 %v317
        %v632 = vunpack.c.l.b16 %v318
        %v633 = vunpack.c.l.b16 %v319
        %v634 = vunpack.c.l.b16 %v320
        %v635 = vunpack.c.l.b16 %v321
        %v636 = vunpack.c.l.b16 %v322
        %v637 = vunpack.c.l.b16 %v323
        %v638 = vunpack.c.l.b16 %v324
        %v639 = vunpack.c.l.b16 %v325
        %v640 = vunpack.c.l.b16 %v326
        %v641 = vunpack.c.l.b16 %v327
        %v642 = vunpack.c.l.b16 %v328
        %v643 = vunpack.c.l.b16 %v329
        %v644 = vpack.c.b16 %v613, %v612
        %v645 = vpack.c.b16 %v615, %v614
        %v646 = vpack.c.b16 %v617, %v616
        %v647 = vpack.c.b16 %v619, %v618
        %v648 = vpack.c.b16 %v621, %v620
        %v649 = vpack.c.b16 %v623, %v622
        %v650 = vpack.c.b16 %v625, %v624
        %v651 = vpack.c.b16 %v627, %v626
        %v652 = vpack.c.b16 %v629, %v628
        %v653 = vpack.c.b16 %v631, %v630
        %v654 = vpack.c.b16 %v633, %v632
        %v655 = vpack.c.b16 %v635, %v634
        %v656 = vpack.c.b16 %v637, %v636
        %v657 = vpack.c.b16 %v639, %v638
        %v658 = vpack.c.b16 %v641, %v640
        %v659 = vpack.c.b16 %v643, %v642
        %676 = vmatpush.bf16.msra.mxu0 %v651
        %677 = vmatpush.bf16.msra.mxu0 %v650
        %678 = vmatpush.bf16.msra.mxu0 %v649
        %679 = vmatpush.bf16.msra.mxu0 %v648
        %680 = vmatpush.bf16.msra.mxu0 %v647
        %681 = vmatpush.bf16.msra.mxu0 %v646
        %682 = vmatpush.bf16.msra.mxu0 %v645
        %683 = vmatpush.bf16.msra.mxu0 %v644
        %684 = vmatmul.bf16.gmra.mxu0 %v480
        %v685 = vpop.f32.mrf.mxu0
        %v686 = vadd.f32 0.0, %v685
        %v687 = vpop.f32.mrf.mxu0
        %v688 = vadd.f32 0.0, %v687
        %689 = vmatmul.bf16.gmra.mxu0 %v482
        %v690 = vpop.f32.mrf.mxu0
        %v691 = vadd.f32 0.0, %v690
        %v692 = vpop.f32.mrf.mxu0
        %v693 = vadd.f32 0.0, %v692
        %694 = vmatmul.bf16.gmra.mxu0 %v484
        %v695 = vpop.f32.mrf.mxu0
        %v696 = vadd.f32 0.0, %v695
        %v697 = vpop.f32.mrf.mxu0
        %v698 = vadd.f32 0.0, %v697
        %699 = vmatmul.bf16.gmra.mxu0 %v486
        %v700 = vpop.f32.mrf.mxu0
        %v701 = vadd.f32 0.0, %v700
        %v702 = vpop.f32.mrf.mxu0
        %v703 = vadd.f32 0.0, %v702
        %704 = vmatmul.bf16.gmra.mxu0 %v488
        %v705 = vpop.f32.mrf.mxu0
        %v706 = vadd.f32 0.0, %v705
        %v707 = vpop.f32.mrf.mxu0
        %v708 = vadd.f32 0.0, %v707
        %709 = vmatmul.bf16.gmra.mxu0 %v490
        %v710 = vpop.f32.mrf.mxu0
        %v711 = vadd.f32 0.0, %v710
        %v712 = vpop.f32.mrf.mxu0
        %v713 = vadd.f32 0.0, %v712
        %714 = vmatmul.bf16.gmra.mxu0 %v492
        %v715 = vpop.f32.mrf.mxu0
        %v716 = vadd.f32 0.0, %v715
        %v717 = vpop.f32.mrf.mxu0
        %v718 = vadd.f32 0.0, %v717
        %719 = vmatmul.bf16.gmra.mxu0 %v494
        %v720 = vpop.f32.mrf.mxu0
        %v721 = vadd.f32 0.0, %v720
        %v722 = vpop.f32.mrf.mxu0
        %v723 = vadd.f32 0.0, %v722
        %724 = vmatmul.bf16.gmra.mxu0 %v496
        %v725 = vpop.f32.mrf.mxu0
        %v726 = vadd.f32 0.0, %v725
        %v727 = vpop.f32.mrf.mxu0
        %v728 = vadd.f32 0.0, %v727
        %729 = vmatmul.bf16.gmra.mxu0 %v498
        %v730 = vpop.f32.mrf.mxu0
        %v731 = vadd.f32 0.0, %v730
        %v732 = vpop.f32.mrf.mxu0
        %v733 = vadd.f32 0.0, %v732
        %734 = vmatmul.bf16.gmra.mxu0 %v500
        %v735 = vpop.f32.mrf.mxu0
        %v736 = vadd.f32 0.0, %v735
        %v737 = vpop.f32.mrf.mxu0
        %v738 = vadd.f32 0.0, %v737
        %739 = vmatmul.bf16.gmra.mxu0 %v502
        %v740 = vpop.f32.mrf.mxu0
        %v741 = vadd.f32 0.0, %v740
        %v742 = vpop.f32.mrf.mxu0
        %v743 = vadd.f32 0.0, %v742
        %744 = vmatmul.bf16.gmra.mxu0 %v504
        %v745 = vpop.f32.mrf.mxu0
        %v746 = vadd.f32 0.0, %v745
        %v747 = vpop.f32.mrf.mxu0
        %v748 = vadd.f32 0.0, %v747
        %749 = vmatmul.bf16.gmra.mxu0 %v506
        %v750 = vpop.f32.mrf.mxu0
        %v751 = vadd.f32 0.0, %v750
        %v752 = vpop.f32.mrf.mxu0
        %v753 = vadd.f32 0.0, %v752
        %754 = vmatmul.bf16.gmra.mxu0 %v508
        %v755 = vpop.f32.mrf.mxu0
        %v756 = vadd.f32 0.0, %v755
        %v757 = vpop.f32.mrf.mxu0
        %v758 = vadd.f32 0.0, %v757
        %759 = vmatmul.bf16.gmra.mxu0 %v510
        %v760 = vpop.f32.mrf.mxu0
        %v761 = vadd.f32 0.0, %v760
        %v762 = vpop.f32.mrf.mxu0
        %v763 = vadd.f32 0.0, %v762
        %764 = vmatmul.bf16.gmra.mxu0 %v512
        %v765 = vpop.f32.mrf.mxu0
        %v766 = vadd.f32 0.0, %v765
        %v767 = vpop.f32.mrf.mxu0
        %v768 = vadd.f32 0.0, %v767
        %769 = vmatmul.bf16.gmra.mxu0 %v514
        %v770 = vpop.f32.mrf.mxu0
        %v771 = vadd.f32 0.0, %v770
        %v772 = vpop.f32.mrf.mxu0
        %v773 = vadd.f32 0.0, %v772
        %774 = vmatmul.bf16.gmra.mxu0 %v516
        %v775 = vpop.f32.mrf.mxu0
        %v776 = vadd.f32 0.0, %v775
        %v777 = vpop.f32.mrf.mxu0
        %v778 = vadd.f32 0.0, %v777
        %779 = vmatmul.bf16.gmra.mxu0 %v518
        %v780 = vpop.f32.mrf.mxu0
        %v781 = vadd.f32 0.0, %v780
        %v782 = vpop.f32.mrf.mxu0
        %v783 = vadd.f32 0.0, %v782
        %784 = vmatmul.bf16.gmra.mxu0 %v520
        %v785 = vpop.f32.mrf.mxu0
        %v786 = vadd.f32 0.0, %v785
        %v787 = vpop.f32.mrf.mxu0
        %v788 = vadd.f32 0.0, %v787
        %789 = vmatmul.bf16.gmra.mxu0 %v522
        %v790 = vpop.f32.mrf.mxu0
        %v791 = vadd.f32 0.0, %v790
        %v792 = vpop.f32.mrf.mxu0
        %v793 = vadd.f32 0.0, %v792
        %794 = vmatmul.bf16.gmra.mxu0 %v524
        %v795 = vpop.f32.mrf.mxu0
        %v796 = vadd.f32 0.0, %v795
        %v797 = vpop.f32.mrf.mxu0
        %v798 = vadd.f32 0.0, %v797
        %799 = vmatmul.bf16.gmra.mxu0 %v526
        %v800 = vpop.f32.mrf.mxu0
        %v801 = vadd.f32 0.0, %v800
        %v802 = vpop.f32.mrf.mxu0
        %v803 = vadd.f32 0.0, %v802
        %804 = vmatmul.bf16.gmra.mxu0 %v528
        %v805 = vpop.f32.mrf.mxu0
        %v806 = vadd.f32 0.0, %v805
        %v807 = vpop.f32.mrf.mxu0
        %v808 = vadd.f32 0.0, %v807
        %809 = vdwg.mxu0
        %810 = vmatpush.bf16.msra.mxu0 %v659
        %811 = vmatpush.bf16.msra.mxu0 %v658
        %812 = vmatpush.bf16.msra.mxu0 %v657
        %813 = vmatpush.bf16.msra.mxu0 %v656
        %814 = vmatpush.bf16.msra.mxu0 %v655
        %815 = vmatpush.bf16.msra.mxu0 %v654
        %816 = vmatpush.bf16.msra.mxu0 %v653
        %817 = vmatpush.bf16.msra.mxu0 %v652
        %818 = vmatmul.bf16.gmra.mxu0 %v481
        %v819 = vpop.f32.mrf.mxu0
        %v820 = vadd.f32 %v686, %v819
        %v821 = vpop.f32.mrf.mxu0
        %v822 = vadd.f32 %v688, %v821
        %823 = vmatmul.bf16.gmra.mxu0 %v483
        %v824 = vpop.f32.mrf.mxu0
        %v825 = vadd.f32 %v691, %v824
        %v826 = vpop.f32.mrf.mxu0
        %v827 = vadd.f32 %v693, %v826
        %828 = vmatmul.bf16.gmra.mxu0 %v485
        %v829 = vpop.f32.mrf.mxu0
        %v830 = vadd.f32 %v696, %v829
        %v831 = vpop.f32.mrf.mxu0
        %v832 = vadd.f32 %v698, %v831
        %833 = vmatmul.bf16.gmra.mxu0 %v487
        %v834 = vpop.f32.mrf.mxu0
        %v835 = vadd.f32 %v701, %v834
        %v836 = vpop.f32.mrf.mxu0
        %v837 = vadd.f32 %v703, %v836
        %838 = vmatmul.bf16.gmra.mxu0 %v489
        %v839 = vpop.f32.mrf.mxu0
        %v840 = vadd.f32 %v706, %v839
        %v841 = vpop.f32.mrf.mxu0
        %v842 = vadd.f32 %v708, %v841
        %843 = vmatmul.bf16.gmra.mxu0 %v491
        %v844 = vpop.f32.mrf.mxu0
        %v845 = vadd.f32 %v711, %v844
        %v846 = vpop.f32.mrf.mxu0
        %v847 = vadd.f32 %v713, %v846
        %848 = vmatmul.bf16.gmra.mxu0 %v493
        %v849 = vpop.f32.mrf.mxu0
        %v850 = vadd.f32 %v716, %v849
        %v851 = vpop.f32.mrf.mxu0
        %v852 = vadd.f32 %v718, %v851
        %853 = vmatmul.bf16.gmra.mxu0 %v495
        %v854 = vpop.f32.mrf.mxu0
        %v855 = vadd.f32 %v721, %v854
        %v856 = vpop.f32.mrf.mxu0
        %v857 = vadd.f32 %v723, %v856
        %858 = vmatmul.bf16.gmra.mxu0 %v497
        %v859 = vpop.f32.mrf.mxu0
        %v860 = vadd.f32 %v726, %v859
        %v861 = vpop.f32.mrf.mxu0
        %v862 = vadd.f32 %v728, %v861
        %863 = vmatmul.bf16.gmra.mxu0 %v499
        %v864 = vpop.f32.mrf.mxu0
        %v865 = vadd.f32 %v731, %v864
        %v866 = vpop.f32.mrf.mxu0
        %v867 = vadd.f32 %v733, %v866
        %868 = vmatmul.bf16.gmra.mxu0 %v501
        %v869 = vpop.f32.mrf.mxu0
        %v870 = vadd.f32 %v736, %v869
        %v871 = vpop.f32.mrf.mxu0
        %v872 = vadd.f32 %v738, %v871
        %873 = vmatmul.bf16.gmra.mxu0 %v503
        %v874 = vpop.f32.mrf.mxu0
        %v875 = vadd.f32 %v741, %v874
        %v876 = vpop.f32.mrf.mxu0
        %v877 = vadd.f32 %v743, %v876
        %878 = vmatmul.bf16.gmra.mxu0 %v505
        %v879 = vpop.f32.mrf.mxu0
        %v880 = vadd.f32 %v746, %v879
        %v881 = vpop.f32.mrf.mxu0
        %v882 = vadd.f32 %v748, %v881
        %883 = vmatmul.bf16.gmra.mxu0 %v507
        %v884 = vpop.f32.mrf.mxu0
        %v885 = vadd.f32 %v751, %v884
        %v886 = vpop.f32.mrf.mxu0
        %v887 = vadd.f32 %v753, %v886
        %888 = vmatmul.bf16.gmra.mxu0 %v509
        %v889 = vpop.f32.mrf.mxu0
        %v890 = vadd.f32 %v756, %v889
        %v891 = vpop.f32.mrf.mxu0
        %v892 = vadd.f32 %v758, %v891
        %893 = vmatmul.bf16.gmra.mxu0 %v511
        %v894 = vpop.f32.mrf.mxu0
        %v895 = vadd.f32 %v761, %v894
        %v896 = vpop.f32.mrf.mxu0
        %v897 = vadd.f32 %v763, %v896
        %898 = vmatmul.bf16.gmra.mxu0 %v513
        %v899 = vpop.f32.mrf.mxu0
        %v900 = vadd.f32 %v766, %v899
        %v901 = vpop.f32.mrf.mxu0
        %v902 = vadd.f32 %v768, %v901
        %903 = vmatmul.bf16.gmra.mxu0 %v515
        %v904 = vpop.f32.mrf.mxu0
        %v905 = vadd.f32 %v771, %v904
        %v906 = vpop.f32.mrf.mxu0
        %v907 = vadd.f32 %v773, %v906
        %908 = vmatmul.bf16.gmra.mxu0 %v517
        %v909 = vpop.f32.mrf.mxu0
        %v910 = vadd.f32 %v776, %v909
        %v911 = vpop.f32.mrf.mxu0
        %v912 = vadd.f32 %v778, %v911
        %913 = vmatmul.bf16.gmra.mxu0 %v519
        %v914 = vpop.f32.mrf.mxu0
        %v915 = vadd.f32 %v781, %v914
        %v916 = vpop.f32.mrf.mxu0
        %v917 = vadd.f32 %v783, %v916
        %918 = vmatmul.bf16.gmra.mxu0 %v521
        %v919 = vpop.f32.mrf.mxu0
        %v920 = vadd.f32 %v786, %v919
        %v921 = vpop.f32.mrf.mxu0
        %v922 = vadd.f32 %v788, %v921
        %923 = vmatmul.bf16.gmra.mxu0 %v523
        %v924 = vpop.f32.mrf.mxu0
        %v925 = vadd.f32 %v791, %v924
        %v926 = vpop.f32.mrf.mxu0
        %v927 = vadd.f32 %v793, %v926
        %928 = vmatmul.bf16.gmra.mxu0 %v525
        %v929 = vpop.f32.mrf.mxu0
        %v930 = vadd.f32 %v796, %v929
        %v931 = vpop.f32.mrf.mxu0
        %v932 = vadd.f32 %v798, %v931
        %933 = vmatmul.bf16.gmra.mxu0 %v527
        %v934 = vpop.f32.mrf.mxu0
        %v935 = vadd.f32 %v801, %v934
        %v936 = vpop.f32.mrf.mxu0
        %v937 = vadd.f32 %v803, %v936
        %938 = vmatmul.bf16.gmra.mxu0 %v529
        %v939 = vpop.f32.mrf.mxu0
        %v940 = vadd.f32 %v806, %v939
        %v941 = vpop.f32.mrf.mxu0
        %v942 = vadd.f32 %v808, %v941
        %943 = vdwg.mxu0
        %s944 = scalar_lea.vmem [#allocation2], %s235
        %vm945 = vcmask 261120
        %946 = vst.msk [vmem:[%s944] sm:$0xff] %vm945, %v820
        %947 = vst.msk [vmem:[%s944 + $0x8] sm:$0xff] %vm945, %v822
        %948 = vst.msk [vmem:[%s944 + $0x10] sm:$0xff] %vm945, %v825
        %949 = vst.msk [vmem:[%s944 + $0x18] sm:$0xff] %vm945, %v827
        %950 = vst.msk [vmem:[%s944 + $0x20] sm:$0xff] %vm945, %v830
        %951 = vst.msk [vmem:[%s944 + $0x28] sm:$0xff] %vm945, %v832
        %952 = vst.msk [vmem:[%s944 + $0x30] sm:$0xff] %vm945, %v835
        %953 = vst.msk [vmem:[%s944 + $0x38] sm:$0xff] %vm945, %v837
        %954 = vst.msk [vmem:[%s944 + $0x40] sm:$0xff] %vm945, %v840
        %955 = vst.msk [vmem:[%s944 + $0x48] sm:$0xff] %vm945, %v842
        %956 = vst.msk [vmem:[%s944 + $0x50] sm:$0xff] %vm945, %v845
        %957 = vst.msk [vmem:[%s944 + $0x58] sm:$0xff] %vm945, %v847
        %958 = vst.msk [vmem:[%s944 + $0x60] sm:$0xff] %vm945, %v850
        %959 = vst.msk [vmem:[%s944 + $0x68] sm:$0xff] %vm945, %v852
        %960 = vst.msk [vmem:[%s944 + $0x70] sm:$0xff] %vm945, %v855
        %961 = vst.msk [vmem:[%s944 + $0x78] sm:$0xff] %vm945, %v857
        %962 = vst.msk [vmem:[%s944 + $0x80] sm:$0xff] %vm945, %v860
        %963 = vst.msk [vmem:[%s944 + $0x88] sm:$0xff] %vm945, %v862
        %964 = vst.msk [vmem:[%s944 + $0x90] sm:$0xff] %vm945, %v865
        %965 = vst.msk [vmem:[%s944 + $0x98] sm:$0xff] %vm945, %v867
        %966 = vst.msk [vmem:[%s944 + $0xa0] sm:$0xff] %vm945, %v870
        %967 = vst.msk [vmem:[%s944 + $0xa8] sm:$0xff] %vm945, %v872
        %968 = vst.msk [vmem:[%s944 + $0xb0] sm:$0xff] %vm945, %v875
        %969 = vst.msk [vmem:[%s944 + $0xb8] sm:$0xff] %vm945, %v877
        %970 = vst.msk [vmem:[%s944 + $0xc0] sm:$0xff] %vm945, %v880
        %971 = vst.msk [vmem:[%s944 + $0xc8] sm:$0xff] %vm945, %v882
        %972 = vst.msk [vmem:[%s944 + $0xd0] sm:$0xff] %vm945, %v885
        %973 = vst.msk [vmem:[%s944 + $0xd8] sm:$0xff] %vm945, %v887
        %974 = vst.msk [vmem:[%s944 + $0xe0] sm:$0xff] %vm945, %v890
        %975 = vst.msk [vmem:[%s944 + $0xe8] sm:$0xff] %vm945, %v892
        %976 = vst.msk [vmem:[%s944 + $0xf0] sm:$0xff] %vm945, %v895
        %977 = vst.msk [vmem:[%s944 + $0xf8] sm:$0xff] %vm945, %v897
        %978 = vst.msk [vmem:[%s944 + $0x100] sm:$0xff] %vm945, %v900
        %979 = vst.msk [vmem:[%s944 + $0x108] sm:$0xff] %vm945, %v902
        %980 = vst.msk [vmem:[%s944 + $0x110] sm:$0xff] %vm945, %v905
        %981 = vst.msk [vmem:[%s944 + $0x118] sm:$0xff] %vm945, %v907
        %982 = vst.msk [vmem:[%s944 + $0x120] sm:$0xff] %vm945, %v910
        %983 = vst.msk [vmem:[%s944 + $0x128] sm:$0xff] %vm945, %v912
        %984 = vst.msk [vmem:[%s944 + $0x130] sm:$0xff] %vm945, %v915
        %985 = vst.msk [vmem:[%s944 + $0x138] sm:$0xff] %vm945, %v917
        %986 = vst.msk [vmem:[%s944 + $0x140] sm:$0xff] %vm945, %v920
        %987 = vst.msk [vmem:[%s944 + $0x148] sm:$0xff] %vm945, %v922
        %988 = vst.msk [vmem:[%s944 + $0x150] sm:$0xff] %vm945, %v925
        %989 = vst.msk [vmem:[%s944 + $0x158] sm:$0xff] %vm945, %v927
        %990 = vst.msk [vmem:[%s944 + $0x160] sm:$0xff] %vm945, %v930
        %991 = vst.msk [vmem:[%s944 + $0x168] sm:$0xff] %vm945, %v932
        %992 = vst.msk [vmem:[%s944 + $0x170] sm:$0xff] %vm945, %v935
        %993 = vst.msk [vmem:[%s944 + $0x178] sm:$0xff] %vm945, %v937
        %994 = vst.msk [vmem:[%s944 + $0x180] sm:$0xff] %vm945, %v940
        %995 = vst.msk [vmem:[%s944 + $0x188] sm:$0xff] %vm945, %v942
        %v996 = vld [vmem:[#allocation3] sm:$0x1]
        %v997 = vsel %vm945, %v820, 0.0
        %v998 = vsel %vm945, %v822, 0.0
        %v999 = vadd.f32 %v997, %v998
        %v1000 = vsel %vm945, %v825, 0.0
        %v1001 = vadd.f32 %v999, %v1000
        %v1002 = vsel %vm945, %v827, 0.0
        %v1003 = vadd.f32 %v1001, %v1002
        %v1004 = vsel %vm945, %v830, 0.0
        %v1005 = vadd.f32 %v1003, %v1004
        %v1006 = vsel %vm945, %v832, 0.0
        %v1007 = vadd.f32 %v1005, %v1006
        %v1008 = vsel %vm945, %v835, 0.0
        %v1009 = vadd.f32 %v1007, %v1008
        %v1010 = vsel %vm945, %v837, 0.0
        %v1011 = vadd.f32 %v1009, %v1010
        %v1012 = vsel %vm945, %v840, 0.0
        %v1013 = vadd.f32 %v1011, %v1012
        %v1014 = vsel %vm945, %v842, 0.0
        %v1015 = vadd.f32 %v1013, %v1014
        %v1016 = vsel %vm945, %v845, 0.0
        %v1017 = vadd.f32 %v1015, %v1016
        %v1018 = vsel %vm945, %v847, 0.0
        %v1019 = vadd.f32 %v1017, %v1018
        %v1020 = vsel %vm945, %v850, 0.0
        %v1021 = vadd.f32 %v1019, %v1020
        %v1022 = vsel %vm945, %v852, 0.0
        %v1023 = vadd.f32 %v1021, %v1022
        %v1024 = vsel %vm945, %v855, 0.0
        %v1025 = vadd.f32 %v1023, %v1024
        %v1026 = vsel %vm945, %v857, 0.0
        %v1027 = vadd.f32 %v1025, %v1026
        %v1028 = vsel %vm945, %v860, 0.0
        %v1029 = vadd.f32 %v1027, %v1028
        %v1030 = vsel %vm945, %v862, 0.0
        %v1031 = vadd.f32 %v1029, %v1030
        %v1032 = vsel %vm945, %v865, 0.0
        %v1033 = vadd.f32 %v1031, %v1032
        %v1034 = vsel %vm945, %v867, 0.0
        %v1035 = vadd.f32 %v1033, %v1034
        %v1036 = vsel %vm945, %v870, 0.0
        %v1037 = vadd.f32 %v1035, %v1036
        %v1038 = vsel %vm945, %v872, 0.0
        %v1039 = vadd.f32 %v1037, %v1038
        %v1040 = vsel %vm945, %v875, 0.0
        %v1041 = vadd.f32 %v1039, %v1040
        %v1042 = vsel %vm945, %v877, 0.0
        %v1043 = vadd.f32 %v1041, %v1042
        %v1044 = vsel %vm945, %v880, 0.0
        %v1045 = vadd.f32 %v1043, %v1044
        %v1046 = vsel %vm945, %v882, 0.0
        %v1047 = vadd.f32 %v1045, %v1046
        %v1048 = vsel %vm945, %v885, 0.0
        %v1049 = vadd.f32 %v1047, %v1048
        %v1050 = vsel %vm945, %v887, 0.0
        %v1051 = vadd.f32 %v1049, %v1050
        %v1052 = vsel %vm945, %v890, 0.0
        %v1053 = vadd.f32 %v1051, %v1052
        %v1054 = vsel %vm945, %v892, 0.0
        %v1055 = vadd.f32 %v1053, %v1054
        %v1056 = vsel %vm945, %v895, 0.0
        %v1057 = vadd.f32 %v1055, %v1056
        %v1058 = vsel %vm945, %v897, 0.0
        %v1059 = vadd.f32 %v1057, %v1058
        %v1060 = vsel %vm945, %v900, 0.0
        %v1061 = vadd.f32 %v1059, %v1060
        %v1062 = vsel %vm945, %v902, 0.0
        %v1063 = vadd.f32 %v1061, %v1062
        %v1064 = vsel %vm945, %v905, 0.0
        %v1065 = vadd.f32 %v1063, %v1064
        %v1066 = vsel %vm945, %v907, 0.0
        %v1067 = vadd.f32 %v1065, %v1066
        %v1068 = vsel %vm945, %v910, 0.0
        %v1069 = vadd.f32 %v1067, %v1068
        %v1070 = vsel %vm945, %v912, 0.0
        %v1071 = vadd.f32 %v1069, %v1070
        %v1072 = vsel %vm945, %v915, 0.0
        %v1073 = vadd.f32 %v1071, %v1072
        %v1074 = vsel %vm945, %v917, 0.0
        %v1075 = vadd.f32 %v1073, %v1074
        %v1076 = vsel %vm945, %v920, 0.0
        %v1077 = vadd.f32 %v1075, %v1076
        %v1078 = vsel %vm945, %v922, 0.0
        %v1079 = vadd.f32 %v1077, %v1078
        %v1080 = vsel %vm945, %v925, 0.0
        %v1081 = vadd.f32 %v1079, %v1080
        %v1082 = vsel %vm945, %v927, 0.0
        %v1083 = vadd.f32 %v1081, %v1082
        %v1084 = vsel %vm945, %v930, 0.0
        %v1085 = vadd.f32 %v1083, %v1084
        %v1086 = vsel %vm945, %v932, 0.0
        %v1087 = vadd.f32 %v1085, %v1086
        %v1088 = vsel %vm945, %v935, 0.0
        %v1089 = vadd.f32 %v1087, %v1088
        %v1090 = vsel %vm945, %v937, 0.0
        %v1091 = vadd.f32 %v1089, %v1090
        %v1092 = vsel %vm945, %v940, 0.0
        %v1093 = vadd.f32 %v1091, %v1092
        %v1094 = vsel %vm945, %v942, 0.0
        %v1095 = vadd.f32 %v1093, %v1094
        %v1096 = vrot.slane %v1095, 4
        %v1097 = vadd.f32 %v1095, %v1096
        %v1098 = vrot.slane %v1097, 2
        %v1099 = vadd.f32 %v1097, %v1098
        %v1100 = vrot.slane %v1099, 1
        %v1101 = vadd.f32 %v1099, %v1100
        %v1102 = vadd.f32 %v996, %v1101
        %vm1103 = vcmask 253952
        %1104 = vst.msk [vmem:[#allocation3] sm:$0x1] %vm1103, %v1102
        %v1105 = vld [vmem:[#allocation4] sm:$0x1]
        %v1106 = vmul.f32 %v820, %v820
        %v1107 = vmul.f32 %v822, %v822
        %v1108 = vmul.f32 %v825, %v825
        %v1109 = vmul.f32 %v827, %v827
        %v1110 = vmul.f32 %v830, %v830
        %v1111 = vmul.f32 %v832, %v832
        %v1112 = vmul.f32 %v835, %v835
        %v1113 = vmul.f32 %v837, %v837
        %v1114 = vmul.f32 %v840, %v840
        %v1115 = vmul.f32 %v842, %v842
        %v1116 = vmul.f32 %v845, %v845
        %v1117 = vmul.f32 %v847, %v847
        %v1118 = vmul.f32 %v850, %v850
        %v1119 = vmul.f32 %v852, %v852
        %v1120 = vmul.f32 %v855, %v855
        %v1121 = vmul.f32 %v857, %v857
        %v1122 = vmul.f32 %v860, %v860
        %v1123 = vmul.f32 %v862, %v862
        %v1124 = vmul.f32 %v865, %v865
        %v1125 = vmul.f32 %v867, %v867
        %v1126 = vmul.f32 %v870, %v870
        %v1127 = vmul.f32 %v872, %v872
        %v1128 = vmul.f32 %v875, %v875
        %v1129 = vmul.f32 %v877, %v877
        %v1130 = vmul.f32 %v880, %v880
        %v1131 = vmul.f32 %v882, %v882
        %v1132 = vmul.f32 %v885, %v885
        %v1133 = vmul.f32 %v887, %v887
        %v1134 = vmul.f32 %v890, %v890
        %v1135 = vmul.f32 %v892, %v892
        %v1136 = vmul.f32 %v895, %v895
        %v1137 = vmul.f32 %v897, %v897
        %v1138 = vmul.f32 %v900, %v900
        %v1139 = vmul.f32 %v902, %v902
        %v1140 = vmul.f32 %v905, %v905
        %v1141 = vmul.f32 %v907, %v907
        %v1142 = vmul.f32 %v910, %v910
        %v1143 = vmul.f32 %v912, %v912
        %v1144 = vmul.f32 %v915, %v915
        %v1145 = vmul.f32 %v917, %v917
        %v1146 = vmul.f32 %v920, %v920
        %v1147 = vmul.f32 %v922, %v922
        %v1148 = vmul.f32 %v925, %v925
        %v1149 = vmul.f32 %v927, %v927
        %v1150 = vmul.f32 %v930, %v930
        %v1151 = vmul.f32 %v932, %v932
        %v1152 = vmul.f32 %v935, %v935
        %v1153 = vmul.f32 %v937, %v937
        %v1154 = vmul.f32 %v940, %v940
        %v1155 = vmul.f32 %v942, %v942
        %v1156 = vsel %vm945, %v1106, 0.0
        %v1157 = vsel %vm945, %v1107, 0.0
        %v1158 = vadd.f32 %v1156, %v1157
        %v1159 = vsel %vm945, %v1108, 0.0
        %v1160 = vadd.f32 %v1158, %v1159
        %v1161 = vsel %vm945, %v1109, 0.0
        %v1162 = vadd.f32 %v1160, %v1161
        %v1163 = vsel %vm945, %v1110, 0.0
        %v1164 = vadd.f32 %v1162, %v1163
        %v1165 = vsel %vm945, %v1111, 0.0
        %v1166 = vadd.f32 %v1164, %v1165
        %v1167 = vsel %vm945, %v1112, 0.0
        %v1168 = vadd.f32 %v1166, %v1167
        %v1169 = vsel %vm945, %v1113, 0.0
        %v1170 = vadd.f32 %v1168, %v1169
        %v1171 = vsel %vm945, %v1114, 0.0
        %v1172 = vadd.f32 %v1170, %v1171
        %v1173 = vsel %vm945, %v1115, 0.0
        %v1174 = vadd.f32 %v1172, %v1173
        %v1175 = vsel %vm945, %v1116, 0.0
        %v1176 = vadd.f32 %v1174, %v1175
        %v1177 = vsel %vm945, %v1117, 0.0
        %v1178 = vadd.f32 %v1176, %v1177
        %v1179 = vsel %vm945, %v1118, 0.0
        %v1180 = vadd.f32 %v1178, %v1179
        %v1181 = vsel %vm945, %v1119, 0.0
        %v1182 = vadd.f32 %v1180, %v1181
        %v1183 = vsel %vm945, %v1120, 0.0
        %v1184 = vadd.f32 %v1182, %v1183
        %v1185 = vsel %vm945, %v1121, 0.0
        %v1186 = vadd.f32 %v1184, %v1185
        %v1187 = vsel %vm945, %v1122, 0.0
        %v1188 = vadd.f32 %v1186, %v1187
        %v1189 = vsel %vm945, %v1123, 0.0
        %v1190 = vadd.f32 %v1188, %v1189
        %v1191 = vsel %vm945, %v1124, 0.0
        %v1192 = vadd.f32 %v1190, %v1191
        %v1193 = vsel %vm945, %v1125, 0.0
        %v1194 = vadd.f32 %v1192, %v1193
        %v1195 = vsel %vm945, %v1126, 0.0
        %v1196 = vadd.f32 %v1194, %v1195
        %v1197 = vsel %vm945, %v1127, 0.0
        %v1198 = vadd.f32 %v1196, %v1197
        %v1199 = vsel %vm945, %v1128, 0.0
        %v1200 = vadd.f32 %v1198, %v1199
        %v1201 = vsel %vm945, %v1129, 0.0
        %v1202 = vadd.f32 %v1200, %v1201
        %v1203 = vsel %vm945, %v1130, 0.0
        %v1204 = vadd.f32 %v1202, %v1203
        %v1205 = vsel %vm945, %v1131, 0.0
        %v1206 = vadd.f32 %v1204, %v1205
        %v1207 = vsel %vm945, %v1132, 0.0
        %v1208 = vadd.f32 %v1206, %v1207
        %v1209 = vsel %vm945, %v1133, 0.0
        %v1210 = vadd.f32 %v1208, %v1209
        %v1211 = vsel %vm945, %v1134, 0.0
        %v1212 = vadd.f32 %v1210, %v1211
        %v1213 = vsel %vm945, %v1135, 0.0
        %v1214 = vadd.f32 %v1212, %v1213
        %v1215 = vsel %vm945, %v1136, 0.0
        %v1216 = vadd.f32 %v1214, %v1215
        %v1217 = vsel %vm945, %v1137, 0.0
        %v1218 = vadd.f32 %v1216, %v1217
        %v1219 = vsel %vm945, %v1138, 0.0
        %v1220 = vadd.f32 %v1218, %v1219
        %v1221 = vsel %vm945, %v1139, 0.0
        %v1222 = vadd.f32 %v1220, %v1221
        %v1223 = vsel %vm945, %v1140, 0.0
        %v1224 = vadd.f32 %v1222, %v1223
        %v1225 = vsel %vm945, %v1141, 0.0
        %v1226 = vadd.f32 %v1224, %v1225
        %v1227 = vsel %vm945, %v1142, 0.0
        %v1228 = vadd.f32 %v1226, %v1227
        %v1229 = vsel %vm945, %v1143, 0.0
        %v1230 = vadd.f32 %v1228, %v1229
        %v1231 = vsel %vm945, %v1144, 0.0
        %v1232 = vadd.f32 %v1230, %v1231
        %v1233 = vsel %vm945, %v1145, 0.0
        %v1234 = vadd.f32 %v1232, %v1233
        %v1235 = vsel %vm945, %v1146, 0.0
        %v1236 = vadd.f32 %v1234, %v1235
        %v1237 = vsel %vm945, %v1147, 0.0
        %v1238 = vadd.f32 %v1236, %v1237
        %v1239 = vsel %vm945, %v1148, 0.0
        %v1240 = vadd.f32 %v1238, %v1239
        %v1241 = vsel %vm945, %v1149, 0.0
        %v1242 = vadd.f32 %v1240, %v1241
        %v1243 = vsel %vm945, %v1150, 0.0
        %v1244 = vadd.f32 %v1242, %v1243
        %v1245 = vsel %vm945, %v1151, 0.0
        %v1246 = vadd.f32 %v1244, %v1245
        %v1247 = vsel %vm945, %v1152, 0.0
        %v1248 = vadd.f32 %v1246, %v1247
        %v1249 = vsel %vm945, %v1153, 0.0
        %v1250 = vadd.f32 %v1248, %v1249
        %v1251 = vsel %vm945, %v1154, 0.0
        %v1252 = vadd.f32 %v1250, %v1251
        %v1253 = vsel %vm945, %v1155, 0.0
        %v1254 = vadd.f32 %v1252, %v1253
        %v1255 = vrot.slane %v1254, 4
        %v1256 = vadd.f32 %v1254, %v1255
        %v1257 = vrot.slane %v1256, 2
        %v1258 = vadd.f32 %v1256, %v1257
        %v1259 = vrot.slane %v1258, 1
        %v1260 = vadd.f32 %v1258, %v1259
        %v1261 = vadd.f32 %v1105, %v1260
        %1262 = vst.msk [vmem:[#allocation4] sm:$0x1] %vm1103, %v1261
      $region44: #{dqn_forward.3} parent=35 // pred_fallthru
        _
      %p1263 = scmp.eq.s32.totalorder %s19, 1
      %p1264 = pnand %p1263, %p237
      %p1265 = pneg %p1264
      // Predicated region
      $region45: #{dqn_forward.3} parent=35 // pred_check
        _
      $region46: #{dqn_forward.3} parent=35 // pred_check_branch
        %1267 = sbr.rel (%p1264) target = $region48
      $region47: #{dqn_forward.3} parent=35 // pred_region
        %v1268 = vld [vmem:[#allocation3] sm:$0x1]
        %v1269 = vrcp.pop 800.0
        %v1270 = vmul.f32 800.0, %v1269
        %v1271 = vsub.f32 1.0, %v1270
        %v1272 = vmul.f32 %v1269, %v1271
        %v1273 = vadd.f32 %v1269, %v1272
        %vm1274 = vweird.f32 %v1269
        %v1275 = vsel %vm1274, %v1269, %v1273
        %v1276 = vmul.f32 %v1268, %v1275
        %v1277 = vld [vmem:[#allocation4] sm:$0x1]
        %v1278 = vmul.f32 %v1277, %v1275
        %v1279 = vmul.f32 %v1276, %v1276
        %v1280 = vsub.f32 %v1278, %v1279
        %v1281 = vld [vmem:[%s2] sm:$0x1]
        %v1282 = vadd.f32 %v1280, 1e-05
        %v1283 = vrsqrt.pop %v1282
        %v1284 = vmul.f32 %v1283, %v1282
        %v1285 = vmul.f32 %v1284, %v1283
        %v1286 = vmul.f32 0.5, %v1285
        %v1287 = vsub.f32 1.5, %v1286
        %v1288 = vmul.f32 %v1283, %v1287
        %vm1289 = vweird.f32 %v1282
        %vm1290 = vweird.f32 %v1283
        %vm1291 = vmor %vm1289, %vm1290
        %v1292 = vsel %vm1291, %v1283, %v1288
        %v1293 = vmul.f32 %v1281, %v1292
        %vm1294 = vcmask 253952
        %1295 = vst.msk [vmem:[#allocation5] sm:$0x1] %vm1294, %v1293
        %v1296 = vld [vmem:[%s3] sm:$0x1]
        %v1297 = vmul.f32 %v1276, %v1293
        %v1298 = vsub.f32 %v1296, %v1297
        %1299 = vst.msk [vmem:[#allocation6] sm:$0x1] %vm1294, %v1298
      $region48: #{dqn_forward.3} parent=35 // pred_fallthru
        _
      // Predicated region
      $region49: #{dqn_forward.3} parent=35 // pred_check
        %p1300 = pneg %p1263
      $region50: #{dqn_forward.3} parent=35 // pred_check_branch
        %1302 = sbr.rel (%p1300) target = $region52
      $region51: #{dqn_forward.3} parent=35 // pred_region
        %s1303 = scalar_lea.vmem [#allocation2], %s235
        %v1304 = vld [vmem:[%s1303] sm:$0xff]
        %v1305 = vld [vmem:[%s1303 + $0x8] sm:$0xff]
        %v1306 = vld [vmem:[%s1303 + $0x10] sm:$0xff]
        %v1307 = vld [vmem:[%s1303 + $0x18] sm:$0xff]
        %v1308 = vld [vmem:[%s1303 + $0x20] sm:$0xff]
        %v1309 = vld [vmem:[%s1303 + $0x28] sm:$0xff]
        %v1310 = vld [vmem:[%s1303 + $0x30] sm:$0xff]
        %v1311 = vld [vmem:[%s1303 + $0x38] sm:$0xff]
        %v1312 = vld [vmem:[%s1303 + $0x40] sm:$0xff]
        %v1313 = vld [vmem:[%s1303 + $0x48] sm:$0xff]
        %v1314 = vld [vmem:[%s1303 + $0x50] sm:$0xff]
        %v1315 = vld [vmem:[%s1303 + $0x58] sm:$0xff]
        %v1316 = vld [vmem:[%s1303 + $0x60] sm:$0xff]
        %v1317 = vld [vmem:[%s1303 + $0x68] sm:$0xff]
        %v1318 = vld [vmem:[%s1303 + $0x70] sm:$0xff]
        %v1319 = vld [vmem:[%s1303 + $0x78] sm:$0xff]
        %v1320 = vld [vmem:[%s1303 + $0x80] sm:$0xff]
        %v1321 = vld [vmem:[%s1303 + $0x88] sm:$0xff]
        %v1322 = vld [vmem:[%s1303 + $0x90] sm:$0xff]
        %v1323 = vld [vmem:[%s1303 + $0x98] sm:$0xff]
        %v1324 = vld [vmem:[%s1303 + $0xa0] sm:$0xff]
        %v1325 = vld [vmem:[%s1303 + $0xa8] sm:$0xff]
        %v1326 = vld [vmem:[%s1303 + $0xb0] sm:$0xff]
        %v1327 = vld [vmem:[%s1303 + $0xb8] sm:$0xff]
        %v1328 = vld [vmem:[%s1303 + $0xc0] sm:$0xff]
        %v1329 = vld [vmem:[%s1303 + $0xc8] sm:$0xff]
        %v1330 = vld [vmem:[%s1303 + $0xd0] sm:$0xff]
        %v1331 = vld [vmem:[%s1303 + $0xd8] sm:$0xff]
        %v1332 = vld [vmem:[%s1303 + $0xe0] sm:$0xff]
        %v1333 = vld [vmem:[%s1303 + $0xe8] sm:$0xff]
        %v1334 = vld [vmem:[%s1303 + $0xf0] sm:$0xff]
        %v1335 = vld [vmem:[%s1303 + $0xf8] sm:$0xff]
        %v1336 = vld [vmem:[%s1303 + $0x100] sm:$0xff]
        %v1337 = vld [vmem:[%s1303 + $0x108] sm:$0xff]
        %v1338 = vld [vmem:[%s1303 + $0x110] sm:$0xff]
        %v1339 = vld [vmem:[%s1303 + $0x118] sm:$0xff]
        %v1340 = vld [vmem:[%s1303 + $0x120] sm:$0xff]
        %v1341 = vld [vmem:[%s1303 + $0x128] sm:$0xff]
        %v1342 = vld [vmem:[%s1303 + $0x130] sm:$0xff]
        %v1343 = vld [vmem:[%s1303 + $0x138] sm:$0xff]
        %v1344 = vld [vmem:[%s1303 + $0x140] sm:$0xff]
        %v1345 = vld [vmem:[%s1303 + $0x148] sm:$0xff]
        %v1346 = vld [vmem:[%s1303 + $0x150] sm:$0xff]
        %v1347 = vld [vmem:[%s1303 + $0x158] sm:$0xff]
        %v1348 = vld [vmem:[%s1303 + $0x160] sm:$0xff]
        %v1349 = vld [vmem:[%s1303 + $0x168] sm:$0xff]
        %v1350 = vld [vmem:[%s1303 + $0x170] sm:$0xff]
        %v1351 = vld [vmem:[%s1303 + $0x178] sm:$0xff]
        %v1352 = vld [vmem:[%s1303 + $0x180] sm:$0xff]
        %v1353 = vld [vmem:[%s1303 + $0x188] sm:$0xff]
        %v1354 = vld [vmem:[#allocation5] sm:$0x1]
        %v1356 = vperm.slane %v1354, 0
        %v1358 = vmul.f32 %v1304, %v1356
        %v1359 = vmul.f32 %v1305, %v1356
        %v1360 = vmul.f32 %v1306, %v1356
        %v1361 = vmul.f32 %v1307, %v1356
        %v1362 = vmul.f32 %v1308, %v1356
        %v1363 = vmul.f32 %v1309, %v1356
        %v1364 = vmul.f32 %v1310, %v1356
        %v1365 = vmul.f32 %v1311, %v1356
        %v1366 = vmul.f32 %v1312, %v1356
        %v1367 = vmul.f32 %v1313, %v1356
        %v1368 = vmul.f32 %v1314, %v1356
        %v1369 = vmul.f32 %v1315, %v1356
        %v1370 = vmul.f32 %v1316, %v1356
        %v1371 = vmul.f32 %v1317, %v1356
        %v1372 = vmul.f32 %v1318, %v1356
        %v1373 = vmul.f32 %v1319, %v1356
        %v1374 = vmul.f32 %v1320, %v1356
        %v1375 = vmul.f32 %v1321, %v1356
        %v1376 = vmul.f32 %v1322, %v1356
        %v1377 = vmul.f32 %v1323, %v1356
        %v1378 = vmul.f32 %v1324, %v1356
        %v1379 = vmul.f32 %v1325, %v1356
        %v1380 = vmul.f32 %v1326, %v1356
        %v1381 = vmul.f32 %v1327, %v1356
        %v1382 = vmul.f32 %v1328, %v1356
        %v1383 = vmul.f32 %v1329, %v1356
        %v1384 = vmul.f32 %v1330, %v1356
        %v1385 = vmul.f32 %v1331, %v1356
        %v1386 = vmul.f32 %v1332, %v1356
        %v1387 = vmul.f32 %v1333, %v1356
        %v1388 = vmul.f32 %v1334, %v1356
        %v1389 = vmul.f32 %v1335, %v1356
        %v1390 = vmul.f32 %v1336, %v1356
        %v1391 = vmul.f32 %v1337, %v1356
        %v1392 = vmul.f32 %v1338, %v1356
        %v1393 = vmul.f32 %v1339, %v1356
        %v1394 = vmul.f32 %v1340, %v1356
        %v1395 = vmul.f32 %v1341, %v1356
        %v1396 = vmul.f32 %v1342, %v1356
        %v1397 = vmul.f32 %v1343, %v1356
        %v1398 = vmul.f32 %v1344, %v1356
        %v1399 = vmul.f32 %v1345, %v1356
        %v1400 = vmul.f32 %v1346, %v1356
        %v1401 = vmul.f32 %v1347, %v1356
        %v1402 = vmul.f32 %v1348, %v1356
        %v1403 = vmul.f32 %v1349, %v1356
        %v1404 = vmul.f32 %v1350, %v1356
        %v1405 = vmul.f32 %v1351, %v1356
        %v1406 = vmul.f32 %v1352, %v1356
        %v1407 = vmul.f32 %v1353, %v1356
        %v1408 = vld [vmem:[#allocation6] sm:$0x1]
        %v1410 = vperm.slane %v1408, 0
        %v1412 = vadd.f32 %v1358, %v1410
        %v1413 = vadd.f32 %v1359, %v1410
        %v1414 = vadd.f32 %v1360, %v1410
        %v1415 = vadd.f32 %v1361, %v1410
        %v1416 = vadd.f32 %v1362, %v1410
        %v1417 = vadd.f32 %v1363, %v1410
        %v1418 = vadd.f32 %v1364, %v1410
        %v1419 = vadd.f32 %v1365, %v1410
        %v1420 = vadd.f32 %v1366, %v1410
        %v1421 = vadd.f32 %v1367, %v1410
        %v1422 = vadd.f32 %v1368, %v1410
        %v1423 = vadd.f32 %v1369, %v1410
        %v1424 = vadd.f32 %v1370, %v1410
        %v1425 = vadd.f32 %v1371, %v1410
        %v1426 = vadd.f32 %v1372, %v1410
        %v1427 = vadd.f32 %v1373, %v1410
        %v1428 = vadd.f32 %v1374, %v1410
        %v1429 = vadd.f32 %v1375, %v1410
        %v1430 = vadd.f32 %v1376, %v1410
        %v1431 = vadd.f32 %v1377, %v1410
        %v1432 = vadd.f32 %v1378, %v1410
        %v1433 = vadd.f32 %v1379, %v1410
        %v1434 = vadd.f32 %v1380, %v1410
        %v1435 = vadd.f32 %v1381, %v1410
        %v1436 = vadd.f32 %v1382, %v1410
        %v1437 = vadd.f32 %v1383, %v1410
        %v1438 = vadd.f32 %v1384, %v1410
        %v1439 = vadd.f32 %v1385, %v1410
        %v1440 = vadd.f32 %v1386, %v1410
        %v1441 = vadd.f32 %v1387, %v1410
        %v1442 = vadd.f32 %v1388, %v1410
        %v1443 = vadd.f32 %v1389, %v1410
        %v1444 = vadd.f32 %v1390, %v1410
        %v1445 = vadd.f32 %v1391, %v1410
        %v1446 = vadd.f32 %v1392, %v1410
        %v1447 = vadd.f32 %v1393, %v1410
        %v1448 = vadd.f32 %v1394, %v1410
        %v1449 = vadd.f32 %v1395, %v1410
        %v1450 = vadd.f32 %v1396, %v1410
        %v1451 = vadd.f32 %v1397, %v1410
        %v1452 = vadd.f32 %v1398, %v1410
        %v1453 = vadd.f32 %v1399, %v1410
        %v1454 = vadd.f32 %v1400, %v1410
        %v1455 = vadd.f32 %v1401, %v1410
        %v1456 = vadd.f32 %v1402, %v1410
        %v1457 = vadd.f32 %v1403, %v1410
        %v1458 = vadd.f32 %v1404, %v1410
        %v1459 = vadd.f32 %v1405, %v1410
        %v1460 = vadd.f32 %v1406, %v1410
        %v1461 = vadd.f32 %v1407, %v1410
        %v1462 = vmax.f32 %v1412, 0.0
        %v1463 = vmax.f32 %v1413, 0.0
        %v1464 = vmax.f32 %v1414, 0.0
        %v1465 = vmax.f32 %v1415, 0.0
        %v1466 = vmax.f32 %v1416, 0.0
        %v1467 = vmax.f32 %v1417, 0.0
        %v1468 = vmax.f32 %v1418, 0.0
        %v1469 = vmax.f32 %v1419, 0.0
        %v1470 = vmax.f32 %v1420, 0.0
        %v1471 = vmax.f32 %v1421, 0.0
        %v1472 = vmax.f32 %v1422, 0.0
        %v1473 = vmax.f32 %v1423, 0.0
        %v1474 = vmax.f32 %v1424, 0.0
        %v1475 = vmax.f32 %v1425, 0.0
        %v1476 = vmax.f32 %v1426, 0.0
        %v1477 = vmax.f32 %v1427, 0.0
        %v1478 = vmax.f32 %v1428, 0.0
        %v1479 = vmax.f32 %v1429, 0.0
        %v1480 = vmax.f32 %v1430, 0.0
        %v1481 = vmax.f32 %v1431, 0.0
        %v1482 = vmax.f32 %v1432, 0.0
        %v1483 = vmax.f32 %v1433, 0.0
        %v1484 = vmax.f32 %v1434, 0.0
        %v1485 = vmax.f32 %v1435, 0.0
        %v1486 = vmax.f32 %v1436, 0.0
        %v1487 = vmax.f32 %v1437, 0.0
        %v1488 = vmax.f32 %v1438, 0.0
        %v1489 = vmax.f32 %v1439, 0.0
        %v1490 = vmax.f32 %v1440, 0.0
        %v1491 = vmax.f32 %v1441, 0.0
        %v1492 = vmax.f32 %v1442, 0.0
        %v1493 = vmax.f32 %v1443, 0.0
        %v1494 = vmax.f32 %v1444, 0.0
        %v1495 = vmax.f32 %v1445, 0.0
        %v1496 = vmax.f32 %v1446, 0.0
        %v1497 = vmax.f32 %v1447, 0.0
        %v1498 = vmax.f32 %v1448, 0.0
        %v1499 = vmax.f32 %v1449, 0.0
        %v1500 = vmax.f32 %v1450, 0.0
        %v1501 = vmax.f32 %v1451, 0.0
        %v1502 = vmax.f32 %v1452, 0.0
        %v1503 = vmax.f32 %v1453, 0.0
        %v1504 = vmax.f32 %v1454, 0.0
        %v1505 = vmax.f32 %v1455, 0.0
        %v1506 = vmax.f32 %v1456, 0.0
        %v1507 = vmax.f32 %v1457, 0.0
        %v1508 = vmax.f32 %v1458, 0.0
        %v1509 = vmax.f32 %v1459, 0.0
        %v1510 = vmax.f32 %v1460, 0.0
        %v1511 = vmax.f32 %v1461, 0.0
        %v1512 = vpack.c.bf16 %v1462, %v1462
        %v1513 = vpack.c.bf16 %v1463, %v1463
        %v1514 = vpack.c.bf16 %v1464, %v1464
        %v1515 = vpack.c.bf16 %v1465, %v1465
        %v1516 = vpack.c.bf16 %v1466, %v1466
        %v1517 = vpack.c.bf16 %v1467, %v1467
        %v1518 = vpack.c.bf16 %v1468, %v1468
        %v1519 = vpack.c.bf16 %v1469, %v1469
        %v1520 = vpack.c.bf16 %v1470, %v1470
        %v1521 = vpack.c.bf16 %v1471, %v1471
        %v1522 = vpack.c.bf16 %v1472, %v1472
        %v1523 = vpack.c.bf16 %v1473, %v1473
        %v1524 = vpack.c.bf16 %v1474, %v1474
        %v1525 = vpack.c.bf16 %v1475, %v1475
        %v1526 = vpack.c.bf16 %v1476, %v1476
        %v1527 = vpack.c.bf16 %v1477, %v1477
        %v1528 = vpack.c.bf16 %v1478, %v1478
        %v1529 = vpack.c.bf16 %v1479, %v1479
        %v1530 = vpack.c.bf16 %v1480, %v1480
        %v1531 = vpack.c.bf16 %v1481, %v1481
        %v1532 = vpack.c.bf16 %v1482, %v1482
        %v1533 = vpack.c.bf16 %v1483, %v1483
        %v1534 = vpack.c.bf16 %v1484, %v1484
        %v1535 = vpack.c.bf16 %v1485, %v1485
        %v1536 = vpack.c.bf16 %v1486, %v1486
        %v1537 = vpack.c.bf16 %v1487, %v1487
        %v1538 = vpack.c.bf16 %v1488, %v1488
        %v1539 = vpack.c.bf16 %v1489, %v1489
        %v1540 = vpack.c.bf16 %v1490, %v1490
        %v1541 = vpack.c.bf16 %v1491, %v1491
        %v1542 = vpack.c.bf16 %v1492, %v1492
        %v1543 = vpack.c.bf16 %v1493, %v1493
        %v1544 = vpack.c.bf16 %v1494, %v1494
        %v1545 = vpack.c.bf16 %v1495, %v1495
        %v1546 = vpack.c.bf16 %v1496, %v1496
        %v1547 = vpack.c.bf16 %v1497, %v1497
        %v1548 = vpack.c.bf16 %v1498, %v1498
        %v1549 = vpack.c.bf16 %v1499, %v1499
        %v1550 = vpack.c.bf16 %v1500, %v1500
        %v1551 = vpack.c.bf16 %v1501, %v1501
        %v1552 = vpack.c.bf16 %v1502, %v1502
        %v1553 = vpack.c.bf16 %v1503, %v1503
        %v1554 = vpack.c.bf16 %v1504, %v1504
        %v1555 = vpack.c.bf16 %v1505, %v1505
        %v1556 = vpack.c.bf16 %v1506, %v1506
        %v1557 = vpack.c.bf16 %v1507, %v1507
        %v1558 = vpack.c.bf16 %v1508, %v1508
        %v1559 = vpack.c.bf16 %v1509, %v1509
        %v1560 = vpack.c.bf16 %v1510, %v1510
        %v1561 = vpack.c.bf16 %v1511, %v1511
        %vm1562 = vcmask 257024
        %1563 = vst.msk [vmem:[%s232] sm:$0xf] %vm1562, %v1512
        %1564 = vst.msk [vmem:[%s232 + $0x4] sm:$0xf] %vm1562, %v1513
        %1565 = vst.msk [vmem:[%s232 + $0x8] sm:$0xf] %vm1562, %v1514
        %1566 = vst.msk [vmem:[%s232 + $0xc] sm:$0xf] %vm1562, %v1515
        %1567 = vst.msk [vmem:[%s232 + $0x10] sm:$0xf] %vm1562, %v1516
        %1568 = vst.msk [vmem:[%s232 + $0x14] sm:$0xf] %vm1562, %v1517
        %1569 = vst.msk [vmem:[%s232 + $0x18] sm:$0xf] %vm1562, %v1518
        %1570 = vst.msk [vmem:[%s232 + $0x1c] sm:$0xf] %vm1562, %v1519
        %1571 = vst.msk [vmem:[%s232 + $0x20] sm:$0xf] %vm1562, %v1520
        %1572 = vst.msk [vmem:[%s232 + $0x24] sm:$0xf] %vm1562, %v1521
        %1573 = vst.msk [vmem:[%s232 + $0x28] sm:$0xf] %vm1562, %v1522
        %1574 = vst.msk [vmem:[%s232 + $0x2c] sm:$0xf] %vm1562, %v1523
        %1575 = vst.msk [vmem:[%s232 + $0x30] sm:$0xf] %vm1562, %v1524
        %1576 = vst.msk [vmem:[%s232 + $0x34] sm:$0xf] %vm1562, %v1525
        %1577 = vst.msk [vmem:[%s232 + $0x38] sm:$0xf] %vm1562, %v1526
        %1578 = vst.msk [vmem:[%s232 + $0x3c] sm:$0xf] %vm1562, %v1527
        %1579 = vst.msk [vmem:[%s232 + $0x40] sm:$0xf] %vm1562, %v1528
        %1580 = vst.msk [vmem:[%s232 + $0x44] sm:$0xf] %vm1562, %v1529
        %1581 = vst.msk [vmem:[%s232 + $0x48] sm:$0xf] %vm1562, %v1530
        %1582 = vst.msk [vmem:[%s232 + $0x4c] sm:$0xf] %vm1562, %v1531
        %1583 = vst.msk [vmem:[%s232 + $0x50] sm:$0xf] %vm1562, %v1532
        %1584 = vst.msk [vmem:[%s232 + $0x54] sm:$0xf] %vm1562, %v1533
        %1585 = vst.msk [vmem:[%s232 + $0x58] sm:$0xf] %vm1562, %v1534
        %1586 = vst.msk [vmem:[%s232 + $0x5c] sm:$0xf] %vm1562, %v1535
        %1587 = vst.msk [vmem:[%s232 + $0x60] sm:$0xf] %vm1562, %v1536
        %1588 = vst.msk [vmem:[%s232 + $0x64] sm:$0xf] %vm1562, %v1537
        %1589 = vst.msk [vmem:[%s232 + $0x68] sm:$0xf] %vm1562, %v1538
        %1590 = vst.msk [vmem:[%s232 + $0x6c] sm:$0xf] %vm1562, %v1539
        %1591 = vst.msk [vmem:[%s232 + $0x70] sm:$0xf] %vm1562, %v1540
        %1592 = vst.msk [vmem:[%s232 + $0x74] sm:$0xf] %vm1562, %v1541
        %1593 = vst.msk [vmem:[%s232 + $0x78] sm:$0xf] %vm1562, %v1542
        %1594 = vst.msk [vmem:[%s232 + $0x7c] sm:$0xf] %vm1562, %v1543
        %1595 = vst.msk [vmem:[%s232 + $0x80] sm:$0xf] %vm1562, %v1544
        %1596 = vst.msk [vmem:[%s232 + $0x84] sm:$0xf] %vm1562, %v1545
        %1597 = vst.msk [vmem:[%s232 + $0x88] sm:$0xf] %vm1562, %v1546
        %1598 = vst.msk [vmem:[%s232 + $0x8c] sm:$0xf] %vm1562, %v1547
        %1599 = vst.msk [vmem:[%s232 + $0x90] sm:$0xf] %vm1562, %v1548
        %1600 = vst.msk [vmem:[%s232 + $0x94] sm:$0xf] %vm1562, %v1549
        %1601 = vst.msk [vmem:[%s232 + $0x98] sm:$0xf] %vm1562, %v1550
        %1602 = vst.msk [vmem:[%s232 + $0x9c] sm:$0xf] %vm1562, %v1551
        %1603 = vst.msk [vmem:[%s232 + $0xa0] sm:$0xf] %vm1562, %v1552
        %1604 = vst.msk [vmem:[%s232 + $0xa4] sm:$0xf] %vm1562, %v1553
        %1605 = vst.msk [vmem:[%s232 + $0xa8] sm:$0xf] %vm1562, %v1554
        %1606 = vst.msk [vmem:[%s232 + $0xac] sm:$0xf] %vm1562, %v1555
        %1607 = vst.msk [vmem:[%s232 + $0xb0] sm:$0xf] %vm1562, %v1556
        %1608 = vst.msk [vmem:[%s232 + $0xb4] sm:$0xf] %vm1562, %v1557
        %1609 = vst.msk [vmem:[%s232 + $0xb8] sm:$0xf] %vm1562, %v1558
        %1610 = vst.msk [vmem:[%s232 + $0xbc] sm:$0xf] %vm1562, %v1559
        %1611 = vst.msk [vmem:[%s232 + $0xc0] sm:$0xf] %vm1562, %v1560
        %1612 = vst.msk [vmem:[%s232 + $0xc4] sm:$0xf] %vm1562, %v1561
      $region52: #{dqn_forward.3} parent=35 // pred_fallthru
        _
      %s1613 = smul.u32 %s20, %s19
      %s1614 = smul.u32 50, %s1613
      %p1615 = scmp.lt.s32.totalorder %s1614, 99
      %s1616 = scalar_select %p1615, %s1614, 99
      %s1617 = smul.addr %s1616, 4
      %s1618 = scalar_lea.vmem %s4, %s1617
      // Predicated region
      $region53: #{dqn_forward.3} parent=35 // pred_check
        %p1619 = pneg %p140
      $region54: #{dqn_forward.3} parent=35 // pred_check_branch
        %1621 = sbr.rel (%p1619) target = $region56
      $region55: #{dqn_forward.3} parent=35 // pred_region
        %s1622 = smul.u32 %s20, %s19
        %s1623 = smul.u32 50, %s1622
      $region56: #{dqn_forward.3} parent=35 // pred_fallthru
        _
    $region36: #{dqn_forward.3} parent=5 // pred_fallthru
      _
    %p1624 = scmp.le.s32.totalorder 2, %s10
    // Predicated region
    $region57: #{dqn_forward.3} parent=5 // pred_check
      %p1625 = pneg %p1624
    $region58: #{dqn_forward.3} parent=5 // pred_check_branch
      %1627 = sbr.rel (%p1625) target = $region60
    $region59: #{dqn_forward.3} parent=5 // pred_region
      %s1628 = ssub.s32 %s10, 2
      // Predicated region
      $region61: #{dqn_forward.3} parent=59 // pred_check
        %p1629 = pneg %p146
      $region62: #{dqn_forward.3} parent=59 // pred_check_branch
        %1631 = sbr.rel (%p1629) target = $region64
      $region63: #{dqn_forward.3} parent=59 // pred_region
        %s1632 = smul.u32 %s22, %s21
        %s1633 = smul.u32 50, %s1632
        %p1634 = scmp.lt.s32.totalorder %s1633, 99
        %s1635 = scalar_select %p1634, %s1633, 99
        %s1636 = smul.addr %s1635, 4
        %s1637 = scalar_lea.vmem %s4, %s1636
      $region64: #{dqn_forward.3} parent=59 // pred_fallthru
        _
    $region60: #{dqn_forward.3} parent=5 // pred_fallthru
      _
  $region6: #{dqn_forward.3} parent=0 // loop_footer
    %s14 = sadd.s32 1, %s10
  $region7: #{dqn_forward.3} parent=0 // loop_footer_branch
    %9 = sbr.rel target = $region3
  $region8: #{dqn_forward.3} parent=0 // loop_exit
    _

// kernel: dqn_forward.4
$region0: #{dqn_forward.4}
  #allocation0 [shape = 'u32[]', space=smem, size = 0x4, offset = 0x4, fixed_abs, tag = 'smem constant byte address 0x4 - core index']
  #allocation1 [shape = 'u32[72,128]{1,0:T(1,128)}', space=vmem, size = 0x9000, scoped, tag = 'internal scratch']
  #allocation2 [shape = 'f32[176,64]{1,0:T(8,128)}', space=vmem, size = 0x16000, scoped, tag = 'scratch operand']
  #allocation3 [shape = 'f32[1,64]{1,0:T(1,128)}', space=vmem, size = 0x200, scoped, tag = 'scratch operand']
  #allocation4 [shape = 'f32[1,64]{1,0:T(1,128)}', space=vmem, size = 0x200, scoped, tag = 'scratch operand']
  #allocation5 [shape = 'f32[1,64]{1,0:T(1,128)}', space=vmem, size = 0x200, scoped, tag = 'scratch operand']
  #allocation6 [shape = 'f32[1,64]{1,0:T(1,128)}', space=vmem, size = 0x200, scoped, tag = 'scratch operand']
  %s0 = inlined_call_operand.vmem [shape: bf16[176,512], index: 0, kind: input, shape index: {}]
  %s1 = inlined_call_operand.vmem [shape: bf16[512,64], index: 1, kind: input, shape index: {}]
  %s2 = inlined_call_operand.vmem [shape: f32[1,64], index: 2, kind: input, shape index: {}]
  %s3 = inlined_call_operand.vmem [shape: f32[1,64], index: 3, kind: input, shape index: {}]
  %s4 = inlined_call_operand.vmem [shape: bf16[176,64], index: 4, kind: output, shape index: {}]
  %s5 = sld [smem:[#allocation0]]
  $region65: #{dqn_forward.4} parent=0
    _
  %s7 = ssub.s32 1, %s5
  %s8 = scalar_select 0, %s7, %s5
  loop: start=0, step=1, limit=4
  $region2: #{dqn_forward.4} parent=0 // loop_pre_header
    _
  $region3: #{dqn_forward.4} parent=0 // loop_header
    %s10 = sphi 0, %s14
    %p11 = scmp.ge.s32.totalorder %s10, 4
    %s17 = sphi 0, %s29
    %s18 = sphi 0, %s25
    %s19 = sphi 0, %s17
    %s20 = sphi 0, %s18
    %s21 = sphi 0, %s19
    %s22 = sphi 0, %s20
    %s36 = sphi 0, %s38
    %s39 = sphi 0, %s36
    %s40 = sphi 0, %s39
    %s56 = sphi 0, %s40
    %s60 = sphi 0, %s60
    %s62 = sphi 0, %s60
    %s63 = sphi 0, %s62
    %s77 = sphi 0, %s63
    %s81 = sphi 0, %s81
    %s83 = sphi 0, %s81
    %s84 = sphi 0, %s83
    %s98 = sphi 0, %s84
    %s102 = sphi 0, %s102
    %s104 = sphi 0, %s102
    %s105 = sphi 0, %s104
    %s119 = sphi 0, %s105
    %s127 = sphi 0, %s129
    %s130 = sphi 0, %s127
    %s131 = sphi 0, %s130
    %s147 = sphi 0, %s131
  $region4: #{dqn_forward.4} parent=0 // loop_header_branch
    %13 = sbr.rel (%p11) target = $region8
  $region5: #{dqn_forward.4} parent=0 // loop_body
    %s15 = ssub.s32 %s10, 1
    %s16 = ssub.s32 %s10, 2
    %s23 = sadd.s32 1, %s18
    %p24 = scmp.ge.s32.totalorder %s23, 1
    %s25 = scalar_select %p24, 0, %s23
    %s26 = sadd.s32 1, %s17
    %s27 = scalar_select %p24, %s26, %s17
    %p28 = scmp.ge.s32.totalorder %s27, 2
    %s29 = scalar_select %p28, 0, %s27
    %s30 = ssub.s32 1, %s17
    %s31 = smul.u32 %s18, %s30
    %s32 = ssub.s32 1, %s29
    %s33 = smul.u32 %s25, %s32
    %s34 = ssub.s32 %s31, %s33
    %p35 = scmp.eq.s32.totalorder %s34, 0
    %s37 = sadd.s32 %s36, 1
    %s38 = scalar_select %p35, %s36, %s37
    %p41 = pneg %p35
    %p42 = scmp.eq.s32.totalorder %s10, 1
    %p43 = por %p41, %p42
    %p44 = scmp.ne.s32.totalorder %s36, %s39
    %p45 = scmp.eq.s32.totalorder %s10, 0
    %p46 = por %p44, %p45
    %p47 = scmp.ne.s32.totalorder %s36, %s39
    %p48 = scmp.eq.s32.totalorder %s15, 1
    %p49 = por %p47, %p48
    %p50 = scmp.ne.s32.totalorder %s39, %s40
    %p51 = scmp.eq.s32.totalorder %s15, 0
    %p52 = por %p50, %p51
    %p53 = scmp.ne.s32.totalorder %s39, %s40
    %p54 = scmp.eq.s32.totalorder %s16, 1
    %p55 = por %p53, %p54
    %p57 = scmp.ne.s32.totalorder %s40, %s56
    %p58 = scmp.eq.s32.totalorder %s16, 0
    %p59 = por %p57, %p58
    %s61 = sadd.s32 %s60, 1
    %p64 = scmp.eq.s32.totalorder %s10, 1
    %p65 = scmp.ne.s32.totalorder %s60, %s62
    %p66 = scmp.eq.s32.totalorder %s10, 0
    %p67 = por %p65, %p66
    %p68 = scmp.ne.s32.totalorder %s60, %s62
    %p69 = scmp.eq.s32.totalorder %s15, 1
    %p70 = por %p68, %p69
    %p71 = scmp.ne.s32.totalorder %s62, %s63
    %p72 = scmp.eq.s32.totalorder %s15, 0
    %p73 = por %p71, %p72
    %p74 = scmp.ne.s32.totalorder %s62, %s63
    %p75 = scmp.eq.s32.totalorder %s16, 1
    %p76 = por %p74, %p75
    %p78 = scmp.ne.s32.totalorder %s63, %s77
    %p79 = scmp.eq.s32.totalorder %s16, 0
    %p80 = por %p78, %p79
    %s82 = sadd.s32 %s81, 1
    %p85 = scmp.eq.s32.totalorder %s10, 1
    %p86 = scmp.ne.s32.totalorder %s81, %s83
    %p87 = scmp.eq.s32.totalorder %s10, 0
    %p88 = por %p86, %p87
    %p89 = scmp.ne.s32.totalorder %s81, %s83
    %p90 = scmp.eq.s32.totalorder %s15, 1
    %p91 = por %p89, %p90
    %p92 = scmp.ne.s32.totalorder %s83, %s84
    %p93 = scmp.eq.s32.totalorder %s15, 0
    %p94 = por %p92, %p93
    %p95 = scmp.ne.s32.totalorder %s83, %s84
    %p96 = scmp.eq.s32.totalorder %s16, 1
    %p97 = por %p95, %p96
    %p99 = scmp.ne.s32.totalorder %s84, %s98
    %p100 = scmp.eq.s32.totalorder %s16, 0
    %p101 = por %p99, %p100
    %s103 = sadd.s32 %s102, 1
    %p106 = scmp.eq.s32.totalorder %s10, 1
    %p107 = scmp.ne.s32.totalorder %s102, %s104
    %p108 = scmp.eq.s32.totalorder %s10, 0
    %p109 = por %p107, %p108
    %p110 = scmp.ne.s32.totalorder %s102, %s104
    %p111 = scmp.eq.s32.totalorder %s15, 1
    %p112 = por %p110, %p111
    %p113 = scmp.ne.s32.totalorder %s104, %s105
    %p114 = scmp.eq.s32.totalorder %s15, 0
    %p115 = por %p113, %p114
    %p116 = scmp.ne.s32.totalorder %s104, %s105
    %p117 = scmp.eq.s32.totalorder %s16, 1
    %p118 = por %p116, %p117
    %p120 = scmp.ne.s32.totalorder %s105, %s119
    %p121 = scmp.eq.s32.totalorder %s16, 0
    %p122 = por %p120, %p121
    %s123 = smul.u32 %s18, %s17
    %s124 = smul.u32 %s25, %s29
    %s125 = ssub.s32 %s123, %s124
    %p126 = scmp.eq.s32.totalorder %s125, 0
    %s128 = sadd.s32 %s127, 1
    %s129 = scalar_select %p126, %s127, %s128
    %p132 = pneg %p126
    %p133 = scmp.eq.s32.totalorder %s10, 1
    %p134 = por %p132, %p133
    %p135 = scmp.ne.s32.totalorder %s127, %s130
    %p136 = scmp.eq.s32.totalorder %s10, 0
    %p137 = por %p135, %p136
    %p138 = scmp.ne.s32.totalorder %s127, %s130
    %p139 = scmp.eq.s32.totalorder %s15, 1
    %p140 = por %p138, %p139
    %p141 = scmp.ne.s32.totalorder %s130, %s131
    %p142 = scmp.eq.s32.totalorder %s15, 0
    %p143 = por %p141, %p142
    %p144 = scmp.ne.s32.totalorder %s130, %s131
    %p145 = scmp.eq.s32.totalorder %s16, 1
    %p146 = por %p144, %p145
    %p148 = scmp.ne.s32.totalorder %s131, %s147
    %p149 = scmp.eq.s32.totalorder %s16, 0
    %p150 = por %p148, %p149
    %p151 = scmp.le.s32.totalorder 1, %s10
    %p152 = scmp.lt.s32.totalorder %s10, 3
    %p153 = pnand %p151, %p152
    %p154 = pneg %p153
    // Predicated region
    $region9: #{dqn_forward.4} parent=5 // pred_check
      _
    $region10: #{dqn_forward.4} parent=5 // pred_check_branch
      %156 = sbr.rel (%p153) target = $region12
    $region11: #{dqn_forward.4} parent=5 // pred_region
      %s157 = ssub.s32 %s10, 1
      // Predicated region
      $region13: #{dqn_forward.4} parent=11 // pred_check
        %p158 = pneg %p73
      $region14: #{dqn_forward.4} parent=11 // pred_check_branch
        %160 = sbr.rel (%p158) target = $region16
      $region15: #{dqn_forward.4} parent=11 // pred_region
        _
      $region16: #{dqn_forward.4} parent=11 // pred_fallthru
        _
      // Predicated region
      $region17: #{dqn_forward.4} parent=11 // pred_check
        %p161 = pneg %p94
      $region18: #{dqn_forward.4} parent=11 // pred_check_branch
        %163 = sbr.rel (%p161) target = $region20
      $region19: #{dqn_forward.4} parent=11 // pred_region
        _
      $region20: #{dqn_forward.4} parent=11 // pred_fallthru
        _
      // Predicated region
      $region21: #{dqn_forward.4} parent=11 // pred_check
        %p164 = pneg %p115
      $region22: #{dqn_forward.4} parent=11 // pred_check_branch
        %166 = sbr.rel (%p164) target = $region24
      $region23: #{dqn_forward.4} parent=11 // pred_region
        _
      $region24: #{dqn_forward.4} parent=11 // pred_fallthru
        _
    $region12: #{dqn_forward.4} parent=5 // pred_fallthru
      _
    %p167 = scmp.lt.s32.totalorder %s10, 2
    // Predicated region
    $region25: #{dqn_forward.4} parent=5 // pred_check
      %p168 = pneg %p167
    $region26: #{dqn_forward.4} parent=5 // pred_check_branch
      %170 = sbr.rel (%p168) target = $region28
    $region27: #{dqn_forward.4} parent=5 // pred_region
      // Predicated region
      $region29: #{dqn_forward.4} parent=27 // pred_check
        %p171 = pneg %p46
      $region30: #{dqn_forward.4} parent=27 // pred_check_branch
        %173 = sbr.rel (%p171) target = $region32
      $region31: #{dqn_forward.4} parent=27 // pred_region
        %s174 = ssub.s32 1, %s17
        %s175 = smul.u32 %s18, %s174
        %s176 = smul.u32 22, %s175
        %p177 = scmp.lt.s32.totalorder %s176, 21
        %s178 = scalar_select %p177, %s176, 21
        %s179 = smul.addr %s178, 4
        %s180 = smul.addr %s179, 4
        %s181 = scalar_lea.vmem %s0, %s180
        %s182 = ssub.s32 1, %s17
        %s183 = smul.u32 %s18, %s182
        %s184 = smul.u32 22, %s183
      $region32: #{dqn_forward.4} parent=27 // pred_fallthru
        _
    $region28: #{dqn_forward.4} parent=5 // pred_fallthru
      _
    %p185 = scmp.le.s32.totalorder 1, %s10
    %p186 = scmp.lt.s32.totalorder %s10, 3
    %p187 = pnand %p185, %p186
    %p188 = pneg %p187
    // Predicated region
    $region33: #{dqn_forward.4} parent=5 // pred_check
      _
    $region34: #{dqn_forward.4} parent=5 // pred_check_branch
      %190 = sbr.rel (%p187) target = $region36
    $region35: #{dqn_forward.4} parent=5 // pred_region
      %s191 = ssub.s32 %s10, 1
      %s192 = ssub.s32 1, %s19
      %s193 = smul.u32 %s20, %s192
      %s194 = smul.u32 22, %s193
      %p195 = scmp.lt.s32.totalorder %s194, 21
      %s196 = scalar_select %p195, %s194, 21
      %s197 = smul.addr %s196, 4
      %s198 = smul.addr %s197, 4
      %s199 = scalar_lea.vmem %s0, %s198
      %p200 = pneg %p52
      %p201 = pneg %p49
      %p202 = pneg %p73
      %p203 = pneg %p70
      %p204 = pneg %p94
      %p205 = pneg %p91
      %p206 = pneg %p115
      %p207 = pneg %p112
      %p208 = pneg %p143
      %p209 = pneg %p140
      %s210 = smul.u32 %s20, %s19
      %s211 = smul.u32 22, %s210
      %p212 = scmp.lt.s32.totalorder %s211, 21
      %s213 = scalar_select %p212, %s211, 21
      %s214 = smul.addr %s213, 4
      %s215 = scalar_lea.vmem %s4, %s214
      %s216 = ssub.s32 1, %s19
      %s217 = smul.u32 %s20, %s216
      %s218 = smul.u32 22, %s217
      %p219 = scmp.lt.s32.totalorder %s218, 21
      %s220 = scalar_select %p219, %s218, 21
      %s221 = smul.addr %s220, 4
      %s222 = smul.addr %s221, 4
      %s223 = scalar_lea.vmem %s0, %s222
      %s224 = ssub.s32 1, %s19
      %s225 = smul.u32 %s20, %s224
      %s226 = smul.u32 22, %s225
      %s227 = smul.u32 %s20, %s19
      %s228 = smul.u32 22, %s227
      %p229 = scmp.lt.s32.totalorder %s228, 21
      %s230 = scalar_select %p229, %s228, 21
      %s231 = smul.addr %s230, 4
      %s232 = scalar_lea.vmem %s4, %s231
      %s233 = smul.u32 %s20, %s19
      %s234 = smul.u32 22, %s233
      %s235 = smul.u32 %s20, 176
      %p236 = scmp.eq.s32.totalorder %s19, 0
      %p237 = scmp.eq.s32.totalorder %s20, 0
      %p238 = pnand %p236, %p237
      %p239 = pneg %p238
      // Predicated region
      $region37: #{dqn_forward.4} parent=35 // pred_check
        _
      $region38: #{dqn_forward.4} parent=35 // pred_check_branch
        %241 = sbr.rel (%p238) target = $region40
      $region39: #{dqn_forward.4} parent=35 // pred_region
        %vm242 = vcmask 516096
        %243 = vst.msk [vmem:[#allocation3] sm:$0x1] %vm242, 0.0
        %244 = vst.msk [vmem:[#allocation4] sm:$0x1] %vm242, 0.0
      $region40: #{dqn_forward.4} parent=35 // pred_fallthru
        _
      // Predicated region
      $region41: #{dqn_forward.4} parent=35 // pred_check
        %p245 = pneg %p236
      $region42: #{dqn_forward.4} parent=35 // pred_check_branch
        %247 = sbr.rel (%p245) target = $region44
      $region43: #{dqn_forward.4} parent=35 // pred_region
        %v248 = vld [vmem:[%s223] sm:$0xff]
        %v249 = vld [vmem:[%s223 + $0x8] sm:$0xff]
        %v250 = vld [vmem:[%s223 + $0x10] sm:$0xff]
        %v251 = vld [vmem:[%s223 + $0x18] sm:$0xff]
        %v252 = vld [vmem:[%s223 + $0x20] sm:$0xff]
        %v253 = vld [vmem:[%s223 + $0x28] sm:$0xff]
        %v254 = vld [vmem:[%s223 + $0x30] sm:$0xff]
        %v255 = vld [vmem:[%s223 + $0x38] sm:$0xff]
        %v256 = vld [vmem:[%s223 + $0x40] sm:$0xff]
        %v257 = vld [vmem:[%s223 + $0x48] sm:$0xff]
        %v258 = vld [vmem:[%s223 + $0x50] sm:$0xff]
        %v259 = vld [vmem:[%s223 + $0x58] sm:$0xff]
        %v260 = vld [vmem:[%s223 + $0x60] sm:$0xff]
        %v261 = vld [vmem:[%s223 + $0x68] sm:$0xff]
        %v262 = vld [vmem:[%s223 + $0x70] sm:$0xff]
        %v263 = vld [vmem:[%s223 + $0x78] sm:$0xff]
        %v264 = vld [vmem:[%s223 + $0x80] sm:$0xff]
        %v265 = vld [vmem:[%s223 + $0x88] sm:$0xff]
        %v266 = vld [vmem:[%s223 + $0x90] sm:$0xff]
        %v267 = vld [vmem:[%s223 + $0x98] sm:$0xff]
        %v268 = vld [vmem:[%s223 + $0xa0] sm:$0xff]
        %v269 = vld [vmem:[%s223 + $0xa8] sm:$0xff]
        %v270 = vld [vmem:[%s223 + $0xb0] sm:$0xff]
        %v271 = vld [vmem:[%s223 + $0xb8] sm:$0xff]
        %v272 = vld [vmem:[%s223 + $0xc0] sm:$0xff]
        %v273 = vld [vmem:[%s223 + $0xc8] sm:$0xff]
        %v274 = vld [vmem:[%s223 + $0xd0] sm:$0xff]
        %v275 = vld [vmem:[%s223 + $0xd8] sm:$0xff]
        %v276 = vld [vmem:[%s223 + $0xe0] sm:$0xff]
        %v277 = vld [vmem:[%s223 + $0xe8] sm:$0xff]
        %v278 = vld [vmem:[%s223 + $0xf0] sm:$0xff]
        %v279 = vld [vmem:[%s223 + $0xf8] sm:$0xff]
        %v280 = vld [vmem:[%s223 + $0x100] sm:$0xff]
        %v281 = vld [vmem:[%s223 + $0x108] sm:$0xff]
        %v282 = vld [vmem:[%s223 + $0x110] sm:$0xff]
        %v283 = vld [vmem:[%s223 + $0x118] sm:$0xff]
        %v284 = vld [vmem:[%s223 + $0x120] sm:$0xff]
        %v285 = vld [vmem:[%s223 + $0x128] sm:$0xff]
        %v286 = vld [vmem:[%s223 + $0x130] sm:$0xff]
        %v287 = vld [vmem:[%s223 + $0x138] sm:$0xff]
        %v288 = vld [vmem:[%s223 + $0x140] sm:$0xff]
        %v289 = vld [vmem:[%s223 + $0x148] sm:$0xff]
        %v290 = vld [vmem:[%s223 + $0x150] sm:$0xff]
        %v291 = vld [vmem:[%s223 + $0x158] sm:$0xff]
        %v292 = vld [vmem:[%s1] sm:$0xf]
        %v293 = vld [vmem:[%s1 + $0x4] sm:$0xf]
        %v294 = vld [vmem:[%s1 + $0x8] sm:$0xf]
        %v295 = vld [vmem:[%s1 + $0xc] sm:$0xf]
        %v296 = vld [vmem:[%s1 + $0x10] sm:$0xf]
        %v297 = vld [vmem:[%s1 + $0x14] sm:$0xf]
        %v298 = vld [vmem:[%s1 + $0x18] sm:$0xf]
        %v299 = vld [vmem:[%s1 + $0x1c] sm:$0xf]
        %v300 = vld [vmem:[%s1 + $0x20] sm:$0xf]
        %v301 = vld [vmem:[%s1 + $0x24] sm:$0xf]
        %v302 = vld [vmem:[%s1 + $0x28] sm:$0xf]
        %v303 = vld [vmem:[%s1 + $0x2c] sm:$0xf]
        %v304 = vld [vmem:[%s1 + $0x30] sm:$0xf]
        %v305 = vld [vmem:[%s1 + $0x34] sm:$0xf]
        %v306 = vld [vmem:[%s1 + $0x38] sm:$0xf]
        %v307 = vld [vmem:[%s1 + $0x3c] sm:$0xf]
        %v308 = vld [vmem:[%s1 + $0x40] sm:$0xf]
        %v309 = vld [vmem:[%s1 + $0x44] sm:$0xf]
        %v310 = vld [vmem:[%s1 + $0x48] sm:$0xf]
        %v311 = vld [vmem:[%s1 + $0x4c] sm:$0xf]
        %v312 = vld [vmem:[%s1 + $0x50] sm:$0xf]
        %v313 = vld [vmem:[%s1 + $0x54] sm:$0xf]
        %v314 = vld [vmem:[%s1 + $0x58] sm:$0xf]
        %v315 = vld [vmem:[%s1 + $0x5c] sm:$0xf]
        %v316 = vld [vmem:[%s1 + $0x60] sm:$0xf]
        %v317 = vld [vmem:[%s1 + $0x64] sm:$0xf]
        %v318 = vld [vmem:[%s1 + $0x68] sm:$0xf]
        %v319 = vld [vmem:[%s1 + $0x6c] sm:$0xf]
        %v320 = vld [vmem:[%s1 + $0x70] sm:$0xf]
        %v321 = vld [vmem:[%s1 + $0x74] sm:$0xf]
        %v322 = vld [vmem:[%s1 + $0x78] sm:$0xf]
        %v323 = vld [vmem:[%s1 + $0x7c] sm:$0xf]
        %v324 = vld [vmem:[%s1 + $0x80] sm:$0xf]
        %v325 = vld [vmem:[%s1 + $0x84] sm:$0xf]
        %v326 = vld [vmem:[%s1 + $0x88] sm:$0xf]
        %v327 = vld [vmem:[%s1 + $0x8c] sm:$0xf]
        %v328 = vld [vmem:[%s1 + $0x90] sm:$0xf]
        %v329 = vld [vmem:[%s1 + $0x94] sm:$0xf]
        %v330 = vld [vmem:[%s1 + $0x98] sm:$0xf]
        %v331 = vld [vmem:[%s1 + $0x9c] sm:$0xf]
        %v332 = vld [vmem:[%s1 + $0xa0] sm:$0xf]
        %v333 = vld [vmem:[%s1 + $0xa4] sm:$0xf]
        %v334 = vld [vmem:[%s1 + $0xa8] sm:$0xf]
        %v335 = vld [vmem:[%s1 + $0xac] sm:$0xf]
        %v336 = vld [vmem:[%s1 + $0xb0] sm:$0xf]
        %v337 = vld [vmem:[%s1 + $0xb4] sm:$0xf]
        %v338 = vld [vmem:[%s1 + $0xb8] sm:$0xf]
        %v339 = vld [vmem:[%s1 + $0xbc] sm:$0xf]
        %v340 = vld [vmem:[%s1 + $0xc0] sm:$0xf]
        %v341 = vld [vmem:[%s1 + $0xc4] sm:$0xf]
        %v342 = vld [vmem:[%s1 + $0xc8] sm:$0xf]
        %v343 = vld [vmem:[%s1 + $0xcc] sm:$0xf]
        %v344 = vld [vmem:[%s1 + $0xd0] sm:$0xf]
        %v345 = vld [vmem:[%s1 + $0xd4] sm:$0xf]
        %v346 = vld [vmem:[%s1 + $0xd8] sm:$0xf]
        %v347 = vld [vmem:[%s1 + $0xdc] sm:$0xf]
        %v348 = vld [vmem:[%s1 + $0xe0] sm:$0xf]
        %v349 = vld [vmem:[%s1 + $0xe4] sm:$0xf]
        %v350 = vld [vmem:[%s1 + $0xe8] sm:$0xf]
        %v351 = vld [vmem:[%s1 + $0xec] sm:$0xf]
        %v352 = vld [vmem:[%s1 + $0xf0] sm:$0xf]
        %v353 = vld [vmem:[%s1 + $0xf4] sm:$0xf]
        %v354 = vld [vmem:[%s1 + $0xf8] sm:$0xf]
        %v355 = vld [vmem:[%s1 + $0xfc] sm:$0xf]
        %v400 = vunpack.c.l.b16 %v248
        %v401 = vunpack.c.h.b16 %v248
        %v402 = vunpack.c.l.b16 %v249
        %v403 = vunpack.c.h.b16 %v249
        %v404 = vunpack.c.l.b16 %v250
        %v405 = vunpack.c.h.b16 %v250
        %v406 = vunpack.c.l.b16 %v251
        %v407 = vunpack.c.h.b16 %v251
        %v408 = vunpack.c.l.b16 %v252
        %v409 = vunpack.c.h.b16 %v252
        %v410 = vunpack.c.l.b16 %v253
        %v411 = vunpack.c.h.b16 %v253
        %v412 = vunpack.c.l.b16 %v254
        %v413 = vunpack.c.h.b16 %v254
        %v414 = vunpack.c.l.b16 %v255
        %v415 = vunpack.c.h.b16 %v255
        %v416 = vunpack.c.l.b16 %v256
        %v417 = vunpack.c.h.b16 %v256
        %v418 = vunpack.c.l.b16 %v257
        %v419 = vunpack.c.h.b16 %v257
        %v420 = vunpack.c.l.b16 %v258
        %v421 = vunpack.c.h.b16 %v258
        %v422 = vunpack.c.l.b16 %v259
        %v423 = vunpack.c.h.b16 %v259
        %v424 = vunpack.c.l.b16 %v260
        %v425 = vunpack.c.h.b16 %v260
        %v426 = vunpack.c.l.b16 %v261
        %v427 = vunpack.c.h.b16 %v261
        %v428 = vunpack.c.l.b16 %v262
        %v429 = vunpack.c.h.b16 %v262
        %v430 = vunpack.c.l.b16 %v263
        %v431 = vunpack.c.h.b16 %v263
        %v432 = vunpack.c.l.b16 %v264
        %v433 = vunpack.c.h.b16 %v264
        %v434 = vunpack.c.l.b16 %v265
        %v435 = vunpack.c.h.b16 %v265
        %v436 = vunpack.c.l.b16 %v266
        %v437 = vunpack.c.h.b16 %v266
        %v438 = vunpack.c.l.b16 %v267
        %v439 = vunpack.c.h.b16 %v267
        %v440 = vunpack.c.l.b16 %v268
        %v441 = vunpack.c.h.b16 %v268
        %v442 = vunpack.c.l.b16 %v269
        %v443 = vunpack.c.h.b16 %v269
        %v444 = vunpack.c.l.b16 %v270
        %v445 = vunpack.c.h.b16 %v270
        %v446 = vunpack.c.l.b16 %v271
        %v447 = vunpack.c.h.b16 %v271
        %v448 = vunpack.c.l.b16 %v272
        %v449 = vunpack.c.h.b16 %v272
        %v450 = vunpack.c.l.b16 %v273
        %v451 = vunpack.c.h.b16 %v273
        %v452 = vunpack.c.l.b16 %v274
        %v453 = vunpack.c.h.b16 %v274
        %v454 = vunpack.c.l.b16 %v275
        %v455 = vunpack.c.h.b16 %v275
        %v456 = vunpack.c.l.b16 %v276
        %v457 = vunpack.c.h.b16 %v276
        %v458 = vunpack.c.l.b16 %v277
        %v459 = vunpack.c.h.b16 %v277
        %v460 = vunpack.c.l.b16 %v278
        %v461 = vunpack.c.h.b16 %v278
        %v462 = vunpack.c.l.b16 %v279
        %v463 = vunpack.c.h.b16 %v279
        %v464 = vunpack.c.l.b16 %v280
        %v465 = vunpack.c.h.b16 %v280
        %v466 = vunpack.c.l.b16 %v281
        %v467 = vunpack.c.h.b16 %v281
        %v468 = vunpack.c.l.b16 %v282
        %v469 = vunpack.c.h.b16 %v282
        %v470 = vunpack.c.l.b16 %v283
        %v471 = vunpack.c.h.b16 %v283
        %v472 = vunpack.c.l.b16 %v284
        %v473 = vunpack.c.h.b16 %v284
        %v474 = vunpack.c.l.b16 %v285
        %v475 = vunpack.c.h.b16 %v285
        %v476 = vunpack.c.l.b16 %v286
        %v477 = vunpack.c.h.b16 %v286
        %v478 = vunpack.c.l.b16 %v287
        %v479 = vunpack.c.h.b16 %v287
        %v480 = vunpack.c.l.b16 %v288
        %v481 = vunpack.c.h.b16 %v288
        %v482 = vunpack.c.l.b16 %v289
        %v483 = vunpack.c.h.b16 %v289
        %v484 = vunpack.c.l.b16 %v290
        %v485 = vunpack.c.h.b16 %v290
        %v486 = vunpack.c.l.b16 %v291
        %v487 = vunpack.c.h.b16 %v291
        %v488 = vpack.c.b16 %v404, %v400
        %v489 = vpack.c.b16 %v405, %v401
        %v490 = vpack.c.b16 %v406, %v402
        %v491 = vpack.c.b16 %v407, %v403
        %v492 = vpack.c.b16 %v412, %v408
        %v493 = vpack.c.b16 %v413, %v409
        %v494 = vpack.c.b16 %v414, %v410
        %v495 = vpack.c.b16 %v415, %v411
        %v496 = vpack.c.b16 %v420, %v416
        %v497 = vpack.c.b16 %v421, %v417
        %v498 = vpack.c.b16 %v422, %v418
        %v499 = vpack.c.b16 %v423, %v419
        %v500 = vpack.c.b16 %v428, %v424
        %v501 = vpack.c.b16 %v429, %v425
        %v502 = vpack.c.b16 %v430, %v426
        %v503 = vpack.c.b16 %v431, %v427
        %v504 = vpack.c.b16 %v436, %v432
        %v505 = vpack.c.b16 %v437, %v433
        %v506 = vpack.c.b16 %v438, %v434
        %v507 = vpack.c.b16 %v439, %v435
        %v508 = vpack.c.b16 %v444, %v440
        %v509 = vpack.c.b16 %v445, %v441
        %v510 = vpack.c.b16 %v446, %v442
        %v511 = vpack.c.b16 %v447, %v443
        %v512 = vpack.c.b16 %v452, %v448
        %v513 = vpack.c.b16 %v453, %v449
        %v514 = vpack.c.b16 %v454, %v450
        %v515 = vpack.c.b16 %v455, %v451
        %v516 = vpack.c.b16 %v460, %v456
        %v517 = vpack.c.b16 %v461, %v457
        %v518 = vpack.c.b16 %v462, %v458
        %v519 = vpack.c.b16 %v463, %v459
        %v520 = vpack.c.b16 %v468, %v464
        %v521 = vpack.c.b16 %v469, %v465
        %v522 = vpack.c.b16 %v470, %v466
        %v523 = vpack.c.b16 %v471, %v467
        %v524 = vpack.c.b16 %v476, %v472
        %v525 = vpack.c.b16 %v477, %v473
        %v526 = vpack.c.b16 %v478, %v474
        %v527 = vpack.c.b16 %v479, %v475
        %v528 = vpack.c.b16 %v484, %v480
        %v529 = vpack.c.b16 %v485, %v481
        %v530 = vpack.c.b16 %v486, %v482
        %v531 = vpack.c.b16 %v487, %v483
        %v640 = vunpack.c.l.b16 %v292
        %v641 = vunpack.c.l.b16 %v293
        %v642 = vunpack.c.l.b16 %v294
        %v643 = vunpack.c.l.b16 %v295
        %v644 = vunpack.c.l.b16 %v296
        %v645 = vunpack.c.l.b16 %v297
        %v646 = vunpack.c.l.b16 %v298
        %v647 = vunpack.c.l.b16 %v299
        %v648 = vunpack.c.l.b16 %v300
        %v649 = vunpack.c.l.b16 %v301
        %v650 = vunpack.c.l.b16 %v302
        %v651 = vunpack.c.l.b16 %v303
        %v652 = vunpack.c.l.b16 %v304
        %v653 = vunpack.c.l.b16 %v305
        %v654 = vunpack.c.l.b16 %v306
        %v655 = vunpack.c.l.b16 %v307
        %v656 = vunpack.c.l.b16 %v308
        %v657 = vunpack.c.l.b16 %v309
        %v658 = vunpack.c.l.b16 %v310
        %v659 = vunpack.c.l.b16 %v311
        %v660 = vunpack.c.l.b16 %v312
        %v661 = vunpack.c.l.b16 %v313
        %v662 = vunpack.c.l.b16 %v314
        %v663 = vunpack.c.l.b16 %v315
        %v664 = vunpack.c.l.b16 %v316
        %v665 = vunpack.c.l.b16 %v317
        %v666 = vunpack.c.l.b16 %v318
        %v667 = vunpack.c.l.b16 %v319
        %v668 = vunpack.c.l.b16 %v320
        %v669 = vunpack.c.l.b16 %v321
        %v670 = vunpack.c.l.b16 %v322
        %v671 = vunpack.c.l.b16 %v323
        %v672 = vunpack.c.l.b16 %v324
        %v673 = vunpack.c.l.b16 %v325
        %v674 = vunpack.c.l.b16 %v326
        %v675 = vunpack.c.l.b16 %v327
        %v676 = vunpack.c.l.b16 %v328
        %v677 = vunpack.c.l.b16 %v329
        %v678 = vunpack.c.l.b16 %v330
        %v679 = vunpack.c.l.b16 %v331
        %v680 = vunpack.c.l.b16 %v332
        %v681 = vunpack.c.l.b16 %v333
        %v682 = vunpack.c.l.b16 %v334
        %v683 = vunpack.c.l.b16 %v335
        %v684 = vunpack.c.l.b16 %v336
        %v685 = vunpack.c.l.b16 %v337
        %v686 = vunpack.c.l.b16 %v338
        %v687 = vunpack.c.l.b16 %v339
        %v688 = vunpack.c.l.b16 %v340
        %v689 = vunpack.c.l.b16 %v341
        %v690 = vunpack.c.l.b16 %v342
        %v691 = vunpack.c.l.b16 %v343
        %v692 = vunpack.c.l.b16 %v344
        %v693 = vunpack.c.l.b16 %v345
        %v694 = vunpack.c.l.b16 %v346
        %v695 = vunpack.c.l.b16 %v347
        %v696 = vunpack.c.l.b16 %v348
        %v697 = vunpack.c.l.b16 %v349
        %v698 = vunpack.c.l.b16 %v350
        %v699 = vunpack.c.l.b16 %v351
        %v700 = vunpack.c.l.b16 %v352
        %v701 = vunpack.c.l.b16 %v353
        %v702 = vunpack.c.l.b16 %v354
        %v703 = vunpack.c.l.b16 %v355
        %v704 = vpack.c.b16 %v641, %v640
        %v705 = vpack.c.b16 %v643, %v642
        %v706 = vpack.c.b16 %v645, %v644
        %v707 = vpack.c.b16 %v647, %v646
        %v708 = vpack.c.b16 %v649, %v648
        %v709 = vpack.c.b16 %v651, %v650
        %v710 = vpack.c.b16 %v653, %v652
        %v711 = vpack.c.b16 %v655, %v654
        %v712 = vpack.c.b16 %v657, %v656
        %v713 = vpack.c.b16 %v659, %v658
        %v714 = vpack.c.b16 %v661, %v660
        %v715 = vpack.c.b16 %v663, %v662
        %v716 = vpack.c.b16 %v665, %v664
        %v717 = vpack.c.b16 %v667, %v666
        %v718 = vpack.c.b16 %v669, %v668
        %v719 = vpack.c.b16 %v671, %v670
        %v720 = vpack.c.b16 %v673, %v672
        %v721 = vpack.c.b16 %v675, %v674
        %v722 = vpack.c.b16 %v677, %v676
        %v723 = vpack.c.b16 %v679, %v678
        %v724 = vpack.c.b16 %v681, %v680
        %v725 = vpack.c.b16 %v683, %v682
        %v726 = vpack.c.b16 %v685, %v684
        %v727 = vpack.c.b16 %v687, %v686
        %v728 = vpack.c.b16 %v689, %v688
        %v729 = vpack.c.b16 %v691, %v690
        %v730 = vpack.c.b16 %v693, %v692
        %v731 = vpack.c.b16 %v695, %v694
        %v732 = vpack.c.b16 %v697, %v696
        %v733 = vpack.c.b16 %v699, %v698
        %v734 = vpack.c.b16 %v701, %v700
        %v735 = vpack.c.b16 %v703, %v702
        %768 = vmatpush.bf16.msra.mxu0 %v711
        %769 = vmatpush.bf16.msra.mxu0 %v710
        %770 = vmatpush.bf16.msra.mxu0 %v709
        %771 = vmatpush.bf16.msra.mxu0 %v708
        %772 = vmatpush.bf16.msra.mxu0 %v707
        %773 = vmatpush.bf16.msra.mxu0 %v706
        %774 = vmatpush.bf16.msra.mxu0 %v705
        %775 = vmatpush.bf16.msra.mxu0 %v704
        %776 = vmatmul.bf16.gmra.mxu0 %v488
        %v777 = vpop.f32.mrf.mxu0
        %v778 = vadd.f32 0.0, %v777
        %v779 = vpop.f32.mrf.mxu0
        %v780 = vadd.f32 0.0, %v779
        %781 = vmatmul.bf16.gmra.mxu0 %v492
        %v782 = vpop.f32.mrf.mxu0
        %v783 = vadd.f32 0.0, %v782
        %v784 = vpop.f32.mrf.mxu0
        %v785 = vadd.f32 0.0, %v784
        %786 = vmatmul.bf16.gmra.mxu0 %v496
        %v787 = vpop.f32.mrf.mxu0
        %v788 = vadd.f32 0.0, %v787
        %v789 = vpop.f32.mrf.mxu0
        %v790 = vadd.f32 0.0, %v789
        %791 = vmatmul.bf16.gmra.mxu0 %v500
        %v792 = vpop.f32.mrf.mxu0
        %v793 = vadd.f32 0.0, %v792
        %v794 = vpop.f32.mrf.mxu0
        %v795 = vadd.f32 0.0, %v794
        %796 = vmatmul.bf16.gmra.mxu0 %v504
        %v797 = vpop.f32.mrf.mxu0
        %v798 = vadd.f32 0.0, %v797
        %v799 = vpop.f32.mrf.mxu0
        %v800 = vadd.f32 0.0, %v799
        %801 = vmatmul.bf16.gmra.mxu0 %v508
        %v802 = vpop.f32.mrf.mxu0
        %v803 = vadd.f32 0.0, %v802
        %v804 = vpop.f32.mrf.mxu0
        %v805 = vadd.f32 0.0, %v804
        %806 = vmatmul.bf16.gmra.mxu0 %v512
        %v807 = vpop.f32.mrf.mxu0
        %v808 = vadd.f32 0.0, %v807
        %v809 = vpop.f32.mrf.mxu0
        %v810 = vadd.f32 0.0, %v809
        %811 = vmatmul.bf16.gmra.mxu0 %v516
        %v812 = vpop.f32.mrf.mxu0
        %v813 = vadd.f32 0.0, %v812
        %v814 = vpop.f32.mrf.mxu0
        %v815 = vadd.f32 0.0, %v814
        %816 = vmatmul.bf16.gmra.mxu0 %v520
        %v817 = vpop.f32.mrf.mxu0
        %v818 = vadd.f32 0.0, %v817
        %v819 = vpop.f32.mrf.mxu0
        %v820 = vadd.f32 0.0, %v819
        %821 = vmatmul.bf16.gmra.mxu0 %v524
        %v822 = vpop.f32.mrf.mxu0
        %v823 = vadd.f32 0.0, %v822
        %v824 = vpop.f32.mrf.mxu0
        %v825 = vadd.f32 0.0, %v824
        %826 = vmatmul.bf16.gmra.mxu0 %v528
        %v827 = vpop.f32.mrf.mxu0
        %v828 = vadd.f32 0.0, %v827
        %v829 = vpop.f32.mrf.mxu0
        %v830 = vadd.f32 0.0, %v829
        %831 = vdwg.mxu0
        %832 = vmatpush.bf16.msra.mxu0 %v719
        %833 = vmatpush.bf16.msra.mxu0 %v718
        %834 = vmatpush.bf16.msra.mxu0 %v717
        %835 = vmatpush.bf16.msra.mxu0 %v716
        %836 = vmatpush.bf16.msra.mxu0 %v715
        %837 = vmatpush.bf16.msra.mxu0 %v714
        %838 = vmatpush.bf16.msra.mxu0 %v713
        %839 = vmatpush.bf16.msra.mxu0 %v712
        %840 = vmatmul.bf16.gmra.mxu0 %v489
        %v841 = vpop.f32.mrf.mxu0
        %v842 = vadd.f32 %v778, %v841
        %v843 = vpop.f32.mrf.mxu0
        %v844 = vadd.f32 %v780, %v843
        %845 = vmatmul.bf16.gmra.mxu0 %v493
        %v846 = vpop.f32.mrf.mxu0
        %v847 = vadd.f32 %v783, %v846
        %v848 = vpop.f32.mrf.mxu0
        %v849 = vadd.f32 %v785, %v848
        %850 = vmatmul.bf16.gmra.mxu0 %v497
        %v851 = vpop.f32.mrf.mxu0
        %v852 = vadd.f32 %v788, %v851
        %v853 = vpop.f32.mrf.mxu0
        %v854 = vadd.f32 %v790, %v853
        %855 = vmatmul.bf16.gmra.mxu0 %v501
        %v856 = vpop.f32.mrf.mxu0
        %v857 = vadd.f32 %v793, %v856
        %v858 = vpop.f32.mrf.mxu0
        %v859 = vadd.f32 %v795, %v858
        %860 = vmatmul.bf16.gmra.mxu0 %v505
        %v861 = vpop.f32.mrf.mxu0
        %v862 = vadd.f32 %v798, %v861
        %v863 = vpop.f32.mrf.mxu0
        %v864 = vadd.f32 %v800, %v863
        %865 = vmatmul.bf16.gmra.mxu0 %v509
        %v866 = vpop.f32.mrf.mxu0
        %v867 = vadd.f32 %v803, %v866
        %v868 = vpop.f32.mrf.mxu0
        %v869 = vadd.f32 %v805, %v868
        %870 = vmatmul.bf16.gmra.mxu0 %v513
        %v871 = vpop.f32.mrf.mxu0
        %v872 = vadd.f32 %v808, %v871
        %v873 = vpop.f32.mrf.mxu0
        %v874 = vadd.f32 %v810, %v873
        %875 = vmatmul.bf16.gmra.mxu0 %v517
        %v876 = vpop.f32.mrf.mxu0
        %v877 = vadd.f32 %v813, %v876
        %v878 = vpop.f32.mrf.mxu0
        %v879 = vadd.f32 %v815, %v878
        %880 = vmatmul.bf16.gmra.mxu0 %v521
        %v881 = vpop.f32.mrf.mxu0
        %v882 = vadd.f32 %v818, %v881
        %v883 = vpop.f32.mrf.mxu0
        %v884 = vadd.f32 %v820, %v883
        %885 = vmatmul.bf16.gmra.mxu0 %v525
        %v886 = vpop.f32.mrf.mxu0
        %v887 = vadd.f32 %v823, %v886
        %v888 = vpop.f32.mrf.mxu0
        %v889 = vadd.f32 %v825, %v888
        %890 = vmatmul.bf16.gmra.mxu0 %v529
        %v891 = vpop.f32.mrf.mxu0
        %v892 = vadd.f32 %v828, %v891
        %v893 = vpop.f32.mrf.mxu0
        %v894 = vadd.f32 %v830, %v893
        %895 = vdwg.mxu0
        %896 = vmatpush.bf16.msra.mxu0 %v727
        %897 = vmatpush.bf16.msra.mxu0 %v726
        %898 = vmatpush.bf16.msra.mxu0 %v725
        %899 = vmatpush.bf16.msra.mxu0 %v724
        %900 = vmatpush.bf16.msra.mxu0 %v723
        %901 = vmatpush.bf16.msra.mxu0 %v722
        %902 = vmatpush.bf16.msra.mxu0 %v721
        %903 = vmatpush.bf16.msra.mxu0 %v720
        %904 = vmatmul.bf16.gmra.mxu0 %v490
        %v905 = vpop.f32.mrf.mxu0
        %v906 = vadd.f32 %v842, %v905
        %v907 = vpop.f32.mrf.mxu0
        %v908 = vadd.f32 %v844, %v907
        %909 = vmatmul.bf16.gmra.mxu0 %v494
        %v910 = vpop.f32.mrf.mxu0
        %v911 = vadd.f32 %v847, %v910
        %v912 = vpop.f32.mrf.mxu0
        %v913 = vadd.f32 %v849, %v912
        %914 = vmatmul.bf16.gmra.mxu0 %v498
        %v915 = vpop.f32.mrf.mxu0
        %v916 = vadd.f32 %v852, %v915
        %v917 = vpop.f32.mrf.mxu0
        %v918 = vadd.f32 %v854, %v917
        %919 = vmatmul.bf16.gmra.mxu0 %v502
        %v920 = vpop.f32.mrf.mxu0
        %v921 = vadd.f32 %v857, %v920
        %v922 = vpop.f32.mrf.mxu0
        %v923 = vadd.f32 %v859, %v922
        %924 = vmatmul.bf16.gmra.mxu0 %v506
        %v925 = vpop.f32.mrf.mxu0
        %v926 = vadd.f32 %v862, %v925
        %v927 = vpop.f32.mrf.mxu0
        %v928 = vadd.f32 %v864, %v927
        %929 = vmatmul.bf16.gmra.mxu0 %v510
        %v930 = vpop.f32.mrf.mxu0
        %v931 = vadd.f32 %v867, %v930
        %v932 = vpop.f32.mrf.mxu0
        %v933 = vadd.f32 %v869, %v932
        %934 = vmatmul.bf16.gmra.mxu0 %v514
        %v935 = vpop.f32.mrf.mxu0
        %v936 = vadd.f32 %v872, %v935
        %v937 = vpop.f32.mrf.mxu0
        %v938 = vadd.f32 %v874, %v937
        %939 = vmatmul.bf16.gmra.mxu0 %v518
        %v940 = vpop.f32.mrf.mxu0
        %v941 = vadd.f32 %v877, %v940
        %v942 = vpop.f32.mrf.mxu0
        %v943 = vadd.f32 %v879, %v942
        %944 = vmatmul.bf16.gmra.mxu0 %v522
        %v945 = vpop.f32.mrf.mxu0
        %v946 = vadd.f32 %v882, %v945
        %v947 = vpop.f32.mrf.mxu0
        %v948 = vadd.f32 %v884, %v947
        %949 = vmatmul.bf16.gmra.mxu0 %v526
        %v950 = vpop.f32.mrf.mxu0
        %v951 = vadd.f32 %v887, %v950
        %v952 = vpop.f32.mrf.mxu0
        %v953 = vadd.f32 %v889, %v952
        %954 = vmatmul.bf16.gmra.mxu0 %v530
        %v955 = vpop.f32.mrf.mxu0
        %v956 = vadd.f32 %v892, %v955
        %v957 = vpop.f32.mrf.mxu0
        %v958 = vadd.f32 %v894, %v957
        %959 = vdwg.mxu0
        %960 = vmatpush.bf16.msra.mxu0 %v735
        %961 = vmatpush.bf16.msra.mxu0 %v734
        %962 = vmatpush.bf16.msra.mxu0 %v733
        %963 = vmatpush.bf16.msra.mxu0 %v732
        %964 = vmatpush.bf16.msra.mxu0 %v731
        %965 = vmatpush.bf16.msra.mxu0 %v730
        %966 = vmatpush.bf16.msra.mxu0 %v729
        %967 = vmatpush.bf16.msra.mxu0 %v728
        %968 = vmatmul.bf16.gmra.mxu0 %v491
        %v969 = vpop.f32.mrf.mxu0
        %v970 = vadd.f32 %v906, %v969
        %v971 = vpop.f32.mrf.mxu0
        %v972 = vadd.f32 %v908, %v971
        %973 = vmatmul.bf16.gmra.mxu0 %v495
        %v974 = vpop.f32.mrf.mxu0
        %v975 = vadd.f32 %v911, %v974
        %v976 = vpop.f32.mrf.mxu0
        %v977 = vadd.f32 %v913, %v976
        %978 = vmatmul.bf16.gmra.mxu0 %v499
        %v979 = vpop.f32.mrf.mxu0
        %v980 = vadd.f32 %v916, %v979
        %v981 = vpop.f32.mrf.mxu0
        %v982 = vadd.f32 %v918, %v981
        %983 = vmatmul.bf16.gmra.mxu0 %v503
        %v984 = vpop.f32.mrf.mxu0
        %v985 = vadd.f32 %v921, %v984
        %v986 = vpop.f32.mrf.mxu0
        %v987 = vadd.f32 %v923, %v986
        %988 = vmatmul.bf16.gmra.mxu0 %v507
        %v989 = vpop.f32.mrf.mxu0
        %v990 = vadd.f32 %v926, %v989
        %v991 = vpop.f32.mrf.mxu0
        %v992 = vadd.f32 %v928, %v991
        %993 = vmatmul.bf16.gmra.mxu0 %v511
        %v994 = vpop.f32.mrf.mxu0
        %v995 = vadd.f32 %v931, %v994
        %v996 = vpop.f32.mrf.mxu0
        %v997 = vadd.f32 %v933, %v996
        %998 = vmatmul.bf16.gmra.mxu0 %v515
        %v999 = vpop.f32.mrf.mxu0
        %v1000 = vadd.f32 %v936, %v999
        %v1001 = vpop.f32.mrf.mxu0
        %v1002 = vadd.f32 %v938, %v1001
        %1003 = vmatmul.bf16.gmra.mxu0 %v519
        %v1004 = vpop.f32.mrf.mxu0
        %v1005 = vadd.f32 %v941, %v1004
        %v1006 = vpop.f32.mrf.mxu0
        %v1007 = vadd.f32 %v943, %v1006
        %1008 = vmatmul.bf16.gmra.mxu0 %v523
        %v1009 = vpop.f32.mrf.mxu0
        %v1010 = vadd.f32 %v946, %v1009
        %v1011 = vpop.f32.mrf.mxu0
        %v1012 = vadd.f32 %v948, %v1011
        %1013 = vmatmul.bf16.gmra.mxu0 %v527
        %v1014 = vpop.f32.mrf.mxu0
        %v1015 = vadd.f32 %v951, %v1014
        %v1016 = vpop.f32.mrf.mxu0
        %v1017 = vadd.f32 %v953, %v1016
        %1018 = vmatmul.bf16.gmra.mxu0 %v531
        %v1019 = vpop.f32.mrf.mxu0
        %v1020 = vadd.f32 %v956, %v1019
        %v1021 = vpop.f32.mrf.mxu0
        %v1022 = vadd.f32 %v958, %v1021
        %1023 = vdwg.mxu0
        %s1024 = scalar_lea.vmem [#allocation2], %s235
        %vm1025 = vcmask 523264
        %1026 = vst.msk [vmem:[%s1024] sm:$0xff] %vm1025, %v970
        %1027 = vst.msk [vmem:[%s1024 + $0x8] sm:$0xff] %vm1025, %v972
        %1028 = vst.msk [vmem:[%s1024 + $0x10] sm:$0xff] %vm1025, %v975
        %1029 = vst.msk [vmem:[%s1024 + $0x18] sm:$0xff] %vm1025, %v977
        %1030 = vst.msk [vmem:[%s1024 + $0x20] sm:$0xff] %vm1025, %v980
        %1031 = vst.msk [vmem:[%s1024 + $0x28] sm:$0xff] %vm1025, %v982
        %1032 = vst.msk [vmem:[%s1024 + $0x30] sm:$0xff] %vm1025, %v985
        %1033 = vst.msk [vmem:[%s1024 + $0x38] sm:$0xff] %vm1025, %v987
        %1034 = vst.msk [vmem:[%s1024 + $0x40] sm:$0xff] %vm1025, %v990
        %1035 = vst.msk [vmem:[%s1024 + $0x48] sm:$0xff] %vm1025, %v992
        %1036 = vst.msk [vmem:[%s1024 + $0x50] sm:$0xff] %vm1025, %v995
        %1037 = vst.msk [vmem:[%s1024 + $0x58] sm:$0xff] %vm1025, %v997
        %1038 = vst.msk [vmem:[%s1024 + $0x60] sm:$0xff] %vm1025, %v1000
        %1039 = vst.msk [vmem:[%s1024 + $0x68] sm:$0xff] %vm1025, %v1002
        %1040 = vst.msk [vmem:[%s1024 + $0x70] sm:$0xff] %vm1025, %v1005
        %1041 = vst.msk [vmem:[%s1024 + $0x78] sm:$0xff] %vm1025, %v1007
        %1042 = vst.msk [vmem:[%s1024 + $0x80] sm:$0xff] %vm1025, %v1010
        %1043 = vst.msk [vmem:[%s1024 + $0x88] sm:$0xff] %vm1025, %v1012
        %1044 = vst.msk [vmem:[%s1024 + $0x90] sm:$0xff] %vm1025, %v1015
        %1045 = vst.msk [vmem:[%s1024 + $0x98] sm:$0xff] %vm1025, %v1017
        %1046 = vst.msk [vmem:[%s1024 + $0xa0] sm:$0xff] %vm1025, %v1020
        %1047 = vst.msk [vmem:[%s1024 + $0xa8] sm:$0xff] %vm1025, %v1022
        %v1048 = vld [vmem:[#allocation3] sm:$0x1]
        %v1049 = vsel %vm1025, %v970, 0.0
        %v1050 = vsel %vm1025, %v972, 0.0
        %v1051 = vadd.f32 %v1049, %v1050
        %v1052 = vsel %vm1025, %v975, 0.0
        %v1053 = vadd.f32 %v1051, %v1052
        %v1054 = vsel %vm1025, %v977, 0.0
        %v1055 = vadd.f32 %v1053, %v1054
        %v1056 = vsel %vm1025, %v980, 0.0
        %v1057 = vadd.f32 %v1055, %v1056
        %v1058 = vsel %vm1025, %v982, 0.0
        %v1059 = vadd.f32 %v1057, %v1058
        %v1060 = vsel %vm1025, %v985, 0.0
        %v1061 = vadd.f32 %v1059, %v1060
        %v1062 = vsel %vm1025, %v987, 0.0
        %v1063 = vadd.f32 %v1061, %v1062
        %v1064 = vsel %vm1025, %v990, 0.0
        %v1065 = vadd.f32 %v1063, %v1064
        %v1066 = vsel %vm1025, %v992, 0.0
        %v1067 = vadd.f32 %v1065, %v1066
        %v1068 = vsel %vm1025, %v995, 0.0
        %v1069 = vadd.f32 %v1067, %v1068
        %v1070 = vsel %vm1025, %v997, 0.0
        %v1071 = vadd.f32 %v1069, %v1070
        %v1072 = vsel %vm1025, %v1000, 0.0
        %v1073 = vadd.f32 %v1071, %v1072
        %v1074 = vsel %vm1025, %v1002, 0.0
        %v1075 = vadd.f32 %v1073, %v1074
        %v1076 = vsel %vm1025, %v1005, 0.0
        %v1077 = vadd.f32 %v1075, %v1076
        %v1078 = vsel %vm1025, %v1007, 0.0
        %v1079 = vadd.f32 %v1077, %v1078
        %v1080 = vsel %vm1025, %v1010, 0.0
        %v1081 = vadd.f32 %v1079, %v1080
        %v1082 = vsel %vm1025, %v1012, 0.0
        %v1083 = vadd.f32 %v1081, %v1082
        %v1084 = vsel %vm1025, %v1015, 0.0
        %v1085 = vadd.f32 %v1083, %v1084
        %v1086 = vsel %vm1025, %v1017, 0.0
        %v1087 = vadd.f32 %v1085, %v1086
        %v1088 = vsel %vm1025, %v1020, 0.0
        %v1089 = vadd.f32 %v1087, %v1088
        %v1090 = vsel %vm1025, %v1022, 0.0
        %v1091 = vadd.f32 %v1089, %v1090
        %v1092 = vrot.slane %v1091, 4
        %v1093 = vadd.f32 %v1091, %v1092
        %v1094 = vrot.slane %v1093, 2
        %v1095 = vadd.f32 %v1093, %v1094
        %v1096 = vrot.slane %v1095, 1
        %v1097 = vadd.f32 %v1095, %v1096
        %v1098 = vadd.f32 %v1048, %v1097
        %vm1099 = vcmask 516096
        %1100 = vst.msk [vmem:[#allocation3] sm:$0x1] %vm1099, %v1098
        %v1101 = vld [vmem:[#allocation4] sm:$0x1]
        %v1102 = vmul.f32 %v970, %v970
        %v1103 = vmul.f32 %v972, %v972
        %v1104 = vmul.f32 %v975, %v975
        %v1105 = vmul.f32 %v977, %v977
        %v1106 = vmul.f32 %v980, %v980
        %v1107 = vmul.f32 %v982, %v982
        %v1108 = vmul.f32 %v985, %v985
        %v1109 = vmul.f32 %v987, %v987
        %v1110 = vmul.f32 %v990, %v990
        %v1111 = vmul.f32 %v992, %v992
        %v1112 = vmul.f32 %v995, %v995
        %v1113 = vmul.f32 %v997, %v997
        %v1114 = vmul.f32 %v1000, %v1000
        %v1115 = vmul.f32 %v1002, %v1002
        %v1116 = vmul.f32 %v1005, %v1005
        %v1117 = vmul.f32 %v1007, %v1007
        %v1118 = vmul.f32 %v1010, %v1010
        %v1119 = vmul.f32 %v1012, %v1012
        %v1120 = vmul.f32 %v1015, %v1015
        %v1121 = vmul.f32 %v1017, %v1017
        %v1122 = vmul.f32 %v1020, %v1020
        %v1123 = vmul.f32 %v1022, %v1022
        %v1124 = vsel %vm1025, %v1102, 0.0
        %v1125 = vsel %vm1025, %v1103, 0.0
        %v1126 = vadd.f32 %v1124, %v1125
        %v1127 = vsel %vm1025, %v1104, 0.0
        %v1128 = vadd.f32 %v1126, %v1127
        %v1129 = vsel %vm1025, %v1105, 0.0
        %v1130 = vadd.f32 %v1128, %v1129
        %v1131 = vsel %vm1025, %v1106, 0.0
        %v1132 = vadd.f32 %v1130, %v1131
        %v1133 = vsel %vm1025, %v1107, 0.0
        %v1134 = vadd.f32 %v1132, %v1133
        %v1135 = vsel %vm1025, %v1108, 0.0
        %v1136 = vadd.f32 %v1134, %v1135
        %v1137 = vsel %vm1025, %v1109, 0.0
        %v1138 = vadd.f32 %v1136, %v1137
        %v1139 = vsel %vm1025, %v1110, 0.0
        %v1140 = vadd.f32 %v1138, %v1139
        %v1141 = vsel %vm1025, %v1111, 0.0
        %v1142 = vadd.f32 %v1140, %v1141
        %v1143 = vsel %vm1025, %v1112, 0.0
        %v1144 = vadd.f32 %v1142, %v1143
        %v1145 = vsel %vm1025, %v1113, 0.0
        %v1146 = vadd.f32 %v1144, %v1145
        %v1147 = vsel %vm1025, %v1114, 0.0
        %v1148 = vadd.f32 %v1146, %v1147
        %v1149 = vsel %vm1025, %v1115, 0.0
        %v1150 = vadd.f32 %v1148, %v1149
        %v1151 = vsel %vm1025, %v1116, 0.0
        %v1152 = vadd.f32 %v1150, %v1151
        %v1153 = vsel %vm1025, %v1117, 0.0
        %v1154 = vadd.f32 %v1152, %v1153
        %v1155 = vsel %vm1025, %v1118, 0.0
        %v1156 = vadd.f32 %v1154, %v1155
        %v1157 = vsel %vm1025, %v1119, 0.0
        %v1158 = vadd.f32 %v1156, %v1157
        %v1159 = vsel %vm1025, %v1120, 0.0
        %v1160 = vadd.f32 %v1158, %v1159
        %v1161 = vsel %vm1025, %v1121, 0.0
        %v1162 = vadd.f32 %v1160, %v1161
        %v1163 = vsel %vm1025, %v1122, 0.0
        %v1164 = vadd.f32 %v1162, %v1163
        %v1165 = vsel %vm1025, %v1123, 0.0
        %v1166 = vadd.f32 %v1164, %v1165
        %v1167 = vrot.slane %v1166, 4
        %v1168 = vadd.f32 %v1166, %v1167
        %v1169 = vrot.slane %v1168, 2
        %v1170 = vadd.f32 %v1168, %v1169
        %v1171 = vrot.slane %v1170, 1
        %v1172 = vadd.f32 %v1170, %v1171
        %v1173 = vadd.f32 %v1101, %v1172
        %1174 = vst.msk [vmem:[#allocation4] sm:$0x1] %vm1099, %v1173
      $region44: #{dqn_forward.4} parent=35 // pred_fallthru
        _
      %p1175 = scmp.eq.s32.totalorder %s19, 1
      %p1176 = pnand %p1175, %p237
      %p1177 = pneg %p1176
      // Predicated region
      $region45: #{dqn_forward.4} parent=35 // pred_check
        _
      $region46: #{dqn_forward.4} parent=35 // pred_check_branch
        %1179 = sbr.rel (%p1176) target = $region48
      $region47: #{dqn_forward.4} parent=35 // pred_region
        %v1180 = vld [vmem:[#allocation3] sm:$0x1]
        %v1181 = vrcp.pop 162.0
        %v1182 = vmul.f32 162.0, %v1181
        %v1183 = vsub.f32 1.0, %v1182
        %v1184 = vmul.f32 %v1181, %v1183
        %v1185 = vadd.f32 %v1181, %v1184
        %vm1186 = vweird.f32 %v1181
        %v1187 = vsel %vm1186, %v1181, %v1185
        %v1188 = vmul.f32 %v1180, %v1187
        %v1189 = vld [vmem:[#allocation4] sm:$0x1]
        %v1190 = vmul.f32 %v1189, %v1187
        %v1191 = vmul.f32 %v1188, %v1188
        %v1192 = vsub.f32 %v1190, %v1191
        %v1193 = vld [vmem:[%s2] sm:$0x1]
        %v1194 = vadd.f32 %v1192, 1e-05
        %v1195 = vrsqrt.pop %v1194
        %v1196 = vmul.f32 %v1195, %v1194
        %v1197 = vmul.f32 %v1196, %v1195
        %v1198 = vmul.f32 0.5, %v1197
        %v1199 = vsub.f32 1.5, %v1198
        %v1200 = vmul.f32 %v1195, %v1199
        %vm1201 = vweird.f32 %v1194
        %vm1202 = vweird.f32 %v1195
        %vm1203 = vmor %vm1201, %vm1202
        %v1204 = vsel %vm1203, %v1195, %v1200
        %v1205 = vmul.f32 %v1193, %v1204
        %vm1206 = vcmask 516096
        %1207 = vst.msk [vmem:[#allocation5] sm:$0x1] %vm1206, %v1205
        %v1208 = vld [vmem:[%s3] sm:$0x1]
        %v1209 = vmul.f32 %v1188, %v1205
        %v1210 = vsub.f32 %v1208, %v1209
        %1211 = vst.msk [vmem:[#allocation6] sm:$0x1] %vm1206, %v1210
      $region48: #{dqn_forward.4} parent=35 // pred_fallthru
        _
      // Predicated region
      $region49: #{dqn_forward.4} parent=35 // pred_check
        %p1212 = pneg %p1175
      $region50: #{dqn_forward.4} parent=35 // pred_check_branch
        %1214 = sbr.rel (%p1212) target = $region52
      $region51: #{dqn_forward.4} parent=35 // pred_region
        %s1215 = scalar_lea.vmem [#allocation2], %s235
        %v1216 = vld [vmem:[%s1215] sm:$0xff]
        %v1217 = vld [vmem:[%s1215 + $0x8] sm:$0xff]
        %v1218 = vld [vmem:[%s1215 + $0x10] sm:$0xff]
        %v1219 = vld [vmem:[%s1215 + $0x18] sm:$0xff]
        %v1220 = vld [vmem:[%s1215 + $0x20] sm:$0xff]
        %v1221 = vld [vmem:[%s1215 + $0x28] sm:$0xff]
        %v1222 = vld [vmem:[%s1215 + $0x30] sm:$0xff]
        %v1223 = vld [vmem:[%s1215 + $0x38] sm:$0xff]
        %v1224 = vld [vmem:[%s1215 + $0x40] sm:$0xff]
        %v1225 = vld [vmem:[%s1215 + $0x48] sm:$0xff]
        %v1226 = vld [vmem:[%s1215 + $0x50] sm:$0xff]
        %v1227 = vld [vmem:[%s1215 + $0x58] sm:$0xff]
        %v1228 = vld [vmem:[%s1215 + $0x60] sm:$0xff]
        %v1229 = vld [vmem:[%s1215 + $0x68] sm:$0xff]
        %v1230 = vld [vmem:[%s1215 + $0x70] sm:$0xff]
        %v1231 = vld [vmem:[%s1215 + $0x78] sm:$0xff]
        %v1232 = vld [vmem:[%s1215 + $0x80] sm:$0xff]
        %v1233 = vld [vmem:[%s1215 + $0x88] sm:$0xff]
        %v1234 = vld [vmem:[%s1215 + $0x90] sm:$0xff]
        %v1235 = vld [vmem:[%s1215 + $0x98] sm:$0xff]
        %v1236 = vld [vmem:[%s1215 + $0xa0] sm:$0xff]
        %v1237 = vld [vmem:[%s1215 + $0xa8] sm:$0xff]
        %v1238 = vld [vmem:[#allocation5] sm:$0x1]
        %v1240 = vperm.slane %v1238, 0
        %v1242 = vmul.f32 %v1216, %v1240
        %v1243 = vmul.f32 %v1217, %v1240
        %v1244 = vmul.f32 %v1218, %v1240
        %v1245 = vmul.f32 %v1219, %v1240
        %v1246 = vmul.f32 %v1220, %v1240
        %v1247 = vmul.f32 %v1221, %v1240
        %v1248 = vmul.f32 %v1222, %v1240
        %v1249 = vmul.f32 %v1223, %v1240
        %v1250 = vmul.f32 %v1224, %v1240
        %v1251 = vmul.f32 %v1225, %v1240
        %v1252 = vmul.f32 %v1226, %v1240
        %v1253 = vmul.f32 %v1227, %v1240
        %v1254 = vmul.f32 %v1228, %v1240
        %v1255 = vmul.f32 %v1229, %v1240
        %v1256 = vmul.f32 %v1230, %v1240
        %v1257 = vmul.f32 %v1231, %v1240
        %v1258 = vmul.f32 %v1232, %v1240
        %v1259 = vmul.f32 %v1233, %v1240
        %v1260 = vmul.f32 %v1234, %v1240
        %v1261 = vmul.f32 %v1235, %v1240
        %v1262 = vmul.f32 %v1236, %v1240
        %v1263 = vmul.f32 %v1237, %v1240
        %v1264 = vld [vmem:[#allocation6] sm:$0x1]
        %v1266 = vperm.slane %v1264, 0
        %v1268 = vadd.f32 %v1242, %v1266
        %v1269 = vadd.f32 %v1243, %v1266
        %v1270 = vadd.f32 %v1244, %v1266
        %v1271 = vadd.f32 %v1245, %v1266
        %v1272 = vadd.f32 %v1246, %v1266
        %v1273 = vadd.f32 %v1247, %v1266
        %v1274 = vadd.f32 %v1248, %v1266
        %v1275 = vadd.f32 %v1249, %v1266
        %v1276 = vadd.f32 %v1250, %v1266
        %v1277 = vadd.f32 %v1251, %v1266
        %v1278 = vadd.f32 %v1252, %v1266
        %v1279 = vadd.f32 %v1253, %v1266
        %v1280 = vadd.f32 %v1254, %v1266
        %v1281 = vadd.f32 %v1255, %v1266
        %v1282 = vadd.f32 %v1256, %v1266
        %v1283 = vadd.f32 %v1257, %v1266
        %v1284 = vadd.f32 %v1258, %v1266
        %v1285 = vadd.f32 %v1259, %v1266
        %v1286 = vadd.f32 %v1260, %v1266
        %v1287 = vadd.f32 %v1261, %v1266
        %v1288 = vadd.f32 %v1262, %v1266
        %v1289 = vadd.f32 %v1263, %v1266
        %v1290 = vmax.f32 %v1268, 0.0
        %v1291 = vmax.f32 %v1269, 0.0
        %v1292 = vmax.f32 %v1270, 0.0
        %v1293 = vmax.f32 %v1271, 0.0
        %v1294 = vmax.f32 %v1272, 0.0
        %v1295 = vmax.f32 %v1273, 0.0
        %v1296 = vmax.f32 %v1274, 0.0
        %v1297 = vmax.f32 %v1275, 0.0
        %v1298 = vmax.f32 %v1276, 0.0
        %v1299 = vmax.f32 %v1277, 0.0
        %v1300 = vmax.f32 %v1278, 0.0
        %v1301 = vmax.f32 %v1279, 0.0
        %v1302 = vmax.f32 %v1280, 0.0
        %v1303 = vmax.f32 %v1281, 0.0
        %v1304 = vmax.f32 %v1282, 0.0
        %v1305 = vmax.f32 %v1283, 0.0
        %v1306 = vmax.f32 %v1284, 0.0
        %v1307 = vmax.f32 %v1285, 0.0
        %v1308 = vmax.f32 %v1286, 0.0
        %v1309 = vmax.f32 %v1287, 0.0
        %v1310 = vmax.f32 %v1288, 0.0
        %v1311 = vmax.f32 %v1289, 0.0
        %v1312 = vpack.c.bf16 %v1290, %v1290
        %v1313 = vpack.c.bf16 %v1291, %v1291
        %v1314 = vpack.c.bf16 %v1292, %v1292
        %v1315 = vpack.c.bf16 %v1293, %v1293
        %v1316 = vpack.c.bf16 %v1294, %v1294
        %v1317 = vpack.c.bf16 %v1295, %v1295
        %v1318 = vpack.c.bf16 %v1296, %v1296
        %v1319 = vpack.c.bf16 %v1297, %v1297
        %v1320 = vpack.c.bf16 %v1298, %v1298
        %v1321 = vpack.c.bf16 %v1299, %v1299
        %v1322 = vpack.c.bf16 %v1300, %v1300
        %v1323 = vpack.c.bf16 %v1301, %v1301
        %v1324 = vpack.c.bf16 %v1302, %v1302
        %v1325 = vpack.c.bf16 %v1303, %v1303
        %v1326 = vpack.c.bf16 %v1304, %v1304
        %v1327 = vpack.c.bf16 %v1305, %v1305
        %v1328 = vpack.c.bf16 %v1306, %v1306
        %v1329 = vpack.c.bf16 %v1307, %v1307
        %v1330 = vpack.c.bf16 %v1308, %v1308
        %v1331 = vpack.c.bf16 %v1309, %v1309
        %v1332 = vpack.c.bf16 %v1310, %v1310
        %v1333 = vpack.c.bf16 %v1311, %v1311
        %vm1334 = vcmask 519168
        %1335 = vst.msk [vmem:[%s232] sm:$0xf] %vm1334, %v1312
        %1336 = vst.msk [vmem:[%s232 + $0x4] sm:$0xf] %vm1334, %v1313
        %1337 = vst.msk [vmem:[%s232 + $0x8] sm:$0xf] %vm1334, %v1314
        %1338 = vst.msk [vmem:[%s232 + $0xc] sm:$0xf] %vm1334, %v1315
        %1339 = vst.msk [vmem:[%s232 + $0x10] sm:$0xf] %vm1334, %v1316
        %1340 = vst.msk [vmem:[%s232 + $0x14] sm:$0xf] %vm1334, %v1317
        %1341 = vst.msk [vmem:[%s232 + $0x18] sm:$0xf] %vm1334, %v1318
        %1342 = vst.msk [vmem:[%s232 + $0x1c] sm:$0xf] %vm1334, %v1319
        %1343 = vst.msk [vmem:[%s232 + $0x20] sm:$0xf] %vm1334, %v1320
        %1344 = vst.msk [vmem:[%s232 + $0x24] sm:$0xf] %vm1334, %v1321
        %1345 = vst.msk [vmem:[%s232 + $0x28] sm:$0xf] %vm1334, %v1322
        %1346 = vst.msk [vmem:[%s232 + $0x2c] sm:$0xf] %vm1334, %v1323
        %1347 = vst.msk [vmem:[%s232 + $0x30] sm:$0xf] %vm1334, %v1324
        %1348 = vst.msk [vmem:[%s232 + $0x34] sm:$0xf] %vm1334, %v1325
        %1349 = vst.msk [vmem:[%s232 + $0x38] sm:$0xf] %vm1334, %v1326
        %1350 = vst.msk [vmem:[%s232 + $0x3c] sm:$0xf] %vm1334, %v1327
        %1351 = vst.msk [vmem:[%s232 + $0x40] sm:$0xf] %vm1334, %v1328
        %1352 = vst.msk [vmem:[%s232 + $0x44] sm:$0xf] %vm1334, %v1329
        %1353 = vst.msk [vmem:[%s232 + $0x48] sm:$0xf] %vm1334, %v1330
        %1354 = vst.msk [vmem:[%s232 + $0x4c] sm:$0xf] %vm1334, %v1331
        %1355 = vst.msk [vmem:[%s232 + $0x50] sm:$0xf] %vm1334, %v1332
        %1356 = vst.msk [vmem:[%s232 + $0x54] sm:$0xf] %vm1334, %v1333
      $region52: #{dqn_forward.4} parent=35 // pred_fallthru
        _
      %s1357 = smul.u32 %s20, %s19
      %s1358 = smul.u32 22, %s1357
      %p1359 = scmp.lt.s32.totalorder %s1358, 21
      %s1360 = scalar_select %p1359, %s1358, 21
      %s1361 = smul.addr %s1360, 4
      %s1362 = scalar_lea.vmem %s4, %s1361
      // Predicated region
      $region53: #{dqn_forward.4} parent=35 // pred_check
        %p1363 = pneg %p140
      $region54: #{dqn_forward.4} parent=35 // pred_check_branch
        %1365 = sbr.rel (%p1363) target = $region56
      $region55: #{dqn_forward.4} parent=35 // pred_region
        %s1366 = smul.u32 %s20, %s19
        %s1367 = smul.u32 22, %s1366
      $region56: #{dqn_forward.4} parent=35 // pred_fallthru
        _
    $region36: #{dqn_forward.4} parent=5 // pred_fallthru
      _
    %p1368 = scmp.le.s32.totalorder 2, %s10
    // Predicated region
    $region57: #{dqn_forward.4} parent=5 // pred_check
      %p1369 = pneg %p1368
    $region58: #{dqn_forward.4} parent=5 // pred_check_branch
      %1371 = sbr.rel (%p1369) target = $region60
    $region59: #{dqn_forward.4} parent=5 // pred_region
      %s1372 = ssub.s32 %s10, 2
      // Predicated region
      $region61: #{dqn_forward.4} parent=59 // pred_check
        %p1373 = pneg %p146
      $region62: #{dqn_forward.4} parent=59 // pred_check_branch
        %1375 = sbr.rel (%p1373) target = $region64
      $region63: #{dqn_forward.4} parent=59 // pred_region
        %s1376 = smul.u32 %s22, %s21
        %s1377 = smul.u32 22, %s1376
        %p1378 = scmp.lt.s32.totalorder %s1377, 21
        %s1379 = scalar_select %p1378, %s1377, 21
        %s1380 = smul.addr %s1379, 4
        %s1381 = scalar_lea.vmem %s4, %s1380
      $region64: #{dqn_forward.4} parent=59 // pred_fallthru
        _
    $region60: #{dqn_forward.4} parent=5 // pred_fallthru
      _
  $region6: #{dqn_forward.4} parent=0 // loop_footer
    %s14 = sadd.s32 1, %s10
  $region7: #{dqn_forward.4} parent=0 // loop_footer_branch
    %9 = sbr.rel target = $region3
  $region8: #{dqn_forward.4} parent=0 // loop_exit
    _

// kernel: dqn_forward.5
$region0: #{dqn_forward.5}
  #allocation0 [shape = 'u32[]', space=smem, size = 0x4, offset = 0x4, fixed_abs, tag = 'smem constant byte address 0x4 - core index']
  #allocation1 [shape = 'u32[72,128]{1,0:T(1,128)}', space=vmem, size = 0x9000, scoped, tag = 'internal scratch']
  %s0 = inlined_call_operand.vmem [shape: bf16[16,5184], index: 0, kind: input, shape index: {}]
  %s1 = inlined_call_operand.vmem [shape: bf16[5184,512], index: 1, kind: input, shape index: {}]
  %s2 = inlined_call_operand.vmem [shape: f32[1,512], index: 2, kind: input, shape index: {}]
  %s3 = inlined_call_operand.vmem [shape: bf16[512,128], index: 3, kind: input, shape index: {}]
  %s4 = inlined_call_operand.vmem [shape: f32[1,128], index: 4, kind: input, shape index: {}]
  %s5 = inlined_call_operand.vmem [shape: f32[16,128], index: 5, kind: output, shape index: {}]
  %s6 = sld [smem:[#allocation0]]
  $region30: #{dqn_forward.5} parent=0
    _
  %s8 = ssub.s32 1, %s6
  %s9 = scalar_select 0, %s8, %s6
  // Predicated region
  $region2: #{dqn_forward.5} parent=0 // pred_check
    _
  $region3: #{dqn_forward.5} parent=0 // pred_check_branch
    %11 = sbr.rel (0) target = $region5
  $region4: #{dqn_forward.5} parent=0 // pred_region
    _
  $region5: #{dqn_forward.5} parent=0 // pred_fallthru
    _
  // Predicated region
  $region6: #{dqn_forward.5} parent=0 // pred_check
    _
  $region7: #{dqn_forward.5} parent=0 // pred_check_branch
    %13 = sbr.rel (0) target = $region9
  $region8: #{dqn_forward.5} parent=0 // pred_region
    _
  $region9: #{dqn_forward.5} parent=0 // pred_fallthru
    _
  // Predicated region
  $region10: #{dqn_forward.5} parent=0 // pred_check
    _
  $region11: #{dqn_forward.5} parent=0 // pred_check_branch
    %15 = sbr.rel (0) target = $region13
  $region12: #{dqn_forward.5} parent=0 // pred_region
    _
  $region13: #{dqn_forward.5} parent=0 // pred_fallthru
    _
  // Predicated region
  $region14: #{dqn_forward.5} parent=0 // pred_check
    _
  $region15: #{dqn_forward.5} parent=0 // pred_check_branch
    %17 = sbr.rel (0) target = $region17
  $region16: #{dqn_forward.5} parent=0 // pred_region
    _
  $region17: #{dqn_forward.5} parent=0 // pred_fallthru
    _
  // Predicated region
  $region18: #{dqn_forward.5} parent=0 // pred_check
    _
  $region19: #{dqn_forward.5} parent=0 // pred_check_branch
    %19 = sbr.rel (0) target = $region21
  $region20: #{dqn_forward.5} parent=0 // pred_region
    _
  $region21: #{dqn_forward.5} parent=0 // pred_fallthru
    _
  %v21 = vld [vmem:[%s0] sm:$0xff]
  %v22 = vld [vmem:[%s0 + $0x8] sm:$0xff]
  %v23 = vld [vmem:[%s0 + $0x10] sm:$0xff]
  %v24 = vld [vmem:[%s0 + $0x18] sm:$0xff]
  %v25 = vld [vmem:[%s0 + $0x20] sm:$0xff]
  %v26 = vld [vmem:[%s0 + $0x28] sm:$0xff]
  %v27 = vld [vmem:[%s0 + $0x30] sm:$0xff]
  %v28 = vld [vmem:[%s0 + $0x38] sm:$0xff]
  %v29 = vld [vmem:[%s0 + $0x40] sm:$0xff]
  %v30 = vld [vmem:[%s0 + $0x48] sm:$0xff]
  %v31 = vld [vmem:[%s0 + $0x50] sm:$0xff]
  %v32 = vld [vmem:[%s0 + $0x58] sm:$0xff]
  %v33 = vld [vmem:[%s0 + $0x60] sm:$0xff]
  %v34 = vld [vmem:[%s0 + $0x68] sm:$0xff]
  %v35 = vld [vmem:[%s0 + $0x70] sm:$0xff]
  %v36 = vld [vmem:[%s0 + $0x78] sm:$0xff]
  %v37 = vld [vmem:[%s0 + $0x80] sm:$0xff]
  %v38 = vld [vmem:[%s0 + $0x88] sm:$0xff]
  %v39 = vld [vmem:[%s0 + $0x90] sm:$0xff]
  %v40 = vld [vmem:[%s0 + $0x98] sm:$0xff]
  %v41 = vld [vmem:[%s0 + $0xa0] sm:$0xf]
  %v42 = vld [vmem:[%s0 + $0xa4] sm:$0xff]
  %v43 = vld [vmem:[%s0 + $0xac] sm:$0xff]
  %v44 = vld [vmem:[%s0 + $0xb4] sm:$0xff]
  %v45 = vld [vmem:[%s0 + $0xbc] sm:$0xff]
  %v46 = vld [vmem:[%s0 + $0xc4] sm:$0xff]
  %v47 = vld [vmem:[%s0 + $0xcc] sm:$0xff]
  %v48 = vld [vmem:[%s0 + $0xd4] sm:$0xff]
  %v49 = vld [vmem:[%s0 + $0xdc] sm:$0xff]
  %v50 = vld [vmem:[%s0 + $0xe4] sm:$0xff]
  %v51 = vld [vmem:[%s0 + $0xec] sm:$0xff]
  %v52 = vld [vmem:[%s0 + $0xf4] sm:$0xff]
  %v53 = vld [vmem:[%s0 + $0xfc] sm:$0xff]
  %v54 = vld [vmem:[%s0 + $0x104] sm:$0xff]
  %v55 = vld [vmem:[%s0 + $0x10c] sm:$0xff]
  %v56 = vld [vmem:[%s0 + $0x114] sm:$0xff]
  %v57 = vld [vmem:[%s0 + $0x11c] sm:$0xff]
  %v58 = vld [vmem:[%s0 + $0x124] sm:$0xff]
  %v59 = vld [vmem:[%s0 + $0x12c] sm:$0xff]
  %v60 = vld [vmem:[%s0 + $0x134] sm:$0xff]
  %v61 = vld [vmem:[%s0 + $0x13c] sm:$0xff]
  %v62 = vld [vmem:[%s0 + $0x144] sm:$0xf]
  %v63 = vld [vmem:[%s1] sm:$0xff]
  %v64 = vld [vmem:[%s1 + $0x8] sm:$0xff]
  %v65 = vld [vmem:[%s1 + $0x10] sm:$0xff]
  %v66 = vld [vmem:[%s1 + $0x18] sm:$0xff]
  %v67 = vld [vmem:[%s1 + $0x20] sm:$0xff]
  %v68 = vld [vmem:[%s1 + $0x28] sm:$0xff]
  %v69 = vld [vmem:[%s1 + $0x30] sm:$0xff]
  %v70 = vld [vmem:[%s1 + $0x38] sm:$0xff]
  %v71 = vld [vmem:[%s1 + $0x40] sm:$0xff]
  %v72 = vld [vmem:[%s1 + $0x48] sm:$0xff]
  %v73 = vld [vmem:[%s1 + $0x50] sm:$0xff]
  %v74 = vld [vmem:[%s1 + $0x58] sm:$0xff]
  %v75 = vld [vmem:[%s1 + $0x60] sm:$0xff]
  %v76 = vld [vmem:[%s1 + $0x68] sm:$0xff]
  %v77 = vld [vmem:[%s1 + $0x70] sm:$0xff]
  %v78 = vld [vmem:[%s1 + $0x78] sm:$0xff]
  %v79 = vld [vmem:[%s1 + $0x80] sm:$0xff]
  %v80 = vld [vmem:[%s1 + $0x88] sm:$0xff]
  %v81 = vld [vmem:[%s1 + $0x90] sm:$0xff]
  %v82 = vld [vmem:[%s1 + $0x98] sm:$0xff]
  %v83 = vld [vmem:[%s1 + $0xa0] sm:$0xff]
  %v84 = vld [vmem:[%s1 + $0xa8] sm:$0xff]
  %v85 = vld [vmem:[%s1 + $0xb0] sm:$0xff]
  %v86 = vld [vmem:[%s1 + $0xb8] sm:$0xff]
  %v87 = vld [vmem:[%s1 + $0xc0] sm:$0xff]
  %v88 = vld [vmem:[%s1 + $0xc8] sm:$0xff]
  %v89 = vld [vmem:[%s1 + $0xd0] sm:$0xff]
  %v90 = vld [vmem:[%s1 + $0xd8] sm:$0xff]
  %v91 = vld [vmem:[%s1 + $0xe0] sm:$0xff]
  %v92 = vld [vmem:[%s1 + $0xe8] sm:$0xff]
  %v93 = vld [vmem:[%s1 + $0xf0] sm:$0xff]
  %v94 = vld [vmem:[%s1 + $0xf8] sm:$0xff]
  %v95 = vld [vmem:[%s1 + $0x100] sm:$0xff]
  %v96 = vld [vmem:[%s1 + $0x108] sm:$0xff]
  %v97 = vld [vmem:[%s1 + $0x110] sm:$0xff]
  %v98 = vld [vmem:[%s1 + $0x118] sm:$0xff]
  %v99 = vld [vmem:[%s1 + $0x120] sm:$0xff]
  %v100 = vld [vmem:[%s1 + $0x128] sm:$0xff]
  %v101 = vld [vmem:[%s1 + $0x130] sm:$0xff]
  %v102 = vld [vmem:[%s1 + $0x138] sm:$0xff]
  %v103 = vld [vmem:[%s1 + $0x140] sm:$0xff]
  %v104 = vld [vmem:[%s1 + $0x148] sm:$0xff]
  %v105 = vld [vmem:[%s1 + $0x150] sm:$0xff]
  %v106 = vld [vmem:[%s1 + $0x158] sm:$0xff]
  %v107 = vld [vmem:[%s1 + $0x160] sm:$0xff]
  %v108 = vld [vmem:[%s1 + $0x168] sm:$0xff]
  %v109 = vld [vmem:[%s1 + $0x170] sm:$0xff]
  %v110 = vld [vmem:[%s1 + $0x178] sm:$0xff]
  %v111 = vld [vmem:[%s1 + $0x180] sm:$0xff]
  %v112 = vld [vmem:[%s1 + $0x188] sm:$0xff]
  %v113 = vld [vmem:[%s1 + $0x190] sm:$0xff]
  %v114 = vld [vmem:[%s1 + $0x198] sm:$0xff]
  %v115 = vld [vmem:[%s1 + $0x1a0] sm:$0xff]
  %v116 = vld [vmem:[%s1 + $0x1a8] sm:$0xff]
  %v117 = vld [vmem:[%s1 + $0x1b0] sm:$0xff]
  %v118 = vld [vmem:[%s1 + $0x1b8] sm:$0xff]
  %v119 = vld [vmem:[%s1 + $0x1c0] sm:$0xff]
  %v120 = vld [vmem:[%s1 + $0x1c8] sm:$0xff]
  %v121 = vld [vmem:[%s1 + $0x1d0] sm:$0xff]
  %v122 = vld [vmem:[%s1 + $0x1d8] sm:$0xff]
  %v123 = vld [vmem:[%s1 + $0x1e0] sm:$0xff]
  %v124 = vld [vmem:[%s1 + $0x1e8] sm:$0xff]
  %v125 = vld [vmem:[%s1 + $0x1f0] sm:$0xff]
  %v126 = vld [vmem:[%s1 + $0x1f8] sm:$0xff]
  %v127 = vld [vmem:[%s1 + $0x200] sm:$0xff]
  %v128 = vld [vmem:[%s1 + $0x208] sm:$0xff]
  %v129 = vld [vmem:[%s1 + $0x210] sm:$0xff]
  %v130 = vld [vmem:[%s1 + $0x218] sm:$0xff]
  %v131 = vld [vmem:[%s1 + $0x220] sm:$0xff]
  %v132 = vld [vmem:[%s1 + $0x228] sm:$0xff]
  %v133 = vld [vmem:[%s1 + $0x230] sm:$0xff]
  %v134 = vld [vmem:[%s1 + $0x238] sm:$0xff]
  %v135 = vld [vmem:[%s1 + $0x240] sm:$0xff]
  %v136 = vld [vmem:[%s1 + $0x248] sm:$0xff]
  %v137 = vld [vmem:[%s1 + $0x250] sm:$0xff]
  %v138 = vld [vmem:[%s1 + $0x258] sm:$0xff]
  %v139 = vld [vmem:[%s1 + $0x260] sm:$0xff]
  %v140 = vld [vmem:[%s1 + $0x268] sm:$0xff]
  %v141 = vld [vmem:[%s1 + $0x270] sm:$0xff]
  %v142 = vld [vmem:[%s1 + $0x278] sm:$0xff]
  %v143 = vld [vmem:[%s1 + $0x280] sm:$0xff]
  %v144 = vld [vmem:[%s1 + $0x288] sm:$0xff]
  %v145 = vld [vmem:[%s1 + $0x290] sm:$0xff]
  %v146 = vld [vmem:[%s1 + $0x298] sm:$0xff]
  %v147 = vld [vmem:[%s1 + $0x2a0] sm:$0xff]
  %v148 = vld [vmem:[%s1 + $0x2a8] sm:$0xff]
  %v149 = vld [vmem:[%s1 + $0x2b0] sm:$0xff]
  %v150 = vld [vmem:[%s1 + $0x2b8] sm:$0xff]
  %v151 = vld [vmem:[%s1 + $0x2c0] sm:$0xff]
  %v152 = vld [vmem:[%s1 + $0x2c8] sm:$0xff]
  %v153 = vld [vmem:[%s1 + $0x2d0] sm:$0xff]
  %v154 = vld [vmem:[%s1 + $0x2d8] sm:$0xff]
  %v155 = vld [vmem:[%s1 + $0x2e0] sm:$0xff]
  %v156 = vld [vmem:[%s1 + $0x2e8] sm:$0xff]
  %v157 = vld [vmem:[%s1 + $0x2f0] sm:$0xff]
  %v158 = vld [vmem:[%s1 + $0x2f8] sm:$0xff]
  %v159 = vld [vmem:[%s1 + $0x300] sm:$0xff]
  %v160 = vld [vmem:[%s1 + $0x308] sm:$0xff]
  %v161 = vld [vmem:[%s1 + $0x310] sm:$0xff]
  %v162 = vld [vmem:[%s1 + $0x318] sm:$0xff]
  %v163 = vld [vmem:[%s1 + $0x320] sm:$0xff]
  %v164 = vld [vmem:[%s1 + $0x328] sm:$0xff]
  %v165 = vld [vmem:[%s1 + $0x330] sm:$0xff]
  %v166 = vld [vmem:[%s1 + $0x338] sm:$0xff]
  %v167 = vld [vmem:[%s1 + $0x340] sm:$0xff]
  %v168 = vld [vmem:[%s1 + $0x348] sm:$0xff]
  %v169 = vld [vmem:[%s1 + $0x350] sm:$0xff]
  %v170 = vld [vmem:[%s1 + $0x358] sm:$0xff]
  %v171 = vld [vmem:[%s1 + $0x360] sm:$0xff]
  %v172 = vld [vmem:[%s1 + $0x368] sm:$0xff]
  %v173 = vld [vmem:[%s1 + $0x370] sm:$0xff]
  %v174 = vld [vmem:[%s1 + $0x378] sm:$0xff]
  %v175 = vld [vmem:[%s1 + $0x380] sm:$0xff]
  %v176 = vld [vmem:[%s1 + $0x388] sm:$0xff]
  %v177 = vld [vmem:[%s1 + $0x390] sm:$0xff]
  %v178 = vld [vmem:[%s1 + $0x398] sm:$0xff]
  %v179 = vld [vmem:[%s1 + $0x3a0] sm:$0xff]
  %v180 = vld [vmem:[%s1 + $0x3a8] sm:$0xff]
  %v181 = vld [vmem:[%s1 + $0x3b0] sm:$0xff]
  %v182 = vld [vmem:[%s1 + $0x3b8] sm:$0xff]
  %v183 = vld [vmem:[%s1 + $0x3c0] sm:$0xff]
  %v184 = vld [vmem:[%s1 + $0x3c8] sm:$0xff]
  %v185 = vld [vmem:[%s1 + $0x3d0] sm:$0xff]
  %v186 = vld [vmem:[%s1 + $0x3d8] sm:$0xff]
  %v187 = vld [vmem:[%s1 + $0x3e0] sm:$0xff]
  %v188 = vld [vmem:[%s1 + $0x3e8] sm:$0xff]
  %v189 = vld [vmem:[%s1 + $0x3f0] sm:$0xff]
  %v190 = vld [vmem:[%s1 + $0x3f8] sm:$0xff]
  %v191 = vld [vmem:[%s1 + $0x400] sm:$0xff]
  %v192 = vld [vmem:[%s1 + $0x408] sm:$0xff]
  %v193 = vld [vmem:[%s1 + $0x410] sm:$0xff]
  %v194 = vld [vmem:[%s1 + $0x418] sm:$0xff]
  %v195 = vld [vmem:[%s1 + $0x420] sm:$0xff]
  %v196 = vld [vmem:[%s1 + $0x428] sm:$0xff]
  %v197 = vld [vmem:[%s1 + $0x430] sm:$0xff]
  %v198 = vld [vmem:[%s1 + $0x438] sm:$0xff]
  %v199 = vld [vmem:[%s1 + $0x440] sm:$0xff]
  %v200 = vld [vmem:[%s1 + $0x448] sm:$0xff]
  %v201 = vld [vmem:[%s1 + $0x450] sm:$0xff]
  %v202 = vld [vmem:[%s1 + $0x458] sm:$0xff]
  %v203 = vld [vmem:[%s1 + $0x460] sm:$0xff]
  %v204 = vld [vmem:[%s1 + $0x468] sm:$0xff]
  %v205 = vld [vmem:[%s1 + $0x470] sm:$0xff]
  %v206 = vld [vmem:[%s1 + $0x478] sm:$0xff]
  %v207 = vld [vmem:[%s1 + $0x480] sm:$0xff]
  %v208 = vld [vmem:[%s1 + $0x488] sm:$0xff]
  %v209 = vld [vmem:[%s1 + $0x490] sm:$0xff]
  %v210 = vld [vmem:[%s1 + $0x498] sm:$0xff]
  %v211 = vld [vmem:[%s1 + $0x4a0] sm:$0xff]
  %v212 = vld [vmem:[%s1 + $0x4a8] sm:$0xff]
  %v213 = vld [vmem:[%s1 + $0x4b0] sm:$0xff]
  %v214 = vld [vmem:[%s1 + $0x4b8] sm:$0xff]
  %v215 = vld [vmem:[%s1 + $0x4c0] sm:$0xff]
  %v216 = vld [vmem:[%s1 + $0x4c8] sm:$0xff]
  %v217 = vld [vmem:[%s1 + $0x4d0] sm:$0xff]
  %v218 = vld [vmem:[%s1 + $0x4d8] sm:$0xff]
  %v219 = vld [vmem:[%s1 + $0x4e0] sm:$0xff]
  %v220 = vld [vmem:[%s1 + $0x4e8] sm:$0xff]
  %v221 = vld [vmem:[%s1 + $0x4f0] sm:$0xff]
  %v222 = vld [vmem:[%s1 + $0x4f8] sm:$0xff]
  %v223 = vld [vmem:[%s1 + $0x500] sm:$0xff]
  %v224 = vld [vmem:[%s1 + $0x508] sm:$0xff]
  %v225 = vld [vmem:[%s1 + $0x510] sm:$0xff]
  %v226 = vld [vmem:[%s1 + $0x518] sm:$0xff]
  %v227 = vld [vmem:[%s1 + $0x520] sm:$0xff]
  %v228 = vld [vmem:[%s1 + $0x528] sm:$0xff]
  %v229 = vld [vmem:[%s1 + $0x530] sm:$0xff]
  %v230 = vld [vmem:[%s1 + $0x538] sm:$0xff]
  %v231 = vld [vmem:[%s1 + $0x540] sm:$0xff]
  %v232 = vld [vmem:[%s1 + $0x548] sm:$0xff]
  %v233 = vld [vmem:[%s1 + $0x550] sm:$0xff]
  %v234 = vld [vmem:[%s1 + $0x558] sm:$0xff]
  %v235 = vld [vmem:[%s1 + $0x560] sm:$0xff]
  %v236 = vld [vmem:[%s1 + $0x568] sm:$0xff]
  %v237 = vld [vmem:[%s1 + $0x570] sm:$0xff]
  %v238 = vld [vmem:[%s1 + $0x578] sm:$0xff]
  %v239 = vld [vmem:[%s1 + $0x580] sm:$0xff]
  %v240 = vld [vmem:[%s1 + $0x588] sm:$0xff]
  %v241 = vld [vmem:[%s1 + $0x590] sm:$0xff]
  %v242 = vld [vmem:[%s1 + $0x598] sm:$0xff]
  %v243 = vld [vmem:[%s1 + $0x5a0] sm:$0xff]
  %v244 = vld [vmem:[%s1 + $0x5a8] sm:$0xff]
  %v245 = vld [vmem:[%s1 + $0x5b0] sm:$0xff]
  %v246 = vld [vmem:[%s1 + $0x5b8] sm:$0xff]
  %v247 = vld [vmem:[%s1 + $0x5c0] sm:$0xff]
  %v248 = vld [vmem:[%s1 + $0x5c8] sm:$0xff]
  %v249 = vld [vmem:[%s1 + $0x5d0] sm:$0xff]
  %v250 = vld [vmem:[%s1 + $0x5d8] sm:$0xff]
  %v251 = vld [vmem:[%s1 + $0x5e0] sm:$0xff]
  %v252 = vld [vmem:[%s1 + $0x5e8] sm:$0xff]
  %v253 = vld [vmem:[%s1 + $0x5f0] sm:$0xff]
  %v254 = vld [vmem:[%s1 + $0x5f8] sm:$0xff]
  %v255 = vld [vmem:[%s1 + $0x600] sm:$0xff]
  %v256 = vld [vmem:[%s1 + $0x608] sm:$0xff]
  %v257 = vld [vmem:[%s1 + $0x610] sm:$0xff]
  %v258 = vld [vmem:[%s1 + $0x618] sm:$0xff]
  %v259 = vld [vmem:[%s1 + $0x620] sm:$0xff]
  %v260 = vld [vmem:[%s1 + $0x628] sm:$0xff]
  %v261 = vld [vmem:[%s1 + $0x630] sm:$0xff]
  %v262 = vld [vmem:[%s1 + $0x638] sm:$0xff]
  %v263 = vld [vmem:[%s1 + $0x640] sm:$0xff]
  %v264 = vld [vmem:[%s1 + $0x648] sm:$0xff]
  %v265 = vld [vmem:[%s1 + $0x650] sm:$0xff]
  %v266 = vld [vmem:[%s1 + $0x658] sm:$0xff]
  %v267 = vld [vmem:[%s1 + $0x660] sm:$0xff]
  %v268 = vld [vmem:[%s1 + $0x668] sm:$0xff]
  %v269 = vld [vmem:[%s1 + $0x670] sm:$0xff]
  %v270 = vld [vmem:[%s1 + $0x678] sm:$0xff]
  %v271 = vld [vmem:[%s1 + $0x680] sm:$0xff]
  %v272 = vld [vmem:[%s1 + $0x688] sm:$0xff]
  %v273 = vld [vmem:[%s1 + $0x690] sm:$0xff]
  %v274 = vld [vmem:[%s1 + $0x698] sm:$0xff]
  %v275 = vld [vmem:[%s1 + $0x6a0] sm:$0xff]
  %v276 = vld [vmem:[%s1 + $0x6a8] sm:$0xff]
  %v277 = vld [vmem:[%s1 + $0x6b0] sm:$0xff]
  %v278 = vld [vmem:[%s1 + $0x6b8] sm:$0xff]
  %v279 = vld [vmem:[%s1 + $0x6c0] sm:$0xff]
  %v280 = vld [vmem:[%s1 + $0x6c8] sm:$0xff]
  %v281 = vld [vmem:[%s1 + $0x6d0] sm:$0xff]
  %v282 = vld [vmem:[%s1 + $0x6d8] sm:$0xff]
  %v283 = vld [vmem:[%s1 + $0x6e0] sm:$0xff]
  %v284 = vld [vmem:[%s1 + $0x6e8] sm:$0xff]
  %v285 = vld [vmem:[%s1 + $0x6f0] sm:$0xff]
  %v286 = vld [vmem:[%s1 + $0x6f8] sm:$0xff]
  %v287 = vld [vmem:[%s1 + $0x700] sm:$0xff]
  %v288 = vld [vmem:[%s1 + $0x708] sm:$0xff]
  %v289 = vld [vmem:[%s1 + $0x710] sm:$0xff]
  %v290 = vld [vmem:[%s1 + $0x718] sm:$0xff]
  %v291 = vld [vmem:[%s1 + $0x720] sm:$0xff]
  %v292 = vld [vmem:[%s1 + $0x728] sm:$0xff]
  %v293 = vld [vmem:[%s1 + $0x730] sm:$0xff]
  %v294 = vld [vmem:[%s1 + $0x738] sm:$0xff]
  %v295 = vld [vmem:[%s1 + $0x740] sm:$0xff]
  %v296 = vld [vmem:[%s1 + $0x748] sm:$0xff]
  %v297 = vld [vmem:[%s1 + $0x750] sm:$0xff]
  %v298 = vld [vmem:[%s1 + $0x758] sm:$0xff]
  %v299 = vld [vmem:[%s1 + $0x760] sm:$0xff]
  %v300 = vld [vmem:[%s1 + $0x768] sm:$0xff]
  %v301 = vld [vmem:[%s1 + $0x770] sm:$0xff]
  %v302 = vld [vmem:[%s1 + $0x778] sm:$0xff]
  %v303 = vld [vmem:[%s1 + $0x780] sm:$0xff]
  %v304 = vld [vmem:[%s1 + $0x788] sm:$0xff]
  %v305 = vld [vmem:[%s1 + $0x790] sm:$0xff]
  %v306 = vld [vmem:[%s1 + $0x798] sm:$0xff]
  %v307 = vld [vmem:[%s1 + $0x7a0] sm:$0xff]
  %v308 = vld [vmem:[%s1 + $0x7a8] sm:$0xff]
  %v309 = vld [vmem:[%s1 + $0x7b0] sm:$0xff]
  %v310 = vld [vmem:[%s1 + $0x7b8] sm:$0xff]
  %v311 = vld [vmem:[%s1 + $0x7c0] sm:$0xff]
  %v312 = vld [vmem:[%s1 + $0x7c8] sm:$0xff]
  %v313 = vld [vmem:[%s1 + $0x7d0] sm:$0xff]
  %v314 = vld [vmem:[%s1 + $0x7d8] sm:$0xff]
  %v315 = vld [vmem:[%s1 + $0x7e0] sm:$0xff]
  %v316 = vld [vmem:[%s1 + $0x7e8] sm:$0xff]
  %v317 = vld [vmem:[%s1 + $0x7f0] sm:$0xff]
  %v318 = vld [vmem:[%s1 + $0x7f8] sm:$0xff]
  %v319 = vld [vmem:[%s1 + $0x800] sm:$0xff]
  %v320 = vld [vmem:[%s1 + $0x808] sm:$0xff]
  %v321 = vld [vmem:[%s1 + $0x810] sm:$0xff]
  %v322 = vld [vmem:[%s1 + $0x818] sm:$0xff]
  %v323 = vld [vmem:[%s1 + $0x820] sm:$0xff]
  %v324 = vld [vmem:[%s1 + $0x828] sm:$0xff]
  %v325 = vld [vmem:[%s1 + $0x830] sm:$0xff]
  %v326 = vld [vmem:[%s1 + $0x838] sm:$0xff]
  %v327 = vld [vmem:[%s1 + $0x840] sm:$0xff]
  %v328 = vld [vmem:[%s1 + $0x848] sm:$0xff]
  %v329 = vld [vmem:[%s1 + $0x850] sm:$0xff]
  %v330 = vld [vmem:[%s1 + $0x858] sm:$0xff]
  %v331 = vld [vmem:[%s1 + $0x860] sm:$0xff]
  %v332 = vld [vmem:[%s1 + $0x868] sm:$0xff]
  %v333 = vld [vmem:[%s1 + $0x870] sm:$0xff]
  %v334 = vld [vmem:[%s1 + $0x878] sm:$0xff]
  %v335 = vld [vmem:[%s1 + $0x880] sm:$0xff]
  %v336 = vld [vmem:[%s1 + $0x888] sm:$0xff]
  %v337 = vld [vmem:[%s1 + $0x890] sm:$0xff]
  %v338 = vld [vmem:[%s1 + $0x898] sm:$0xff]
  %v339 = vld [vmem:[%s1 + $0x8a0] sm:$0xff]
  %v340 = vld [vmem:[%s1 + $0x8a8] sm:$0xff]
  %v341 = vld [vmem:[%s1 + $0x8b0] sm:$0xff]
  %v342 = vld [vmem:[%s1 + $0x8b8] sm:$0xff]
  %v343 = vld [vmem:[%s1 + $0x8c0] sm:$0xff]
  %v344 = vld [vmem:[%s1 + $0x8c8] sm:$0xff]
  %v345 = vld [vmem:[%s1 + $0x8d0] sm:$0xff]
  %v346 = vld [vmem:[%s1 + $0x8d8] sm:$0xff]
  %v347 = vld [vmem:[%s1 + $0x8e0] sm:$0xff]
  %v348 = vld [vmem:[%s1 + $0x8e8] sm:$0xff]
  %v349 = vld [vmem:[%s1 + $0x8f0] sm:$0xff]
  %v350 = vld [vmem:[%s1 + $0x8f8] sm:$0xff]
  %v351 = vld [vmem:[%s1 + $0x900] sm:$0xff]
  %v352 = vld [vmem:[%s1 + $0x908] sm:$0xff]
  %v353 = vld [vmem:[%s1 + $0x910] sm:$0xff]
  %v354 = vld [vmem:[%s1 + $0x918] sm:$0xff]
  %v355 = vld [vmem:[%s1 + $0x920] sm:$0xff]
  %v356 = vld [vmem:[%s1 + $0x928] sm:$0xff]
  %v357 = vld [vmem:[%s1 + $0x930] sm:$0xff]
  %v358 = vld [vmem:[%s1 + $0x938] sm:$0xff]
  %v359 = vld [vmem:[%s1 + $0x940] sm:$0xff]
  %v360 = vld [vmem:[%s1 + $0x948] sm:$0xff]
  %v361 = vld [vmem:[%s1 + $0x950] sm:$0xff]
  %v362 = vld [vmem:[%s1 + $0x958] sm:$0xff]
  %v363 = vld [vmem:[%s1 + $0x960] sm:$0xff]
  %v364 = vld [vmem:[%s1 + $0x968] sm:$0xff]
  %v365 = vld [vmem:[%s1 + $0x970] sm:$0xff]
  %v366 = vld [vmem:[%s1 + $0x978] sm:$0xff]
  %v367 = vld [vmem:[%s1 + $0x980] sm:$0xff]
  %v368 = vld [vmem:[%s1 + $0x988] sm:$0xff]
  %v369 = vld [vmem:[%s1 + $0x990] sm:$0xff]
  %v370 = vld [vmem:[%s1 + $0x998] sm:$0xff]
  %v371 = vld [vmem:[%s1 + $0x9a0] sm:$0xff]
  %v372 = vld [vmem:[%s1 + $0x9a8] sm:$0xff]
  %v373 = vld [vmem:[%s1 + $0x9b0] sm:$0xff]
  %v374 = vld [vmem:[%s1 + $0x9b8] sm:$0xff]
  %v375 = vld [vmem:[%s1 + $0x9c0] sm:$0xff]
  %v376 = vld [vmem:[%s1 + $0x9c8] sm:$0xff]
  %v377 = vld [vmem:[%s1 + $0x9d0] sm:$0xff]
  %v378 = vld [vmem:[%s1 + $0x9d8] sm:$0xff]
  %v379 = vld [vmem:[%s1 + $0x9e0] sm:$0xff]
  %v380 = vld [vmem:[%s1 + $0x9e8] sm:$0xff]
  %v381 = vld [vmem:[%s1 + $0x9f0] sm:$0xff]
  %v382 = vld [vmem:[%s1 + $0x9f8] sm:$0xff]
  %v383 = vld [vmem:[%s1 + $0xa00] sm:$0xff]
  %v384 = vld [vmem:[%s1 + $0xa08] sm:$0xff]
  %v385 = vld [vmem:[%s1 + $0xa10] sm:$0xff]
  %v386 = vld [vmem:[%s1 + $0xa18] sm:$0xff]
  %v387 = vld [vmem:[%s1 + $0xa20] sm:$0xff]
  %v388 = vld [vmem:[%s1 + $0xa28] sm:$0xff]
  %v389 = vld [vmem:[%s1 + $0xa30] sm:$0xff]
  %v390 = vld [vmem:[%s1 + $0xa38] sm:$0xff]
  %v391 = vld [vmem:[%s1 + $0xa40] sm:$0xff]
  %v392 = vld [vmem:[%s1 + $0xa48] sm:$0xff]
  %v393 = vld [vmem:[%s1 + $0xa50] sm:$0xff]
  %v394 = vld [vmem:[%s1 + $0xa58] sm:$0xff]
  %v395 = vld [vmem:[%s1 + $0xa60] sm:$0xff]
  %v396 = vld [vmem:[%s1 + $0xa68] sm:$0xff]
  %v397 = vld [vmem:[%s1 + $0xa70] sm:$0xff]
  %v398 = vld [vmem:[%s1 + $0xa78] sm:$0xff]
  %v399 = vld [vmem:[%s1 + $0xa80] sm:$0xff]
  %v400 = vld [vmem:[%s1 + $0xa88] sm:$0xff]
  %v401 = vld [vmem:[%s1 + $0xa90] sm:$0xff]
  %v402 = vld [vmem:[%s1 + $0xa98] sm:$0xff]
  %v403 = vld [vmem:[%s1 + $0xaa0] sm:$0xff]
  %v404 = vld [vmem:[%s1 + $0xaa8] sm:$0xff]
  %v405 = vld [vmem:[%s1 + $0xab0] sm:$0xff]
  %v406 = vld [vmem:[%s1 + $0xab8] sm:$0xff]
  %v407 = vld [vmem:[%s1 + $0xac0] sm:$0xff]
  %v408 = vld [vmem:[%s1 + $0xac8] sm:$0xff]
  %v409 = vld [vmem:[%s1 + $0xad0] sm:$0xff]
  %v410 = vld [vmem:[%s1 + $0xad8] sm:$0xff]
  %v411 = vld [vmem:[%s1 + $0xae0] sm:$0xff]
  %v412 = vld [vmem:[%s1 + $0xae8] sm:$0xff]
  %v413 = vld [vmem:[%s1 + $0xaf0] sm:$0xff]
  %v414 = vld [vmem:[%s1 + $0xaf8] sm:$0xff]
  %v415 = vld [vmem:[%s1 + $0xb00] sm:$0xff]
  %v416 = vld [vmem:[%s1 + $0xb08] sm:$0xff]
  %v417 = vld [vmem:[%s1 + $0xb10] sm:$0xff]
  %v418 = vld [vmem:[%s1 + $0xb18] sm:$0xff]
  %v419 = vld [vmem:[%s1 + $0xb20] sm:$0xff]
  %v420 = vld [vmem:[%s1 + $0xb28] sm:$0xff]
  %v421 = vld [vmem:[%s1 + $0xb30] sm:$0xff]
  %v422 = vld [vmem:[%s1 + $0xb38] sm:$0xff]
  %v423 = vld [vmem:[%s1 + $0xb40] sm:$0xff]
  %v424 = vld [vmem:[%s1 + $0xb48] sm:$0xff]
  %v425 = vld [vmem:[%s1 + $0xb50] sm:$0xff]
  %v426 = vld [vmem:[%s1 + $0xb58] sm:$0xff]
  %v427 = vld [vmem:[%s1 + $0xb60] sm:$0xff]
  %v428 = vld [vmem:[%s1 + $0xb68] sm:$0xff]
  %v429 = vld [vmem:[%s1 + $0xb70] sm:$0xff]
  %v430 = vld [vmem:[%s1 + $0xb78] sm:$0xff]
  %v431 = vld [vmem:[%s1 + $0xb80] sm:$0xff]
  %v432 = vld [vmem:[%s1 + $0xb88] sm:$0xff]
  %v433 = vld [vmem:[%s1 + $0xb90] sm:$0xff]
  %v434 = vld [vmem:[%s1 + $0xb98] sm:$0xff]
  %v435 = vld [vmem:[%s1 + $0xba0] sm:$0xff]
  %v436 = vld [vmem:[%s1 + $0xba8] sm:$0xff]
  %v437 = vld [vmem:[%s1 + $0xbb0] sm:$0xff]
  %v438 = vld [vmem:[%s1 + $0xbb8] sm:$0xff]
  %v439 = vld [vmem:[%s1 + $0xbc0] sm:$0xff]
  %v440 = vld [vmem:[%s1 + $0xbc8] sm:$0xff]
  %v441 = vld [vmem:[%s1 + $0xbd0] sm:$0xff]
  %v442 = vld [vmem:[%s1 + $0xbd8] sm:$0xff]
  %v443 = vld [vmem:[%s1 + $0xbe0] sm:$0xff]
  %v444 = vld [vmem:[%s1 + $0xbe8] sm:$0xff]
  %v445 = vld [vmem:[%s1 + $0xbf0] sm:$0xff]
  %v446 = vld [vmem:[%s1 + $0xbf8] sm:$0xff]
  %v447 = vld [vmem:[%s1 + $0xc00] sm:$0xff]
  %v448 = vld [vmem:[%s1 + $0xc08] sm:$0xff]
  %v449 = vld [vmem:[%s1 + $0xc10] sm:$0xff]
  %v450 = vld [vmem:[%s1 + $0xc18] sm:$0xff]
  %v451 = vld [vmem:[%s1 + $0xc20] sm:$0xff]
  %v452 = vld [vmem:[%s1 + $0xc28] sm:$0xff]
  %v453 = vld [vmem:[%s1 + $0xc30] sm:$0xff]
  %v454 = vld [vmem:[%s1 + $0xc38] sm:$0xff]
  %v455 = vld [vmem:[%s1 + $0xc40] sm:$0xff]
  %v456 = vld [vmem:[%s1 + $0xc48] sm:$0xff]
  %v457 = vld [vmem:[%s1 + $0xc50] sm:$0xff]
  %v458 = vld [vmem:[%s1 + $0xc58] sm:$0xff]
  %v459 = vld [vmem:[%s1 + $0xc60] sm:$0xff]
  %v460 = vld [vmem:[%s1 + $0xc68] sm:$0xff]
  %v461 = vld [vmem:[%s1 + $0xc70] sm:$0xff]
  %v462 = vld [vmem:[%s1 + $0xc78] sm:$0xff]
  %v463 = vld [vmem:[%s1 + $0xc80] sm:$0xff]
  %v464 = vld [vmem:[%s1 + $0xc88] sm:$0xff]
  %v465 = vld [vmem:[%s1 + $0xc90] sm:$0xff]
  %v466 = vld [vmem:[%s1 + $0xc98] sm:$0xff]
  %v467 = vld [vmem:[%s1 + $0xca0] sm:$0xff]
  %v468 = vld [vmem:[%s1 + $0xca8] sm:$0xff]
  %v469 = vld [vmem:[%s1 + $0xcb0] sm:$0xff]
  %v470 = vld [vmem:[%s1 + $0xcb8] sm:$0xff]
  %v471 = vld [vmem:[%s1 + $0xcc0] sm:$0xff]
  %v472 = vld [vmem:[%s1 + $0xcc8] sm:$0xff]
  %v473 = vld [vmem:[%s1 + $0xcd0] sm:$0xff]
  %v474 = vld [vmem:[%s1 + $0xcd8] sm:$0xff]
  %v475 = vld [vmem:[%s1 + $0xce0] sm:$0xff]
  %v476 = vld [vmem:[%s1 + $0xce8] sm:$0xff]
  %v477 = vld [vmem:[%s1 + $0xcf0] sm:$0xff]
  %v478 = vld [vmem:[%s1 + $0xcf8] sm:$0xff]
  %v479 = vld [vmem:[%s1 + $0xd00] sm:$0xff]
  %v480 = vld [vmem:[%s1 + $0xd08] sm:$0xff]
  %v481 = vld [vmem:[%s1 + $0xd10] sm:$0xff]
  %v482 = vld [vmem:[%s1 + $0xd18] sm:$0xff]
  %v483 = vld [vmem:[%s1 + $0xd20] sm:$0xff]
  %v484 = vld [vmem:[%s1 + $0xd28] sm:$0xff]
  %v485 = vld [vmem:[%s1 + $0xd30] sm:$0xff]
  %v486 = vld [vmem:[%s1 + $0xd38] sm:$0xff]
  %v487 = vld [vmem:[%s1 + $0xd40] sm:$0xff]
  %v488 = vld [vmem:[%s1 + $0xd48] sm:$0xff]
  %v489 = vld [vmem:[%s1 + $0xd50] sm:$0xff]
  %v490 = vld [vmem:[%s1 + $0xd58] sm:$0xff]
  %v491 = vld [vmem:[%s1 + $0xd60] sm:$0xff]
  %v492 = vld [vmem:[%s1 + $0xd68] sm:$0xff]
  %v493 = vld [vmem:[%s1 + $0xd70] sm:$0xff]
  %v494 = vld [vmem:[%s1 + $0xd78] sm:$0xff]
  %v495 = vld [vmem:[%s1 + $0xd80] sm:$0xff]
  %v496 = vld [vmem:[%s1 + $0xd88] sm:$0xff]
  %v497 = vld [vmem:[%s1 + $0xd90] sm:$0xff]
  %v498 = vld [vmem:[%s1 + $0xd98] sm:$0xff]
  %v499 = vld [vmem:[%s1 + $0xda0] sm:$0xff]
  %v500 = vld [vmem:[%s1 + $0xda8] sm:$0xff]
  %v501 = vld [vmem:[%s1 + $0xdb0] sm:$0xff]
  %v502 = vld [vmem:[%s1 + $0xdb8] sm:$0xff]
  %v503 = vld [vmem:[%s1 + $0xdc0] sm:$0xff]
  %v504 = vld [vmem:[%s1 + $0xdc8] sm:$0xff]
  %v505 = vld [vmem:[%s1 + $0xdd0] sm:$0xff]
  %v506 = vld [vmem:[%s1 + $0xdd8] sm:$0xff]
  %v507 = vld [vmem:[%s1 + $0xde0] sm:$0xff]
  %v508 = vld [vmem:[%s1 + $0xde8] sm:$0xff]
  %v509 = vld [vmem:[%s1 + $0xdf0] sm:$0xff]
  %v510 = vld [vmem:[%s1 + $0xdf8] sm:$0xff]
  %v511 = vld [vmem:[%s1 + $0xe00] sm:$0xff]
  %v512 = vld [vmem:[%s1 + $0xe08] sm:$0xff]
  %v513 = vld [vmem:[%s1 + $0xe10] sm:$0xff]
  %v514 = vld [vmem:[%s1 + $0xe18] sm:$0xff]
  %v515 = vld [vmem:[%s1 + $0xe20] sm:$0xff]
  %v516 = vld [vmem:[%s1 + $0xe28] sm:$0xff]
  %v517 = vld [vmem:[%s1 + $0xe30] sm:$0xff]
  %v518 = vld [vmem:[%s1 + $0xe38] sm:$0xff]
  %v519 = vld [vmem:[%s1 + $0xe40] sm:$0xff]
  %v520 = vld [vmem:[%s1 + $0xe48] sm:$0xff]
  %v521 = vld [vmem:[%s1 + $0xe50] sm:$0xff]
  %v522 = vld [vmem:[%s1 + $0xe58] sm:$0xff]
  %v523 = vld [vmem:[%s1 + $0xe60] sm:$0xff]
  %v524 = vld [vmem:[%s1 + $0xe68] sm:$0xff]
  %v525 = vld [vmem:[%s1 + $0xe70] sm:$0xff]
  %v526 = vld [vmem:[%s1 + $0xe78] sm:$0xff]
  %v527 = vld [vmem:[%s1 + $0xe80] sm:$0xff]
  %v528 = vld [vmem:[%s1 + $0xe88] sm:$0xff]
  %v529 = vld [vmem:[%s1 + $0xe90] sm:$0xff]
  %v530 = vld [vmem:[%s1 + $0xe98] sm:$0xff]
  %v531 = vld [vmem:[%s1 + $0xea0] sm:$0xff]
  %v532 = vld [vmem:[%s1 + $0xea8] sm:$0xff]
  %v533 = vld [vmem:[%s1 + $0xeb0] sm:$0xff]
  %v534 = vld [vmem:[%s1 + $0xeb8] sm:$0xff]
  %v535 = vld [vmem:[%s1 + $0xec0] sm:$0xff]
  %v536 = vld [vmem:[%s1 + $0xec8] sm:$0xff]
  %v537 = vld [vmem:[%s1 + $0xed0] sm:$0xff]
  %v538 = vld [vmem:[%s1 + $0xed8] sm:$0xff]
  %v539 = vld [vmem:[%s1 + $0xee0] sm:$0xff]
  %v540 = vld [vmem:[%s1 + $0xee8] sm:$0xff]
  %v541 = vld [vmem:[%s1 + $0xef0] sm:$0xff]
  %v542 = vld [vmem:[%s1 + $0xef8] sm:$0xff]
  %v543 = vld [vmem:[%s1 + $0xf00] sm:$0xff]
  %v544 = vld [vmem:[%s1 + $0xf08] sm:$0xff]
  %v545 = vld [vmem:[%s1 + $0xf10] sm:$0xff]
  %v546 = vld [vmem:[%s1 + $0xf18] sm:$0xff]
  %v547 = vld [vmem:[%s1 + $0xf20] sm:$0xff]
  %v548 = vld [vmem:[%s1 + $0xf28] sm:$0xff]
  %v549 = vld [vmem:[%s1 + $0xf30] sm:$0xff]
  %v550 = vld [vmem:[%s1 + $0xf38] sm:$0xff]
  %v551 = vld [vmem:[%s1 + $0xf40] sm:$0xff]
  %v552 = vld [vmem:[%s1 + $0xf48] sm:$0xff]
  %v553 = vld [vmem:[%s1 + $0xf50] sm:$0xff]
  %v554 = vld [vmem:[%s1 + $0xf58] sm:$0xff]
  %v555 = vld [vmem:[%s1 + $0xf60] sm:$0xff]
  %v556 = vld [vmem:[%s1 + $0xf68] sm:$0xff]
  %v557 = vld [vmem:[%s1 + $0xf70] sm:$0xff]
  %v558 = vld [vmem:[%s1 + $0xf78] sm:$0xff]
  %v559 = vld [vmem:[%s1 + $0xf80] sm:$0xff]
  %v560 = vld [vmem:[%s1 + $0xf88] sm:$0xff]
  %v561 = vld [vmem:[%s1 + $0xf90] sm:$0xff]
  %v562 = vld [vmem:[%s1 + $0xf98] sm:$0xff]
  %v563 = vld [vmem:[%s1 + $0xfa0] sm:$0xff]
  %v564 = vld [vmem:[%s1 + $0xfa8] sm:$0xff]
  %v565 = vld [vmem:[%s1 + $0xfb0] sm:$0xff]
  %v566 = vld [vmem:[%s1 + $0xfb8] sm:$0xff]
  %v567 = vld [vmem:[%s1 + $0xfc0] sm:$0xff]
  %v568 = vld [vmem:[%s1 + $0xfc8] sm:$0xff]
  %v569 = vld [vmem:[%s1 + $0xfd0] sm:$0xff]
  %v570 = vld [vmem:[%s1 + $0xfd8] sm:$0xff]
  %v571 = vld [vmem:[%s1 + $0xfe0] sm:$0xff]
  %v572 = vld [vmem:[%s1 + $0xfe8] sm:$0xff]
  %v573 = vld [vmem:[%s1 + $0xff0] sm:$0xff]
  %v574 = vld [vmem:[%s1 + $0xff8] sm:$0xff]
  %v575 = vld [vmem:[%s1 + $0x1000] sm:$0xff]
  %v576 = vld [vmem:[%s1 + $0x1008] sm:$0xff]
  %v577 = vld [vmem:[%s1 + $0x1010] sm:$0xff]
  %v578 = vld [vmem:[%s1 + $0x1018] sm:$0xff]
  %v579 = vld [vmem:[%s1 + $0x1020] sm:$0xff]
  %v580 = vld [vmem:[%s1 + $0x1028] sm:$0xff]
  %v581 = vld [vmem:[%s1 + $0x1030] sm:$0xff]
  %v582 = vld [vmem:[%s1 + $0x1038] sm:$0xff]
  %v583 = vld [vmem:[%s1 + $0x1040] sm:$0xff]
  %v584 = vld [vmem:[%s1 + $0x1048] sm:$0xff]
  %v585 = vld [vmem:[%s1 + $0x1050] sm:$0xff]
  %v586 = vld [vmem:[%s1 + $0x1058] sm:$0xff]
  %v587 = vld [vmem:[%s1 + $0x1060] sm:$0xff]
  %v588 = vld [vmem:[%s1 + $0x1068] sm:$0xff]
  %v589 = vld [vmem:[%s1 + $0x1070] sm:$0xff]
  %v590 = vld [vmem:[%s1 + $0x1078] sm:$0xff]
  %v591 = vld [vmem:[%s1 + $0x1080] sm:$0xff]
  %v592 = vld [vmem:[%s1 + $0x1088] sm:$0xff]
  %v593 = vld [vmem:[%s1 + $0x1090] sm:$0xff]
  %v594 = vld [vmem:[%s1 + $0x1098] sm:$0xff]
  %v595 = vld [vmem:[%s1 + $0x10a0] sm:$0xff]
  %v596 = vld [vmem:[%s1 + $0x10a8] sm:$0xff]
  %v597 = vld [vmem:[%s1 + $0x10b0] sm:$0xff]
  %v598 = vld [vmem:[%s1 + $0x10b8] sm:$0xff]
  %v599 = vld [vmem:[%s1 + $0x10c0] sm:$0xff]
  %v600 = vld [vmem:[%s1 + $0x10c8] sm:$0xff]
  %v601 = vld [vmem:[%s1 + $0x10d0] sm:$0xff]
  %v602 = vld [vmem:[%s1 + $0x10d8] sm:$0xff]
  %v603 = vld [vmem:[%s1 + $0x10e0] sm:$0xff]
  %v604 = vld [vmem:[%s1 + $0x10e8] sm:$0xff]
  %v605 = vld [vmem:[%s1 + $0x10f0] sm:$0xff]
  %v606 = vld [vmem:[%s1 + $0x10f8] sm:$0xff]
  %v607 = vld [vmem:[%s1 + $0x1100] sm:$0xff]
  %v608 = vld [vmem:[%s1 + $0x1108] sm:$0xff]
  %v609 = vld [vmem:[%s1 + $0x1110] sm:$0xff]
  %v610 = vld [vmem:[%s1 + $0x1118] sm:$0xff]
  %v611 = vld [vmem:[%s1 + $0x1120] sm:$0xff]
  %v612 = vld [vmem:[%s1 + $0x1128] sm:$0xff]
  %v613 = vld [vmem:[%s1 + $0x1130] sm:$0xff]
  %v614 = vld [vmem:[%s1 + $0x1138] sm:$0xff]
  %v615 = vld [vmem:[%s1 + $0x1140] sm:$0xff]
  %v616 = vld [vmem:[%s1 + $0x1148] sm:$0xff]
  %v617 = vld [vmem:[%s1 + $0x1150] sm:$0xff]
  %v618 = vld [vmem:[%s1 + $0x1158] sm:$0xff]
  %v619 = vld [vmem:[%s1 + $0x1160] sm:$0xff]
  %v620 = vld [vmem:[%s1 + $0x1168] sm:$0xff]
  %v621 = vld [vmem:[%s1 + $0x1170] sm:$0xff]
  %v622 = vld [vmem:[%s1 + $0x1178] sm:$0xff]
  %v623 = vld [vmem:[%s1 + $0x1180] sm:$0xff]
  %v624 = vld [vmem:[%s1 + $0x1188] sm:$0xff]
  %v625 = vld [vmem:[%s1 + $0x1190] sm:$0xff]
  %v626 = vld [vmem:[%s1 + $0x1198] sm:$0xff]
  %v627 = vld [vmem:[%s1 + $0x11a0] sm:$0xff]
  %v628 = vld [vmem:[%s1 + $0x11a8] sm:$0xff]
  %v629 = vld [vmem:[%s1 + $0x11b0] sm:$0xff]
  %v630 = vld [vmem:[%s1 + $0x11b8] sm:$0xff]
  %v631 = vld [vmem:[%s1 + $0x11c0] sm:$0xff]
  %v632 = vld [vmem:[%s1 + $0x11c8] sm:$0xff]
  %v633 = vld [vmem:[%s1 + $0x11d0] sm:$0xff]
  %v634 = vld [vmem:[%s1 + $0x11d8] sm:$0xff]
  %v635 = vld [vmem:[%s1 + $0x11e0] sm:$0xff]
  %v636 = vld [vmem:[%s1 + $0x11e8] sm:$0xff]
  %v637 = vld [vmem:[%s1 + $0x11f0] sm:$0xff]
  %v638 = vld [vmem:[%s1 + $0x11f8] sm:$0xff]
  %v639 = vld [vmem:[%s1 + $0x1200] sm:$0xff]
  %v640 = vld [vmem:[%s1 + $0x1208] sm:$0xff]
  %v641 = vld [vmem:[%s1 + $0x1210] sm:$0xff]
  %v642 = vld [vmem:[%s1 + $0x1218] sm:$0xff]
  %v643 = vld [vmem:[%s1 + $0x1220] sm:$0xff]
  %v644 = vld [vmem:[%s1 + $0x1228] sm:$0xff]
  %v645 = vld [vmem:[%s1 + $0x1230] sm:$0xff]
  %v646 = vld [vmem:[%s1 + $0x1238] sm:$0xff]
  %v647 = vld [vmem:[%s1 + $0x1240] sm:$0xff]
  %v648 = vld [vmem:[%s1 + $0x1248] sm:$0xff]
  %v649 = vld [vmem:[%s1 + $0x1250] sm:$0xff]
  %v650 = vld [vmem:[%s1 + $0x1258] sm:$0xff]
  %v651 = vld [vmem:[%s1 + $0x1260] sm:$0xff]
  %v652 = vld [vmem:[%s1 + $0x1268] sm:$0xff]
  %v653 = vld [vmem:[%s1 + $0x1270] sm:$0xff]
  %v654 = vld [vmem:[%s1 + $0x1278] sm:$0xff]
  %v655 = vld [vmem:[%s1 + $0x1280] sm:$0xff]
  %v656 = vld [vmem:[%s1 + $0x1288] sm:$0xff]
  %v657 = vld [vmem:[%s1 + $0x1290] sm:$0xff]
  %v658 = vld [vmem:[%s1 + $0x1298] sm:$0xff]
  %v659 = vld [vmem:[%s1 + $0x12a0] sm:$0xff]
  %v660 = vld [vmem:[%s1 + $0x12a8] sm:$0xff]
  %v661 = vld [vmem:[%s1 + $0x12b0] sm:$0xff]
  %v662 = vld [vmem:[%s1 + $0x12b8] sm:$0xff]
  %v663 = vld [vmem:[%s1 + $0x12c0] sm:$0xff]
  %v664 = vld [vmem:[%s1 + $0x12c8] sm:$0xff]
  %v665 = vld [vmem:[%s1 + $0x12d0] sm:$0xff]
  %v666 = vld [vmem:[%s1 + $0x12d8] sm:$0xff]
  %v667 = vld [vmem:[%s1 + $0x12e0] sm:$0xff]
  %v668 = vld [vmem:[%s1 + $0x12e8] sm:$0xff]
  %v669 = vld [vmem:[%s1 + $0x12f0] sm:$0xff]
  %v670 = vld [vmem:[%s1 + $0x12f8] sm:$0xff]
  %v671 = vld [vmem:[%s1 + $0x1300] sm:$0xff]
  %v672 = vld [vmem:[%s1 + $0x1308] sm:$0xff]
  %v673 = vld [vmem:[%s1 + $0x1310] sm:$0xff]
  %v674 = vld [vmem:[%s1 + $0x1318] sm:$0xff]
  %v675 = vld [vmem:[%s1 + $0x1320] sm:$0xff]
  %v676 = vld [vmem:[%s1 + $0x1328] sm:$0xff]
  %v677 = vld [vmem:[%s1 + $0x1330] sm:$0xff]
  %v678 = vld [vmem:[%s1 + $0x1338] sm:$0xff]
  %v679 = vld [vmem:[%s1 + $0x1340] sm:$0xff]
  %v680 = vld [vmem:[%s1 + $0x1348] sm:$0xff]
  %v681 = vld [vmem:[%s1 + $0x1350] sm:$0xff]
  %v682 = vld [vmem:[%s1 + $0x1358] sm:$0xff]
  %v683 = vld [vmem:[%s1 + $0x1360] sm:$0xff]
  %v684 = vld [vmem:[%s1 + $0x1368] sm:$0xff]
  %v685 = vld [vmem:[%s1 + $0x1370] sm:$0xff]
  %v686 = vld [vmem:[%s1 + $0x1378] sm:$0xff]
  %v687 = vld [vmem:[%s1 + $0x1380] sm:$0xff]
  %v688 = vld [vmem:[%s1 + $0x1388] sm:$0xff]
  %v689 = vld [vmem:[%s1 + $0x1390] sm:$0xff]
  %v690 = vld [vmem:[%s1 + $0x1398] sm:$0xff]
  %v691 = vld [vmem:[%s1 + $0x13a0] sm:$0xff]
  %v692 = vld [vmem:[%s1 + $0x13a8] sm:$0xff]
  %v693 = vld [vmem:[%s1 + $0x13b0] sm:$0xff]
  %v694 = vld [vmem:[%s1 + $0x13b8] sm:$0xff]
  %v695 = vld [vmem:[%s1 + $0x13c0] sm:$0xff]
  %v696 = vld [vmem:[%s1 + $0x13c8] sm:$0xff]
  %v697 = vld [vmem:[%s1 + $0x13d0] sm:$0xff]
  %v698 = vld [vmem:[%s1 + $0x13d8] sm:$0xff]
  %v699 = vld [vmem:[%s1 + $0x13e0] sm:$0xff]
  %v700 = vld [vmem:[%s1 + $0x13e8] sm:$0xff]
  %v701 = vld [vmem:[%s1 + $0x13f0] sm:$0xff]
  %v702 = vld [vmem:[%s1 + $0x13f8] sm:$0xff]
  %v703 = vld [vmem:[%s1 + $0x1400] sm:$0xff]
  %v704 = vld [vmem:[%s1 + $0x1408] sm:$0xff]
  %v705 = vld [vmem:[%s1 + $0x1410] sm:$0xff]
  %v706 = vld [vmem:[%s1 + $0x1418] sm:$0xff]
  %v707 = vld [vmem:[%s1 + $0x1420] sm:$0xff]
  %v708 = vld [vmem:[%s1 + $0x1428] sm:$0xff]
  %v709 = vld [vmem:[%s1 + $0x1430] sm:$0xff]
  %v710 = vld [vmem:[%s1 + $0x1438] sm:$0xff]
  %v711 = vld [vmem:[%s1 + $0x1440] sm:$0xff]
  %v712 = vld [vmem:[%s1 + $0x1448] sm:$0xff]
  %v713 = vld [vmem:[%s1 + $0x1450] sm:$0xff]
  %v714 = vld [vmem:[%s1 + $0x1458] sm:$0xff]
  %v715 = vld [vmem:[%s1 + $0x1460] sm:$0xff]
  %v716 = vld [vmem:[%s1 + $0x1468] sm:$0xff]
  %v717 = vld [vmem:[%s1 + $0x1470] sm:$0xff]
  %v718 = vld [vmem:[%s1 + $0x1478] sm:$0xff]
  %v719 = vld [vmem:[%s1 + $0x1480] sm:$0xff]
  %v720 = vld [vmem:[%s1 + $0x1488] sm:$0xff]
  %v721 = vld [vmem:[%s1 + $0x1490] sm:$0xff]
  %v722 = vld [vmem:[%s1 + $0x1498] sm:$0xff]
  %v723 = vld [vmem:[%s1 + $0x14a0] sm:$0xff]
  %v724 = vld [vmem:[%s1 + $0x14a8] sm:$0xff]
  %v725 = vld [vmem:[%s1 + $0x14b0] sm:$0xff]
  %v726 = vld [vmem:[%s1 + $0x14b8] sm:$0xff]
  %v727 = vld [vmem:[%s1 + $0x14c0] sm:$0xff]
  %v728 = vld [vmem:[%s1 + $0x14c8] sm:$0xff]
  %v729 = vld [vmem:[%s1 + $0x14d0] sm:$0xff]
  %v730 = vld [vmem:[%s1 + $0x14d8] sm:$0xff]
  %v731 = vld [vmem:[%s1 + $0x14e0] sm:$0xff]
  %v732 = vld [vmem:[%s1 + $0x14e8] sm:$0xff]
  %v733 = vld [vmem:[%s1 + $0x14f0] sm:$0xff]
  %v734 = vld [vmem:[%s1 + $0x14f8] sm:$0xff]
  %v735 = vld [vmem:[%s1 + $0x1500] sm:$0xff]
  %v736 = vld [vmem:[%s1 + $0x1508] sm:$0xff]
  %v737 = vld [vmem:[%s1 + $0x1510] sm:$0xff]
  %v738 = vld [vmem:[%s1 + $0x1518] sm:$0xff]
  %v739 = vld [vmem:[%s1 + $0x1520] sm:$0xff]
  %v740 = vld [vmem:[%s1 + $0x1528] sm:$0xff]
  %v741 = vld [vmem:[%s1 + $0x1530] sm:$0xff]
  %v742 = vld [vmem:[%s1 + $0x1538] sm:$0xff]
  %v743 = vld [vmem:[%s1 + $0x1540] sm:$0xff]
  %v744 = vld [vmem:[%s1 + $0x1548] sm:$0xff]
  %v745 = vld [vmem:[%s1 + $0x1550] sm:$0xff]
  %v746 = vld [vmem:[%s1 + $0x1558] sm:$0xff]
  %v747 = vld [vmem:[%s1 + $0x1560] sm:$0xff]
  %v748 = vld [vmem:[%s1 + $0x1568] sm:$0xff]
  %v749 = vld [vmem:[%s1 + $0x1570] sm:$0xff]
  %v750 = vld [vmem:[%s1 + $0x1578] sm:$0xff]
  %v751 = vld [vmem:[%s1 + $0x1580] sm:$0xff]
  %v752 = vld [vmem:[%s1 + $0x1588] sm:$0xff]
  %v753 = vld [vmem:[%s1 + $0x1590] sm:$0xff]
  %v754 = vld [vmem:[%s1 + $0x1598] sm:$0xff]
  %v755 = vld [vmem:[%s1 + $0x15a0] sm:$0xff]
  %v756 = vld [vmem:[%s1 + $0x15a8] sm:$0xff]
  %v757 = vld [vmem:[%s1 + $0x15b0] sm:$0xff]
  %v758 = vld [vmem:[%s1 + $0x15b8] sm:$0xff]
  %v759 = vld [vmem:[%s1 + $0x15c0] sm:$0xff]
  %v760 = vld [vmem:[%s1 + $0x15c8] sm:$0xff]
  %v761 = vld [vmem:[%s1 + $0x15d0] sm:$0xff]
  %v762 = vld [vmem:[%s1 + $0x15d8] sm:$0xff]
  %v763 = vld [vmem:[%s1 + $0x15e0] sm:$0xff]
  %v764 = vld [vmem:[%s1 + $0x15e8] sm:$0xff]
  %v765 = vld [vmem:[%s1 + $0x15f0] sm:$0xff]
  %v766 = vld [vmem:[%s1 + $0x15f8] sm:$0xff]
  %v767 = vld [vmem:[%s1 + $0x1600] sm:$0xff]
  %v768 = vld [vmem:[%s1 + $0x1608] sm:$0xff]
  %v769 = vld [vmem:[%s1 + $0x1610] sm:$0xff]
  %v770 = vld [vmem:[%s1 + $0x1618] sm:$0xff]
  %v771 = vld [vmem:[%s1 + $0x1620] sm:$0xff]
  %v772 = vld [vmem:[%s1 + $0x1628] sm:$0xff]
  %v773 = vld [vmem:[%s1 + $0x1630] sm:$0xff]
  %v774 = vld [vmem:[%s1 + $0x1638] sm:$0xff]
  %v775 = vld [vmem:[%s1 + $0x1640] sm:$0xff]
  %v776 = vld [vmem:[%s1 + $0x1648] sm:$0xff]
  %v777 = vld [vmem:[%s1 + $0x1650] sm:$0xff]
  %v778 = vld [vmem:[%s1 + $0x1658] sm:$0xff]
  %v779 = vld [vmem:[%s1 + $0x1660] sm:$0xff]
  %v780 = vld [vmem:[%s1 + $0x1668] sm:$0xff]
  %v781 = vld [vmem:[%s1 + $0x1670] sm:$0xff]
  %v782 = vld [vmem:[%s1 + $0x1678] sm:$0xff]
  %v783 = vld [vmem:[%s1 + $0x1680] sm:$0xff]
  %v784 = vld [vmem:[%s1 + $0x1688] sm:$0xff]
  %v785 = vld [vmem:[%s1 + $0x1690] sm:$0xff]
  %v786 = vld [vmem:[%s1 + $0x1698] sm:$0xff]
  %v787 = vld [vmem:[%s1 + $0x16a0] sm:$0xff]
  %v788 = vld [vmem:[%s1 + $0x16a8] sm:$0xff]
  %v789 = vld [vmem:[%s1 + $0x16b0] sm:$0xff]
  %v790 = vld [vmem:[%s1 + $0x16b8] sm:$0xff]
  %v791 = vld [vmem:[%s1 + $0x16c0] sm:$0xff]
  %v792 = vld [vmem:[%s1 + $0x16c8] sm:$0xff]
  %v793 = vld [vmem:[%s1 + $0x16d0] sm:$0xff]
  %v794 = vld [vmem:[%s1 + $0x16d8] sm:$0xff]
  %v795 = vld [vmem:[%s1 + $0x16e0] sm:$0xff]
  %v796 = vld [vmem:[%s1 + $0x16e8] sm:$0xff]
  %v797 = vld [vmem:[%s1 + $0x16f0] sm:$0xff]
  %v798 = vld [vmem:[%s1 + $0x16f8] sm:$0xff]
  %v799 = vld [vmem:[%s1 + $0x1700] sm:$0xff]
  %v800 = vld [vmem:[%s1 + $0x1708] sm:$0xff]
  %v801 = vld [vmem:[%s1 + $0x1710] sm:$0xff]
  %v802 = vld [vmem:[%s1 + $0x1718] sm:$0xff]
  %v803 = vld [vmem:[%s1 + $0x1720] sm:$0xff]
  %v804 = vld [vmem:[%s1 + $0x1728] sm:$0xff]
  %v805 = vld [vmem:[%s1 + $0x1730] sm:$0xff]
  %v806 = vld [vmem:[%s1 + $0x1738] sm:$0xff]
  %v807 = vld [vmem:[%s1 + $0x1740] sm:$0xff]
  %v808 = vld [vmem:[%s1 + $0x1748] sm:$0xff]
  %v809 = vld [vmem:[%s1 + $0x1750] sm:$0xff]
  %v810 = vld [vmem:[%s1 + $0x1758] sm:$0xff]
  %v811 = vld [vmem:[%s1 + $0x1760] sm:$0xff]
  %v812 = vld [vmem:[%s1 + $0x1768] sm:$0xff]
  %v813 = vld [vmem:[%s1 + $0x1770] sm:$0xff]
  %v814 = vld [vmem:[%s1 + $0x1778] sm:$0xff]
  %v815 = vld [vmem:[%s1 + $0x1780] sm:$0xff]
  %v816 = vld [vmem:[%s1 + $0x1788] sm:$0xff]
  %v817 = vld [vmem:[%s1 + $0x1790] sm:$0xff]
  %v818 = vld [vmem:[%s1 + $0x1798] sm:$0xff]
  %v819 = vld [vmem:[%s1 + $0x17a0] sm:$0xff]
  %v820 = vld [vmem:[%s1 + $0x17a8] sm:$0xff]
  %v821 = vld [vmem:[%s1 + $0x17b0] sm:$0xff]
  %v822 = vld [vmem:[%s1 + $0x17b8] sm:$0xff]
  %v823 = vld [vmem:[%s1 + $0x17c0] sm:$0xff]
  %v824 = vld [vmem:[%s1 + $0x17c8] sm:$0xff]
  %v825 = vld [vmem:[%s1 + $0x17d0] sm:$0xff]
  %v826 = vld [vmem:[%s1 + $0x17d8] sm:$0xff]
  %v827 = vld [vmem:[%s1 + $0x17e0] sm:$0xff]
  %v828 = vld [vmem:[%s1 + $0x17e8] sm:$0xff]
  %v829 = vld [vmem:[%s1 + $0x17f0] sm:$0xff]
  %v830 = vld [vmem:[%s1 + $0x17f8] sm:$0xff]
  %v831 = vld [vmem:[%s1 + $0x1800] sm:$0xff]
  %v832 = vld [vmem:[%s1 + $0x1808] sm:$0xff]
  %v833 = vld [vmem:[%s1 + $0x1810] sm:$0xff]
  %v834 = vld [vmem:[%s1 + $0x1818] sm:$0xff]
  %v835 = vld [vmem:[%s1 + $0x1820] sm:$0xff]
  %v836 = vld [vmem:[%s1 + $0x1828] sm:$0xff]
  %v837 = vld [vmem:[%s1 + $0x1830] sm:$0xff]
  %v838 = vld [vmem:[%s1 + $0x1838] sm:$0xff]
  %v839 = vld [vmem:[%s1 + $0x1840] sm:$0xff]
  %v840 = vld [vmem:[%s1 + $0x1848] sm:$0xff]
  %v841 = vld [vmem:[%s1 + $0x1850] sm:$0xff]
  %v842 = vld [vmem:[%s1 + $0x1858] sm:$0xff]
  %v843 = vld [vmem:[%s1 + $0x1860] sm:$0xff]
  %v844 = vld [vmem:[%s1 + $0x1868] sm:$0xff]
  %v845 = vld [vmem:[%s1 + $0x1870] sm:$0xff]
  %v846 = vld [vmem:[%s1 + $0x1878] sm:$0xff]
  %v847 = vld [vmem:[%s1 + $0x1880] sm:$0xff]
  %v848 = vld [vmem:[%s1 + $0x1888] sm:$0xff]
  %v849 = vld [vmem:[%s1 + $0x1890] sm:$0xff]
  %v850 = vld [vmem:[%s1 + $0x1898] sm:$0xff]
  %v851 = vld [vmem:[%s1 + $0x18a0] sm:$0xff]
  %v852 = vld [vmem:[%s1 + $0x18a8] sm:$0xff]
  %v853 = vld [vmem:[%s1 + $0x18b0] sm:$0xff]
  %v854 = vld [vmem:[%s1 + $0x18b8] sm:$0xff]
  %v855 = vld [vmem:[%s1 + $0x18c0] sm:$0xff]
  %v856 = vld [vmem:[%s1 + $0x18c8] sm:$0xff]
  %v857 = vld [vmem:[%s1 + $0x18d0] sm:$0xff]
  %v858 = vld [vmem:[%s1 + $0x18d8] sm:$0xff]
  %v859 = vld [vmem:[%s1 + $0x18e0] sm:$0xff]
  %v860 = vld [vmem:[%s1 + $0x18e8] sm:$0xff]
  %v861 = vld [vmem:[%s1 + $0x18f0] sm:$0xff]
  %v862 = vld [vmem:[%s1 + $0x18f8] sm:$0xff]
  %v863 = vld [vmem:[%s1 + $0x1900] sm:$0xff]
  %v864 = vld [vmem:[%s1 + $0x1908] sm:$0xff]
  %v865 = vld [vmem:[%s1 + $0x1910] sm:$0xff]
  %v866 = vld [vmem:[%s1 + $0x1918] sm:$0xff]
  %v867 = vld [vmem:[%s1 + $0x1920] sm:$0xff]
  %v868 = vld [vmem:[%s1 + $0x1928] sm:$0xff]
  %v869 = vld [vmem:[%s1 + $0x1930] sm:$0xff]
  %v870 = vld [vmem:[%s1 + $0x1938] sm:$0xff]
  %v871 = vld [vmem:[%s1 + $0x1940] sm:$0xff]
  %v872 = vld [vmem:[%s1 + $0x1948] sm:$0xff]
  %v873 = vld [vmem:[%s1 + $0x1950] sm:$0xff]
  %v874 = vld [vmem:[%s1 + $0x1958] sm:$0xff]
  %v875 = vld [vmem:[%s1 + $0x1960] sm:$0xff]
  %v876 = vld [vmem:[%s1 + $0x1968] sm:$0xff]
  %v877 = vld [vmem:[%s1 + $0x1970] sm:$0xff]
  %v878 = vld [vmem:[%s1 + $0x1978] sm:$0xff]
  %v879 = vld [vmem:[%s1 + $0x1980] sm:$0xff]
  %v880 = vld [vmem:[%s1 + $0x1988] sm:$0xff]
  %v881 = vld [vmem:[%s1 + $0x1990] sm:$0xff]
  %v882 = vld [vmem:[%s1 + $0x1998] sm:$0xff]
  %v883 = vld [vmem:[%s1 + $0x19a0] sm:$0xff]
  %v884 = vld [vmem:[%s1 + $0x19a8] sm:$0xff]
  %v885 = vld [vmem:[%s1 + $0x19b0] sm:$0xff]
  %v886 = vld [vmem:[%s1 + $0x19b8] sm:$0xff]
  %v887 = vld [vmem:[%s1 + $0x19c0] sm:$0xff]
  %v888 = vld [vmem:[%s1 + $0x19c8] sm:$0xff]
  %v889 = vld [vmem:[%s1 + $0x19d0] sm:$0xff]
  %v890 = vld [vmem:[%s1 + $0x19d8] sm:$0xff]
  %v891 = vld [vmem:[%s1 + $0x19e0] sm:$0xff]
  %v892 = vld [vmem:[%s1 + $0x19e8] sm:$0xff]
  %v893 = vld [vmem:[%s1 + $0x19f0] sm:$0xff]
  %v894 = vld [vmem:[%s1 + $0x19f8] sm:$0xff]
  %v895 = vld [vmem:[%s1 + $0x1a00] sm:$0xff]
  %v896 = vld [vmem:[%s1 + $0x1a08] sm:$0xff]
  %v897 = vld [vmem:[%s1 + $0x1a10] sm:$0xff]
  %v898 = vld [vmem:[%s1 + $0x1a18] sm:$0xff]
  %v899 = vld [vmem:[%s1 + $0x1a20] sm:$0xff]
  %v900 = vld [vmem:[%s1 + $0x1a28] sm:$0xff]
  %v901 = vld [vmem:[%s1 + $0x1a30] sm:$0xff]
  %v902 = vld [vmem:[%s1 + $0x1a38] sm:$0xff]
  %v903 = vld [vmem:[%s1 + $0x1a40] sm:$0xff]
  %v904 = vld [vmem:[%s1 + $0x1a48] sm:$0xff]
  %v905 = vld [vmem:[%s1 + $0x1a50] sm:$0xff]
  %v906 = vld [vmem:[%s1 + $0x1a58] sm:$0xff]
  %v907 = vld [vmem:[%s1 + $0x1a60] sm:$0xff]
  %v908 = vld [vmem:[%s1 + $0x1a68] sm:$0xff]
  %v909 = vld [vmem:[%s1 + $0x1a70] sm:$0xff]
  %v910 = vld [vmem:[%s1 + $0x1a78] sm:$0xff]
  %v911 = vld [vmem:[%s1 + $0x1a80] sm:$0xff]
  %v912 = vld [vmem:[%s1 + $0x1a88] sm:$0xff]
  %v913 = vld [vmem:[%s1 + $0x1a90] sm:$0xff]
  %v914 = vld [vmem:[%s1 + $0x1a98] sm:$0xff]
  %v915 = vld [vmem:[%s1 + $0x1aa0] sm:$0xff]
  %v916 = vld [vmem:[%s1 + $0x1aa8] sm:$0xff]
  %v917 = vld [vmem:[%s1 + $0x1ab0] sm:$0xff]
  %v918 = vld [vmem:[%s1 + $0x1ab8] sm:$0xff]
  %v919 = vld [vmem:[%s1 + $0x1ac0] sm:$0xff]
  %v920 = vld [vmem:[%s1 + $0x1ac8] sm:$0xff]
  %v921 = vld [vmem:[%s1 + $0x1ad0] sm:$0xff]
  %v922 = vld [vmem:[%s1 + $0x1ad8] sm:$0xff]
  %v923 = vld [vmem:[%s1 + $0x1ae0] sm:$0xff]
  %v924 = vld [vmem:[%s1 + $0x1ae8] sm:$0xff]
  %v925 = vld [vmem:[%s1 + $0x1af0] sm:$0xff]
  %v926 = vld [vmem:[%s1 + $0x1af8] sm:$0xff]
  %v927 = vld [vmem:[%s1 + $0x1b00] sm:$0xff]
  %v928 = vld [vmem:[%s1 + $0x1b08] sm:$0xff]
  %v929 = vld [vmem:[%s1 + $0x1b10] sm:$0xff]
  %v930 = vld [vmem:[%s1 + $0x1b18] sm:$0xff]
  %v931 = vld [vmem:[%s1 + $0x1b20] sm:$0xff]
  %v932 = vld [vmem:[%s1 + $0x1b28] sm:$0xff]
  %v933 = vld [vmem:[%s1 + $0x1b30] sm:$0xff]
  %v934 = vld [vmem:[%s1 + $0x1b38] sm:$0xff]
  %v935 = vld [vmem:[%s1 + $0x1b40] sm:$0xff]
  %v936 = vld [vmem:[%s1 + $0x1b48] sm:$0xff]
  %v937 = vld [vmem:[%s1 + $0x1b50] sm:$0xff]
  %v938 = vld [vmem:[%s1 + $0x1b58] sm:$0xff]
  %v939 = vld [vmem:[%s1 + $0x1b60] sm:$0xff]
  %v940 = vld [vmem:[%s1 + $0x1b68] sm:$0xff]
  %v941 = vld [vmem:[%s1 + $0x1b70] sm:$0xff]
  %v942 = vld [vmem:[%s1 + $0x1b78] sm:$0xff]
  %v943 = vld [vmem:[%s1 + $0x1b80] sm:$0xff]
  %v944 = vld [vmem:[%s1 + $0x1b88] sm:$0xff]
  %v945 = vld [vmem:[%s1 + $0x1b90] sm:$0xff]
  %v946 = vld [vmem:[%s1 + $0x1b98] sm:$0xff]
  %v947 = vld [vmem:[%s1 + $0x1ba0] sm:$0xff]
  %v948 = vld [vmem:[%s1 + $0x1ba8] sm:$0xff]
  %v949 = vld [vmem:[%s1 + $0x1bb0] sm:$0xff]
  %v950 = vld [vmem:[%s1 + $0x1bb8] sm:$0xff]
  %v951 = vld [vmem:[%s1 + $0x1bc0] sm:$0xff]
  %v952 = vld [vmem:[%s1 + $0x1bc8] sm:$0xff]
  %v953 = vld [vmem:[%s1 + $0x1bd0] sm:$0xff]
  %v954 = vld [vmem:[%s1 + $0x1bd8] sm:$0xff]
  %v955 = vld [vmem:[%s1 + $0x1be0] sm:$0xff]
  %v956 = vld [vmem:[%s1 + $0x1be8] sm:$0xff]
  %v957 = vld [vmem:[%s1 + $0x1bf0] sm:$0xff]
  %v958 = vld [vmem:[%s1 + $0x1bf8] sm:$0xff]
  %v959 = vld [vmem:[%s1 + $0x1c00] sm:$0xff]
  %v960 = vld [vmem:[%s1 + $0x1c08] sm:$0xff]
  %v961 = vld [vmem:[%s1 + $0x1c10] sm:$0xff]
  %v962 = vld [vmem:[%s1 + $0x1c18] sm:$0xff]
  %v963 = vld [vmem:[%s1 + $0x1c20] sm:$0xff]
  %v964 = vld [vmem:[%s1 + $0x1c28] sm:$0xff]
  %v965 = vld [vmem:[%s1 + $0x1c30] sm:$0xff]
  %v966 = vld [vmem:[%s1 + $0x1c38] sm:$0xff]
  %v967 = vld [vmem:[%s1 + $0x1c40] sm:$0xff]
  %v968 = vld [vmem:[%s1 + $0x1c48] sm:$0xff]
  %v969 = vld [vmem:[%s1 + $0x1c50] sm:$0xff]
  %v970 = vld [vmem:[%s1 + $0x1c58] sm:$0xff]
  %v971 = vld [vmem:[%s1 + $0x1c60] sm:$0xff]
  %v972 = vld [vmem:[%s1 + $0x1c68] sm:$0xff]
  %v973 = vld [vmem:[%s1 + $0x1c70] sm:$0xff]
  %v974 = vld [vmem:[%s1 + $0x1c78] sm:$0xff]
  %v975 = vld [vmem:[%s1 + $0x1c80] sm:$0xff]
  %v976 = vld [vmem:[%s1 + $0x1c88] sm:$0xff]
  %v977 = vld [vmem:[%s1 + $0x1c90] sm:$0xff]
  %v978 = vld [vmem:[%s1 + $0x1c98] sm:$0xff]
  %v979 = vld [vmem:[%s1 + $0x1ca0] sm:$0xff]
  %v980 = vld [vmem:[%s1 + $0x1ca8] sm:$0xff]
  %v981 = vld [vmem:[%s1 + $0x1cb0] sm:$0xff]
  %v982 = vld [vmem:[%s1 + $0x1cb8] sm:$0xff]
  %v983 = vld [vmem:[%s1 + $0x1cc0] sm:$0xff]
  %v984 = vld [vmem:[%s1 + $0x1cc8] sm:$0xff]
  %v985 = vld [vmem:[%s1 + $0x1cd0] sm:$0xff]
  %v986 = vld [vmem:[%s1 + $0x1cd8] sm:$0xff]
  %v987 = vld [vmem:[%s1 + $0x1ce0] sm:$0xff]
  %v988 = vld [vmem:[%s1 + $0x1ce8] sm:$0xff]
  %v989 = vld [vmem:[%s1 + $0x1cf0] sm:$0xff]
  %v990 = vld [vmem:[%s1 + $0x1cf8] sm:$0xff]
  %v991 = vld [vmem:[%s1 + $0x1d00] sm:$0xff]
  %v992 = vld [vmem:[%s1 + $0x1d08] sm:$0xff]
  %v993 = vld [vmem:[%s1 + $0x1d10] sm:$0xff]
  %v994 = vld [vmem:[%s1 + $0x1d18] sm:$0xff]
  %v995 = vld [vmem:[%s1 + $0x1d20] sm:$0xff]
  %v996 = vld [vmem:[%s1 + $0x1d28] sm:$0xff]
  %v997 = vld [vmem:[%s1 + $0x1d30] sm:$0xff]
  %v998 = vld [vmem:[%s1 + $0x1d38] sm:$0xff]
  %v999 = vld [vmem:[%s1 + $0x1d40] sm:$0xff]
  %v1000 = vld [vmem:[%s1 + $0x1d48] sm:$0xff]
  %v1001 = vld [vmem:[%s1 + $0x1d50] sm:$0xff]
  %v1002 = vld [vmem:[%s1 + $0x1d58] sm:$0xff]
  %v1003 = vld [vmem:[%s1 + $0x1d60] sm:$0xff]
  %v1004 = vld [vmem:[%s1 + $0x1d68] sm:$0xff]
  %v1005 = vld [vmem:[%s1 + $0x1d70] sm:$0xff]
  %v1006 = vld [vmem:[%s1 + $0x1d78] sm:$0xff]
  %v1007 = vld [vmem:[%s1 + $0x1d80] sm:$0xff]
  %v1008 = vld [vmem:[%s1 + $0x1d88] sm:$0xff]
  %v1009 = vld [vmem:[%s1 + $0x1d90] sm:$0xff]
  %v1010 = vld [vmem:[%s1 + $0x1d98] sm:$0xff]
  %v1011 = vld [vmem:[%s1 + $0x1da0] sm:$0xff]
  %v1012 = vld [vmem:[%s1 + $0x1da8] sm:$0xff]
  %v1013 = vld [vmem:[%s1 + $0x1db0] sm:$0xff]
  %v1014 = vld [vmem:[%s1 + $0x1db8] sm:$0xff]
  %v1015 = vld [vmem:[%s1 + $0x1dc0] sm:$0xff]
  %v1016 = vld [vmem:[%s1 + $0x1dc8] sm:$0xff]
  %v1017 = vld [vmem:[%s1 + $0x1dd0] sm:$0xff]
  %v1018 = vld [vmem:[%s1 + $0x1dd8] sm:$0xff]
  %v1019 = vld [vmem:[%s1 + $0x1de0] sm:$0xff]
  %v1020 = vld [vmem:[%s1 + $0x1de8] sm:$0xff]
  %v1021 = vld [vmem:[%s1 + $0x1df0] sm:$0xff]
  %v1022 = vld [vmem:[%s1 + $0x1df8] sm:$0xff]
  %v1023 = vld [vmem:[%s1 + $0x1e00] sm:$0xff]
  %v1024 = vld [vmem:[%s1 + $0x1e08] sm:$0xff]
  %v1025 = vld [vmem:[%s1 + $0x1e10] sm:$0xff]
  %v1026 = vld [vmem:[%s1 + $0x1e18] sm:$0xff]
  %v1027 = vld [vmem:[%s1 + $0x1e20] sm:$0xff]
  %v1028 = vld [vmem:[%s1 + $0x1e28] sm:$0xff]
  %v1029 = vld [vmem:[%s1 + $0x1e30] sm:$0xff]
  %v1030 = vld [vmem:[%s1 + $0x1e38] sm:$0xff]
  %v1031 = vld [vmem:[%s1 + $0x1e40] sm:$0xff]
  %v1032 = vld [vmem:[%s1 + $0x1e48] sm:$0xff]
  %v1033 = vld [vmem:[%s1 + $0x1e50] sm:$0xff]
  %v1034 = vld [vmem:[%s1 + $0x1e58] sm:$0xff]
  %v1035 = vld [vmem:[%s1 + $0x1e60] sm:$0xff]
  %v1036 = vld [vmem:[%s1 + $0x1e68] sm:$0xff]
  %v1037 = vld [vmem:[%s1 + $0x1e70] sm:$0xff]
  %v1038 = vld [vmem:[%s1 + $0x1e78] sm:$0xff]
  %v1039 = vld [vmem:[%s1 + $0x1e80] sm:$0xff]
  %v1040 = vld [vmem:[%s1 + $0x1e88] sm:$0xff]
  %v1041 = vld [vmem:[%s1 + $0x1e90] sm:$0xff]
  %v1042 = vld [vmem:[%s1 + $0x1e98] sm:$0xff]
  %v1043 = vld [vmem:[%s1 + $0x1ea0] sm:$0xff]
  %v1044 = vld [vmem:[%s1 + $0x1ea8] sm:$0xff]
  %v1045 = vld [vmem:[%s1 + $0x1eb0] sm:$0xff]
  %v1046 = vld [vmem:[%s1 + $0x1eb8] sm:$0xff]
  %v1047 = vld [vmem:[%s1 + $0x1ec0] sm:$0xff]
  %v1048 = vld [vmem:[%s1 + $0x1ec8] sm:$0xff]
  %v1049 = vld [vmem:[%s1 + $0x1ed0] sm:$0xff]
  %v1050 = vld [vmem:[%s1 + $0x1ed8] sm:$0xff]
  %v1051 = vld [vmem:[%s1 + $0x1ee0] sm:$0xff]
  %v1052 = vld [vmem:[%s1 + $0x1ee8] sm:$0xff]
  %v1053 = vld [vmem:[%s1 + $0x1ef0] sm:$0xff]
  %v1054 = vld [vmem:[%s1 + $0x1ef8] sm:$0xff]
  %v1055 = vld [vmem:[%s1 + $0x1f00] sm:$0xff]
  %v1056 = vld [vmem:[%s1 + $0x1f08] sm:$0xff]
  %v1057 = vld [vmem:[%s1 + $0x1f10] sm:$0xff]
  %v1058 = vld [vmem:[%s1 + $0x1f18] sm:$0xff]
  %v1059 = vld [vmem:[%s1 + $0x1f20] sm:$0xff]
  %v1060 = vld [vmem:[%s1 + $0x1f28] sm:$0xff]
  %v1061 = vld [vmem:[%s1 + $0x1f30] sm:$0xff]
  %v1062 = vld [vmem:[%s1 + $0x1f38] sm:$0xff]
  %v1063 = vld [vmem:[%s1 + $0x1f40] sm:$0xff]
  %v1064 = vld [vmem:[%s1 + $0x1f48] sm:$0xff]
  %v1065 = vld [vmem:[%s1 + $0x1f50] sm:$0xff]
  %v1066 = vld [vmem:[%s1 + $0x1f58] sm:$0xff]
  %v1067 = vld [vmem:[%s1 + $0x1f60] sm:$0xff]
  %v1068 = vld [vmem:[%s1 + $0x1f68] sm:$0xff]
  %v1069 = vld [vmem:[%s1 + $0x1f70] sm:$0xff]
  %v1070 = vld [vmem:[%s1 + $0x1f78] sm:$0xff]
  %v1071 = vld [vmem:[%s1 + $0x1f80] sm:$0xff]
  %v1072 = vld [vmem:[%s1 + $0x1f88] sm:$0xff]
  %v1073 = vld [vmem:[%s1 + $0x1f90] sm:$0xff]
  %v1074 = vld [vmem:[%s1 + $0x1f98] sm:$0xff]
  %v1075 = vld [vmem:[%s1 + $0x1fa0] sm:$0xff]
  %v1076 = vld [vmem:[%s1 + $0x1fa8] sm:$0xff]
  %v1077 = vld [vmem:[%s1 + $0x1fb0] sm:$0xff]
  %v1078 = vld [vmem:[%s1 + $0x1fb8] sm:$0xff]
  %v1079 = vld [vmem:[%s1 + $0x1fc0] sm:$0xff]
  %v1080 = vld [vmem:[%s1 + $0x1fc8] sm:$0xff]
  %v1081 = vld [vmem:[%s1 + $0x1fd0] sm:$0xff]
  %v1082 = vld [vmem:[%s1 + $0x1fd8] sm:$0xff]
  %v1083 = vld [vmem:[%s1 + $0x1fe0] sm:$0xff]
  %v1084 = vld [vmem:[%s1 + $0x1fe8] sm:$0xff]
  %v1085 = vld [vmem:[%s1 + $0x1ff0] sm:$0xff]
  %v1086 = vld [vmem:[%s1 + $0x1ff8] sm:$0xff]
  %v1087 = vld [vmem:[%s1 + $0x2000] sm:$0xff]
  %v1088 = vld [vmem:[%s1 + $0x2008] sm:$0xff]
  %v1089 = vld [vmem:[%s1 + $0x2010] sm:$0xff]
  %v1090 = vld [vmem:[%s1 + $0x2018] sm:$0xff]
  %v1091 = vld [vmem:[%s1 + $0x2020] sm:$0xff]
  %v1092 = vld [vmem:[%s1 + $0x2028] sm:$0xff]
  %v1093 = vld [vmem:[%s1 + $0x2030] sm:$0xff]
  %v1094 = vld [vmem:[%s1 + $0x2038] sm:$0xff]
  %v1095 = vld [vmem:[%s1 + $0x2040] sm:$0xff]
  %v1096 = vld [vmem:[%s1 + $0x2048] sm:$0xff]
  %v1097 = vld [vmem:[%s1 + $0x2050] sm:$0xff]
  %v1098 = vld [vmem:[%s1 + $0x2058] sm:$0xff]
  %v1099 = vld [vmem:[%s1 + $0x2060] sm:$0xff]
  %v1100 = vld [vmem:[%s1 + $0x2068] sm:$0xff]
  %v1101 = vld [vmem:[%s1 + $0x2070] sm:$0xff]
  %v1102 = vld [vmem:[%s1 + $0x2078] sm:$0xff]
  %v1103 = vld [vmem:[%s1 + $0x2080] sm:$0xff]
  %v1104 = vld [vmem:[%s1 + $0x2088] sm:$0xff]
  %v1105 = vld [vmem:[%s1 + $0x2090] sm:$0xff]
  %v1106 = vld [vmem:[%s1 + $0x2098] sm:$0xff]
  %v1107 = vld [vmem:[%s1 + $0x20a0] sm:$0xff]
  %v1108 = vld [vmem:[%s1 + $0x20a8] sm:$0xff]
  %v1109 = vld [vmem:[%s1 + $0x20b0] sm:$0xff]
  %v1110 = vld [vmem:[%s1 + $0x20b8] sm:$0xff]
  %v1111 = vld [vmem:[%s1 + $0x20c0] sm:$0xff]
  %v1112 = vld [vmem:[%s1 + $0x20c8] sm:$0xff]
  %v1113 = vld [vmem:[%s1 + $0x20d0] sm:$0xff]
  %v1114 = vld [vmem:[%s1 + $0x20d8] sm:$0xff]
  %v1115 = vld [vmem:[%s1 + $0x20e0] sm:$0xff]
  %v1116 = vld [vmem:[%s1 + $0x20e8] sm:$0xff]
  %v1117 = vld [vmem:[%s1 + $0x20f0] sm:$0xff]
  %v1118 = vld [vmem:[%s1 + $0x20f8] sm:$0xff]
  %v1119 = vld [vmem:[%s1 + $0x2100] sm:$0xff]
  %v1120 = vld [vmem:[%s1 + $0x2108] sm:$0xff]
  %v1121 = vld [vmem:[%s1 + $0x2110] sm:$0xff]
  %v1122 = vld [vmem:[%s1 + $0x2118] sm:$0xff]
  %v1123 = vld [vmem:[%s1 + $0x2120] sm:$0xff]
  %v1124 = vld [vmem:[%s1 + $0x2128] sm:$0xff]
  %v1125 = vld [vmem:[%s1 + $0x2130] sm:$0xff]
  %v1126 = vld [vmem:[%s1 + $0x2138] sm:$0xff]
  %v1127 = vld [vmem:[%s1 + $0x2140] sm:$0xff]
  %v1128 = vld [vmem:[%s1 + $0x2148] sm:$0xff]
  %v1129 = vld [vmem:[%s1 + $0x2150] sm:$0xff]
  %v1130 = vld [vmem:[%s1 + $0x2158] sm:$0xff]
  %v1131 = vld [vmem:[%s1 + $0x2160] sm:$0xff]
  %v1132 = vld [vmem:[%s1 + $0x2168] sm:$0xff]
  %v1133 = vld [vmem:[%s1 + $0x2170] sm:$0xff]
  %v1134 = vld [vmem:[%s1 + $0x2178] sm:$0xff]
  %v1135 = vld [vmem:[%s1 + $0x2180] sm:$0xff]
  %v1136 = vld [vmem:[%s1 + $0x2188] sm:$0xff]
  %v1137 = vld [vmem:[%s1 + $0x2190] sm:$0xff]
  %v1138 = vld [vmem:[%s1 + $0x2198] sm:$0xff]
  %v1139 = vld [vmem:[%s1 + $0x21a0] sm:$0xff]
  %v1140 = vld [vmem:[%s1 + $0x21a8] sm:$0xff]
  %v1141 = vld [vmem:[%s1 + $0x21b0] sm:$0xff]
  %v1142 = vld [vmem:[%s1 + $0x21b8] sm:$0xff]
  %v1143 = vld [vmem:[%s1 + $0x21c0] sm:$0xff]
  %v1144 = vld [vmem:[%s1 + $0x21c8] sm:$0xff]
  %v1145 = vld [vmem:[%s1 + $0x21d0] sm:$0xff]
  %v1146 = vld [vmem:[%s1 + $0x21d8] sm:$0xff]
  %v1147 = vld [vmem:[%s1 + $0x21e0] sm:$0xff]
  %v1148 = vld [vmem:[%s1 + $0x21e8] sm:$0xff]
  %v1149 = vld [vmem:[%s1 + $0x21f0] sm:$0xff]
  %v1150 = vld [vmem:[%s1 + $0x21f8] sm:$0xff]
  %v1151 = vld [vmem:[%s1 + $0x2200] sm:$0xff]
  %v1152 = vld [vmem:[%s1 + $0x2208] sm:$0xff]
  %v1153 = vld [vmem:[%s1 + $0x2210] sm:$0xff]
  %v1154 = vld [vmem:[%s1 + $0x2218] sm:$0xff]
  %v1155 = vld [vmem:[%s1 + $0x2220] sm:$0xff]
  %v1156 = vld [vmem:[%s1 + $0x2228] sm:$0xff]
  %v1157 = vld [vmem:[%s1 + $0x2230] sm:$0xff]
  %v1158 = vld [vmem:[%s1 + $0x2238] sm:$0xff]
  %v1159 = vld [vmem:[%s1 + $0x2240] sm:$0xff]
  %v1160 = vld [vmem:[%s1 + $0x2248] sm:$0xff]
  %v1161 = vld [vmem:[%s1 + $0x2250] sm:$0xff]
  %v1162 = vld [vmem:[%s1 + $0x2258] sm:$0xff]
  %v1163 = vld [vmem:[%s1 + $0x2260] sm:$0xff]
  %v1164 = vld [vmem:[%s1 + $0x2268] sm:$0xff]
  %v1165 = vld [vmem:[%s1 + $0x2270] sm:$0xff]
  %v1166 = vld [vmem:[%s1 + $0x2278] sm:$0xff]
  %v1167 = vld [vmem:[%s1 + $0x2280] sm:$0xff]
  %v1168 = vld [vmem:[%s1 + $0x2288] sm:$0xff]
  %v1169 = vld [vmem:[%s1 + $0x2290] sm:$0xff]
  %v1170 = vld [vmem:[%s1 + $0x2298] sm:$0xff]
  %v1171 = vld [vmem:[%s1 + $0x22a0] sm:$0xff]
  %v1172 = vld [vmem:[%s1 + $0x22a8] sm:$0xff]
  %v1173 = vld [vmem:[%s1 + $0x22b0] sm:$0xff]
  %v1174 = vld [vmem:[%s1 + $0x22b8] sm:$0xff]
  %v1175 = vld [vmem:[%s1 + $0x22c0] sm:$0xff]
  %v1176 = vld [vmem:[%s1 + $0x22c8] sm:$0xff]
  %v1177 = vld [vmem:[%s1 + $0x22d0] sm:$0xff]
  %v1178 = vld [vmem:[%s1 + $0x22d8] sm:$0xff]
  %v1179 = vld [vmem:[%s1 + $0x22e0] sm:$0xff]
  %v1180 = vld [vmem:[%s1 + $0x22e8] sm:$0xff]
  %v1181 = vld [vmem:[%s1 + $0x22f0] sm:$0xff]
  %v1182 = vld [vmem:[%s1 + $0x22f8] sm:$0xff]
  %v1183 = vld [vmem:[%s1 + $0x2300] sm:$0xff]
  %v1184 = vld [vmem:[%s1 + $0x2308] sm:$0xff]
  %v1185 = vld [vmem:[%s1 + $0x2310] sm:$0xff]
  %v1186 = vld [vmem:[%s1 + $0x2318] sm:$0xff]
  %v1187 = vld [vmem:[%s1 + $0x2320] sm:$0xff]
  %v1188 = vld [vmem:[%s1 + $0x2328] sm:$0xff]
  %v1189 = vld [vmem:[%s1 + $0x2330] sm:$0xff]
  %v1190 = vld [vmem:[%s1 + $0x2338] sm:$0xff]
  %v1191 = vld [vmem:[%s1 + $0x2340] sm:$0xff]
  %v1192 = vld [vmem:[%s1 + $0x2348] sm:$0xff]
  %v1193 = vld [vmem:[%s1 + $0x2350] sm:$0xff]
  %v1194 = vld [vmem:[%s1 + $0x2358] sm:$0xff]
  %v1195 = vld [vmem:[%s1 + $0x2360] sm:$0xff]
  %v1196 = vld [vmem:[%s1 + $0x2368] sm:$0xff]
  %v1197 = vld [vmem:[%s1 + $0x2370] sm:$0xff]
  %v1198 = vld [vmem:[%s1 + $0x2378] sm:$0xff]
  %v1199 = vld [vmem:[%s1 + $0x2380] sm:$0xff]
  %v1200 = vld [vmem:[%s1 + $0x2388] sm:$0xff]
  %v1201 = vld [vmem:[%s1 + $0x2390] sm:$0xff]
  %v1202 = vld [vmem:[%s1 + $0x2398] sm:$0xff]
  %v1203 = vld [vmem:[%s1 + $0x23a0] sm:$0xff]
  %v1204 = vld [vmem:[%s1 + $0x23a8] sm:$0xff]
  %v1205 = vld [vmem:[%s1 + $0x23b0] sm:$0xff]
  %v1206 = vld [vmem:[%s1 + $0x23b8] sm:$0xff]
  %v1207 = vld [vmem:[%s1 + $0x23c0] sm:$0xff]
  %v1208 = vld [vmem:[%s1 + $0x23c8] sm:$0xff]
  %v1209 = vld [vmem:[%s1 + $0x23d0] sm:$0xff]
  %v1210 = vld [vmem:[%s1 + $0x23d8] sm:$0xff]
  %v1211 = vld [vmem:[%s1 + $0x23e0] sm:$0xff]
  %v1212 = vld [vmem:[%s1 + $0x23e8] sm:$0xff]
  %v1213 = vld [vmem:[%s1 + $0x23f0] sm:$0xff]
  %v1214 = vld [vmem:[%s1 + $0x23f8] sm:$0xff]
  %v1215 = vld [vmem:[%s1 + $0x2400] sm:$0xff]
  %v1216 = vld [vmem:[%s1 + $0x2408] sm:$0xff]
  %v1217 = vld [vmem:[%s1 + $0x2410] sm:$0xff]
  %v1218 = vld [vmem:[%s1 + $0x2418] sm:$0xff]
  %v1219 = vld [vmem:[%s1 + $0x2420] sm:$0xff]
  %v1220 = vld [vmem:[%s1 + $0x2428] sm:$0xff]
  %v1221 = vld [vmem:[%s1 + $0x2430] sm:$0xff]
  %v1222 = vld [vmem:[%s1 + $0x2438] sm:$0xff]
  %v1223 = vld [vmem:[%s1 + $0x2440] sm:$0xff]
  %v1224 = vld [vmem:[%s1 + $0x2448] sm:$0xff]
  %v1225 = vld [vmem:[%s1 + $0x2450] sm:$0xff]
  %v1226 = vld [vmem:[%s1 + $0x2458] sm:$0xff]
  %v1227 = vld [vmem:[%s1 + $0x2460] sm:$0xff]
  %v1228 = vld [vmem:[%s1 + $0x2468] sm:$0xff]
  %v1229 = vld [vmem:[%s1 + $0x2470] sm:$0xff]
  %v1230 = vld [vmem:[%s1 + $0x2478] sm:$0xff]
  %v1231 = vld [vmem:[%s1 + $0x2480] sm:$0xff]
  %v1232 = vld [vmem:[%s1 + $0x2488] sm:$0xff]
  %v1233 = vld [vmem:[%s1 + $0x2490] sm:$0xff]
  %v1234 = vld [vmem:[%s1 + $0x2498] sm:$0xff]
  %v1235 = vld [vmem:[%s1 + $0x24a0] sm:$0xff]
  %v1236 = vld [vmem:[%s1 + $0x24a8] sm:$0xff]
  %v1237 = vld [vmem:[%s1 + $0x24b0] sm:$0xff]
  %v1238 = vld [vmem:[%s1 + $0x24b8] sm:$0xff]
  %v1239 = vld [vmem:[%s1 + $0x24c0] sm:$0xff]
  %v1240 = vld [vmem:[%s1 + $0x24c8] sm:$0xff]
  %v1241 = vld [vmem:[%s1 + $0x24d0] sm:$0xff]
  %v1242 = vld [vmem:[%s1 + $0x24d8] sm:$0xff]
  %v1243 = vld [vmem:[%s1 + $0x24e0] sm:$0xff]
  %v1244 = vld [vmem:[%s1 + $0x24e8] sm:$0xff]
  %v1245 = vld [vmem:[%s1 + $0x24f0] sm:$0xff]
  %v1246 = vld [vmem:[%s1 + $0x24f8] sm:$0xff]
  %v1247 = vld [vmem:[%s1 + $0x2500] sm:$0xff]
  %v1248 = vld [vmem:[%s1 + $0x2508] sm:$0xff]
  %v1249 = vld [vmem:[%s1 + $0x2510] sm:$0xff]
  %v1250 = vld [vmem:[%s1 + $0x2518] sm:$0xff]
  %v1251 = vld [vmem:[%s1 + $0x2520] sm:$0xff]
  %v1252 = vld [vmem:[%s1 + $0x2528] sm:$0xff]
  %v1253 = vld [vmem:[%s1 + $0x2530] sm:$0xff]
  %v1254 = vld [vmem:[%s1 + $0x2538] sm:$0xff]
  %v1255 = vld [vmem:[%s1 + $0x2540] sm:$0xff]
  %v1256 = vld [vmem:[%s1 + $0x2548] sm:$0xff]
  %v1257 = vld [vmem:[%s1 + $0x2550] sm:$0xff]
  %v1258 = vld [vmem:[%s1 + $0x2558] sm:$0xff]
  %v1259 = vld [vmem:[%s1 + $0x2560] sm:$0xff]
  %v1260 = vld [vmem:[%s1 + $0x2568] sm:$0xff]
  %v1261 = vld [vmem:[%s1 + $0x2570] sm:$0xff]
  %v1262 = vld [vmem:[%s1 + $0x2578] sm:$0xff]
  %v1263 = vld [vmem:[%s1 + $0x2580] sm:$0xff]
  %v1264 = vld [vmem:[%s1 + $0x2588] sm:$0xff]
  %v1265 = vld [vmem:[%s1 + $0x2590] sm:$0xff]
  %v1266 = vld [vmem:[%s1 + $0x2598] sm:$0xff]
  %v1267 = vld [vmem:[%s1 + $0x25a0] sm:$0xff]
  %v1268 = vld [vmem:[%s1 + $0x25a8] sm:$0xff]
  %v1269 = vld [vmem:[%s1 + $0x25b0] sm:$0xff]
  %v1270 = vld [vmem:[%s1 + $0x25b8] sm:$0xff]
  %v1271 = vld [vmem:[%s1 + $0x25c0] sm:$0xff]
  %v1272 = vld [vmem:[%s1 + $0x25c8] sm:$0xff]
  %v1273 = vld [vmem:[%s1 + $0x25d0] sm:$0xff]
  %v1274 = vld [vmem:[%s1 + $0x25d8] sm:$0xff]
  %v1275 = vld [vmem:[%s1 + $0x25e0] sm:$0xff]
  %v1276 = vld [vmem:[%s1 + $0x25e8] sm:$0xff]
  %v1277 = vld [vmem:[%s1 + $0x25f0] sm:$0xff]
  %v1278 = vld [vmem:[%s1 + $0x25f8] sm:$0xff]
  %v1279 = vld [vmem:[%s1 + $0x2600] sm:$0xff]
  %v1280 = vld [vmem:[%s1 + $0x2608] sm:$0xff]
  %v1281 = vld [vmem:[%s1 + $0x2610] sm:$0xff]
  %v1282 = vld [vmem:[%s1 + $0x2618] sm:$0xff]
  %v1283 = vld [vmem:[%s1 + $0x2620] sm:$0xff]
  %v1284 = vld [vmem:[%s1 + $0x2628] sm:$0xff]
  %v1285 = vld [vmem:[%s1 + $0x2630] sm:$0xff]
  %v1286 = vld [vmem:[%s1 + $0x2638] sm:$0xff]
  %v1287 = vld [vmem:[%s1 + $0x2640] sm:$0xff]
  %v1288 = vld [vmem:[%s1 + $0x2648] sm:$0xff]
  %v1289 = vld [vmem:[%s1 + $0x2650] sm:$0xff]
  %v1290 = vld [vmem:[%s1 + $0x2658] sm:$0xff]
  %v1291 = vld [vmem:[%s1 + $0x2660] sm:$0xff]
  %v1292 = vld [vmem:[%s1 + $0x2668] sm:$0xff]
  %v1293 = vld [vmem:[%s1 + $0x2670] sm:$0xff]
  %v1294 = vld [vmem:[%s1 + $0x2678] sm:$0xff]
  %v1295 = vld [vmem:[%s1 + $0x2680] sm:$0xff]
  %v1296 = vld [vmem:[%s1 + $0x2688] sm:$0xff]
  %v1297 = vld [vmem:[%s1 + $0x2690] sm:$0xff]
  %v1298 = vld [vmem:[%s1 + $0x2698] sm:$0xff]
  %v1299 = vld [vmem:[%s1 + $0x26a0] sm:$0xff]
  %v1300 = vld [vmem:[%s1 + $0x26a8] sm:$0xff]
  %v1301 = vld [vmem:[%s1 + $0x26b0] sm:$0xff]
  %v1302 = vld [vmem:[%s1 + $0x26b8] sm:$0xff]
  %v1303 = vld [vmem:[%s1 + $0x26c0] sm:$0xff]
  %v1304 = vld [vmem:[%s1 + $0x26c8] sm:$0xff]
  %v1305 = vld [vmem:[%s1 + $0x26d0] sm:$0xff]
  %v1306 = vld [vmem:[%s1 + $0x26d8] sm:$0xff]
  %v1307 = vld [vmem:[%s1 + $0x26e0] sm:$0xff]
  %v1308 = vld [vmem:[%s1 + $0x26e8] sm:$0xff]
  %v1309 = vld [vmem:[%s1 + $0x26f0] sm:$0xff]
  %v1310 = vld [vmem:[%s1 + $0x26f8] sm:$0xff]
  %v1311 = vld [vmem:[%s1 + $0x2700] sm:$0xff]
  %v1312 = vld [vmem:[%s1 + $0x2708] sm:$0xff]
  %v1313 = vld [vmem:[%s1 + $0x2710] sm:$0xff]
  %v1314 = vld [vmem:[%s1 + $0x2718] sm:$0xff]
  %v1315 = vld [vmem:[%s1 + $0x2720] sm:$0xff]
  %v1316 = vld [vmem:[%s1 + $0x2728] sm:$0xff]
  %v1317 = vld [vmem:[%s1 + $0x2730] sm:$0xff]
  %v1318 = vld [vmem:[%s1 + $0x2738] sm:$0xff]
  %v1319 = vld [vmem:[%s1 + $0x2740] sm:$0xff]
  %v1320 = vld [vmem:[%s1 + $0x2748] sm:$0xff]
  %v1321 = vld [vmem:[%s1 + $0x2750] sm:$0xff]
  %v1322 = vld [vmem:[%s1 + $0x2758] sm:$0xff]
  %v1323 = vld [vmem:[%s1 + $0x2760] sm:$0xff]
  %v1324 = vld [vmem:[%s1 + $0x2768] sm:$0xff]
  %v1325 = vld [vmem:[%s1 + $0x2770] sm:$0xff]
  %v1326 = vld [vmem:[%s1 + $0x2778] sm:$0xff]
  %v1327 = vld [vmem:[%s1 + $0x2780] sm:$0xff]
  %v1328 = vld [vmem:[%s1 + $0x2788] sm:$0xff]
  %v1329 = vld [vmem:[%s1 + $0x2790] sm:$0xff]
  %v1330 = vld [vmem:[%s1 + $0x2798] sm:$0xff]
  %v1331 = vld [vmem:[%s1 + $0x27a0] sm:$0xff]
  %v1332 = vld [vmem:[%s1 + $0x27a8] sm:$0xff]
  %v1333 = vld [vmem:[%s1 + $0x27b0] sm:$0xff]
  %v1334 = vld [vmem:[%s1 + $0x27b8] sm:$0xff]
  %v1335 = vld [vmem:[%s1 + $0x27c0] sm:$0xff]
  %v1336 = vld [vmem:[%s1 + $0x27c8] sm:$0xff]
  %v1337 = vld [vmem:[%s1 + $0x27d0] sm:$0xff]
  %v1338 = vld [vmem:[%s1 + $0x27d8] sm:$0xff]
  %v1339 = vld [vmem:[%s1 + $0x27e0] sm:$0xff]
  %v1340 = vld [vmem:[%s1 + $0x27e8] sm:$0xff]
  %v1341 = vld [vmem:[%s1 + $0x27f0] sm:$0xff]
  %v1342 = vld [vmem:[%s1 + $0x27f8] sm:$0xff]
  %v1343 = vld [vmem:[%s1 + $0x2800] sm:$0xff]
  %v1344 = vld [vmem:[%s1 + $0x2808] sm:$0xff]
  %v1345 = vld [vmem:[%s1 + $0x2810] sm:$0xff]
  %v1346 = vld [vmem:[%s1 + $0x2818] sm:$0xff]
  %v1347 = vld [vmem:[%s1 + $0x2820] sm:$0xff]
  %v1348 = vld [vmem:[%s1 + $0x2828] sm:$0xff]
  %v1349 = vld [vmem:[%s1 + $0x2830] sm:$0xff]
  %v1350 = vld [vmem:[%s1 + $0x2838] sm:$0xff]
  %v1351 = vld [vmem:[%s1 + $0x2840] sm:$0xff]
  %v1352 = vld [vmem:[%s1 + $0x2848] sm:$0xff]
  %v1353 = vld [vmem:[%s1 + $0x2850] sm:$0xff]
  %v1354 = vld [vmem:[%s1 + $0x2858] sm:$0xff]
  %v1355 = vld [vmem:[%s1 + $0x2860] sm:$0xff]
  %v1356 = vld [vmem:[%s1 + $0x2868] sm:$0xff]
  %v1357 = vld [vmem:[%s1 + $0x2870] sm:$0xff]
  %v1358 = vld [vmem:[%s1 + $0x2878] sm:$0xff]
  %v1359 = vld [vmem:[%s2] sm:$0xf]
  %v1361 = vperm.slane %v1359, 0
  %v1362 = vperm.slane %v1359, 1
  %v1363 = vperm.slane %v1359, 2
  %v1364 = vperm.slane %v1359, 3
  %v1411 = vunpack.c.l.b16 %v21
  %v1412 = vunpack.c.h.b16 %v21
  %v1413 = vunpack.c.l.b16 %v22
  %v1414 = vunpack.c.h.b16 %v22
  %v1415 = vunpack.c.l.b16 %v23
  %v1416 = vunpack.c.h.b16 %v23
  %v1417 = vunpack.c.l.b16 %v24
  %v1418 = vunpack.c.h.b16 %v24
  %v1419 = vunpack.c.l.b16 %v25
  %v1420 = vunpack.c.h.b16 %v25
  %v1421 = vunpack.c.l.b16 %v26
  %v1422 = vunpack.c.h.b16 %v26
  %v1423 = vunpack.c.l.b16 %v27
  %v1424 = vunpack.c.h.b16 %v27
  %v1425 = vunpack.c.l.b16 %v28
  %v1426 = vunpack.c.h.b16 %v28
  %v1427 = vunpack.c.l.b16 %v29
  %v1428 = vunpack.c.h.b16 %v29
  %v1429 = vunpack.c.l.b16 %v30
  %v1430 = vunpack.c.h.b16 %v30
  %v1431 = vunpack.c.l.b16 %v31
  %v1432 = vunpack.c.h.b16 %v31
  %v1433 = vunpack.c.l.b16 %v32
  %v1434 = vunpack.c.h.b16 %v32
  %v1435 = vunpack.c.l.b16 %v33
  %v1436 = vunpack.c.h.b16 %v33
  %v1437 = vunpack.c.l.b16 %v34
  %v1438 = vunpack.c.h.b16 %v34
  %v1439 = vunpack.c.l.b16 %v35
  %v1440 = vunpack.c.h.b16 %v35
  %v1441 = vunpack.c.l.b16 %v36
  %v1442 = vunpack.c.h.b16 %v36
  %v1443 = vunpack.c.l.b16 %v37
  %v1444 = vunpack.c.h.b16 %v37
  %v1445 = vunpack.c.l.b16 %v38
  %v1446 = vunpack.c.h.b16 %v38
  %v1447 = vunpack.c.l.b16 %v39
  %v1448 = vunpack.c.h.b16 %v39
  %v1449 = vunpack.c.l.b16 %v40
  %v1450 = vunpack.c.h.b16 %v40
  %v1451 = vunpack.c.l.b16 %v41
  %v1452 = vunpack.c.l.b16 %v42
  %v1453 = vunpack.c.h.b16 %v42
  %v1454 = vunpack.c.l.b16 %v43
  %v1455 = vunpack.c.h.b16 %v43
  %v1456 = vunpack.c.l.b16 %v44
  %v1457 = vunpack.c.h.b16 %v44
  %v1458 = vunpack.c.l.b16 %v45
  %v1459 = vunpack.c.h.b16 %v45
  %v1460 = vunpack.c.l.b16 %v46
  %v1461 = vunpack.c.h.b16 %v46
  %v1462 = vunpack.c.l.b16 %v47
  %v1463 = vunpack.c.h.b16 %v47
  %v1464 = vunpack.c.l.b16 %v48
  %v1465 = vunpack.c.h.b16 %v48
  %v1466 = vunpack.c.l.b16 %v49
  %v1467 = vunpack.c.h.b16 %v49
  %v1468 = vunpack.c.l.b16 %v50
  %v1469 = vunpack.c.h.b16 %v50
  %v1470 = vunpack.c.l.b16 %v51
  %v1471 = vunpack.c.h.b16 %v51
  %v1472 = vunpack.c.l.b16 %v52
  %v1473 = vunpack.c.h.b16 %v52
  %v1474 = vunpack.c.l.b16 %v53
  %v1475 = vunpack.c.h.b16 %v53
  %v1476 = vunpack.c.l.b16 %v54
  %v1477 = vunpack.c.h.b16 %v54
  %v1478 = vunpack.c.l.b16 %v55
  %v1479 = vunpack.c.h.b16 %v55
  %v1480 = vunpack.c.l.b16 %v56
  %v1481 = vunpack.c.h.b16 %v56
  %v1482 = vunpack.c.l.b16 %v57
  %v1483 = vunpack.c.h.b16 %v57
  %v1484 = vunpack.c.l.b16 %v58
  %v1485 = vunpack.c.h.b16 %v58
  %v1486 = vunpack.c.l.b16 %v59
  %v1487 = vunpack.c.h.b16 %v59
  %v1488 = vunpack.c.l.b16 %v60
  %v1489 = vunpack.c.h.b16 %v60
  %v1490 = vunpack.c.l.b16 %v61
  %v1491 = vunpack.c.h.b16 %v61
  %v1492 = vunpack.c.l.b16 %v62
  %v1493 = vpack.c.b16 %v1452, %v1411
  %v1494 = vpack.c.b16 %v1453, %v1412
  %v1495 = vpack.c.b16 %v1454, %v1413
  %v1496 = vpack.c.b16 %v1455, %v1414
  %v1497 = vpack.c.b16 %v1456, %v1415
  %v1498 = vpack.c.b16 %v1457, %v1416
  %v1499 = vpack.c.b16 %v1458, %v1417
  %v1500 = vpack.c.b16 %v1459, %v1418
  %v1501 = vpack.c.b16 %v1460, %v1419
  %v1502 = vpack.c.b16 %v1461, %v1420
  %v1503 = vpack.c.b16 %v1462, %v1421
  %v1504 = vpack.c.b16 %v1463, %v1422
  %v1505 = vpack.c.b16 %v1464, %v1423
  %v1506 = vpack.c.b16 %v1465, %v1424
  %v1507 = vpack.c.b16 %v1466, %v1425
  %v1508 = vpack.c.b16 %v1467, %v1426
  %v1509 = vpack.c.b16 %v1468, %v1427
  %v1510 = vpack.c.b16 %v1469, %v1428
  %v1511 = vpack.c.b16 %v1470, %v1429
  %v1512 = vpack.c.b16 %v1471, %v1430
  %v1513 = vpack.c.b16 %v1472, %v1431
  %v1514 = vpack.c.b16 %v1473, %v1432
  %v1515 = vpack.c.b16 %v1474, %v1433
  %v1516 = vpack.c.b16 %v1475, %v1434
  %v1517 = vpack.c.b16 %v1476, %v1435
  %v1518 = vpack.c.b16 %v1477, %v1436
  %v1519 = vpack.c.b16 %v1478, %v1437
  %v1520 = vpack.c.b16 %v1479, %v1438
  %v1521 = vpack.c.b16 %v1480, %v1439
  %v1522 = vpack.c.b16 %v1481, %v1440
  %v1523 = vpack.c.b16 %v1482, %v1441
  %v1524 = vpack.c.b16 %v1483, %v1442
  %v1525 = vpack.c.b16 %v1484, %v1443
  %v1526 = vpack.c.b16 %v1485, %v1444
  %v1527 = vpack.c.b16 %v1486, %v1445
  %v1528 = vpack.c.b16 %v1487, %v1446
  %v1529 = vpack.c.b16 %v1488, %v1447
  %v1530 = vpack.c.b16 %v1489, %v1448
  %v1531 = vpack.c.b16 %v1490, %v1449
  %v1532 = vpack.c.b16 %v1491, %v1450
  %v1533 = vpack.c.b16 %v1492, %v1451
  %v2870 = vunpack.c.l.b16 %v63
  %v2871 = vunpack.c.h.b16 %v63
  %v2872 = vunpack.c.l.b16 %v64
  %v2873 = vunpack.c.h.b16 %v64
  %v2874 = vunpack.c.l.b16 %v65
  %v2875 = vunpack.c.h.b16 %v65
  %v2876 = vunpack.c.l.b16 %v66
  %v2877 = vunpack.c.h.b16 %v66
  %v2878 = vunpack.c.l.b16 %v67
  %v2879 = vunpack.c.h.b16 %v67
  %v2880 = vunpack.c.l.b16 %v68
  %v2881 = vunpack.c.h.b16 %v68
  %v2882 = vunpack.c.l.b16 %v69
  %v2883 = vunpack.c.h.b16 %v69
  %v2884 = vunpack.c.l.b16 %v70
  %v2885 = vunpack.c.h.b16 %v70
  %v2886 = vunpack.c.l.b16 %v71
  %v2887 = vunpack.c.h.b16 %v71
  %v2888 = vunpack.c.l.b16 %v72
  %v2889 = vunpack.c.h.b16 %v72
  %v2890 = vunpack.c.l.b16 %v73
  %v2891 = vunpack.c.h.b16 %v73
  %v2892 = vunpack.c.l.b16 %v74
  %v2893 = vunpack.c.h.b16 %v74
  %v2894 = vunpack.c.l.b16 %v75
  %v2895 = vunpack.c.h.b16 %v75
  %v2896 = vunpack.c.l.b16 %v76
  %v2897 = vunpack.c.h.b16 %v76
  %v2898 = vunpack.c.l.b16 %v77
  %v2899 = vunpack.c.h.b16 %v77
  %v2900 = vunpack.c.l.b16 %v78
  %v2901 = vunpack.c.h.b16 %v78
  %v2902 = vunpack.c.l.b16 %v79
  %v2903 = vunpack.c.h.b16 %v79
  %v2904 = vunpack.c.l.b16 %v80
  %v2905 = vunpack.c.h.b16 %v80
  %v2906 = vunpack.c.l.b16 %v81
  %v2907 = vunpack.c.h.b16 %v81
  %v2908 = vunpack.c.l.b16 %v82
  %v2909 = vunpack.c.h.b16 %v82
  %v2910 = vunpack.c.l.b16 %v83
  %v2911 = vunpack.c.h.b16 %v83
  %v2912 = vunpack.c.l.b16 %v84
  %v2913 = vunpack.c.h.b16 %v84
  %v2914 = vunpack.c.l.b16 %v85
  %v2915 = vunpack.c.h.b16 %v85
  %v2916 = vunpack.c.l.b16 %v86
  %v2917 = vunpack.c.h.b16 %v86
  %v2918 = vunpack.c.l.b16 %v87
  %v2919 = vunpack.c.h.b16 %v87
  %v2920 = vunpack.c.l.b16 %v88
  %v2921 = vunpack.c.h.b16 %v88
  %v2922 = vunpack.c.l.b16 %v89
  %v2923 = vunpack.c.h.b16 %v89
  %v2924 = vunpack.c.l.b16 %v90
  %v2925 = vunpack.c.h.b16 %v90
  %v2926 = vunpack.c.l.b16 %v91
  %v2927 = vunpack.c.h.b16 %v91
  %v2928 = vunpack.c.l.b16 %v92
  %v2929 = vunpack.c.h.b16 %v92
  %v2930 = vunpack.c.l.b16 %v93
  %v2931 = vunpack.c.h.b16 %v93
  %v2932 = vunpack.c.l.b16 %v94
  %v2933 = vunpack.c.h.b16 %v94
  %v2934 = vunpack.c.l.b16 %v95
  %v2935 = vunpack.c.h.b16 %v95
  %v2936 = vunpack.c.l.b16 %v96
  %v2937 = vunpack.c.h.b16 %v96
  %v2938 = vunpack.c.l.b16 %v97
  %v2939 = vunpack.c.h.b16 %v97
  %v2940 = vunpack.c.l.b16 %v98
  %v2941 = vunpack.c.h.b16 %v98
  %v2942 = vunpack.c.l.b16 %v99
  %v2943 = vunpack.c.h.b16 %v99
  %v2944 = vunpack.c.l.b16 %v100
  %v2945 = vunpack.c.h.b16 %v100
  %v2946 = vunpack.c.l.b16 %v101
  %v2947 = vunpack.c.h.b16 %v101
  %v2948 = vunpack.c.l.b16 %v102
  %v2949 = vunpack.c.h.b16 %v102
  %v2950 = vunpack.c.l.b16 %v103
  %v2951 = vunpack.c.h.b16 %v103
  %v2952 = vunpack.c.l.b16 %v104
  %v2953 = vunpack.c.h.b16 %v104
  %v2954 = vunpack.c.l.b16 %v105
  %v2955 = vunpack.c.h.b16 %v105
  %v2956 = vunpack.c.l.b16 %v106
  %v2957 = vunpack.c.h.b16 %v106
  %v2958 = vunpack.c.l.b16 %v107
  %v2959 = vunpack.c.h.b16 %v107
  %v2960 = vunpack.c.l.b16 %v108
  %v2961 = vunpack.c.h.b16 %v108
  %v2962 = vunpack.c.l.b16 %v109
  %v2963 = vunpack.c.h.b16 %v109
  %v2964 = vunpack.c.l.b16 %v110
  %v2965 = vunpack.c.h.b16 %v110
  %v2966 = vunpack.c.l.b16 %v111
  %v2967 = vunpack.c.h.b16 %v111
  %v2968 = vunpack.c.l.b16 %v112
  %v2969 = vunpack.c.h.b16 %v112
  %v2970 = vunpack.c.l.b16 %v113
  %v2971 = vunpack.c.h.b16 %v113
  %v2972 = vunpack.c.l.b16 %v114
  %v2973 = vunpack.c.h.b16 %v114
  %v2974 = vunpack.c.l.b16 %v115
  %v2975 = vunpack.c.h.b16 %v115
  %v2976 = vunpack.c.l.b16 %v116
  %v2977 = vunpack.c.h.b16 %v116
  %v2978 = vunpack.c.l.b16 %v117
  %v2979 = vunpack.c.h.b16 %v117
  %v2980 = vunpack.c.l.b16 %v118
  %v2981 = vunpack.c.h.b16 %v118
  %v2982 = vunpack.c.l.b16 %v119
  %v2983 = vunpack.c.h.b16 %v119
  %v2984 = vunpack.c.l.b16 %v120
  %v2985 = vunpack.c.h.b16 %v120
  %v2986 = vunpack.c.l.b16 %v121
  %v2987 = vunpack.c.h.b16 %v121
  %v2988 = vunpack.c.l.b16 %v122
  %v2989 = vunpack.c.h.b16 %v122
  %v2990 = vunpack.c.l.b16 %v123
  %v2991 = vunpack.c.h.b16 %v123
  %v2992 = vunpack.c.l.b16 %v124
  %v2993 = vunpack.c.h.b16 %v124
  %v2994 = vunpack.c.l.b16 %v125
  %v2995 = vunpack.c.h.b16 %v125
  %v2996 = vunpack.c.l.b16 %v126
  %v2997 = vunpack.c.h.b16 %v126
  %v2998 = vunpack.c.l.b16 %v127
  %v2999 = vunpack.c.h.b16 %v127
  %v3000 = vunpack.c.l.b16 %v128
  %v3001 = vunpack.c.h.b16 %v128
  %v3002 = vunpack.c.l.b16 %v129
  %v3003 = vunpack.c.h.b16 %v129
  %v3004 = vunpack.c.l.b16 %v130
  %v3005 = vunpack.c.h.b16 %v130
  %v3006 = vunpack.c.l.b16 %v131
  %v3007 = vunpack.c.h.b16 %v131
  %v3008 = vunpack.c.l.b16 %v132
  %v3009 = vunpack.c.h.b16 %v132
  %v3010 = vunpack.c.l.b16 %v133
  %v3011 = vunpack.c.h.b16 %v133
  %v3012 = vunpack.c.l.b16 %v134
  %v3013 = vunpack.c.h.b16 %v134
  %v3014 = vunpack.c.l.b16 %v135
  %v3015 = vunpack.c.h.b16 %v135
  %v3016 = vunpack.c.l.b16 %v136
  %v3017 = vunpack.c.h.b16 %v136
  %v3018 = vunpack.c.l.b16 %v137
  %v3019 = vunpack.c.h.b16 %v137
  %v3020 = vunpack.c.l.b16 %v138
  %v3021 = vunpack.c.h.b16 %v138
  %v3022 = vunpack.c.l.b16 %v139
  %v3023 = vunpack.c.h.b16 %v139
  %v3024 = vunpack.c.l.b16 %v140
  %v3025 = vunpack.c.h.b16 %v140
  %v3026 = vunpack.c.l.b16 %v141
  %v3027 = vunpack.c.h.b16 %v141
  %v3028 = vunpack.c.l.b16 %v142
  %v3029 = vunpack.c.h.b16 %v142
  %v3030 = vunpack.c.l.b16 %v143
  %v3031 = vunpack.c.h.b16 %v143
  %v3032 = vunpack.c.l.b16 %v144
  %v3033 = vunpack.c.h.b16 %v144
  %v3034 = vunpack.c.l.b16 %v145
  %v3035 = vunpack.c.h.b16 %v145
  %v3036 = vunpack.c.l.b16 %v146
  %v3037 = vunpack.c.h.b16 %v146
  %v3038 = vunpack.c.l.b16 %v147
  %v3039 = vunpack.c.h.b16 %v147
  %v3040 = vunpack.c.l.b16 %v148
  %v3041 = vunpack.c.h.b16 %v148
  %v3042 = vunpack.c.l.b16 %v149
  %v3043 = vunpack.c.h.b16 %v149
  %v3044 = vunpack.c.l.b16 %v150
  %v3045 = vunpack.c.h.b16 %v150
  %v3046 = vunpack.c.l.b16 %v151
  %v3047 = vunpack.c.h.b16 %v151
  %v3048 = vunpack.c.l.b16 %v152
  %v3049 = vunpack.c.h.b16 %v152
  %v3050 = vunpack.c.l.b16 %v153
  %v3051 = vunpack.c.h.b16 %v153
  %v3052 = vunpack.c.l.b16 %v154
  %v3053 = vunpack.c.h.b16 %v154
  %v3054 = vunpack.c.l.b16 %v155
  %v3055 = vunpack.c.h.b16 %v155
  %v3056 = vunpack.c.l.b16 %v156
  %v3057 = vunpack.c.h.b16 %v156
  %v3058 = vunpack.c.l.b16 %v157
  %v3059 = vunpack.c.h.b16 %v157
  %v3060 = vunpack.c.l.b16 %v158
  %v3061 = vunpack.c.h.b16 %v158
  %v3062 = vunpack.c.l.b16 %v159
  %v3063 = vunpack.c.h.b16 %v159
  %v3064 = vunpack.c.l.b16 %v160
  %v3065 = vunpack.c.h.b16 %v160
  %v3066 = vunpack.c.l.b16 %v161
  %v3067 = vunpack.c.h.b16 %v161
  %v3068 = vunpack.c.l.b16 %v162
  %v3069 = vunpack.c.h.b16 %v162
  %v3070 = vunpack.c.l.b16 %v163
  %v3071 = vunpack.c.h.b16 %v163
  %v3072 = vunpack.c.l.b16 %v164
  %v3073 = vunpack.c.h.b16 %v164
  %v3074 = vunpack.c.l.b16 %v165
  %v3075 = vunpack.c.h.b16 %v165
  %v3076 = vunpack.c.l.b16 %v166
  %v3077 = vunpack.c.h.b16 %v166
  %v3078 = vunpack.c.l.b16 %v167
  %v3079 = vunpack.c.h.b16 %v167
  %v3080 = vunpack.c.l.b16 %v168
  %v3081 = vunpack.c.h.b16 %v168
  %v3082 = vunpack.c.l.b16 %v169
  %v3083 = vunpack.c.h.b16 %v169
  %v3084 = vunpack.c.l.b16 %v170
  %v3085 = vunpack.c.h.b16 %v170
  %v3086 = vunpack.c.l.b16 %v171
  %v3087 = vunpack.c.h.b16 %v171
  %v3088 = vunpack.c.l.b16 %v172
  %v3089 = vunpack.c.h.b16 %v172
  %v3090 = vunpack.c.l.b16 %v173
  %v3091 = vunpack.c.h.b16 %v173
  %v3092 = vunpack.c.l.b16 %v174
  %v3093 = vunpack.c.h.b16 %v174
  %v3094 = vunpack.c.l.b16 %v175
  %v3095 = vunpack.c.h.b16 %v175
  %v3096 = vunpack.c.l.b16 %v176
  %v3097 = vunpack.c.h.b16 %v176
  %v3098 = vunpack.c.l.b16 %v177
  %v3099 = vunpack.c.h.b16 %v177
  %v3100 = vunpack.c.l.b16 %v178
  %v3101 = vunpack.c.h.b16 %v178
  %v3102 = vunpack.c.l.b16 %v179
  %v3103 = vunpack.c.h.b16 %v179
  %v3104 = vunpack.c.l.b16 %v180
  %v3105 = vunpack.c.h.b16 %v180
  %v3106 = vunpack.c.l.b16 %v181
  %v3107 = vunpack.c.h.b16 %v181
  %v3108 = vunpack.c.l.b16 %v182
  %v3109 = vunpack.c.h.b16 %v182
  %v3110 = vunpack.c.l.b16 %v183
  %v3111 = vunpack.c.h.b16 %v183
  %v3112 = vunpack.c.l.b16 %v184
  %v3113 = vunpack.c.h.b16 %v184
  %v3114 = vunpack.c.l.b16 %v185
  %v3115 = vunpack.c.h.b16 %v185
  %v3116 = vunpack.c.l.b16 %v186
  %v3117 = vunpack.c.h.b16 %v186
  %v3118 = vunpack.c.l.b16 %v187
  %v3119 = vunpack.c.h.b16 %v187
  %v3120 = vunpack.c.l.b16 %v188
  %v3121 = vunpack.c.h.b16 %v188
  %v3122 = vunpack.c.l.b16 %v189
  %v3123 = vunpack.c.h.b16 %v189
  %v3124 = vunpack.c.l.b16 %v190
  %v3125 = vunpack.c.h.b16 %v190
  %v3126 = vunpack.c.l.b16 %v191
  %v3127 = vunpack.c.h.b16 %v191
  %v3128 = vunpack.c.l.b16 %v192
  %v3129 = vunpack.c.h.b16 %v192
  %v3130 = vunpack.c.l.b16 %v193
  %v3131 = vunpack.c.h.b16 %v193
  %v3132 = vunpack.c.l.b16 %v194
  %v3133 = vunpack.c.h.b16 %v194
  %v3134 = vunpack.c.l.b16 %v195
  %v3135 = vunpack.c.h.b16 %v195
  %v3136 = vunpack.c.l.b16 %v196
  %v3137 = vunpack.c.h.b16 %v196
  %v3138 = vunpack.c.l.b16 %v197
  %v3139 = vunpack.c.h.b16 %v197
  %v3140 = vunpack.c.l.b16 %v198
  %v3141 = vunpack.c.h.b16 %v198
  %v3142 = vunpack.c.l.b16 %v199
  %v3143 = vunpack.c.h.b16 %v199
  %v3144 = vunpack.c.l.b16 %v200
  %v3145 = vunpack.c.h.b16 %v200
  %v3146 = vunpack.c.l.b16 %v201
  %v3147 = vunpack.c.h.b16 %v201
  %v3148 = vunpack.c.l.b16 %v202
  %v3149 = vunpack.c.h.b16 %v202
  %v3150 = vunpack.c.l.b16 %v203
  %v3151 = vunpack.c.h.b16 %v203
  %v3152 = vunpack.c.l.b16 %v204
  %v3153 = vunpack.c.h.b16 %v204
  %v3154 = vunpack.c.l.b16 %v205
  %v3155 = vunpack.c.h.b16 %v205
  %v3156 = vunpack.c.l.b16 %v206
  %v3157 = vunpack.c.h.b16 %v206
  %v3158 = vunpack.c.l.b16 %v207
  %v3159 = vunpack.c.h.b16 %v207
  %v3160 = vunpack.c.l.b16 %v208
  %v3161 = vunpack.c.h.b16 %v208
  %v3162 = vunpack.c.l.b16 %v209
  %v3163 = vunpack.c.h.b16 %v209
  %v3164 = vunpack.c.l.b16 %v210
  %v3165 = vunpack.c.h.b16 %v210
  %v3166 = vunpack.c.l.b16 %v211
  %v3167 = vunpack.c.h.b16 %v211
  %v3168 = vunpack.c.l.b16 %v212
  %v3169 = vunpack.c.h.b16 %v212
  %v3170 = vunpack.c.l.b16 %v213
  %v3171 = vunpack.c.h.b16 %v213
  %v3172 = vunpack.c.l.b16 %v214
  %v3173 = vunpack.c.h.b16 %v214
  %v3174 = vunpack.c.l.b16 %v215
  %v3175 = vunpack.c.h.b16 %v215
  %v3176 = vunpack.c.l.b16 %v216
  %v3177 = vunpack.c.h.b16 %v216
  %v3178 = vunpack.c.l.b16 %v217
  %v3179 = vunpack.c.h.b16 %v217
  %v3180 = vunpack.c.l.b16 %v218
  %v3181 = vunpack.c.h.b16 %v218
  %v3182 = vunpack.c.l.b16 %v219
  %v3183 = vunpack.c.h.b16 %v219
  %v3184 = vunpack.c.l.b16 %v220
  %v3185 = vunpack.c.h.b16 %v220
  %v3186 = vunpack.c.l.b16 %v221
  %v3187 = vunpack.c.h.b16 %v221
  %v3188 = vunpack.c.l.b16 %v222
  %v3189 = vunpack.c.h.b16 %v222
  %v3190 = vunpack.c.l.b16 %v223
  %v3191 = vunpack.c.h.b16 %v223
  %v3192 = vunpack.c.l.b16 %v224
  %v3193 = vunpack.c.h.b16 %v224
  %v3194 = vunpack.c.l.b16 %v225
  %v3195 = vunpack.c.h.b16 %v225
  %v3196 = vunpack.c.l.b16 %v226
  %v3197 = vunpack.c.h.b16 %v226
  %v3198 = vunpack.c.l.b16 %v227
  %v3199 = vunpack.c.h.b16 %v227
  %v3200 = vunpack.c.l.b16 %v228
  %v3201 = vunpack.c.h.b16 %v228
  %v3202 = vunpack.c.l.b16 %v229
  %v3203 = vunpack.c.h.b16 %v229
  %v3204 = vunpack.c.l.b16 %v230
  %v3205 = vunpack.c.h.b16 %v230
  %v3206 = vunpack.c.l.b16 %v231
  %v3207 = vunpack.c.h.b16 %v231
  %v3208 = vunpack.c.l.b16 %v232
  %v3209 = vunpack.c.h.b16 %v232
  %v3210 = vunpack.c.l.b16 %v233
  %v3211 = vunpack.c.h.b16 %v233
  %v3212 = vunpack.c.l.b16 %v234
  %v3213 = vunpack.c.h.b16 %v234
  %v3214 = vunpack.c.l.b16 %v235
  %v3215 = vunpack.c.h.b16 %v235
  %v3216 = vunpack.c.l.b16 %v236
  %v3217 = vunpack.c.h.b16 %v236
  %v3218 = vunpack.c.l.b16 %v237
  %v3219 = vunpack.c.h.b16 %v237
  %v3220 = vunpack.c.l.b16 %v238
  %v3221 = vunpack.c.h.b16 %v238
  %v3222 = vunpack.c.l.b16 %v239
  %v3223 = vunpack.c.h.b16 %v239
  %v3224 = vunpack.c.l.b16 %v240
  %v3225 = vunpack.c.h.b16 %v240
  %v3226 = vunpack.c.l.b16 %v241
  %v3227 = vunpack.c.h.b16 %v241
  %v3228 = vunpack.c.l.b16 %v242
  %v3229 = vunpack.c.h.b16 %v242
  %v3230 = vunpack.c.l.b16 %v243
  %v3231 = vunpack.c.h.b16 %v243
  %v3232 = vunpack.c.l.b16 %v244
  %v3233 = vunpack.c.h.b16 %v244
  %v3234 = vunpack.c.l.b16 %v245
  %v3235 = vunpack.c.h.b16 %v245
  %v3236 = vunpack.c.l.b16 %v246
  %v3237 = vunpack.c.h.b16 %v246
  %v3238 = vunpack.c.l.b16 %v247
  %v3239 = vunpack.c.h.b16 %v247
  %v3240 = vunpack.c.l.b16 %v248
  %v3241 = vunpack.c.h.b16 %v248
  %v3242 = vunpack.c.l.b16 %v249
  %v3243 = vunpack.c.h.b16 %v249
  %v3244 = vunpack.c.l.b16 %v250
  %v3245 = vunpack.c.h.b16 %v250
  %v3246 = vunpack.c.l.b16 %v251
  %v3247 = vunpack.c.h.b16 %v251
  %v3248 = vunpack.c.l.b16 %v252
  %v3249 = vunpack.c.h.b16 %v252
  %v3250 = vunpack.c.l.b16 %v253
  %v3251 = vunpack.c.h.b16 %v253
  %v3252 = vunpack.c.l.b16 %v254
  %v3253 = vunpack.c.h.b16 %v254
  %v3254 = vunpack.c.l.b16 %v255
  %v3255 = vunpack.c.h.b16 %v255
  %v3256 = vunpack.c.l.b16 %v256
  %v3257 = vunpack.c.h.b16 %v256
  %v3258 = vunpack.c.l.b16 %v257
  %v3259 = vunpack.c.h.b16 %v257
  %v3260 = vunpack.c.l.b16 %v258
  %v3261 = vunpack.c.h.b16 %v258
  %v3262 = vunpack.c.l.b16 %v259
  %v3263 = vunpack.c.h.b16 %v259
  %v3264 = vunpack.c.l.b16 %v260
  %v3265 = vunpack.c.h.b16 %v260
  %v3266 = vunpack.c.l.b16 %v261
  %v3267 = vunpack.c.h.b16 %v261
  %v3268 = vunpack.c.l.b16 %v262
  %v3269 = vunpack.c.h.b16 %v262
  %v3270 = vunpack.c.l.b16 %v263
  %v3271 = vunpack.c.h.b16 %v263
  %v3272 = vunpack.c.l.b16 %v264
  %v3273 = vunpack.c.h.b16 %v264
  %v3274 = vunpack.c.l.b16 %v265
  %v3275 = vunpack.c.h.b16 %v265
  %v3276 = vunpack.c.l.b16 %v266
  %v3277 = vunpack.c.h.b16 %v266
  %v3278 = vunpack.c.l.b16 %v267
  %v3279 = vunpack.c.h.b16 %v267
  %v3280 = vunpack.c.l.b16 %v268
  %v3281 = vunpack.c.h.b16 %v268
  %v3282 = vunpack.c.l.b16 %v269
  %v3283 = vunpack.c.h.b16 %v269
  %v3284 = vunpack.c.l.b16 %v270
  %v3285 = vunpack.c.h.b16 %v270
  %v3286 = vunpack.c.l.b16 %v271
  %v3287 = vunpack.c.h.b16 %v271
  %v3288 = vunpack.c.l.b16 %v272
  %v3289 = vunpack.c.h.b16 %v272
  %v3290 = vunpack.c.l.b16 %v273
  %v3291 = vunpack.c.h.b16 %v273
  %v3292 = vunpack.c.l.b16 %v274
  %v3293 = vunpack.c.h.b16 %v274
  %v3294 = vunpack.c.l.b16 %v275
  %v3295 = vunpack.c.h.b16 %v275
  %v3296 = vunpack.c.l.b16 %v276
  %v3297 = vunpack.c.h.b16 %v276
  %v3298 = vunpack.c.l.b16 %v277
  %v3299 = vunpack.c.h.b16 %v277
  %v3300 = vunpack.c.l.b16 %v278
  %v3301 = vunpack.c.h.b16 %v278
  %v3302 = vunpack.c.l.b16 %v279
  %v3303 = vunpack.c.h.b16 %v279
  %v3304 = vunpack.c.l.b16 %v280
  %v3305 = vunpack.c.h.b16 %v280
  %v3306 = vunpack.c.l.b16 %v281
  %v3307 = vunpack.c.h.b16 %v281
  %v3308 = vunpack.c.l.b16 %v282
  %v3309 = vunpack.c.h.b16 %v282
  %v3310 = vunpack.c.l.b16 %v283
  %v3311 = vunpack.c.h.b16 %v283
  %v3312 = vunpack.c.l.b16 %v284
  %v3313 = vunpack.c.h.b16 %v284
  %v3314 = vunpack.c.l.b16 %v285
  %v3315 = vunpack.c.h.b16 %v285
  %v3316 = vunpack.c.l.b16 %v286
  %v3317 = vunpack.c.h.b16 %v286
  %v3318 = vunpack.c.l.b16 %v287
  %v3319 = vunpack.c.h.b16 %v287
  %v3320 = vunpack.c.l.b16 %v288
  %v3321 = vunpack.c.h.b16 %v288
  %v3322 = vunpack.c.l.b16 %v289
  %v3323 = vunpack.c.h.b16 %v289
  %v3324 = vunpack.c.l.b16 %v290
  %v3325 = vunpack.c.h.b16 %v290
  %v3326 = vunpack.c.l.b16 %v291
  %v3327 = vunpack.c.h.b16 %v291
  %v3328 = vunpack.c.l.b16 %v292
  %v3329 = vunpack.c.h.b16 %v292
  %v3330 = vunpack.c.l.b16 %v293
  %v3331 = vunpack.c.h.b16 %v293
  %v3332 = vunpack.c.l.b16 %v294
  %v3333 = vunpack.c.h.b16 %v294
  %v3334 = vunpack.c.l.b16 %v295
  %v3335 = vunpack.c.h.b16 %v295
  %v3336 = vunpack.c.l.b16 %v296
  %v3337 = vunpack.c.h.b16 %v296
  %v3338 = vunpack.c.l.b16 %v297
  %v3339 = vunpack.c.h.b16 %v297
  %v3340 = vunpack.c.l.b16 %v298
  %v3341 = vunpack.c.h.b16 %v298
  %v3342 = vunpack.c.l.b16 %v299
  %v3343 = vunpack.c.h.b16 %v299
  %v3344 = vunpack.c.l.b16 %v300
  %v3345 = vunpack.c.h.b16 %v300
  %v3346 = vunpack.c.l.b16 %v301
  %v3347 = vunpack.c.h.b16 %v301
  %v3348 = vunpack.c.l.b16 %v302
  %v3349 = vunpack.c.h.b16 %v302
  %v3350 = vunpack.c.l.b16 %v303
  %v3351 = vunpack.c.h.b16 %v303
  %v3352 = vunpack.c.l.b16 %v304
  %v3353 = vunpack.c.h.b16 %v304
  %v3354 = vunpack.c.l.b16 %v305
  %v3355 = vunpack.c.h.b16 %v305
  %v3356 = vunpack.c.l.b16 %v306
  %v3357 = vunpack.c.h.b16 %v306
  %v3358 = vunpack.c.l.b16 %v307
  %v3359 = vunpack.c.h.b16 %v307
  %v3360 = vunpack.c.l.b16 %v308
  %v3361 = vunpack.c.h.b16 %v308
  %v3362 = vunpack.c.l.b16 %v309
  %v3363 = vunpack.c.h.b16 %v309
  %v3364 = vunpack.c.l.b16 %v310
  %v3365 = vunpack.c.h.b16 %v310
  %v3366 = vunpack.c.l.b16 %v311
  %v3367 = vunpack.c.h.b16 %v311
  %v3368 = vunpack.c.l.b16 %v312
  %v3369 = vunpack.c.h.b16 %v312
  %v3370 = vunpack.c.l.b16 %v313
  %v3371 = vunpack.c.h.b16 %v313
  %v3372 = vunpack.c.l.b16 %v314
  %v3373 = vunpack.c.h.b16 %v314
  %v3374 = vunpack.c.l.b16 %v315
  %v3375 = vunpack.c.h.b16 %v315
  %v3376 = vunpack.c.l.b16 %v316
  %v3377 = vunpack.c.h.b16 %v316
  %v3378 = vunpack.c.l.b16 %v317
  %v3379 = vunpack.c.h.b16 %v317
  %v3380 = vunpack.c.l.b16 %v318
  %v3381 = vunpack.c.h.b16 %v318
  %v3382 = vunpack.c.l.b16 %v319
  %v3383 = vunpack.c.h.b16 %v319
  %v3384 = vunpack.c.l.b16 %v320
  %v3385 = vunpack.c.h.b16 %v320
  %v3386 = vunpack.c.l.b16 %v321
  %v3387 = vunpack.c.h.b16 %v321
  %v3388 = vunpack.c.l.b16 %v322
  %v3389 = vunpack.c.h.b16 %v322
  %v3390 = vunpack.c.l.b16 %v323
  %v3391 = vunpack.c.h.b16 %v323
  %v3392 = vunpack.c.l.b16 %v324
  %v3393 = vunpack.c.h.b16 %v324
  %v3394 = vunpack.c.l.b16 %v325
  %v3395 = vunpack.c.h.b16 %v325
  %v3396 = vunpack.c.l.b16 %v326
  %v3397 = vunpack.c.h.b16 %v326
  %v3398 = vunpack.c.l.b16 %v327
  %v3399 = vunpack.c.h.b16 %v327
  %v3400 = vunpack.c.l.b16 %v328
  %v3401 = vunpack.c.h.b16 %v328
  %v3402 = vunpack.c.l.b16 %v329
  %v3403 = vunpack.c.h.b16 %v329
  %v3404 = vunpack.c.l.b16 %v330
  %v3405 = vunpack.c.h.b16 %v330
  %v3406 = vunpack.c.l.b16 %v331
  %v3407 = vunpack.c.h.b16 %v331
  %v3408 = vunpack.c.l.b16 %v332
  %v3409 = vunpack.c.h.b16 %v332
  %v3410 = vunpack.c.l.b16 %v333
  %v3411 = vunpack.c.h.b16 %v333
  %v3412 = vunpack.c.l.b16 %v334
  %v3413 = vunpack.c.h.b16 %v334
  %v3414 = vunpack.c.l.b16 %v335
  %v3415 = vunpack.c.h.b16 %v335
  %v3416 = vunpack.c.l.b16 %v336
  %v3417 = vunpack.c.h.b16 %v336
  %v3418 = vunpack.c.l.b16 %v337
  %v3419 = vunpack.c.h.b16 %v337
  %v3420 = vunpack.c.l.b16 %v338
  %v3421 = vunpack.c.h.b16 %v338
  %v3422 = vunpack.c.l.b16 %v339
  %v3423 = vunpack.c.h.b16 %v339
  %v3424 = vunpack.c.l.b16 %v340
  %v3425 = vunpack.c.h.b16 %v340
  %v3426 = vunpack.c.l.b16 %v341
  %v3427 = vunpack.c.h.b16 %v341
  %v3428 = vunpack.c.l.b16 %v342
  %v3429 = vunpack.c.h.b16 %v342
  %v3430 = vunpack.c.l.b16 %v343
  %v3431 = vunpack.c.h.b16 %v343
  %v3432 = vunpack.c.l.b16 %v344
  %v3433 = vunpack.c.h.b16 %v344
  %v3434 = vunpack.c.l.b16 %v345
  %v3435 = vunpack.c.h.b16 %v345
  %v3436 = vunpack.c.l.b16 %v346
  %v3437 = vunpack.c.h.b16 %v346
  %v3438 = vunpack.c.l.b16 %v347
  %v3439 = vunpack.c.h.b16 %v347
  %v3440 = vunpack.c.l.b16 %v348
  %v3441 = vunpack.c.h.b16 %v348
  %v3442 = vunpack.c.l.b16 %v349
  %v3443 = vunpack.c.h.b16 %v349
  %v3444 = vunpack.c.l.b16 %v350
  %v3445 = vunpack.c.h.b16 %v350
  %v3446 = vunpack.c.l.b16 %v351
  %v3447 = vunpack.c.h.b16 %v351
  %v3448 = vunpack.c.l.b16 %v352
  %v3449 = vunpack.c.h.b16 %v352
  %v3450 = vunpack.c.l.b16 %v353
  %v3451 = vunpack.c.h.b16 %v353
  %v3452 = vunpack.c.l.b16 %v354
  %v3453 = vunpack.c.h.b16 %v354
  %v3454 = vunpack.c.l.b16 %v355
  %v3455 = vunpack.c.h.b16 %v355
  %v3456 = vunpack.c.l.b16 %v356
  %v3457 = vunpack.c.h.b16 %v356
  %v3458 = vunpack.c.l.b16 %v357
  %v3459 = vunpack.c.h.b16 %v357
  %v3460 = vunpack.c.l.b16 %v358
  %v3461 = vunpack.c.h.b16 %v358
  %v3462 = vunpack.c.l.b16 %v359
  %v3463 = vunpack.c.h.b16 %v359
  %v3464 = vunpack.c.l.b16 %v360
  %v3465 = vunpack.c.h.b16 %v360
  %v3466 = vunpack.c.l.b16 %v361
  %v3467 = vunpack.c.h.b16 %v361
  %v3468 = vunpack.c.l.b16 %v362
  %v3469 = vunpack.c.h.b16 %v362
  %v3470 = vunpack.c.l.b16 %v363
  %v3471 = vunpack.c.h.b16 %v363
  %v3472 = vunpack.c.l.b16 %v364
  %v3473 = vunpack.c.h.b16 %v364
  %v3474 = vunpack.c.l.b16 %v365
  %v3475 = vunpack.c.h.b16 %v365
  %v3476 = vunpack.c.l.b16 %v366
  %v3477 = vunpack.c.h.b16 %v366
  %v3478 = vunpack.c.l.b16 %v367
  %v3479 = vunpack.c.h.b16 %v367
  %v3480 = vunpack.c.l.b16 %v368
  %v3481 = vunpack.c.h.b16 %v368
  %v3482 = vunpack.c.l.b16 %v369
  %v3483 = vunpack.c.h.b16 %v369
  %v3484 = vunpack.c.l.b16 %v370
  %v3485 = vunpack.c.h.b16 %v370
  %v3486 = vunpack.c.l.b16 %v371
  %v3487 = vunpack.c.h.b16 %v371
  %v3488 = vunpack.c.l.b16 %v372
  %v3489 = vunpack.c.h.b16 %v372
  %v3490 = vunpack.c.l.b16 %v373
  %v3491 = vunpack.c.h.b16 %v373
  %v3492 = vunpack.c.l.b16 %v374
  %v3493 = vunpack.c.h.b16 %v374
  %v3494 = vunpack.c.l.b16 %v375
  %v3495 = vunpack.c.h.b16 %v375
  %v3496 = vunpack.c.l.b16 %v376
  %v3497 = vunpack.c.h.b16 %v376
  %v3498 = vunpack.c.l.b16 %v377
  %v3499 = vunpack.c.h.b16 %v377
  %v3500 = vunpack.c.l.b16 %v378
  %v3501 = vunpack.c.h.b16 %v378
  %v3502 = vunpack.c.l.b16 %v379
  %v3503 = vunpack.c.h.b16 %v379
  %v3504 = vunpack.c.l.b16 %v380
  %v3505 = vunpack.c.h.b16 %v380
  %v3506 = vunpack.c.l.b16 %v381
  %v3507 = vunpack.c.h.b16 %v381
  %v3508 = vunpack.c.l.b16 %v382
  %v3509 = vunpack.c.h.b16 %v382
  %v3510 = vunpack.c.l.b16 %v383
  %v3511 = vunpack.c.h.b16 %v383
  %v3512 = vunpack.c.l.b16 %v384
  %v3513 = vunpack.c.h.b16 %v384
  %v3514 = vunpack.c.l.b16 %v385
  %v3515 = vunpack.c.h.b16 %v385
  %v3516 = vunpack.c.l.b16 %v386
  %v3517 = vunpack.c.h.b16 %v386
  %v3518 = vunpack.c.l.b16 %v387
  %v3519 = vunpack.c.h.b16 %v387
  %v3520 = vunpack.c.l.b16 %v388
  %v3521 = vunpack.c.h.b16 %v388
  %v3522 = vunpack.c.l.b16 %v389
  %v3523 = vunpack.c.h.b16 %v389
  %v3524 = vunpack.c.l.b16 %v390
  %v3525 = vunpack.c.h.b16 %v390
  %v3526 = vunpack.c.l.b16 %v391
  %v3527 = vunpack.c.h.b16 %v391
  %v3528 = vunpack.c.l.b16 %v392
  %v3529 = vunpack.c.h.b16 %v392
  %v3530 = vunpack.c.l.b16 %v393
  %v3531 = vunpack.c.h.b16 %v393
  %v3532 = vunpack.c.l.b16 %v394
  %v3533 = vunpack.c.h.b16 %v394
  %v3534 = vunpack.c.l.b16 %v395
  %v3535 = vunpack.c.h.b16 %v395
  %v3536 = vunpack.c.l.b16 %v396
  %v3537 = vunpack.c.h.b16 %v396
  %v3538 = vunpack.c.l.b16 %v397
  %v3539 = vunpack.c.h.b16 %v397
  %v3540 = vunpack.c.l.b16 %v398
  %v3541 = vunpack.c.h.b16 %v398
  %v3542 = vunpack.c.l.b16 %v399
  %v3543 = vunpack.c.h.b16 %v399
  %v3544 = vunpack.c.l.b16 %v400
  %v3545 = vunpack.c.h.b16 %v400
  %v3546 = vunpack.c.l.b16 %v401
  %v3547 = vunpack.c.h.b16 %v401
  %v3548 = vunpack.c.l.b16 %v402
  %v3549 = vunpack.c.h.b16 %v402
  %v3550 = vunpack.c.l.b16 %v403
  %v3551 = vunpack.c.h.b16 %v403
  %v3552 = vunpack.c.l.b16 %v404
  %v3553 = vunpack.c.h.b16 %v404
  %v3554 = vunpack.c.l.b16 %v405
  %v3555 = vunpack.c.h.b16 %v405
  %v3556 = vunpack.c.l.b16 %v406
  %v3557 = vunpack.c.h.b16 %v406
  %v3558 = vunpack.c.l.b16 %v407
  %v3559 = vunpack.c.h.b16 %v407
  %v3560 = vunpack.c.l.b16 %v408
  %v3561 = vunpack.c.h.b16 %v408
  %v3562 = vunpack.c.l.b16 %v409
  %v3563 = vunpack.c.h.b16 %v409
  %v3564 = vunpack.c.l.b16 %v410
  %v3565 = vunpack.c.h.b16 %v410
  %v3566 = vunpack.c.l.b16 %v411
  %v3567 = vunpack.c.h.b16 %v411
  %v3568 = vunpack.c.l.b16 %v412
  %v3569 = vunpack.c.h.b16 %v412
  %v3570 = vunpack.c.l.b16 %v413
  %v3571 = vunpack.c.h.b16 %v413
  %v3572 = vunpack.c.l.b16 %v414
  %v3573 = vunpack.c.h.b16 %v414
  %v3574 = vunpack.c.l.b16 %v415
  %v3575 = vunpack.c.h.b16 %v415
  %v3576 = vunpack.c.l.b16 %v416
  %v3577 = vunpack.c.h.b16 %v416
  %v3578 = vunpack.c.l.b16 %v417
  %v3579 = vunpack.c.h.b16 %v417
  %v3580 = vunpack.c.l.b16 %v418
  %v3581 = vunpack.c.h.b16 %v418
  %v3582 = vunpack.c.l.b16 %v419
  %v3583 = vunpack.c.h.b16 %v419
  %v3584 = vunpack.c.l.b16 %v420
  %v3585 = vunpack.c.h.b16 %v420
  %v3586 = vunpack.c.l.b16 %v421
  %v3587 = vunpack.c.h.b16 %v421
  %v3588 = vunpack.c.l.b16 %v422
  %v3589 = vunpack.c.h.b16 %v422
  %v3590 = vunpack.c.l.b16 %v423
  %v3591 = vunpack.c.h.b16 %v423
  %v3592 = vunpack.c.l.b16 %v424
  %v3593 = vunpack.c.h.b16 %v424
  %v3594 = vunpack.c.l.b16 %v425
  %v3595 = vunpack.c.h.b16 %v425
  %v3596 = vunpack.c.l.b16 %v426
  %v3597 = vunpack.c.h.b16 %v426
  %v3598 = vunpack.c.l.b16 %v427
  %v3599 = vunpack.c.h.b16 %v427
  %v3600 = vunpack.c.l.b16 %v428
  %v3601 = vunpack.c.h.b16 %v428
  %v3602 = vunpack.c.l.b16 %v429
  %v3603 = vunpack.c.h.b16 %v429
  %v3604 = vunpack.c.l.b16 %v430
  %v3605 = vunpack.c.h.b16 %v430
  %v3606 = vunpack.c.l.b16 %v431
  %v3607 = vunpack.c.h.b16 %v431
  %v3608 = vunpack.c.l.b16 %v432
  %v3609 = vunpack.c.h.b16 %v432
  %v3610 = vunpack.c.l.b16 %v433
  %v3611 = vunpack.c.h.b16 %v433
  %v3612 = vunpack.c.l.b16 %v434
  %v3613 = vunpack.c.h.b16 %v434
  %v3614 = vunpack.c.l.b16 %v435
  %v3615 = vunpack.c.h.b16 %v435
  %v3616 = vunpack.c.l.b16 %v436
  %v3617 = vunpack.c.h.b16 %v436
  %v3618 = vunpack.c.l.b16 %v437
  %v3619 = vunpack.c.h.b16 %v437
  %v3620 = vunpack.c.l.b16 %v438
  %v3621 = vunpack.c.h.b16 %v438
  %v3622 = vunpack.c.l.b16 %v439
  %v3623 = vunpack.c.h.b16 %v439
  %v3624 = vunpack.c.l.b16 %v440
  %v3625 = vunpack.c.h.b16 %v440
  %v3626 = vunpack.c.l.b16 %v441
  %v3627 = vunpack.c.h.b16 %v441
  %v3628 = vunpack.c.l.b16 %v442
  %v3629 = vunpack.c.h.b16 %v442
  %v3630 = vunpack.c.l.b16 %v443
  %v3631 = vunpack.c.h.b16 %v443
  %v3632 = vunpack.c.l.b16 %v444
  %v3633 = vunpack.c.h.b16 %v444
  %v3634 = vunpack.c.l.b16 %v445
  %v3635 = vunpack.c.h.b16 %v445
  %v3636 = vunpack.c.l.b16 %v446
  %v3637 = vunpack.c.h.b16 %v446
  %v3638 = vunpack.c.l.b16 %v447
  %v3639 = vunpack.c.h.b16 %v447
  %v3640 = vunpack.c.l.b16 %v448
  %v3641 = vunpack.c.h.b16 %v448
  %v3642 = vunpack.c.l.b16 %v449
  %v3643 = vunpack.c.h.b16 %v449
  %v3644 = vunpack.c.l.b16 %v450
  %v3645 = vunpack.c.h.b16 %v450
  %v3646 = vunpack.c.l.b16 %v451
  %v3647 = vunpack.c.h.b16 %v451
  %v3648 = vunpack.c.l.b16 %v452
  %v3649 = vunpack.c.h.b16 %v452
  %v3650 = vunpack.c.l.b16 %v453
  %v3651 = vunpack.c.h.b16 %v453
  %v3652 = vunpack.c.l.b16 %v454
  %v3653 = vunpack.c.h.b16 %v454
  %v3654 = vunpack.c.l.b16 %v455
  %v3655 = vunpack.c.h.b16 %v455
  %v3656 = vunpack.c.l.b16 %v456
  %v3657 = vunpack.c.h.b16 %v456
  %v3658 = vunpack.c.l.b16 %v457
  %v3659 = vunpack.c.h.b16 %v457
  %v3660 = vunpack.c.l.b16 %v458
  %v3661 = vunpack.c.h.b16 %v458
  %v3662 = vunpack.c.l.b16 %v459
  %v3663 = vunpack.c.h.b16 %v459
  %v3664 = vunpack.c.l.b16 %v460
  %v3665 = vunpack.c.h.b16 %v460
  %v3666 = vunpack.c.l.b16 %v461
  %v3667 = vunpack.c.h.b16 %v461
  %v3668 = vunpack.c.l.b16 %v462
  %v3669 = vunpack.c.h.b16 %v462
  %v3670 = vunpack.c.l.b16 %v463
  %v3671 = vunpack.c.h.b16 %v463
  %v3672 = vunpack.c.l.b16 %v464
  %v3673 = vunpack.c.h.b16 %v464
  %v3674 = vunpack.c.l.b16 %v465
  %v3675 = vunpack.c.h.b16 %v465
  %v3676 = vunpack.c.l.b16 %v466
  %v3677 = vunpack.c.h.b16 %v466
  %v3678 = vunpack.c.l.b16 %v467
  %v3679 = vunpack.c.h.b16 %v467
  %v3680 = vunpack.c.l.b16 %v468
  %v3681 = vunpack.c.h.b16 %v468
  %v3682 = vunpack.c.l.b16 %v469
  %v3683 = vunpack.c.h.b16 %v469
  %v3684 = vunpack.c.l.b16 %v470
  %v3685 = vunpack.c.h.b16 %v470
  %v3686 = vunpack.c.l.b16 %v471
  %v3687 = vunpack.c.h.b16 %v471
  %v3688 = vunpack.c.l.b16 %v472
  %v3689 = vunpack.c.h.b16 %v472
  %v3690 = vunpack.c.l.b16 %v473
  %v3691 = vunpack.c.h.b16 %v473
  %v3692 = vunpack.c.l.b16 %v474
  %v3693 = vunpack.c.h.b16 %v474
  %v3694 = vunpack.c.l.b16 %v475
  %v3695 = vunpack.c.h.b16 %v475
  %v3696 = vunpack.c.l.b16 %v476
  %v3697 = vunpack.c.h.b16 %v476
  %v3698 = vunpack.c.l.b16 %v477
  %v3699 = vunpack.c.h.b16 %v477
  %v3700 = vunpack.c.l.b16 %v478
  %v3701 = vunpack.c.h.b16 %v478
  %v3702 = vunpack.c.l.b16 %v479
  %v3703 = vunpack.c.h.b16 %v479
  %v3704 = vunpack.c.l.b16 %v480
  %v3705 = vunpack.c.h.b16 %v480
  %v3706 = vunpack.c.l.b16 %v481
  %v3707 = vunpack.c.h.b16 %v481
  %v3708 = vunpack.c.l.b16 %v482
  %v3709 = vunpack.c.h.b16 %v482
  %v3710 = vunpack.c.l.b16 %v483
  %v3711 = vunpack.c.h.b16 %v483
  %v3712 = vunpack.c.l.b16 %v484
  %v3713 = vunpack.c.h.b16 %v484
  %v3714 = vunpack.c.l.b16 %v485
  %v3715 = vunpack.c.h.b16 %v485
  %v3716 = vunpack.c.l.b16 %v486
  %v3717 = vunpack.c.h.b16 %v486
  %v3718 = vunpack.c.l.b16 %v487
  %v3719 = vunpack.c.h.b16 %v487
  %v3720 = vunpack.c.l.b16 %v488
  %v3721 = vunpack.c.h.b16 %v488
  %v3722 = vunpack.c.l.b16 %v489
  %v3723 = vunpack.c.h.b16 %v489
  %v3724 = vunpack.c.l.b16 %v490
  %v3725 = vunpack.c.h.b16 %v490
  %v3726 = vunpack.c.l.b16 %v491
  %v3727 = vunpack.c.h.b16 %v491
  %v3728 = vunpack.c.l.b16 %v492
  %v3729 = vunpack.c.h.b16 %v492
  %v3730 = vunpack.c.l.b16 %v493
  %v3731 = vunpack.c.h.b16 %v493
  %v3732 = vunpack.c.l.b16 %v494
  %v3733 = vunpack.c.h.b16 %v494
  %v3734 = vunpack.c.l.b16 %v495
  %v3735 = vunpack.c.h.b16 %v495
  %v3736 = vunpack.c.l.b16 %v496
  %v3737 = vunpack.c.h.b16 %v496
  %v3738 = vunpack.c.l.b16 %v497
  %v3739 = vunpack.c.h.b16 %v497
  %v3740 = vunpack.c.l.b16 %v498
  %v3741 = vunpack.c.h.b16 %v498
  %v3742 = vunpack.c.l.b16 %v499
  %v3743 = vunpack.c.h.b16 %v499
  %v3744 = vunpack.c.l.b16 %v500
  %v3745 = vunpack.c.h.b16 %v500
  %v3746 = vunpack.c.l.b16 %v501
  %v3747 = vunpack.c.h.b16 %v501
  %v3748 = vunpack.c.l.b16 %v502
  %v3749 = vunpack.c.h.b16 %v502
  %v3750 = vunpack.c.l.b16 %v503
  %v3751 = vunpack.c.h.b16 %v503
  %v3752 = vunpack.c.l.b16 %v504
  %v3753 = vunpack.c.h.b16 %v504
  %v3754 = vunpack.c.l.b16 %v505
  %v3755 = vunpack.c.h.b16 %v505
  %v3756 = vunpack.c.l.b16 %v506
  %v3757 = vunpack.c.h.b16 %v506
  %v3758 = vunpack.c.l.b16 %v507
  %v3759 = vunpack.c.h.b16 %v507
  %v3760 = vunpack.c.l.b16 %v508
  %v3761 = vunpack.c.h.b16 %v508
  %v3762 = vunpack.c.l.b16 %v509
  %v3763 = vunpack.c.h.b16 %v509
  %v3764 = vunpack.c.l.b16 %v510
  %v3765 = vunpack.c.h.b16 %v510
  %v3766 = vunpack.c.l.b16 %v511
  %v3767 = vunpack.c.h.b16 %v511
  %v3768 = vunpack.c.l.b16 %v512
  %v3769 = vunpack.c.h.b16 %v512
  %v3770 = vunpack.c.l.b16 %v513
  %v3771 = vunpack.c.h.b16 %v513
  %v3772 = vunpack.c.l.b16 %v514
  %v3773 = vunpack.c.h.b16 %v514
  %v3774 = vunpack.c.l.b16 %v515
  %v3775 = vunpack.c.h.b16 %v515
  %v3776 = vunpack.c.l.b16 %v516
  %v3777 = vunpack.c.h.b16 %v516
  %v3778 = vunpack.c.l.b16 %v517
  %v3779 = vunpack.c.h.b16 %v517
  %v3780 = vunpack.c.l.b16 %v518
  %v3781 = vunpack.c.h.b16 %v518
  %v3782 = vunpack.c.l.b16 %v519
  %v3783 = vunpack.c.h.b16 %v519
  %v3784 = vunpack.c.l.b16 %v520
  %v3785 = vunpack.c.h.b16 %v520
  %v3786 = vunpack.c.l.b16 %v521
  %v3787 = vunpack.c.h.b16 %v521
  %v3788 = vunpack.c.l.b16 %v522
  %v3789 = vunpack.c.h.b16 %v522
  %v3790 = vunpack.c.l.b16 %v523
  %v3791 = vunpack.c.h.b16 %v523
  %v3792 = vunpack.c.l.b16 %v524
  %v3793 = vunpack.c.h.b16 %v524
  %v3794 = vunpack.c.l.b16 %v525
  %v3795 = vunpack.c.h.b16 %v525
  %v3796 = vunpack.c.l.b16 %v526
  %v3797 = vunpack.c.h.b16 %v526
  %v3798 = vunpack.c.l.b16 %v527
  %v3799 = vunpack.c.h.b16 %v527
  %v3800 = vunpack.c.l.b16 %v528
  %v3801 = vunpack.c.h.b16 %v528
  %v3802 = vunpack.c.l.b16 %v529
  %v3803 = vunpack.c.h.b16 %v529
  %v3804 = vunpack.c.l.b16 %v530
  %v3805 = vunpack.c.h.b16 %v530
  %v3806 = vunpack.c.l.b16 %v531
  %v3807 = vunpack.c.h.b16 %v531
  %v3808 = vunpack.c.l.b16 %v532
  %v3809 = vunpack.c.h.b16 %v532
  %v3810 = vunpack.c.l.b16 %v533
  %v3811 = vunpack.c.h.b16 %v533
  %v3812 = vunpack.c.l.b16 %v534
  %v3813 = vunpack.c.h.b16 %v534
  %v3814 = vunpack.c.l.b16 %v535
  %v3815 = vunpack.c.h.b16 %v535
  %v3816 = vunpack.c.l.b16 %v536
  %v3817 = vunpack.c.h.b16 %v536
  %v3818 = vunpack.c.l.b16 %v537
  %v3819 = vunpack.c.h.b16 %v537
  %v3820 = vunpack.c.l.b16 %v538
  %v3821 = vunpack.c.h.b16 %v538
  %v3822 = vunpack.c.l.b16 %v539
  %v3823 = vunpack.c.h.b16 %v539
  %v3824 = vunpack.c.l.b16 %v540
  %v3825 = vunpack.c.h.b16 %v540
  %v3826 = vunpack.c.l.b16 %v541
  %v3827 = vunpack.c.h.b16 %v541
  %v3828 = vunpack.c.l.b16 %v542
  %v3829 = vunpack.c.h.b16 %v542
  %v3830 = vunpack.c.l.b16 %v543
  %v3831 = vunpack.c.h.b16 %v543
  %v3832 = vunpack.c.l.b16 %v544
  %v3833 = vunpack.c.h.b16 %v544
  %v3834 = vunpack.c.l.b16 %v545
  %v3835 = vunpack.c.h.b16 %v545
  %v3836 = vunpack.c.l.b16 %v546
  %v3837 = vunpack.c.h.b16 %v546
  %v3838 = vunpack.c.l.b16 %v547
  %v3839 = vunpack.c.h.b16 %v547
  %v3840 = vunpack.c.l.b16 %v548
  %v3841 = vunpack.c.h.b16 %v548
  %v3842 = vunpack.c.l.b16 %v549
  %v3843 = vunpack.c.h.b16 %v549
  %v3844 = vunpack.c.l.b16 %v550
  %v3845 = vunpack.c.h.b16 %v550
  %v3846 = vunpack.c.l.b16 %v551
  %v3847 = vunpack.c.h.b16 %v551
  %v3848 = vunpack.c.l.b16 %v552
  %v3849 = vunpack.c.h.b16 %v552
  %v3850 = vunpack.c.l.b16 %v553
  %v3851 = vunpack.c.h.b16 %v553
  %v3852 = vunpack.c.l.b16 %v554
  %v3853 = vunpack.c.h.b16 %v554
  %v3854 = vunpack.c.l.b16 %v555
  %v3855 = vunpack.c.h.b16 %v555
  %v3856 = vunpack.c.l.b16 %v556
  %v3857 = vunpack.c.h.b16 %v556
  %v3858 = vunpack.c.l.b16 %v557
  %v3859 = vunpack.c.h.b16 %v557
  %v3860 = vunpack.c.l.b16 %v558
  %v3861 = vunpack.c.h.b16 %v558
  %v3862 = vunpack.c.l.b16 %v559
  %v3863 = vunpack.c.h.b16 %v559
  %v3864 = vunpack.c.l.b16 %v560
  %v3865 = vunpack.c.h.b16 %v560
  %v3866 = vunpack.c.l.b16 %v561
  %v3867 = vunpack.c.h.b16 %v561
  %v3868 = vunpack.c.l.b16 %v562
  %v3869 = vunpack.c.h.b16 %v562
  %v3870 = vunpack.c.l.b16 %v563
  %v3871 = vunpack.c.h.b16 %v563
  %v3872 = vunpack.c.l.b16 %v564
  %v3873 = vunpack.c.h.b16 %v564
  %v3874 = vunpack.c.l.b16 %v565
  %v3875 = vunpack.c.h.b16 %v565
  %v3876 = vunpack.c.l.b16 %v566
  %v3877 = vunpack.c.h.b16 %v566
  %v3878 = vunpack.c.l.b16 %v567
  %v3879 = vunpack.c.h.b16 %v567
  %v3880 = vunpack.c.l.b16 %v568
  %v3881 = vunpack.c.h.b16 %v568
  %v3882 = vunpack.c.l.b16 %v569
  %v3883 = vunpack.c.h.b16 %v569
  %v3884 = vunpack.c.l.b16 %v570
  %v3885 = vunpack.c.h.b16 %v570
  %v3886 = vunpack.c.l.b16 %v571
  %v3887 = vunpack.c.h.b16 %v571
  %v3888 = vunpack.c.l.b16 %v572
  %v3889 = vunpack.c.h.b16 %v572
  %v3890 = vunpack.c.l.b16 %v573
  %v3891 = vunpack.c.h.b16 %v573
  %v3892 = vunpack.c.l.b16 %v574
  %v3893 = vunpack.c.h.b16 %v574
  %v3894 = vunpack.c.l.b16 %v575
  %v3895 = vunpack.c.h.b16 %v575
  %v3896 = vunpack.c.l.b16 %v576
  %v3897 = vunpack.c.h.b16 %v576
  %v3898 = vunpack.c.l.b16 %v577
  %v3899 = vunpack.c.h.b16 %v577
  %v3900 = vunpack.c.l.b16 %v578
  %v3901 = vunpack.c.h.b16 %v578
  %v3902 = vunpack.c.l.b16 %v579
  %v3903 = vunpack.c.h.b16 %v579
  %v3904 = vunpack.c.l.b16 %v580
  %v3905 = vunpack.c.h.b16 %v580
  %v3906 = vunpack.c.l.b16 %v581
  %v3907 = vunpack.c.h.b16 %v581
  %v3908 = vunpack.c.l.b16 %v582
  %v3909 = vunpack.c.h.b16 %v582
  %v3910 = vunpack.c.l.b16 %v583
  %v3911 = vunpack.c.h.b16 %v583
  %v3912 = vunpack.c.l.b16 %v584
  %v3913 = vunpack.c.h.b16 %v584
  %v3914 = vunpack.c.l.b16 %v585
  %v3915 = vunpack.c.h.b16 %v585
  %v3916 = vunpack.c.l.b16 %v586
  %v3917 = vunpack.c.h.b16 %v586
  %v3918 = vunpack.c.l.b16 %v587
  %v3919 = vunpack.c.h.b16 %v587
  %v3920 = vunpack.c.l.b16 %v588
  %v3921 = vunpack.c.h.b16 %v588
  %v3922 = vunpack.c.l.b16 %v589
  %v3923 = vunpack.c.h.b16 %v589
  %v3924 = vunpack.c.l.b16 %v590
  %v3925 = vunpack.c.h.b16 %v590
  %v3926 = vunpack.c.l.b16 %v591
  %v3927 = vunpack.c.h.b16 %v591
  %v3928 = vunpack.c.l.b16 %v592
  %v3929 = vunpack.c.h.b16 %v592
  %v3930 = vunpack.c.l.b16 %v593
  %v3931 = vunpack.c.h.b16 %v593
  %v3932 = vunpack.c.l.b16 %v594
  %v3933 = vunpack.c.h.b16 %v594
  %v3934 = vunpack.c.l.b16 %v595
  %v3935 = vunpack.c.h.b16 %v595
  %v3936 = vunpack.c.l.b16 %v596
  %v3937 = vunpack.c.h.b16 %v596
  %v3938 = vunpack.c.l.b16 %v597
  %v3939 = vunpack.c.h.b16 %v597
  %v3940 = vunpack.c.l.b16 %v598
  %v3941 = vunpack.c.h.b16 %v598
  %v3942 = vunpack.c.l.b16 %v599
  %v3943 = vunpack.c.h.b16 %v599
  %v3944 = vunpack.c.l.b16 %v600
  %v3945 = vunpack.c.h.b16 %v600
  %v3946 = vunpack.c.l.b16 %v601
  %v3947 = vunpack.c.h.b16 %v601
  %v3948 = vunpack.c.l.b16 %v602
  %v3949 = vunpack.c.h.b16 %v602
  %v3950 = vunpack.c.l.b16 %v603
  %v3951 = vunpack.c.h.b16 %v603
  %v3952 = vunpack.c.l.b16 %v604
  %v3953 = vunpack.c.h.b16 %v604
  %v3954 = vunpack.c.l.b16 %v605
  %v3955 = vunpack.c.h.b16 %v605
  %v3956 = vunpack.c.l.b16 %v606
  %v3957 = vunpack.c.h.b16 %v606
  %v3958 = vunpack.c.l.b16 %v607
  %v3959 = vunpack.c.h.b16 %v607
  %v3960 = vunpack.c.l.b16 %v608
  %v3961 = vunpack.c.h.b16 %v608
  %v3962 = vunpack.c.l.b16 %v609
  %v3963 = vunpack.c.h.b16 %v609
  %v3964 = vunpack.c.l.b16 %v610
  %v3965 = vunpack.c.h.b16 %v610
  %v3966 = vunpack.c.l.b16 %v611
  %v3967 = vunpack.c.h.b16 %v611
  %v3968 = vunpack.c.l.b16 %v612
  %v3969 = vunpack.c.h.b16 %v612
  %v3970 = vunpack.c.l.b16 %v613
  %v3971 = vunpack.c.h.b16 %v613
  %v3972 = vunpack.c.l.b16 %v614
  %v3973 = vunpack.c.h.b16 %v614
  %v3974 = vunpack.c.l.b16 %v615
  %v3975 = vunpack.c.h.b16 %v615
  %v3976 = vunpack.c.l.b16 %v616
  %v3977 = vunpack.c.h.b16 %v616
  %v3978 = vunpack.c.l.b16 %v617
  %v3979 = vunpack.c.h.b16 %v617
  %v3980 = vunpack.c.l.b16 %v618
  %v3981 = vunpack.c.h.b16 %v618
  %v3982 = vunpack.c.l.b16 %v619
  %v3983 = vunpack.c.h.b16 %v619
  %v3984 = vunpack.c.l.b16 %v620
  %v3985 = vunpack.c.h.b16 %v620
  %v3986 = vunpack.c.l.b16 %v621
  %v3987 = vunpack.c.h.b16 %v621
  %v3988 = vunpack.c.l.b16 %v622
  %v3989 = vunpack.c.h.b16 %v622
  %v3990 = vunpack.c.l.b16 %v623
  %v3991 = vunpack.c.h.b16 %v623
  %v3992 = vunpack.c.l.b16 %v624
  %v3993 = vunpack.c.h.b16 %v624
  %v3994 = vunpack.c.l.b16 %v625
  %v3995 = vunpack.c.h.b16 %v625
  %v3996 = vunpack.c.l.b16 %v626
  %v3997 = vunpack.c.h.b16 %v626
  %v3998 = vunpack.c.l.b16 %v627
  %v3999 = vunpack.c.h.b16 %v627
  %v4000 = vunpack.c.l.b16 %v628
  %v4001 = vunpack.c.h.b16 %v628
  %v4002 = vunpack.c.l.b16 %v629
  %v4003 = vunpack.c.h.b16 %v629
  %v4004 = vunpack.c.l.b16 %v630
  %v4005 = vunpack.c.h.b16 %v630
  %v4006 = vunpack.c.l.b16 %v631
  %v4007 = vunpack.c.h.b16 %v631
  %v4008 = vunpack.c.l.b16 %v632
  %v4009 = vunpack.c.h.b16 %v632
  %v4010 = vunpack.c.l.b16 %v633
  %v4011 = vunpack.c.h.b16 %v633
  %v4012 = vunpack.c.l.b16 %v634
  %v4013 = vunpack.c.h.b16 %v634
  %v4014 = vunpack.c.l.b16 %v635
  %v4015 = vunpack.c.h.b16 %v635
  %v4016 = vunpack.c.l.b16 %v636
  %v4017 = vunpack.c.h.b16 %v636
  %v4018 = vunpack.c.l.b16 %v637
  %v4019 = vunpack.c.h.b16 %v637
  %v4020 = vunpack.c.l.b16 %v638
  %v4021 = vunpack.c.h.b16 %v638
  %v4022 = vunpack.c.l.b16 %v639
  %v4023 = vunpack.c.h.b16 %v639
  %v4024 = vunpack.c.l.b16 %v640
  %v4025 = vunpack.c.h.b16 %v640
  %v4026 = vunpack.c.l.b16 %v641
  %v4027 = vunpack.c.h.b16 %v641
  %v4028 = vunpack.c.l.b16 %v642
  %v4029 = vunpack.c.h.b16 %v642
  %v4030 = vunpack.c.l.b16 %v643
  %v4031 = vunpack.c.h.b16 %v643
  %v4032 = vunpack.c.l.b16 %v644
  %v4033 = vunpack.c.h.b16 %v644
  %v4034 = vunpack.c.l.b16 %v645
  %v4035 = vunpack.c.h.b16 %v645
  %v4036 = vunpack.c.l.b16 %v646
  %v4037 = vunpack.c.h.b16 %v646
  %v4038 = vunpack.c.l.b16 %v647
  %v4039 = vunpack.c.h.b16 %v647
  %v4040 = vunpack.c.l.b16 %v648
  %v4041 = vunpack.c.h.b16 %v648
  %v4042 = vunpack.c.l.b16 %v649
  %v4043 = vunpack.c.h.b16 %v649
  %v4044 = vunpack.c.l.b16 %v650
  %v4045 = vunpack.c.h.b16 %v650
  %v4046 = vunpack.c.l.b16 %v651
  %v4047 = vunpack.c.h.b16 %v651
  %v4048 = vunpack.c.l.b16 %v652
  %v4049 = vunpack.c.h.b16 %v652
  %v4050 = vunpack.c.l.b16 %v653
  %v4051 = vunpack.c.h.b16 %v653
  %v4052 = vunpack.c.l.b16 %v654
  %v4053 = vunpack.c.h.b16 %v654
  %v4054 = vunpack.c.l.b16 %v655
  %v4055 = vunpack.c.h.b16 %v655
  %v4056 = vunpack.c.l.b16 %v656
  %v4057 = vunpack.c.h.b16 %v656
  %v4058 = vunpack.c.l.b16 %v657
  %v4059 = vunpack.c.h.b16 %v657
  %v4060 = vunpack.c.l.b16 %v658
  %v4061 = vunpack.c.h.b16 %v658
  %v4062 = vunpack.c.l.b16 %v659
  %v4063 = vunpack.c.h.b16 %v659
  %v4064 = vunpack.c.l.b16 %v660
  %v4065 = vunpack.c.h.b16 %v660
  %v4066 = vunpack.c.l.b16 %v661
  %v4067 = vunpack.c.h.b16 %v661
  %v4068 = vunpack.c.l.b16 %v662
  %v4069 = vunpack.c.h.b16 %v662
  %v4070 = vunpack.c.l.b16 %v663
  %v4071 = vunpack.c.h.b16 %v663
  %v4072 = vunpack.c.l.b16 %v664
  %v4073 = vunpack.c.h.b16 %v664
  %v4074 = vunpack.c.l.b16 %v665
  %v4075 = vunpack.c.h.b16 %v665
  %v4076 = vunpack.c.l.b16 %v666
  %v4077 = vunpack.c.h.b16 %v666
  %v4078 = vunpack.c.l.b16 %v667
  %v4079 = vunpack.c.h.b16 %v667
  %v4080 = vunpack.c.l.b16 %v668
  %v4081 = vunpack.c.h.b16 %v668
  %v4082 = vunpack.c.l.b16 %v669
  %v4083 = vunpack.c.h.b16 %v669
  %v4084 = vunpack.c.l.b16 %v670
  %v4085 = vunpack.c.h.b16 %v670
  %v4086 = vunpack.c.l.b16 %v671
  %v4087 = vunpack.c.h.b16 %v671
  %v4088 = vunpack.c.l.b16 %v672
  %v4089 = vunpack.c.h.b16 %v672
  %v4090 = vunpack.c.l.b16 %v673
  %v4091 = vunpack.c.h.b16 %v673
  %v4092 = vunpack.c.l.b16 %v674
  %v4093 = vunpack.c.h.b16 %v674
  %v4094 = vunpack.c.l.b16 %v675
  %v4095 = vunpack.c.h.b16 %v675
  %v4096 = vunpack.c.l.b16 %v676
  %v4097 = vunpack.c.h.b16 %v676
  %v4098 = vunpack.c.l.b16 %v677
  %v4099 = vunpack.c.h.b16 %v677
  %v4100 = vunpack.c.l.b16 %v678
  %v4101 = vunpack.c.h.b16 %v678
  %v4102 = vunpack.c.l.b16 %v679
  %v4103 = vunpack.c.h.b16 %v679
  %v4104 = vunpack.c.l.b16 %v680
  %v4105 = vunpack.c.h.b16 %v680
  %v4106 = vunpack.c.l.b16 %v681
  %v4107 = vunpack.c.h.b16 %v681
  %v4108 = vunpack.c.l.b16 %v682
  %v4109 = vunpack.c.h.b16 %v682
  %v4110 = vunpack.c.l.b16 %v683
  %v4111 = vunpack.c.h.b16 %v683
  %v4112 = vunpack.c.l.b16 %v684
  %v4113 = vunpack.c.h.b16 %v684
  %v4114 = vunpack.c.l.b16 %v685
  %v4115 = vunpack.c.h.b16 %v685
  %v4116 = vunpack.c.l.b16 %v686
  %v4117 = vunpack.c.h.b16 %v686
  %v4118 = vunpack.c.l.b16 %v687
  %v4119 = vunpack.c.h.b16 %v687
  %v4120 = vunpack.c.l.b16 %v688
  %v4121 = vunpack.c.h.b16 %v688
  %v4122 = vunpack.c.l.b16 %v689
  %v4123 = vunpack.c.h.b16 %v689
  %v4124 = vunpack.c.l.b16 %v690
  %v4125 = vunpack.c.h.b16 %v690
  %v4126 = vunpack.c.l.b16 %v691
  %v4127 = vunpack.c.h.b16 %v691
  %v4128 = vunpack.c.l.b16 %v692
  %v4129 = vunpack.c.h.b16 %v692
  %v4130 = vunpack.c.l.b16 %v693
  %v4131 = vunpack.c.h.b16 %v693
  %v4132 = vunpack.c.l.b16 %v694
  %v4133 = vunpack.c.h.b16 %v694
  %v4134 = vunpack.c.l.b16 %v695
  %v4135 = vunpack.c.h.b16 %v695
  %v4136 = vunpack.c.l.b16 %v696
  %v4137 = vunpack.c.h.b16 %v696
  %v4138 = vunpack.c.l.b16 %v697
  %v4139 = vunpack.c.h.b16 %v697
  %v4140 = vunpack.c.l.b16 %v698
  %v4141 = vunpack.c.h.b16 %v698
  %v4142 = vunpack.c.l.b16 %v699
  %v4143 = vunpack.c.h.b16 %v699
  %v4144 = vunpack.c.l.b16 %v700
  %v4145 = vunpack.c.h.b16 %v700
  %v4146 = vunpack.c.l.b16 %v701
  %v4147 = vunpack.c.h.b16 %v701
  %v4148 = vunpack.c.l.b16 %v702
  %v4149 = vunpack.c.h.b16 %v702
  %v4150 = vunpack.c.l.b16 %v703
  %v4151 = vunpack.c.h.b16 %v703
  %v4152 = vunpack.c.l.b16 %v704
  %v4153 = vunpack.c.h.b16 %v704
  %v4154 = vunpack.c.l.b16 %v705
  %v4155 = vunpack.c.h.b16 %v705
  %v4156 = vunpack.c.l.b16 %v706
  %v4157 = vunpack.c.h.b16 %v706
  %v4158 = vunpack.c.l.b16 %v707
  %v4159 = vunpack.c.h.b16 %v707
  %v4160 = vunpack.c.l.b16 %v708
  %v4161 = vunpack.c.h.b16 %v708
  %v4162 = vunpack.c.l.b16 %v709
  %v4163 = vunpack.c.h.b16 %v709
  %v4164 = vunpack.c.l.b16 %v710
  %v4165 = vunpack.c.h.b16 %v710
  %v4166 = vunpack.c.l.b16 %v711
  %v4167 = vunpack.c.h.b16 %v711
  %v4168 = vunpack.c.l.b16 %v712
  %v4169 = vunpack.c.h.b16 %v712
  %v4170 = vunpack.c.l.b16 %v713
  %v4171 = vunpack.c.h.b16 %v713
  %v4172 = vunpack.c.l.b16 %v714
  %v4173 = vunpack.c.h.b16 %v714
  %v4174 = vunpack.c.l.b16 %v715
  %v4175 = vunpack.c.h.b16 %v715
  %v4176 = vunpack.c.l.b16 %v716
  %v4177 = vunpack.c.h.b16 %v716
  %v4178 = vunpack.c.l.b16 %v717
  %v4179 = vunpack.c.h.b16 %v717
  %v4180 = vunpack.c.l.b16 %v718
  %v4181 = vunpack.c.h.b16 %v718
  %v4182 = vunpack.c.l.b16 %v719
  %v4183 = vunpack.c.h.b16 %v719
  %v4184 = vunpack.c.l.b16 %v720
  %v4185 = vunpack.c.h.b16 %v720
  %v4186 = vunpack.c.l.b16 %v721
  %v4187 = vunpack.c.h.b16 %v721
  %v4188 = vunpack.c.l.b16 %v722
  %v4189 = vunpack.c.h.b16 %v722
  %v4190 = vunpack.c.l.b16 %v723
  %v4191 = vunpack.c.h.b16 %v723
  %v4192 = vunpack.c.l.b16 %v724
  %v4193 = vunpack.c.h.b16 %v724
  %v4194 = vunpack.c.l.b16 %v725
  %v4195 = vunpack.c.h.b16 %v725
  %v4196 = vunpack.c.l.b16 %v726
  %v4197 = vunpack.c.h.b16 %v726
  %v4198 = vunpack.c.l.b16 %v727
  %v4199 = vunpack.c.h.b16 %v727
  %v4200 = vunpack.c.l.b16 %v728
  %v4201 = vunpack.c.h.b16 %v728
  %v4202 = vunpack.c.l.b16 %v729
  %v4203 = vunpack.c.h.b16 %v729
  %v4204 = vunpack.c.l.b16 %v730
  %v4205 = vunpack.c.h.b16 %v730
  %v4206 = vunpack.c.l.b16 %v731
  %v4207 = vunpack.c.h.b16 %v731
  %v4208 = vunpack.c.l.b16 %v732
  %v4209 = vunpack.c.h.b16 %v732
  %v4210 = vunpack.c.l.b16 %v733
  %v4211 = vunpack.c.h.b16 %v733
  %v4212 = vunpack.c.l.b16 %v734
  %v4213 = vunpack.c.h.b16 %v734
  %v4214 = vunpack.c.l.b16 %v735
  %v4215 = vunpack.c.h.b16 %v735
  %v4216 = vunpack.c.l.b16 %v736
  %v4217 = vunpack.c.h.b16 %v736
  %v4218 = vunpack.c.l.b16 %v737
  %v4219 = vunpack.c.h.b16 %v737
  %v4220 = vunpack.c.l.b16 %v738
  %v4221 = vunpack.c.h.b16 %v738
  %v4222 = vunpack.c.l.b16 %v739
  %v4223 = vunpack.c.h.b16 %v739
  %v4224 = vunpack.c.l.b16 %v740
  %v4225 = vunpack.c.h.b16 %v740
  %v4226 = vunpack.c.l.b16 %v741
  %v4227 = vunpack.c.h.b16 %v741
  %v4228 = vunpack.c.l.b16 %v742
  %v4229 = vunpack.c.h.b16 %v742
  %v4230 = vunpack.c.l.b16 %v743
  %v4231 = vunpack.c.h.b16 %v743
  %v4232 = vunpack.c.l.b16 %v744
  %v4233 = vunpack.c.h.b16 %v744
  %v4234 = vunpack.c.l.b16 %v745
  %v4235 = vunpack.c.h.b16 %v745
  %v4236 = vunpack.c.l.b16 %v746
  %v4237 = vunpack.c.h.b16 %v746
  %v4238 = vunpack.c.l.b16 %v747
  %v4239 = vunpack.c.h.b16 %v747
  %v4240 = vunpack.c.l.b16 %v748
  %v4241 = vunpack.c.h.b16 %v748
  %v4242 = vunpack.c.l.b16 %v749
  %v4243 = vunpack.c.h.b16 %v749
  %v4244 = vunpack.c.l.b16 %v750
  %v4245 = vunpack.c.h.b16 %v750
  %v4246 = vunpack.c.l.b16 %v751
  %v4247 = vunpack.c.h.b16 %v751
  %v4248 = vunpack.c.l.b16 %v752
  %v4249 = vunpack.c.h.b16 %v752
  %v4250 = vunpack.c.l.b16 %v753
  %v4251 = vunpack.c.h.b16 %v753
  %v4252 = vunpack.c.l.b16 %v754
  %v4253 = vunpack.c.h.b16 %v754
  %v4254 = vunpack.c.l.b16 %v755
  %v4255 = vunpack.c.h.b16 %v755
  %v4256 = vunpack.c.l.b16 %v756
  %v4257 = vunpack.c.h.b16 %v756
  %v4258 = vunpack.c.l.b16 %v757
  %v4259 = vunpack.c.h.b16 %v757
  %v4260 = vunpack.c.l.b16 %v758
  %v4261 = vunpack.c.h.b16 %v758
  %v4262 = vunpack.c.l.b16 %v759
  %v4263 = vunpack.c.h.b16 %v759
  %v4264 = vunpack.c.l.b16 %v760
  %v4265 = vunpack.c.h.b16 %v760
  %v4266 = vunpack.c.l.b16 %v761
  %v4267 = vunpack.c.h.b16 %v761
  %v4268 = vunpack.c.l.b16 %v762
  %v4269 = vunpack.c.h.b16 %v762
  %v4270 = vunpack.c.l.b16 %v763
  %v4271 = vunpack.c.h.b16 %v763
  %v4272 = vunpack.c.l.b16 %v764
  %v4273 = vunpack.c.h.b16 %v764
  %v4274 = vunpack.c.l.b16 %v765
  %v4275 = vunpack.c.h.b16 %v765
  %v4276 = vunpack.c.l.b16 %v766
  %v4277 = vunpack.c.h.b16 %v766
  %v4278 = vunpack.c.l.b16 %v767
  %v4279 = vunpack.c.h.b16 %v767
  %v4280 = vunpack.c.l.b16 %v768
  %v4281 = vunpack.c.h.b16 %v768
  %v4282 = vunpack.c.l.b16 %v769
  %v4283 = vunpack.c.h.b16 %v769
  %v4284 = vunpack.c.l.b16 %v770
  %v4285 = vunpack.c.h.b16 %v770
  %v4286 = vunpack.c.l.b16 %v771
  %v4287 = vunpack.c.h.b16 %v771
  %v4288 = vunpack.c.l.b16 %v772
  %v4289 = vunpack.c.h.b16 %v772
  %v4290 = vunpack.c.l.b16 %v773
  %v4291 = vunpack.c.h.b16 %v773
  %v4292 = vunpack.c.l.b16 %v774
  %v4293 = vunpack.c.h.b16 %v774
  %v4294 = vunpack.c.l.b16 %v775
  %v4295 = vunpack.c.h.b16 %v775
  %v4296 = vunpack.c.l.b16 %v776
  %v4297 = vunpack.c.h.b16 %v776
  %v4298 = vunpack.c.l.b16 %v777
  %v4299 = vunpack.c.h.b16 %v777
  %v4300 = vunpack.c.l.b16 %v778
  %v4301 = vunpack.c.h.b16 %v778
  %v4302 = vunpack.c.l.b16 %v779
  %v4303 = vunpack.c.h.b16 %v779
  %v4304 = vunpack.c.l.b16 %v780
  %v4305 = vunpack.c.h.b16 %v780
  %v4306 = vunpack.c.l.b16 %v781
  %v4307 = vunpack.c.h.b16 %v781
  %v4308 = vunpack.c.l.b16 %v782
  %v4309 = vunpack.c.h.b16 %v782
  %v4310 = vunpack.c.l.b16 %v783
  %v4311 = vunpack.c.h.b16 %v783
  %v4312 = vunpack.c.l.b16 %v784
  %v4313 = vunpack.c.h.b16 %v784
  %v4314 = vunpack.c.l.b16 %v785
  %v4315 = vunpack.c.h.b16 %v785
  %v4316 = vunpack.c.l.b16 %v786
  %v4317 = vunpack.c.h.b16 %v786
  %v4318 = vunpack.c.l.b16 %v787
  %v4319 = vunpack.c.h.b16 %v787
  %v4320 = vunpack.c.l.b16 %v788
  %v4321 = vunpack.c.h.b16 %v788
  %v4322 = vunpack.c.l.b16 %v789
  %v4323 = vunpack.c.h.b16 %v789
  %v4324 = vunpack.c.l.b16 %v790
  %v4325 = vunpack.c.h.b16 %v790
  %v4326 = vunpack.c.l.b16 %v791
  %v4327 = vunpack.c.h.b16 %v791
  %v4328 = vunpack.c.l.b16 %v792
  %v4329 = vunpack.c.h.b16 %v792
  %v4330 = vunpack.c.l.b16 %v793
  %v4331 = vunpack.c.h.b16 %v793
  %v4332 = vunpack.c.l.b16 %v794
  %v4333 = vunpack.c.h.b16 %v794
  %v4334 = vunpack.c.l.b16 %v795
  %v4335 = vunpack.c.h.b16 %v795
  %v4336 = vunpack.c.l.b16 %v796
  %v4337 = vunpack.c.h.b16 %v796
  %v4338 = vunpack.c.l.b16 %v797
  %v4339 = vunpack.c.h.b16 %v797
  %v4340 = vunpack.c.l.b16 %v798
  %v4341 = vunpack.c.h.b16 %v798
  %v4342 = vunpack.c.l.b16 %v799
  %v4343 = vunpack.c.h.b16 %v799
  %v4344 = vunpack.c.l.b16 %v800
  %v4345 = vunpack.c.h.b16 %v800
  %v4346 = vunpack.c.l.b16 %v801
  %v4347 = vunpack.c.h.b16 %v801
  %v4348 = vunpack.c.l.b16 %v802
  %v4349 = vunpack.c.h.b16 %v802
  %v4350 = vunpack.c.l.b16 %v803
  %v4351 = vunpack.c.h.b16 %v803
  %v4352 = vunpack.c.l.b16 %v804
  %v4353 = vunpack.c.h.b16 %v804
  %v4354 = vunpack.c.l.b16 %v805
  %v4355 = vunpack.c.h.b16 %v805
  %v4356 = vunpack.c.l.b16 %v806
  %v4357 = vunpack.c.h.b16 %v806
  %v4358 = vunpack.c.l.b16 %v807
  %v4359 = vunpack.c.h.b16 %v807
  %v4360 = vunpack.c.l.b16 %v808
  %v4361 = vunpack.c.h.b16 %v808
  %v4362 = vunpack.c.l.b16 %v809
  %v4363 = vunpack.c.h.b16 %v809
  %v4364 = vunpack.c.l.b16 %v810
  %v4365 = vunpack.c.h.b16 %v810
  %v4366 = vunpack.c.l.b16 %v811
  %v4367 = vunpack.c.h.b16 %v811
  %v4368 = vunpack.c.l.b16 %v812
  %v4369 = vunpack.c.h.b16 %v812
  %v4370 = vunpack.c.l.b16 %v813
  %v4371 = vunpack.c.h.b16 %v813
  %v4372 = vunpack.c.l.b16 %v814
  %v4373 = vunpack.c.h.b16 %v814
  %v4374 = vunpack.c.l.b16 %v815
  %v4375 = vunpack.c.h.b16 %v815
  %v4376 = vunpack.c.l.b16 %v816
  %v4377 = vunpack.c.h.b16 %v816
  %v4378 = vunpack.c.l.b16 %v817
  %v4379 = vunpack.c.h.b16 %v817
  %v4380 = vunpack.c.l.b16 %v818
  %v4381 = vunpack.c.h.b16 %v818
  %v4382 = vunpack.c.l.b16 %v819
  %v4383 = vunpack.c.h.b16 %v819
  %v4384 = vunpack.c.l.b16 %v820
  %v4385 = vunpack.c.h.b16 %v820
  %v4386 = vunpack.c.l.b16 %v821
  %v4387 = vunpack.c.h.b16 %v821
  %v4388 = vunpack.c.l.b16 %v822
  %v4389 = vunpack.c.h.b16 %v822
  %v4390 = vunpack.c.l.b16 %v823
  %v4391 = vunpack.c.h.b16 %v823
  %v4392 = vunpack.c.l.b16 %v824
  %v4393 = vunpack.c.h.b16 %v824
  %v4394 = vunpack.c.l.b16 %v825
  %v4395 = vunpack.c.h.b16 %v825
  %v4396 = vunpack.c.l.b16 %v826
  %v4397 = vunpack.c.h.b16 %v826
  %v4398 = vunpack.c.l.b16 %v827
  %v4399 = vunpack.c.h.b16 %v827
  %v4400 = vunpack.c.l.b16 %v828
  %v4401 = vunpack.c.h.b16 %v828
  %v4402 = vunpack.c.l.b16 %v829
  %v4403 = vunpack.c.h.b16 %v829
  %v4404 = vunpack.c.l.b16 %v830
  %v4405 = vunpack.c.h.b16 %v830
  %v4406 = vunpack.c.l.b16 %v831
  %v4407 = vunpack.c.h.b16 %v831
  %v4408 = vunpack.c.l.b16 %v832
  %v4409 = vunpack.c.h.b16 %v832
  %v4410 = vunpack.c.l.b16 %v833
  %v4411 = vunpack.c.h.b16 %v833
  %v4412 = vunpack.c.l.b16 %v834
  %v4413 = vunpack.c.h.b16 %v834
  %v4414 = vunpack.c.l.b16 %v835
  %v4415 = vunpack.c.h.b16 %v835
  %v4416 = vunpack.c.l.b16 %v836
  %v4417 = vunpack.c.h.b16 %v836
  %v4418 = vunpack.c.l.b16 %v837
  %v4419 = vunpack.c.h.b16 %v837
  %v4420 = vunpack.c.l.b16 %v838
  %v4421 = vunpack.c.h.b16 %v838
  %v4422 = vunpack.c.l.b16 %v839
  %v4423 = vunpack.c.h.b16 %v839
  %v4424 = vunpack.c.l.b16 %v840
  %v4425 = vunpack.c.h.b16 %v840
  %v4426 = vunpack.c.l.b16 %v841
  %v4427 = vunpack.c.h.b16 %v841
  %v4428 = vunpack.c.l.b16 %v842
  %v4429 = vunpack.c.h.b16 %v842
  %v4430 = vunpack.c.l.b16 %v843
  %v4431 = vunpack.c.h.b16 %v843
  %v4432 = vunpack.c.l.b16 %v844
  %v4433 = vunpack.c.h.b16 %v844
  %v4434 = vunpack.c.l.b16 %v845
  %v4435 = vunpack.c.h.b16 %v845
  %v4436 = vunpack.c.l.b16 %v846
  %v4437 = vunpack.c.h.b16 %v846
  %v4438 = vunpack.c.l.b16 %v847
  %v4439 = vunpack.c.h.b16 %v847
  %v4440 = vunpack.c.l.b16 %v848
  %v4441 = vunpack.c.h.b16 %v848
  %v4442 = vunpack.c.l.b16 %v849
  %v4443 = vunpack.c.h.b16 %v849
  %v4444 = vunpack.c.l.b16 %v850
  %v4445 = vunpack.c.h.b16 %v850
  %v4446 = vunpack.c.l.b16 %v851
  %v4447 = vunpack.c.h.b16 %v851
  %v4448 = vunpack.c.l.b16 %v852
  %v4449 = vunpack.c.h.b16 %v852
  %v4450 = vunpack.c.l.b16 %v853
  %v4451 = vunpack.c.h.b16 %v853
  %v4452 = vunpack.c.l.b16 %v854
  %v4453 = vunpack.c.h.b16 %v854
  %v4454 = vunpack.c.l.b16 %v855
  %v4455 = vunpack.c.h.b16 %v855
  %v4456 = vunpack.c.l.b16 %v856
  %v4457 = vunpack.c.h.b16 %v856
  %v4458 = vunpack.c.l.b16 %v857
  %v4459 = vunpack.c.h.b16 %v857
  %v4460 = vunpack.c.l.b16 %v858
  %v4461 = vunpack.c.h.b16 %v858
  %v4462 = vunpack.c.l.b16 %v859
  %v4463 = vunpack.c.h.b16 %v859
  %v4464 = vunpack.c.l.b16 %v860
  %v4465 = vunpack.c.h.b16 %v860
  %v4466 = vunpack.c.l.b16 %v861
  %v4467 = vunpack.c.h.b16 %v861
  %v4468 = vunpack.c.l.b16 %v862
  %v4469 = vunpack.c.h.b16 %v862
  %v4470 = vunpack.c.l.b16 %v863
  %v4471 = vunpack.c.h.b16 %v863
  %v4472 = vunpack.c.l.b16 %v864
  %v4473 = vunpack.c.h.b16 %v864
  %v4474 = vunpack.c.l.b16 %v865
  %v4475 = vunpack.c.h.b16 %v865
  %v4476 = vunpack.c.l.b16 %v866
  %v4477 = vunpack.c.h.b16 %v866
  %v4478 = vunpack.c.l.b16 %v867
  %v4479 = vunpack.c.h.b16 %v867
  %v4480 = vunpack.c.l.b16 %v868
  %v4481 = vunpack.c.h.b16 %v868
  %v4482 = vunpack.c.l.b16 %v869
  %v4483 = vunpack.c.h.b16 %v869
  %v4484 = vunpack.c.l.b16 %v870
  %v4485 = vunpack.c.h.b16 %v870
  %v4486 = vunpack.c.l.b16 %v871
  %v4487 = vunpack.c.h.b16 %v871
  %v4488 = vunpack.c.l.b16 %v872
  %v4489 = vunpack.c.h.b16 %v872
  %v4490 = vunpack.c.l.b16 %v873
  %v4491 = vunpack.c.h.b16 %v873
  %v4492 = vunpack.c.l.b16 %v874
  %v4493 = vunpack.c.h.b16 %v874
  %v4494 = vunpack.c.l.b16 %v875
  %v4495 = vunpack.c.h.b16 %v875
  %v4496 = vunpack.c.l.b16 %v876
  %v4497 = vunpack.c.h.b16 %v876
  %v4498 = vunpack.c.l.b16 %v877
  %v4499 = vunpack.c.h.b16 %v877
  %v4500 = vunpack.c.l.b16 %v878
  %v4501 = vunpack.c.h.b16 %v878
  %v4502 = vunpack.c.l.b16 %v879
  %v4503 = vunpack.c.h.b16 %v879
  %v4504 = vunpack.c.l.b16 %v880
  %v4505 = vunpack.c.h.b16 %v880
  %v4506 = vunpack.c.l.b16 %v881
  %v4507 = vunpack.c.h.b16 %v881
  %v4508 = vunpack.c.l.b16 %v882
  %v4509 = vunpack.c.h.b16 %v882
  %v4510 = vunpack.c.l.b16 %v883
  %v4511 = vunpack.c.h.b16 %v883
  %v4512 = vunpack.c.l.b16 %v884
  %v4513 = vunpack.c.h.b16 %v884
  %v4514 = vunpack.c.l.b16 %v885
  %v4515 = vunpack.c.h.b16 %v885
  %v4516 = vunpack.c.l.b16 %v886
  %v4517 = vunpack.c.h.b16 %v886
  %v4518 = vunpack.c.l.b16 %v887
  %v4519 = vunpack.c.h.b16 %v887
  %v4520 = vunpack.c.l.b16 %v888
  %v4521 = vunpack.c.h.b16 %v888
  %v4522 = vunpack.c.l.b16 %v889
  %v4523 = vunpack.c.h.b16 %v889
  %v4524 = vunpack.c.l.b16 %v890
  %v4525 = vunpack.c.h.b16 %v890
  %v4526 = vunpack.c.l.b16 %v891
  %v4527 = vunpack.c.h.b16 %v891
  %v4528 = vunpack.c.l.b16 %v892
  %v4529 = vunpack.c.h.b16 %v892
  %v4530 = vunpack.c.l.b16 %v893
  %v4531 = vunpack.c.h.b16 %v893
  %v4532 = vunpack.c.l.b16 %v894
  %v4533 = vunpack.c.h.b16 %v894
  %v4534 = vunpack.c.l.b16 %v895
  %v4535 = vunpack.c.h.b16 %v895
  %v4536 = vunpack.c.l.b16 %v896
  %v4537 = vunpack.c.h.b16 %v896
  %v4538 = vunpack.c.l.b16 %v897
  %v4539 = vunpack.c.h.b16 %v897
  %v4540 = vunpack.c.l.b16 %v898
  %v4541 = vunpack.c.h.b16 %v898
  %v4542 = vunpack.c.l.b16 %v899
  %v4543 = vunpack.c.h.b16 %v899
  %v4544 = vunpack.c.l.b16 %v900
  %v4545 = vunpack.c.h.b16 %v900
  %v4546 = vunpack.c.l.b16 %v901
  %v4547 = vunpack.c.h.b16 %v901
  %v4548 = vunpack.c.l.b16 %v902
  %v4549 = vunpack.c.h.b16 %v902
  %v4550 = vunpack.c.l.b16 %v903
  %v4551 = vunpack.c.h.b16 %v903
  %v4552 = vunpack.c.l.b16 %v904
  %v4553 = vunpack.c.h.b16 %v904
  %v4554 = vunpack.c.l.b16 %v905
  %v4555 = vunpack.c.h.b16 %v905
  %v4556 = vunpack.c.l.b16 %v906
  %v4557 = vunpack.c.h.b16 %v906
  %v4558 = vunpack.c.l.b16 %v907
  %v4559 = vunpack.c.h.b16 %v907
  %v4560 = vunpack.c.l.b16 %v908
  %v4561 = vunpack.c.h.b16 %v908
  %v4562 = vunpack.c.l.b16 %v909
  %v4563 = vunpack.c.h.b16 %v909
  %v4564 = vunpack.c.l.b16 %v910
  %v4565 = vunpack.c.h.b16 %v910
  %v4566 = vunpack.c.l.b16 %v911
  %v4567 = vunpack.c.h.b16 %v911
  %v4568 = vunpack.c.l.b16 %v912
  %v4569 = vunpack.c.h.b16 %v912
  %v4570 = vunpack.c.l.b16 %v913
  %v4571 = vunpack.c.h.b16 %v913
  %v4572 = vunpack.c.l.b16 %v914
  %v4573 = vunpack.c.h.b16 %v914
  %v4574 = vunpack.c.l.b16 %v915
  %v4575 = vunpack.c.h.b16 %v915
  %v4576 = vunpack.c.l.b16 %v916
  %v4577 = vunpack.c.h.b16 %v916
  %v4578 = vunpack.c.l.b16 %v917
  %v4579 = vunpack.c.h.b16 %v917
  %v4580 = vunpack.c.l.b16 %v918
  %v4581 = vunpack.c.h.b16 %v918
  %v4582 = vunpack.c.l.b16 %v919
  %v4583 = vunpack.c.h.b16 %v919
  %v4584 = vunpack.c.l.b16 %v920
  %v4585 = vunpack.c.h.b16 %v920
  %v4586 = vunpack.c.l.b16 %v921
  %v4587 = vunpack.c.h.b16 %v921
  %v4588 = vunpack.c.l.b16 %v922
  %v4589 = vunpack.c.h.b16 %v922
  %v4590 = vunpack.c.l.b16 %v923
  %v4591 = vunpack.c.h.b16 %v923
  %v4592 = vunpack.c.l.b16 %v924
  %v4593 = vunpack.c.h.b16 %v924
  %v4594 = vunpack.c.l.b16 %v925
  %v4595 = vunpack.c.h.b16 %v925
  %v4596 = vunpack.c.l.b16 %v926
  %v4597 = vunpack.c.h.b16 %v926
  %v4598 = vunpack.c.l.b16 %v927
  %v4599 = vunpack.c.h.b16 %v927
  %v4600 = vunpack.c.l.b16 %v928
  %v4601 = vunpack.c.h.b16 %v928
  %v4602 = vunpack.c.l.b16 %v929
  %v4603 = vunpack.c.h.b16 %v929
  %v4604 = vunpack.c.l.b16 %v930
  %v4605 = vunpack.c.h.b16 %v930
  %v4606 = vunpack.c.l.b16 %v931
  %v4607 = vunpack.c.h.b16 %v931
  %v4608 = vunpack.c.l.b16 %v932
  %v4609 = vunpack.c.h.b16 %v932
  %v4610 = vunpack.c.l.b16 %v933
  %v4611 = vunpack.c.h.b16 %v933
  %v4612 = vunpack.c.l.b16 %v934
  %v4613 = vunpack.c.h.b16 %v934
  %v4614 = vunpack.c.l.b16 %v935
  %v4615 = vunpack.c.h.b16 %v935
  %v4616 = vunpack.c.l.b16 %v936
  %v4617 = vunpack.c.h.b16 %v936
  %v4618 = vunpack.c.l.b16 %v937
  %v4619 = vunpack.c.h.b16 %v937
  %v4620 = vunpack.c.l.b16 %v938
  %v4621 = vunpack.c.h.b16 %v938
  %v4622 = vunpack.c.l.b16 %v939
  %v4623 = vunpack.c.h.b16 %v939
  %v4624 = vunpack.c.l.b16 %v940
  %v4625 = vunpack.c.h.b16 %v940
  %v4626 = vunpack.c.l.b16 %v941
  %v4627 = vunpack.c.h.b16 %v941
  %v4628 = vunpack.c.l.b16 %v942
  %v4629 = vunpack.c.h.b16 %v942
  %v4630 = vunpack.c.l.b16 %v943
  %v4631 = vunpack.c.h.b16 %v943
  %v4632 = vunpack.c.l.b16 %v944
  %v4633 = vunpack.c.h.b16 %v944
  %v4634 = vunpack.c.l.b16 %v945
  %v4635 = vunpack.c.h.b16 %v945
  %v4636 = vunpack.c.l.b16 %v946
  %v4637 = vunpack.c.h.b16 %v946
  %v4638 = vunpack.c.l.b16 %v947
  %v4639 = vunpack.c.h.b16 %v947
  %v4640 = vunpack.c.l.b16 %v948
  %v4641 = vunpack.c.h.b16 %v948
  %v4642 = vunpack.c.l.b16 %v949
  %v4643 = vunpack.c.h.b16 %v949
  %v4644 = vunpack.c.l.b16 %v950
  %v4645 = vunpack.c.h.b16 %v950
  %v4646 = vunpack.c.l.b16 %v951
  %v4647 = vunpack.c.h.b16 %v951
  %v4648 = vunpack.c.l.b16 %v952
  %v4649 = vunpack.c.h.b16 %v952
  %v4650 = vunpack.c.l.b16 %v953
  %v4651 = vunpack.c.h.b16 %v953
  %v4652 = vunpack.c.l.b16 %v954
  %v4653 = vunpack.c.h.b16 %v954
  %v4654 = vunpack.c.l.b16 %v955
  %v4655 = vunpack.c.h.b16 %v955
  %v4656 = vunpack.c.l.b16 %v956
  %v4657 = vunpack.c.h.b16 %v956
  %v4658 = vunpack.c.l.b16 %v957
  %v4659 = vunpack.c.h.b16 %v957
  %v4660 = vunpack.c.l.b16 %v958
  %v4661 = vunpack.c.h.b16 %v958
  %v4662 = vunpack.c.l.b16 %v959
  %v4663 = vunpack.c.h.b16 %v959
  %v4664 = vunpack.c.l.b16 %v960
  %v4665 = vunpack.c.h.b16 %v960
  %v4666 = vunpack.c.l.b16 %v961
  %v4667 = vunpack.c.h.b16 %v961
  %v4668 = vunpack.c.l.b16 %v962
  %v4669 = vunpack.c.h.b16 %v962
  %v4670 = vunpack.c.l.b16 %v963
  %v4671 = vunpack.c.h.b16 %v963
  %v4672 = vunpack.c.l.b16 %v964
  %v4673 = vunpack.c.h.b16 %v964
  %v4674 = vunpack.c.l.b16 %v965
  %v4675 = vunpack.c.h.b16 %v965
  %v4676 = vunpack.c.l.b16 %v966
  %v4677 = vunpack.c.h.b16 %v966
  %v4678 = vunpack.c.l.b16 %v967
  %v4679 = vunpack.c.h.b16 %v967
  %v4680 = vunpack.c.l.b16 %v968
  %v4681 = vunpack.c.h.b16 %v968
  %v4682 = vunpack.c.l.b16 %v969
  %v4683 = vunpack.c.h.b16 %v969
  %v4684 = vunpack.c.l.b16 %v970
  %v4685 = vunpack.c.h.b16 %v970
  %v4686 = vunpack.c.l.b16 %v971
  %v4687 = vunpack.c.h.b16 %v971
  %v4688 = vunpack.c.l.b16 %v972
  %v4689 = vunpack.c.h.b16 %v972
  %v4690 = vunpack.c.l.b16 %v973
  %v4691 = vunpack.c.h.b16 %v973
  %v4692 = vunpack.c.l.b16 %v974
  %v4693 = vunpack.c.h.b16 %v974
  %v4694 = vunpack.c.l.b16 %v975
  %v4695 = vunpack.c.h.b16 %v975
  %v4696 = vunpack.c.l.b16 %v976
  %v4697 = vunpack.c.h.b16 %v976
  %v4698 = vunpack.c.l.b16 %v977
  %v4699 = vunpack.c.h.b16 %v977
  %v4700 = vunpack.c.l.b16 %v978
  %v4701 = vunpack.c.h.b16 %v978
  %v4702 = vunpack.c.l.b16 %v979
  %v4703 = vunpack.c.h.b16 %v979
  %v4704 = vunpack.c.l.b16 %v980
  %v4705 = vunpack.c.h.b16 %v980
  %v4706 = vunpack.c.l.b16 %v981
  %v4707 = vunpack.c.h.b16 %v981
  %v4708 = vunpack.c.l.b16 %v982
  %v4709 = vunpack.c.h.b16 %v982
  %v4710 = vunpack.c.l.b16 %v983
  %v4711 = vunpack.c.h.b16 %v983
  %v4712 = vunpack.c.l.b16 %v984
  %v4713 = vunpack.c.h.b16 %v984
  %v4714 = vunpack.c.l.b16 %v985
  %v4715 = vunpack.c.h.b16 %v985
  %v4716 = vunpack.c.l.b16 %v986
  %v4717 = vunpack.c.h.b16 %v986
  %v4718 = vunpack.c.l.b16 %v987
  %v4719 = vunpack.c.h.b16 %v987
  %v4720 = vunpack.c.l.b16 %v988
  %v4721 = vunpack.c.h.b16 %v988
  %v4722 = vunpack.c.l.b16 %v989
  %v4723 = vunpack.c.h.b16 %v989
  %v4724 = vunpack.c.l.b16 %v990
  %v4725 = vunpack.c.h.b16 %v990
  %v4726 = vunpack.c.l.b16 %v991
  %v4727 = vunpack.c.h.b16 %v991
  %v4728 = vunpack.c.l.b16 %v992
  %v4729 = vunpack.c.h.b16 %v992
  %v4730 = vunpack.c.l.b16 %v993
  %v4731 = vunpack.c.h.b16 %v993
  %v4732 = vunpack.c.l.b16 %v994
  %v4733 = vunpack.c.h.b16 %v994
  %v4734 = vunpack.c.l.b16 %v995
  %v4735 = vunpack.c.h.b16 %v995
  %v4736 = vunpack.c.l.b16 %v996
  %v4737 = vunpack.c.h.b16 %v996
  %v4738 = vunpack.c.l.b16 %v997
  %v4739 = vunpack.c.h.b16 %v997
  %v4740 = vunpack.c.l.b16 %v998
  %v4741 = vunpack.c.h.b16 %v998
  %v4742 = vunpack.c.l.b16 %v999
  %v4743 = vunpack.c.h.b16 %v999
  %v4744 = vunpack.c.l.b16 %v1000
  %v4745 = vunpack.c.h.b16 %v1000
  %v4746 = vunpack.c.l.b16 %v1001
  %v4747 = vunpack.c.h.b16 %v1001
  %v4748 = vunpack.c.l.b16 %v1002
  %v4749 = vunpack.c.h.b16 %v1002
  %v4750 = vunpack.c.l.b16 %v1003
  %v4751 = vunpack.c.h.b16 %v1003
  %v4752 = vunpack.c.l.b16 %v1004
  %v4753 = vunpack.c.h.b16 %v1004
  %v4754 = vunpack.c.l.b16 %v1005
  %v4755 = vunpack.c.h.b16 %v1005
  %v4756 = vunpack.c.l.b16 %v1006
  %v4757 = vunpack.c.h.b16 %v1006
  %v4758 = vunpack.c.l.b16 %v1007
  %v4759 = vunpack.c.h.b16 %v1007
  %v4760 = vunpack.c.l.b16 %v1008
  %v4761 = vunpack.c.h.b16 %v1008
  %v4762 = vunpack.c.l.b16 %v1009
  %v4763 = vunpack.c.h.b16 %v1009
  %v4764 = vunpack.c.l.b16 %v1010
  %v4765 = vunpack.c.h.b16 %v1010
  %v4766 = vunpack.c.l.b16 %v1011
  %v4767 = vunpack.c.h.b16 %v1011
  %v4768 = vunpack.c.l.b16 %v1012
  %v4769 = vunpack.c.h.b16 %v1012
  %v4770 = vunpack.c.l.b16 %v1013
  %v4771 = vunpack.c.h.b16 %v1013
  %v4772 = vunpack.c.l.b16 %v1014
  %v4773 = vunpack.c.h.b16 %v1014
  %v4774 = vunpack.c.l.b16 %v1015
  %v4775 = vunpack.c.h.b16 %v1015
  %v4776 = vunpack.c.l.b16 %v1016
  %v4777 = vunpack.c.h.b16 %v1016
  %v4778 = vunpack.c.l.b16 %v1017
  %v4779 = vunpack.c.h.b16 %v1017
  %v4780 = vunpack.c.l.b16 %v1018
  %v4781 = vunpack.c.h.b16 %v1018
  %v4782 = vunpack.c.l.b16 %v1019
  %v4783 = vunpack.c.h.b16 %v1019
  %v4784 = vunpack.c.l.b16 %v1020
  %v4785 = vunpack.c.h.b16 %v1020
  %v4786 = vunpack.c.l.b16 %v1021
  %v4787 = vunpack.c.h.b16 %v1021
  %v4788 = vunpack.c.l.b16 %v1022
  %v4789 = vunpack.c.h.b16 %v1022
  %v4790 = vunpack.c.l.b16 %v1023
  %v4791 = vunpack.c.h.b16 %v1023
  %v4792 = vunpack.c.l.b16 %v1024
  %v4793 = vunpack.c.h.b16 %v1024
  %v4794 = vunpack.c.l.b16 %v1025
  %v4795 = vunpack.c.h.b16 %v1025
  %v4796 = vunpack.c.l.b16 %v1026
  %v4797 = vunpack.c.h.b16 %v1026
  %v4798 = vunpack.c.l.b16 %v1027
  %v4799 = vunpack.c.h.b16 %v1027
  %v4800 = vunpack.c.l.b16 %v1028
  %v4801 = vunpack.c.h.b16 %v1028
  %v4802 = vunpack.c.l.b16 %v1029
  %v4803 = vunpack.c.h.b16 %v1029
  %v4804 = vunpack.c.l.b16 %v1030
  %v4805 = vunpack.c.h.b16 %v1030
  %v4806 = vunpack.c.l.b16 %v1031
  %v4807 = vunpack.c.h.b16 %v1031
  %v4808 = vunpack.c.l.b16 %v1032
  %v4809 = vunpack.c.h.b16 %v1032
  %v4810 = vunpack.c.l.b16 %v1033
  %v4811 = vunpack.c.h.b16 %v1033
  %v4812 = vunpack.c.l.b16 %v1034
  %v4813 = vunpack.c.h.b16 %v1034
  %v4814 = vunpack.c.l.b16 %v1035
  %v4815 = vunpack.c.h.b16 %v1035
  %v4816 = vunpack.c.l.b16 %v1036
  %v4817 = vunpack.c.h.b16 %v1036
  %v4818 = vunpack.c.l.b16 %v1037
  %v4819 = vunpack.c.h.b16 %v1037
  %v4820 = vunpack.c.l.b16 %v1038
  %v4821 = vunpack.c.h.b16 %v1038
  %v4822 = vunpack.c.l.b16 %v1039
  %v4823 = vunpack.c.h.b16 %v1039
  %v4824 = vunpack.c.l.b16 %v1040
  %v4825 = vunpack.c.h.b16 %v1040
  %v4826 = vunpack.c.l.b16 %v1041
  %v4827 = vunpack.c.h.b16 %v1041
  %v4828 = vunpack.c.l.b16 %v1042
  %v4829 = vunpack.c.h.b16 %v1042
  %v4830 = vunpack.c.l.b16 %v1043
  %v4831 = vunpack.c.h.b16 %v1043
  %v4832 = vunpack.c.l.b16 %v1044
  %v4833 = vunpack.c.h.b16 %v1044
  %v4834 = vunpack.c.l.b16 %v1045
  %v4835 = vunpack.c.h.b16 %v1045
  %v4836 = vunpack.c.l.b16 %v1046
  %v4837 = vunpack.c.h.b16 %v1046
  %v4838 = vunpack.c.l.b16 %v1047
  %v4839 = vunpack.c.h.b16 %v1047
  %v4840 = vunpack.c.l.b16 %v1048
  %v4841 = vunpack.c.h.b16 %v1048
  %v4842 = vunpack.c.l.b16 %v1049
  %v4843 = vunpack.c.h.b16 %v1049
  %v4844 = vunpack.c.l.b16 %v1050
  %v4845 = vunpack.c.h.b16 %v1050
  %v4846 = vunpack.c.l.b16 %v1051
  %v4847 = vunpack.c.h.b16 %v1051
  %v4848 = vunpack.c.l.b16 %v1052
  %v4849 = vunpack.c.h.b16 %v1052
  %v4850 = vunpack.c.l.b16 %v1053
  %v4851 = vunpack.c.h.b16 %v1053
  %v4852 = vunpack.c.l.b16 %v1054
  %v4853 = vunpack.c.h.b16 %v1054
  %v4854 = vunpack.c.l.b16 %v1055
  %v4855 = vunpack.c.h.b16 %v1055
  %v4856 = vunpack.c.l.b16 %v1056
  %v4857 = vunpack.c.h.b16 %v1056
  %v4858 = vunpack.c.l.b16 %v1057
  %v4859 = vunpack.c.h.b16 %v1057
  %v4860 = vunpack.c.l.b16 %v1058
  %v4861 = vunpack.c.h.b16 %v1058
  %v4862 = vunpack.c.l.b16 %v1059
  %v4863 = vunpack.c.h.b16 %v1059
  %v4864 = vunpack.c.l.b16 %v1060
  %v4865 = vunpack.c.h.b16 %v1060
  %v4866 = vunpack.c.l.b16 %v1061
  %v4867 = vunpack.c.h.b16 %v1061
  %v4868 = vunpack.c.l.b16 %v1062
  %v4869 = vunpack.c.h.b16 %v1062
  %v4870 = vunpack.c.l.b16 %v1063
  %v4871 = vunpack.c.h.b16 %v1063
  %v4872 = vunpack.c.l.b16 %v1064
  %v4873 = vunpack.c.h.b16 %v1064
  %v4874 = vunpack.c.l.b16 %v1065
  %v4875 = vunpack.c.h.b16 %v1065
  %v4876 = vunpack.c.l.b16 %v1066
  %v4877 = vunpack.c.h.b16 %v1066
  %v4878 = vunpack.c.l.b16 %v1067
  %v4879 = vunpack.c.h.b16 %v1067
  %v4880 = vunpack.c.l.b16 %v1068
  %v4881 = vunpack.c.h.b16 %v1068
  %v4882 = vunpack.c.l.b16 %v1069
  %v4883 = vunpack.c.h.b16 %v1069
  %v4884 = vunpack.c.l.b16 %v1070
  %v4885 = vunpack.c.h.b16 %v1070
  %v4886 = vunpack.c.l.b16 %v1071
  %v4887 = vunpack.c.h.b16 %v1071
  %v4888 = vunpack.c.l.b16 %v1072
  %v4889 = vunpack.c.h.b16 %v1072
  %v4890 = vunpack.c.l.b16 %v1073
  %v4891 = vunpack.c.h.b16 %v1073
  %v4892 = vunpack.c.l.b16 %v1074
  %v4893 = vunpack.c.h.b16 %v1074
  %v4894 = vunpack.c.l.b16 %v1075
  %v4895 = vunpack.c.h.b16 %v1075
  %v4896 = vunpack.c.l.b16 %v1076
  %v4897 = vunpack.c.h.b16 %v1076
  %v4898 = vunpack.c.l.b16 %v1077
  %v4899 = vunpack.c.h.b16 %v1077
  %v4900 = vunpack.c.l.b16 %v1078
  %v4901 = vunpack.c.h.b16 %v1078
  %v4902 = vunpack.c.l.b16 %v1079
  %v4903 = vunpack.c.h.b16 %v1079
  %v4904 = vunpack.c.l.b16 %v1080
  %v4905 = vunpack.c.h.b16 %v1080
  %v4906 = vunpack.c.l.b16 %v1081
  %v4907 = vunpack.c.h.b16 %v1081
  %v4908 = vunpack.c.l.b16 %v1082
  %v4909 = vunpack.c.h.b16 %v1082
  %v4910 = vunpack.c.l.b16 %v1083
  %v4911 = vunpack.c.h.b16 %v1083
  %v4912 = vunpack.c.l.b16 %v1084
  %v4913 = vunpack.c.h.b16 %v1084
  %v4914 = vunpack.c.l.b16 %v1085
  %v4915 = vunpack.c.h.b16 %v1085
  %v4916 = vunpack.c.l.b16 %v1086
  %v4917 = vunpack.c.h.b16 %v1086
  %v4918 = vunpack.c.l.b16 %v1087
  %v4919 = vunpack.c.h.b16 %v1087
  %v4920 = vunpack.c.l.b16 %v1088
  %v4921 = vunpack.c.h.b16 %v1088
  %v4922 = vunpack.c.l.b16 %v1089
  %v4923 = vunpack.c.h.b16 %v1089
  %v4924 = vunpack.c.l.b16 %v1090
  %v4925 = vunpack.c.h.b16 %v1090
  %v4926 = vunpack.c.l.b16 %v1091
  %v4927 = vunpack.c.h.b16 %v1091
  %v4928 = vunpack.c.l.b16 %v1092
  %v4929 = vunpack.c.h.b16 %v1092
  %v4930 = vunpack.c.l.b16 %v1093
  %v4931 = vunpack.c.h.b16 %v1093
  %v4932 = vunpack.c.l.b16 %v1094
  %v4933 = vunpack.c.h.b16 %v1094
  %v4934 = vunpack.c.l.b16 %v1095
  %v4935 = vunpack.c.h.b16 %v1095
  %v4936 = vunpack.c.l.b16 %v1096
  %v4937 = vunpack.c.h.b16 %v1096
  %v4938 = vunpack.c.l.b16 %v1097
  %v4939 = vunpack.c.h.b16 %v1097
  %v4940 = vunpack.c.l.b16 %v1098
  %v4941 = vunpack.c.h.b16 %v1098
  %v4942 = vunpack.c.l.b16 %v1099
  %v4943 = vunpack.c.h.b16 %v1099
  %v4944 = vunpack.c.l.b16 %v1100
  %v4945 = vunpack.c.h.b16 %v1100
  %v4946 = vunpack.c.l.b16 %v1101
  %v4947 = vunpack.c.h.b16 %v1101
  %v4948 = vunpack.c.l.b16 %v1102
  %v4949 = vunpack.c.h.b16 %v1102
  %v4950 = vunpack.c.l.b16 %v1103
  %v4951 = vunpack.c.h.b16 %v1103
  %v4952 = vunpack.c.l.b16 %v1104
  %v4953 = vunpack.c.h.b16 %v1104
  %v4954 = vunpack.c.l.b16 %v1105
  %v4955 = vunpack.c.h.b16 %v1105
  %v4956 = vunpack.c.l.b16 %v1106
  %v4957 = vunpack.c.h.b16 %v1106
  %v4958 = vunpack.c.l.b16 %v1107
  %v4959 = vunpack.c.h.b16 %v1107
  %v4960 = vunpack.c.l.b16 %v1108
  %v4961 = vunpack.c.h.b16 %v1108
  %v4962 = vunpack.c.l.b16 %v1109
  %v4963 = vunpack.c.h.b16 %v1109
  %v4964 = vunpack.c.l.b16 %v1110
  %v4965 = vunpack.c.h.b16 %v1110
  %v4966 = vunpack.c.l.b16 %v1111
  %v4967 = vunpack.c.h.b16 %v1111
  %v4968 = vunpack.c.l.b16 %v1112
  %v4969 = vunpack.c.h.b16 %v1112
  %v4970 = vunpack.c.l.b16 %v1113
  %v4971 = vunpack.c.h.b16 %v1113
  %v4972 = vunpack.c.l.b16 %v1114
  %v4973 = vunpack.c.h.b16 %v1114
  %v4974 = vunpack.c.l.b16 %v1115
  %v4975 = vunpack.c.h.b16 %v1115
  %v4976 = vunpack.c.l.b16 %v1116
  %v4977 = vunpack.c.h.b16 %v1116
  %v4978 = vunpack.c.l.b16 %v1117
  %v4979 = vunpack.c.h.b16 %v1117
  %v4980 = vunpack.c.l.b16 %v1118
  %v4981 = vunpack.c.h.b16 %v1118
  %v4982 = vunpack.c.l.b16 %v1119
  %v4983 = vunpack.c.h.b16 %v1119
  %v4984 = vunpack.c.l.b16 %v1120
  %v4985 = vunpack.c.h.b16 %v1120
  %v4986 = vunpack.c.l.b16 %v1121
  %v4987 = vunpack.c.h.b16 %v1121
  %v4988 = vunpack.c.l.b16 %v1122
  %v4989 = vunpack.c.h.b16 %v1122
  %v4990 = vunpack.c.l.b16 %v1123
  %v4991 = vunpack.c.h.b16 %v1123
  %v4992 = vunpack.c.l.b16 %v1124
  %v4993 = vunpack.c.h.b16 %v1124
  %v4994 = vunpack.c.l.b16 %v1125
  %v4995 = vunpack.c.h.b16 %v1125
  %v4996 = vunpack.c.l.b16 %v1126
  %v4997 = vunpack.c.h.b16 %v1126
  %v4998 = vunpack.c.l.b16 %v1127
  %v4999 = vunpack.c.h.b16 %v1127
  %v5000 = vunpack.c.l.b16 %v1128
  %v5001 = vunpack.c.h.b16 %v1128
  %v5002 = vunpack.c.l.b16 %v1129
  %v5003 = vunpack.c.h.b16 %v1129
  %v5004 = vunpack.c.l.b16 %v1130
  %v5005 = vunpack.c.h.b16 %v1130
  %v5006 = vunpack.c.l.b16 %v1131
  %v5007 = vunpack.c.h.b16 %v1131
  %v5008 = vunpack.c.l.b16 %v1132
  %v5009 = vunpack.c.h.b16 %v1132
  %v5010 = vunpack.c.l.b16 %v1133
  %v5011 = vunpack.c.h.b16 %v1133
  %v5012 = vunpack.c.l.b16 %v1134
  %v5013 = vunpack.c.h.b16 %v1134
  %v5014 = vunpack.c.l.b16 %v1135
  %v5015 = vunpack.c.h.b16 %v1135
  %v5016 = vunpack.c.l.b16 %v1136
  %v5017 = vunpack.c.h.b16 %v1136
  %v5018 = vunpack.c.l.b16 %v1137
  %v5019 = vunpack.c.h.b16 %v1137
  %v5020 = vunpack.c.l.b16 %v1138
  %v5021 = vunpack.c.h.b16 %v1138
  %v5022 = vunpack.c.l.b16 %v1139
  %v5023 = vunpack.c.h.b16 %v1139
  %v5024 = vunpack.c.l.b16 %v1140
  %v5025 = vunpack.c.h.b16 %v1140
  %v5026 = vunpack.c.l.b16 %v1141
  %v5027 = vunpack.c.h.b16 %v1141
  %v5028 = vunpack.c.l.b16 %v1142
  %v5029 = vunpack.c.h.b16 %v1142
  %v5030 = vunpack.c.l.b16 %v1143
  %v5031 = vunpack.c.h.b16 %v1143
  %v5032 = vunpack.c.l.b16 %v1144
  %v5033 = vunpack.c.h.b16 %v1144
  %v5034 = vunpack.c.l.b16 %v1145
  %v5035 = vunpack.c.h.b16 %v1145
  %v5036 = vunpack.c.l.b16 %v1146
  %v5037 = vunpack.c.h.b16 %v1146
  %v5038 = vunpack.c.l.b16 %v1147
  %v5039 = vunpack.c.h.b16 %v1147
  %v5040 = vunpack.c.l.b16 %v1148
  %v5041 = vunpack.c.h.b16 %v1148
  %v5042 = vunpack.c.l.b16 %v1149
  %v5043 = vunpack.c.h.b16 %v1149
  %v5044 = vunpack.c.l.b16 %v1150
  %v5045 = vunpack.c.h.b16 %v1150
  %v5046 = vunpack.c.l.b16 %v1151
  %v5047 = vunpack.c.h.b16 %v1151
  %v5048 = vunpack.c.l.b16 %v1152
  %v5049 = vunpack.c.h.b16 %v1152
  %v5050 = vunpack.c.l.b16 %v1153
  %v5051 = vunpack.c.h.b16 %v1153
  %v5052 = vunpack.c.l.b16 %v1154
  %v5053 = vunpack.c.h.b16 %v1154
  %v5054 = vunpack.c.l.b16 %v1155
  %v5055 = vunpack.c.h.b16 %v1155
  %v5056 = vunpack.c.l.b16 %v1156
  %v5057 = vunpack.c.h.b16 %v1156
  %v5058 = vunpack.c.l.b16 %v1157
  %v5059 = vunpack.c.h.b16 %v1157
  %v5060 = vunpack.c.l.b16 %v1158
  %v5061 = vunpack.c.h.b16 %v1158
  %v5062 = vunpack.c.l.b16 %v1159
  %v5063 = vunpack.c.h.b16 %v1159
  %v5064 = vunpack.c.l.b16 %v1160
  %v5065 = vunpack.c.h.b16 %v1160
  %v5066 = vunpack.c.l.b16 %v1161
  %v5067 = vunpack.c.h.b16 %v1161
  %v5068 = vunpack.c.l.b16 %v1162
  %v5069 = vunpack.c.h.b16 %v1162
  %v5070 = vunpack.c.l.b16 %v1163
  %v5071 = vunpack.c.h.b16 %v1163
  %v5072 = vunpack.c.l.b16 %v1164
  %v5073 = vunpack.c.h.b16 %v1164
  %v5074 = vunpack.c.l.b16 %v1165
  %v5075 = vunpack.c.h.b16 %v1165
  %v5076 = vunpack.c.l.b16 %v1166
  %v5077 = vunpack.c.h.b16 %v1166
  %v5078 = vunpack.c.l.b16 %v1167
  %v5079 = vunpack.c.h.b16 %v1167
  %v5080 = vunpack.c.l.b16 %v1168
  %v5081 = vunpack.c.h.b16 %v1168
  %v5082 = vunpack.c.l.b16 %v1169
  %v5083 = vunpack.c.h.b16 %v1169
  %v5084 = vunpack.c.l.b16 %v1170
  %v5085 = vunpack.c.h.b16 %v1170
  %v5086 = vunpack.c.l.b16 %v1171
  %v5087 = vunpack.c.h.b16 %v1171
  %v5088 = vunpack.c.l.b16 %v1172
  %v5089 = vunpack.c.h.b16 %v1172
  %v5090 = vunpack.c.l.b16 %v1173
  %v5091 = vunpack.c.h.b16 %v1173
  %v5092 = vunpack.c.l.b16 %v1174
  %v5093 = vunpack.c.h.b16 %v1174
  %v5094 = vunpack.c.l.b16 %v1175
  %v5095 = vunpack.c.h.b16 %v1175
  %v5096 = vunpack.c.l.b16 %v1176
  %v5097 = vunpack.c.h.b16 %v1176
  %v5098 = vunpack.c.l.b16 %v1177
  %v5099 = vunpack.c.h.b16 %v1177
  %v5100 = vunpack.c.l.b16 %v1178
  %v5101 = vunpack.c.h.b16 %v1178
  %v5102 = vunpack.c.l.b16 %v1179
  %v5103 = vunpack.c.h.b16 %v1179
  %v5104 = vunpack.c.l.b16 %v1180
  %v5105 = vunpack.c.h.b16 %v1180
  %v5106 = vunpack.c.l.b16 %v1181
  %v5107 = vunpack.c.h.b16 %v1181
  %v5108 = vunpack.c.l.b16 %v1182
  %v5109 = vunpack.c.h.b16 %v1182
  %v5110 = vunpack.c.l.b16 %v1183
  %v5111 = vunpack.c.h.b16 %v1183
  %v5112 = vunpack.c.l.b16 %v1184
  %v5113 = vunpack.c.h.b16 %v1184
  %v5114 = vunpack.c.l.b16 %v1185
  %v5115 = vunpack.c.h.b16 %v1185
  %v5116 = vunpack.c.l.b16 %v1186
  %v5117 = vunpack.c.h.b16 %v1186
  %v5118 = vunpack.c.l.b16 %v1187
  %v5119 = vunpack.c.h.b16 %v1187
  %v5120 = vunpack.c.l.b16 %v1188
  %v5121 = vunpack.c.h.b16 %v1188
  %v5122 = vunpack.c.l.b16 %v1189
  %v5123 = vunpack.c.h.b16 %v1189
  %v5124 = vunpack.c.l.b16 %v1190
  %v5125 = vunpack.c.h.b16 %v1190
  %v5126 = vunpack.c.l.b16 %v1191
  %v5127 = vunpack.c.h.b16 %v1191
  %v5128 = vunpack.c.l.b16 %v1192
  %v5129 = vunpack.c.h.b16 %v1192
  %v5130 = vunpack.c.l.b16 %v1193
  %v5131 = vunpack.c.h.b16 %v1193
  %v5132 = vunpack.c.l.b16 %v1194
  %v5133 = vunpack.c.h.b16 %v1194
  %v5134 = vunpack.c.l.b16 %v1195
  %v5135 = vunpack.c.h.b16 %v1195
  %v5136 = vunpack.c.l.b16 %v1196
  %v5137 = vunpack.c.h.b16 %v1196
  %v5138 = vunpack.c.l.b16 %v1197
  %v5139 = vunpack.c.h.b16 %v1197
  %v5140 = vunpack.c.l.b16 %v1198
  %v5141 = vunpack.c.h.b16 %v1198
  %v5142 = vunpack.c.l.b16 %v1199
  %v5143 = vunpack.c.h.b16 %v1199
  %v5144 = vunpack.c.l.b16 %v1200
  %v5145 = vunpack.c.h.b16 %v1200
  %v5146 = vunpack.c.l.b16 %v1201
  %v5147 = vunpack.c.h.b16 %v1201
  %v5148 = vunpack.c.l.b16 %v1202
  %v5149 = vunpack.c.h.b16 %v1202
  %v5150 = vunpack.c.l.b16 %v1203
  %v5151 = vunpack.c.h.b16 %v1203
  %v5152 = vunpack.c.l.b16 %v1204
  %v5153 = vunpack.c.h.b16 %v1204
  %v5154 = vunpack.c.l.b16 %v1205
  %v5155 = vunpack.c.h.b16 %v1205
  %v5156 = vunpack.c.l.b16 %v1206
  %v5157 = vunpack.c.h.b16 %v1206
  %v5158 = vunpack.c.l.b16 %v1207
  %v5159 = vunpack.c.h.b16 %v1207
  %v5160 = vunpack.c.l.b16 %v1208
  %v5161 = vunpack.c.h.b16 %v1208
  %v5162 = vunpack.c.l.b16 %v1209
  %v5163 = vunpack.c.h.b16 %v1209
  %v5164 = vunpack.c.l.b16 %v1210
  %v5165 = vunpack.c.h.b16 %v1210
  %v5166 = vunpack.c.l.b16 %v1211
  %v5167 = vunpack.c.h.b16 %v1211
  %v5168 = vunpack.c.l.b16 %v1212
  %v5169 = vunpack.c.h.b16 %v1212
  %v5170 = vunpack.c.l.b16 %v1213
  %v5171 = vunpack.c.h.b16 %v1213
  %v5172 = vunpack.c.l.b16 %v1214
  %v5173 = vunpack.c.h.b16 %v1214
  %v5174 = vunpack.c.l.b16 %v1215
  %v5175 = vunpack.c.h.b16 %v1215
  %v5176 = vunpack.c.l.b16 %v1216
  %v5177 = vunpack.c.h.b16 %v1216
  %v5178 = vunpack.c.l.b16 %v1217
  %v5179 = vunpack.c.h.b16 %v1217
  %v5180 = vunpack.c.l.b16 %v1218
  %v5181 = vunpack.c.h.b16 %v1218
  %v5182 = vunpack.c.l.b16 %v1219
  %v5183 = vunpack.c.h.b16 %v1219
  %v5184 = vunpack.c.l.b16 %v1220
  %v5185 = vunpack.c.h.b16 %v1220
  %v5186 = vunpack.c.l.b16 %v1221
  %v5187 = vunpack.c.h.b16 %v1221
  %v5188 = vunpack.c.l.b16 %v1222
  %v5189 = vunpack.c.h.b16 %v1222
  %v5190 = vunpack.c.l.b16 %v1223
  %v5191 = vunpack.c.h.b16 %v1223
  %v5192 = vunpack.c.l.b16 %v1224
  %v5193 = vunpack.c.h.b16 %v1224
  %v5194 = vunpack.c.l.b16 %v1225
  %v5195 = vunpack.c.h.b16 %v1225
  %v5196 = vunpack.c.l.b16 %v1226
  %v5197 = vunpack.c.h.b16 %v1226
  %v5198 = vunpack.c.l.b16 %v1227
  %v5199 = vunpack.c.h.b16 %v1227
  %v5200 = vunpack.c.l.b16 %v1228
  %v5201 = vunpack.c.h.b16 %v1228
  %v5202 = vunpack.c.l.b16 %v1229
  %v5203 = vunpack.c.h.b16 %v1229
  %v5204 = vunpack.c.l.b16 %v1230
  %v5205 = vunpack.c.h.b16 %v1230
  %v5206 = vunpack.c.l.b16 %v1231
  %v5207 = vunpack.c.h.b16 %v1231
  %v5208 = vunpack.c.l.b16 %v1232
  %v5209 = vunpack.c.h.b16 %v1232
  %v5210 = vunpack.c.l.b16 %v1233
  %v5211 = vunpack.c.h.b16 %v1233
  %v5212 = vunpack.c.l.b16 %v1234
  %v5213 = vunpack.c.h.b16 %v1234
  %v5214 = vunpack.c.l.b16 %v1235
  %v5215 = vunpack.c.h.b16 %v1235
  %v5216 = vunpack.c.l.b16 %v1236
  %v5217 = vunpack.c.h.b16 %v1236
  %v5218 = vunpack.c.l.b16 %v1237
  %v5219 = vunpack.c.h.b16 %v1237
  %v5220 = vunpack.c.l.b16 %v1238
  %v5221 = vunpack.c.h.b16 %v1238
  %v5222 = vunpack.c.l.b16 %v1239
  %v5223 = vunpack.c.h.b16 %v1239
  %v5224 = vunpack.c.l.b16 %v1240
  %v5225 = vunpack.c.h.b16 %v1240
  %v5226 = vunpack.c.l.b16 %v1241
  %v5227 = vunpack.c.h.b16 %v1241
  %v5228 = vunpack.c.l.b16 %v1242
  %v5229 = vunpack.c.h.b16 %v1242
  %v5230 = vunpack.c.l.b16 %v1243
  %v5231 = vunpack.c.h.b16 %v1243
  %v5232 = vunpack.c.l.b16 %v1244
  %v5233 = vunpack.c.h.b16 %v1244
  %v5234 = vunpack.c.l.b16 %v1245
  %v5235 = vunpack.c.h.b16 %v1245
  %v5236 = vunpack.c.l.b16 %v1246
  %v5237 = vunpack.c.h.b16 %v1246
  %v5238 = vunpack.c.l.b16 %v1247
  %v5239 = vunpack.c.h.b16 %v1247
  %v5240 = vunpack.c.l.b16 %v1248
  %v5241 = vunpack.c.h.b16 %v1248
  %v5242 = vunpack.c.l.b16 %v1249
  %v5243 = vunpack.c.h.b16 %v1249
  %v5244 = vunpack.c.l.b16 %v1250
  %v5245 = vunpack.c.h.b16 %v1250
  %v5246 = vunpack.c.l.b16 %v1251
  %v5247 = vunpack.c.h.b16 %v1251
  %v5248 = vunpack.c.l.b16 %v1252
  %v5249 = vunpack.c.h.b16 %v1252
  %v5250 = vunpack.c.l.b16 %v1253
  %v5251 = vunpack.c.h.b16 %v1253
  %v5252 = vunpack.c.l.b16 %v1254
  %v5253 = vunpack.c.h.b16 %v1254
  %v5254 = vunpack.c.l.b16 %v1255
  %v5255 = vunpack.c.h.b16 %v1255
  %v5256 = vunpack.c.l.b16 %v1256
  %v5257 = vunpack.c.h.b16 %v1256
  %v5258 = vunpack.c.l.b16 %v1257
  %v5259 = vunpack.c.h.b16 %v1257
  %v5260 = vunpack.c.l.b16 %v1258
  %v5261 = vunpack.c.h.b16 %v1258
  %v5262 = vunpack.c.l.b16 %v1259
  %v5263 = vunpack.c.h.b16 %v1259
  %v5264 = vunpack.c.l.b16 %v1260
  %v5265 = vunpack.c.h.b16 %v1260
  %v5266 = vunpack.c.l.b16 %v1261
  %v5267 = vunpack.c.h.b16 %v1261
  %v5268 = vunpack.c.l.b16 %v1262
  %v5269 = vunpack.c.h.b16 %v1262
  %v5270 = vunpack.c.l.b16 %v1263
  %v5271 = vunpack.c.h.b16 %v1263
  %v5272 = vunpack.c.l.b16 %v1264
  %v5273 = vunpack.c.h.b16 %v1264
  %v5274 = vunpack.c.l.b16 %v1265
  %v5275 = vunpack.c.h.b16 %v1265
  %v5276 = vunpack.c.l.b16 %v1266
  %v5277 = vunpack.c.h.b16 %v1266
  %v5278 = vunpack.c.l.b16 %v1267
  %v5279 = vunpack.c.h.b16 %v1267
  %v5280 = vunpack.c.l.b16 %v1268
  %v5281 = vunpack.c.h.b16 %v1268
  %v5282 = vunpack.c.l.b16 %v1269
  %v5283 = vunpack.c.h.b16 %v1269
  %v5284 = vunpack.c.l.b16 %v1270
  %v5285 = vunpack.c.h.b16 %v1270
  %v5286 = vunpack.c.l.b16 %v1271
  %v5287 = vunpack.c.h.b16 %v1271
  %v5288 = vunpack.c.l.b16 %v1272
  %v5289 = vunpack.c.h.b16 %v1272
  %v5290 = vunpack.c.l.b16 %v1273
  %v5291 = vunpack.c.h.b16 %v1273
  %v5292 = vunpack.c.l.b16 %v1274
  %v5293 = vunpack.c.h.b16 %v1274
  %v5294 = vunpack.c.l.b16 %v1275
  %v5295 = vunpack.c.h.b16 %v1275
  %v5296 = vunpack.c.l.b16 %v1276
  %v5297 = vunpack.c.h.b16 %v1276
  %v5298 = vunpack.c.l.b16 %v1277
  %v5299 = vunpack.c.h.b16 %v1277
  %v5300 = vunpack.c.l.b16 %v1278
  %v5301 = vunpack.c.h.b16 %v1278
  %v5302 = vunpack.c.l.b16 %v1279
  %v5303 = vunpack.c.h.b16 %v1279
  %v5304 = vunpack.c.l.b16 %v1280
  %v5305 = vunpack.c.h.b16 %v1280
  %v5306 = vunpack.c.l.b16 %v1281
  %v5307 = vunpack.c.h.b16 %v1281
  %v5308 = vunpack.c.l.b16 %v1282
  %v5309 = vunpack.c.h.b16 %v1282
  %v5310 = vunpack.c.l.b16 %v1283
  %v5311 = vunpack.c.h.b16 %v1283
  %v5312 = vunpack.c.l.b16 %v1284
  %v5313 = vunpack.c.h.b16 %v1284
  %v5314 = vunpack.c.l.b16 %v1285
  %v5315 = vunpack.c.h.b16 %v1285
  %v5316 = vunpack.c.l.b16 %v1286
  %v5317 = vunpack.c.h.b16 %v1286
  %v5318 = vunpack.c.l.b16 %v1287
  %v5319 = vunpack.c.h.b16 %v1287
  %v5320 = vunpack.c.l.b16 %v1288
  %v5321 = vunpack.c.h.b16 %v1288
  %v5322 = vunpack.c.l.b16 %v1289
  %v5323 = vunpack.c.h.b16 %v1289
  %v5324 = vunpack.c.l.b16 %v1290
  %v5325 = vunpack.c.h.b16 %v1290
  %v5326 = vunpack.c.l.b16 %v1291
  %v5327 = vunpack.c.h.b16 %v1291
  %v5328 = vunpack.c.l.b16 %v1292
  %v5329 = vunpack.c.h.b16 %v1292
  %v5330 = vunpack.c.l.b16 %v1293
  %v5331 = vunpack.c.h.b16 %v1293
  %v5332 = vunpack.c.l.b16 %v1294
  %v5333 = vunpack.c.h.b16 %v1294
  %v5334 = vunpack.c.l.b16 %v1295
  %v5335 = vunpack.c.h.b16 %v1295
  %v5336 = vunpack.c.l.b16 %v1296
  %v5337 = vunpack.c.h.b16 %v1296
  %v5338 = vunpack.c.l.b16 %v1297
  %v5339 = vunpack.c.h.b16 %v1297
  %v5340 = vunpack.c.l.b16 %v1298
  %v5341 = vunpack.c.h.b16 %v1298
  %v5342 = vunpack.c.l.b16 %v1299
  %v5343 = vunpack.c.h.b16 %v1299
  %v5344 = vunpack.c.l.b16 %v1300
  %v5345 = vunpack.c.h.b16 %v1300
  %v5346 = vunpack.c.l.b16 %v1301
  %v5347 = vunpack.c.h.b16 %v1301
  %v5348 = vunpack.c.l.b16 %v1302
  %v5349 = vunpack.c.h.b16 %v1302
  %v5350 = vunpack.c.l.b16 %v1303
  %v5351 = vunpack.c.h.b16 %v1303
  %v5352 = vunpack.c.l.b16 %v1304
  %v5353 = vunpack.c.h.b16 %v1304
  %v5354 = vunpack.c.l.b16 %v1305
  %v5355 = vunpack.c.h.b16 %v1305
  %v5356 = vunpack.c.l.b16 %v1306
  %v5357 = vunpack.c.h.b16 %v1306
  %v5358 = vunpack.c.l.b16 %v1307
  %v5359 = vunpack.c.h.b16 %v1307
  %v5360 = vunpack.c.l.b16 %v1308
  %v5361 = vunpack.c.h.b16 %v1308
  %v5362 = vunpack.c.l.b16 %v1309
  %v5363 = vunpack.c.h.b16 %v1309
  %v5364 = vunpack.c.l.b16 %v1310
  %v5365 = vunpack.c.h.b16 %v1310
  %v5366 = vunpack.c.l.b16 %v1311
  %v5367 = vunpack.c.h.b16 %v1311
  %v5368 = vunpack.c.l.b16 %v1312
  %v5369 = vunpack.c.h.b16 %v1312
  %v5370 = vunpack.c.l.b16 %v1313
  %v5371 = vunpack.c.h.b16 %v1313
  %v5372 = vunpack.c.l.b16 %v1314
  %v5373 = vunpack.c.h.b16 %v1314
  %v5374 = vunpack.c.l.b16 %v1315
  %v5375 = vunpack.c.h.b16 %v1315
  %v5376 = vunpack.c.l.b16 %v1316
  %v5377 = vunpack.c.h.b16 %v1316
  %v5378 = vunpack.c.l.b16 %v1317
  %v5379 = vunpack.c.h.b16 %v1317
  %v5380 = vunpack.c.l.b16 %v1318
  %v5381 = vunpack.c.h.b16 %v1318
  %v5382 = vunpack.c.l.b16 %v1319
  %v5383 = vunpack.c.h.b16 %v1319
  %v5384 = vunpack.c.l.b16 %v1320
  %v5385 = vunpack.c.h.b16 %v1320
  %v5386 = vunpack.c.l.b16 %v1321
  %v5387 = vunpack.c.h.b16 %v1321
  %v5388 = vunpack.c.l.b16 %v1322
  %v5389 = vunpack.c.h.b16 %v1322
  %v5390 = vunpack.c.l.b16 %v1323
  %v5391 = vunpack.c.h.b16 %v1323
  %v5392 = vunpack.c.l.b16 %v1324
  %v5393 = vunpack.c.h.b16 %v1324
  %v5394 = vunpack.c.l.b16 %v1325
  %v5395 = vunpack.c.h.b16 %v1325
  %v5396 = vunpack.c.l.b16 %v1326
  %v5397 = vunpack.c.h.b16 %v1326
  %v5398 = vunpack.c.l.b16 %v1327
  %v5399 = vunpack.c.h.b16 %v1327
  %v5400 = vunpack.c.l.b16 %v1328
  %v5401 = vunpack.c.h.b16 %v1328
  %v5402 = vunpack.c.l.b16 %v1329
  %v5403 = vunpack.c.h.b16 %v1329
  %v5404 = vunpack.c.l.b16 %v1330
  %v5405 = vunpack.c.h.b16 %v1330
  %v5406 = vunpack.c.l.b16 %v1331
  %v5407 = vunpack.c.h.b16 %v1331
  %v5408 = vunpack.c.l.b16 %v1332
  %v5409 = vunpack.c.h.b16 %v1332
  %v5410 = vunpack.c.l.b16 %v1333
  %v5411 = vunpack.c.h.b16 %v1333
  %v5412 = vunpack.c.l.b16 %v1334
  %v5413 = vunpack.c.h.b16 %v1334
  %v5414 = vunpack.c.l.b16 %v1335
  %v5415 = vunpack.c.h.b16 %v1335
  %v5416 = vunpack.c.l.b16 %v1336
  %v5417 = vunpack.c.h.b16 %v1336
  %v5418 = vunpack.c.l.b16 %v1337
  %v5419 = vunpack.c.h.b16 %v1337
  %v5420 = vunpack.c.l.b16 %v1338
  %v5421 = vunpack.c.h.b16 %v1338
  %v5422 = vunpack.c.l.b16 %v1339
  %v5423 = vunpack.c.h.b16 %v1339
  %v5424 = vunpack.c.l.b16 %v1340
  %v5425 = vunpack.c.h.b16 %v1340
  %v5426 = vunpack.c.l.b16 %v1341
  %v5427 = vunpack.c.h.b16 %v1341
  %v5428 = vunpack.c.l.b16 %v1342
  %v5429 = vunpack.c.h.b16 %v1342
  %v5430 = vunpack.c.l.b16 %v1343
  %v5431 = vunpack.c.h.b16 %v1343
  %v5432 = vunpack.c.l.b16 %v1344
  %v5433 = vunpack.c.h.b16 %v1344
  %v5434 = vunpack.c.l.b16 %v1345
  %v5435 = vunpack.c.h.b16 %v1345
  %v5436 = vunpack.c.l.b16 %v1346
  %v5437 = vunpack.c.h.b16 %v1346
  %v5438 = vunpack.c.l.b16 %v1347
  %v5439 = vunpack.c.h.b16 %v1347
  %v5440 = vunpack.c.l.b16 %v1348
  %v5441 = vunpack.c.h.b16 %v1348
  %v5442 = vunpack.c.l.b16 %v1349
  %v5443 = vunpack.c.h.b16 %v1349
  %v5444 = vunpack.c.l.b16 %v1350
  %v5445 = vunpack.c.h.b16 %v1350
  %v5446 = vunpack.c.l.b16 %v1351
  %v5447 = vunpack.c.h.b16 %v1351
  %v5448 = vunpack.c.l.b16 %v1352
  %v5449 = vunpack.c.h.b16 %v1352
  %v5450 = vunpack.c.l.b16 %v1353
  %v5451 = vunpack.c.h.b16 %v1353
  %v5452 = vunpack.c.l.b16 %v1354
  %v5453 = vunpack.c.h.b16 %v1354
  %v5454 = vunpack.c.l.b16 %v1355
  %v5455 = vunpack.c.h.b16 %v1355
  %v5456 = vunpack.c.l.b16 %v1356
  %v5457 = vunpack.c.h.b16 %v1356
  %v5458 = vunpack.c.l.b16 %v1357
  %v5459 = vunpack.c.h.b16 %v1357
  %v5460 = vunpack.c.l.b16 %v1358
  %v5461 = vunpack.c.h.b16 %v1358
  %v5462 = vpack.c.b16 %v2874, %v2870
  %v5463 = vpack.c.b16 %v2875, %v2871
  %v5464 = vpack.c.b16 %v2876, %v2872
  %v5465 = vpack.c.b16 %v2877, %v2873
  %v5466 = vpack.c.b16 %v2882, %v2878
  %v5467 = vpack.c.b16 %v2883, %v2879
  %v5468 = vpack.c.b16 %v2884, %v2880
  %v5469 = vpack.c.b16 %v2885, %v2881
  %v5470 = vpack.c.b16 %v2890, %v2886
  %v5471 = vpack.c.b16 %v2891, %v2887
  %v5472 = vpack.c.b16 %v2892, %v2888
  %v5473 = vpack.c.b16 %v2893, %v2889
  %v5474 = vpack.c.b16 %v2898, %v2894
  %v5475 = vpack.c.b16 %v2899, %v2895
  %v5476 = vpack.c.b16 %v2900, %v2896
  %v5477 = vpack.c.b16 %v2901, %v2897
  %v5478 = vpack.c.b16 %v2906, %v2902
  %v5479 = vpack.c.b16 %v2907, %v2903
  %v5480 = vpack.c.b16 %v2908, %v2904
  %v5481 = vpack.c.b16 %v2909, %v2905
  %v5482 = vpack.c.b16 %v2914, %v2910
  %v5483 = vpack.c.b16 %v2915, %v2911
  %v5484 = vpack.c.b16 %v2916, %v2912
  %v5485 = vpack.c.b16 %v2917, %v2913
  %v5486 = vpack.c.b16 %v2922, %v2918
  %v5487 = vpack.c.b16 %v2923, %v2919
  %v5488 = vpack.c.b16 %v2924, %v2920
  %v5489 = vpack.c.b16 %v2925, %v2921
  %v5490 = vpack.c.b16 %v2930, %v2926
  %v5491 = vpack.c.b16 %v2931, %v2927
  %v5492 = vpack.c.b16 %v2932, %v2928
  %v5493 = vpack.c.b16 %v2933, %v2929
  %v5494 = vpack.c.b16 %v2938, %v2934
  %v5495 = vpack.c.b16 %v2939, %v2935
  %v5496 = vpack.c.b16 %v2940, %v2936
  %v5497 = vpack.c.b16 %v2941, %v2937
  %v5498 = vpack.c.b16 %v2946, %v2942
  %v5499 = vpack.c.b16 %v2947, %v2943
  %v5500 = vpack.c.b16 %v2948, %v2944
  %v5501 = vpack.c.b16 %v2949, %v2945
  %v5502 = vpack.c.b16 %v2954, %v2950
  %v5503 = vpack.c.b16 %v2955, %v2951
  %v5504 = vpack.c.b16 %v2956, %v2952
  %v5505 = vpack.c.b16 %v2957, %v2953
  %v5506 = vpack.c.b16 %v2962, %v2958
  %v5507 = vpack.c.b16 %v2963, %v2959
  %v5508 = vpack.c.b16 %v2964, %v2960
  %v5509 = vpack.c.b16 %v2965, %v2961
  %v5510 = vpack.c.b16 %v2970, %v2966
  %v5511 = vpack.c.b16 %v2971, %v2967
  %v5512 = vpack.c.b16 %v2972, %v2968
  %v5513 = vpack.c.b16 %v2973, %v2969
  %v5514 = vpack.c.b16 %v2978, %v2974
  %v5515 = vpack.c.b16 %v2979, %v2975
  %v5516 = vpack.c.b16 %v2980, %v2976
  %v5517 = vpack.c.b16 %v2981, %v2977
  %v5518 = vpack.c.b16 %v2986, %v2982
  %v5519 = vpack.c.b16 %v2987, %v2983
  %v5520 = vpack.c.b16 %v2988, %v2984
  %v5521 = vpack.c.b16 %v2989, %v2985
  %v5522 = vpack.c.b16 %v2994, %v2990
  %v5523 = vpack.c.b16 %v2995, %v2991
  %v5524 = vpack.c.b16 %v2996, %v2992
  %v5525 = vpack.c.b16 %v2997, %v2993
  %v5526 = vpack.c.b16 %v3002, %v2998
  %v5527 = vpack.c.b16 %v3003, %v2999
  %v5528 = vpack.c.b16 %v3004, %v3000
  %v5529 = vpack.c.b16 %v3005, %v3001
  %v5530 = vpack.c.b16 %v3010, %v3006
  %v5531 = vpack.c.b16 %v3011, %v3007
  %v5532 = vpack.c.b16 %v3012, %v3008
  %v5533 = vpack.c.b16 %v3013, %v3009
  %v5534 = vpack.c.b16 %v3018, %v3014
  %v5535 = vpack.c.b16 %v3019, %v3015
  %v5536 = vpack.c.b16 %v3020, %v3016
  %v5537 = vpack.c.b16 %v3021, %v3017
  %v5538 = vpack.c.b16 %v3026, %v3022
  %v5539 = vpack.c.b16 %v3027, %v3023
  %v5540 = vpack.c.b16 %v3028, %v3024
  %v5541 = vpack.c.b16 %v3029, %v3025
  %v5542 = vpack.c.b16 %v3034, %v3030
  %v5543 = vpack.c.b16 %v3035, %v3031
  %v5544 = vpack.c.b16 %v3036, %v3032
  %v5545 = vpack.c.b16 %v3037, %v3033
  %v5546 = vpack.c.b16 %v3042, %v3038
  %v5547 = vpack.c.b16 %v3043, %v3039
  %v5548 = vpack.c.b16 %v3044, %v3040
  %v5549 = vpack.c.b16 %v3045, %v3041
  %v5550 = vpack.c.b16 %v3050, %v3046
  %v5551 = vpack.c.b16 %v3051, %v3047
  %v5552 = vpack.c.b16 %v3052, %v3048
  %v5553 = vpack.c.b16 %v3053, %v3049
  %v5554 = vpack.c.b16 %v3058, %v3054
  %v5555 = vpack.c.b16 %v3059, %v3055
  %v5556 = vpack.c.b16 %v3060, %v3056
  %v5557 = vpack.c.b16 %v3061, %v3057
  %v5558 = vpack.c.b16 %v3066, %v3062
  %v5559 = vpack.c.b16 %v3067, %v3063
  %v5560 = vpack.c.b16 %v3068, %v3064
  %v5561 = vpack.c.b16 %v3069, %v3065
  %v5562 = vpack.c.b16 %v3074, %v3070
  %v5563 = vpack.c.b16 %v3075, %v3071
  %v5564 = vpack.c.b16 %v3076, %v3072
  %v5565 = vpack.c.b16 %v3077, %v3073
  %v5566 = vpack.c.b16 %v3082, %v3078
  %v5567 = vpack.c.b16 %v3083, %v3079
  %v5568 = vpack.c.b16 %v3084, %v3080
  %v5569 = vpack.c.b16 %v3085, %v3081
  %v5570 = vpack.c.b16 %v3090, %v3086
  %v5571 = vpack.c.b16 %v3091, %v3087
  %v5572 = vpack.c.b16 %v3092, %v3088
  %v5573 = vpack.c.b16 %v3093, %v3089
  %v5574 = vpack.c.b16 %v3098, %v3094
  %v5575 = vpack.c.b16 %v3099, %v3095
  %v5576 = vpack.c.b16 %v3100, %v3096
  %v5577 = vpack.c.b16 %v3101, %v3097
  %v5578 = vpack.c.b16 %v3106, %v3102
  %v5579 = vpack.c.b16 %v3107, %v3103
  %v5580 = vpack.c.b16 %v3108, %v3104
  %v5581 = vpack.c.b16 %v3109, %v3105
  %v5582 = vpack.c.b16 %v3114, %v3110
  %v5583 = vpack.c.b16 %v3115, %v3111
  %v5584 = vpack.c.b16 %v3116, %v3112
  %v5585 = vpack.c.b16 %v3117, %v3113
  %v5586 = vpack.c.b16 %v3122, %v3118
  %v5587 = vpack.c.b16 %v3123, %v3119
  %v5588 = vpack.c.b16 %v3124, %v3120
  %v5589 = vpack.c.b16 %v3125, %v3121
  %v5590 = vpack.c.b16 %v3130, %v3126
  %v5591 = vpack.c.b16 %v3131, %v3127
  %v5592 = vpack.c.b16 %v3132, %v3128
  %v5593 = vpack.c.b16 %v3133, %v3129
  %v5594 = vpack.c.b16 %v3138, %v3134
  %v5595 = vpack.c.b16 %v3139, %v3135
  %v5596 = vpack.c.b16 %v3140, %v3136
  %v5597 = vpack.c.b16 %v3141, %v3137
  %v5598 = vpack.c.b16 %v3146, %v3142
  %v5599 = vpack.c.b16 %v3147, %v3143
  %v5600 = vpack.c.b16 %v3148, %v3144
  %v5601 = vpack.c.b16 %v3149, %v3145
  %v5602 = vpack.c.b16 %v3154, %v3150
  %v5603 = vpack.c.b16 %v3155, %v3151
  %v5604 = vpack.c.b16 %v3156, %v3152
  %v5605 = vpack.c.b16 %v3157, %v3153
  %v5606 = vpack.c.b16 %v3162, %v3158
  %v5607 = vpack.c.b16 %v3163, %v3159
  %v5608 = vpack.c.b16 %v3164, %v3160
  %v5609 = vpack.c.b16 %v3165, %v3161
  %v5610 = vpack.c.b16 %v3170, %v3166
  %v5611 = vpack.c.b16 %v3171, %v3167
  %v5612 = vpack.c.b16 %v3172, %v3168
  %v5613 = vpack.c.b16 %v3173, %v3169
  %v5614 = vpack.c.b16 %v3178, %v3174
  %v5615 = vpack.c.b16 %v3179, %v3175
  %v5616 = vpack.c.b16 %v3180, %v3176
  %v5617 = vpack.c.b16 %v3181, %v3177
  %v5618 = vpack.c.b16 %v3186, %v3182
  %v5619 = vpack.c.b16 %v3187, %v3183
  %v5620 = vpack.c.b16 %v3188, %v3184
  %v5621 = vpack.c.b16 %v3189, %v3185
  %v5622 = vpack.c.b16 %v3194, %v3190
  %v5623 = vpack.c.b16 %v3195, %v3191
  %v5624 = vpack.c.b16 %v3196, %v3192
  %v5625 = vpack.c.b16 %v3197, %v3193
  %v5626 = vpack.c.b16 %v3202, %v3198
  %v5627 = vpack.c.b16 %v3203, %v3199
  %v5628 = vpack.c.b16 %v3204, %v3200
  %v5629 = vpack.c.b16 %v3205, %v3201
  %v5630 = vpack.c.b16 %v3210, %v3206
  %v5631 = vpack.c.b16 %v3211, %v3207
  %v5632 = vpack.c.b16 %v3212, %v3208
  %v5633 = vpack.c.b16 %v3213, %v3209
  %v5634 = vpack.c.b16 %v3218, %v3214
  %v5635 = vpack.c.b16 %v3219, %v3215
  %v5636 = vpack.c.b16 %v3220, %v3216
  %v5637 = vpack.c.b16 %v3221, %v3217
  %v5638 = vpack.c.b16 %v3226, %v3222
  %v5639 = vpack.c.b16 %v3227, %v3223
  %v5640 = vpack.c.b16 %v3228, %v3224
  %v5641 = vpack.c.b16 %v3229, %v3225
  %v5642 = vpack.c.b16 %v3234, %v3230
  %v5643 = vpack.c.b16 %v3235, %v3231
  %v5644 = vpack.c.b16 %v3236, %v3232
  %v5645 = vpack.c.b16 %v3237, %v3233
  %v5646 = vpack.c.b16 %v3242, %v3238
  %v5647 = vpack.c.b16 %v3243, %v3239
  %v5648 = vpack.c.b16 %v3244, %v3240
  %v5649 = vpack.c.b16 %v3245, %v3241
  %v5650 = vpack.c.b16 %v3250, %v3246
  %v5651 = vpack.c.b16 %v3251, %v3247
  %v5652 = vpack.c.b16 %v3252, %v3248
  %v5653 = vpack.c.b16 %v3253, %v3249
  %v5654 = vpack.c.b16 %v3258, %v3254
  %v5655 = vpack.c.b16 %v3259, %v3255
  %v5656 = vpack.c.b16 %v3260, %v3256
  %v5657 = vpack.c.b16 %v3261, %v3257
  %v5658 = vpack.c.b16 %v3266, %v3262
  %v5659 = vpack.c.b16 %v3267, %v3263
  %v5660 = vpack.c.b16 %v3268, %v3264
  %v5661 = vpack.c.b16 %v3269, %v3265
  %v5662 = vpack.c.b16 %v3274, %v3270
  %v5663 = vpack.c.b16 %v3275, %v3271
  %v5664 = vpack.c.b16 %v3276, %v3272
  %v5665 = vpack.c.b16 %v3277, %v3273
  %v5666 = vpack.c.b16 %v3282, %v3278
  %v5667 = vpack.c.b16 %v3283, %v3279
  %v5668 = vpack.c.b16 %v3284, %v3280
  %v5669 = vpack.c.b16 %v3285, %v3281
  %v5670 = vpack.c.b16 %v3290, %v3286
  %v5671 = vpack.c.b16 %v3291, %v3287
  %v5672 = vpack.c.b16 %v3292, %v3288
  %v5673 = vpack.c.b16 %v3293, %v3289
  %v5674 = vpack.c.b16 %v3298, %v3294
  %v5675 = vpack.c.b16 %v3299, %v3295
  %v5676 = vpack.c.b16 %v3300, %v3296
  %v5677 = vpack.c.b16 %v3301, %v3297
  %v5678 = vpack.c.b16 %v3306, %v3302
  %v5679 = vpack.c.b16 %v3307, %v3303
  %v5680 = vpack.c.b16 %v3308, %v3304
  %v5681 = vpack.c.b16 %v3309, %v3305
  %v5682 = vpack.c.b16 %v3314, %v3310
  %v5683 = vpack.c.b16 %v3315, %v3311
  %v5684 = vpack.c.b16 %v3316, %v3312
  %v5685 = vpack.c.b16 %v3317, %v3313
  %v5686 = vpack.c.b16 %v3322, %v3318
  %v5687 = vpack.c.b16 %v3323, %v3319
  %v5688 = vpack.c.b16 %v3324, %v3320
  %v5689 = vpack.c.b16 %v3325, %v3321
  %v5690 = vpack.c.b16 %v3330, %v3326
  %v5691 = vpack.c.b16 %v3331, %v3327
  %v5692 = vpack.c.b16 %v3332, %v3328
  %v5693 = vpack.c.b16 %v3333, %v3329
  %v5694 = vpack.c.b16 %v3338, %v3334
  %v5695 = vpack.c.b16 %v3339, %v3335
  %v5696 = vpack.c.b16 %v3340, %v3336
  %v5697 = vpack.c.b16 %v3341, %v3337
  %v5698 = vpack.c.b16 %v3346, %v3342
  %v5699 = vpack.c.b16 %v3347, %v3343
  %v5700 = vpack.c.b16 %v3348, %v3344
  %v5701 = vpack.c.b16 %v3349, %v3345
  %v5702 = vpack.c.b16 %v3354, %v3350
  %v5703 = vpack.c.b16 %v3355, %v3351
  %v5704 = vpack.c.b16 %v3356, %v3352
  %v5705 = vpack.c.b16 %v3357, %v3353
  %v5706 = vpack.c.b16 %v3362, %v3358
  %v5707 = vpack.c.b16 %v3363, %v3359
  %v5708 = vpack.c.b16 %v3364, %v3360
  %v5709 = vpack.c.b16 %v3365, %v3361
  %v5710 = vpack.c.b16 %v3370, %v3366
  %v5711 = vpack.c.b16 %v3371, %v3367
  %v5712 = vpack.c.b16 %v3372, %v3368
  %v5713 = vpack.c.b16 %v3373, %v3369
  %v5714 = vpack.c.b16 %v3378, %v3374
  %v5715 = vpack.c.b16 %v3379, %v3375
  %v5716 = vpack.c.b16 %v3380, %v3376
  %v5717 = vpack.c.b16 %v3381, %v3377
  %v5718 = vpack.c.b16 %v3386, %v3382
  %v5719 = vpack.c.b16 %v3387, %v3383
  %v5720 = vpack.c.b16 %v3388, %v3384
  %v5721 = vpack.c.b16 %v3389, %v3385
  %v5722 = vpack.c.b16 %v3394, %v3390
  %v5723 = vpack.c.b16 %v3395, %v3391
  %v5724 = vpack.c.b16 %v3396, %v3392
  %v5725 = vpack.c.b16 %v3397, %v3393
  %v5726 = vpack.c.b16 %v3402, %v3398
  %v5727 = vpack.c.b16 %v3403, %v3399
  %v5728 = vpack.c.b16 %v3404, %v3400
  %v5729 = vpack.c.b16 %v3405, %v3401
  %v5730 = vpack.c.b16 %v3410, %v3406
  %v5731 = vpack.c.b16 %v3411, %v3407
  %v5732 = vpack.c.b16 %v3412, %v3408
  %v5733 = vpack.c.b16 %v3413, %v3409
  %v5734 = vpack.c.b16 %v3418, %v3414
  %v5735 = vpack.c.b16 %v3419, %v3415
  %v5736 = vpack.c.b16 %v3420, %v3416
  %v5737 = vpack.c.b16 %v3421, %v3417
  %v5738 = vpack.c.b16 %v3426, %v3422
  %v5739 = vpack.c.b16 %v3427, %v3423
  %v5740 = vpack.c.b16 %v3428, %v3424
  %v5741 = vpack.c.b16 %v3429, %v3425
  %v5742 = vpack.c.b16 %v3434, %v3430
  %v5743 = vpack.c.b16 %v3435, %v3431
  %v5744 = vpack.c.b16 %v3436, %v3432
  %v5745 = vpack.c.b16 %v3437, %v3433
  %v5746 = vpack.c.b16 %v3442, %v3438
  %v5747 = vpack.c.b16 %v3443, %v3439
  %v5748 = vpack.c.b16 %v3444, %v3440
  %v5749 = vpack.c.b16 %v3445, %v3441
  %v5750 = vpack.c.b16 %v3450, %v3446
  %v5751 = vpack.c.b16 %v3451, %v3447
  %v5752 = vpack.c.b16 %v3452, %v3448
  %v5753 = vpack.c.b16 %v3453, %v3449
  %v5754 = vpack.c.b16 %v3458, %v3454
  %v5755 = vpack.c.b16 %v3459, %v3455
  %v5756 = vpack.c.b16 %v3460, %v3456
  %v5757 = vpack.c.b16 %v3461, %v3457
  %v5758 = vpack.c.b16 %v3466, %v3462
  %v5759 = vpack.c.b16 %v3467, %v3463
  %v5760 = vpack.c.b16 %v3468, %v3464
  %v5761 = vpack.c.b16 %v3469, %v3465
  %v5762 = vpack.c.b16 %v3474, %v3470
  %v5763 = vpack.c.b16 %v3475, %v3471
  %v5764 = vpack.c.b16 %v3476, %v3472
  %v5765 = vpack.c.b16 %v3477, %v3473
  %v5766 = vpack.c.b16 %v3482, %v3478
  %v5767 = vpack.c.b16 %v3483, %v3479
  %v5768 = vpack.c.b16 %v3484, %v3480
  %v5769 = vpack.c.b16 %v3485, %v3481
  %v5770 = vpack.c.b16 %v3490, %v3486
  %v5771 = vpack.c.b16 %v3491, %v3487
  %v5772 = vpack.c.b16 %v3492, %v3488
  %v5773 = vpack.c.b16 %v3493, %v3489
  %v5774 = vpack.c.b16 %v3498, %v3494
  %v5775 = vpack.c.b16 %v3499, %v3495
  %v5776 = vpack.c.b16 %v3500, %v3496
  %v5777 = vpack.c.b16 %v3501, %v3497
  %v5778 = vpack.c.b16 %v3506, %v3502
  %v5779 = vpack.c.b16 %v3507, %v3503
  %v5780 = vpack.c.b16 %v3508, %v3504
  %v5781 = vpack.c.b16 %v3509, %v3505
  %v5782 = vpack.c.b16 %v3514, %v3510
  %v5783 = vpack.c.b16 %v3515, %v3511
  %v5784 = vpack.c.b16 %v3516, %v3512
  %v5785 = vpack.c.b16 %v3517, %v3513
  %v5786 = vpack.c.b16 %v3522, %v3518
  %v5787 = vpack.c.b16 %v3523, %v3519
  %v5788 = vpack.c.b16 %v3524, %v3520
  %v5789 = vpack.c.b16 %v3525, %v3521
  %v5790 = vpack.c.b16 %v3530, %v3526
  %v5791 = vpack.c.b16 %v3531, %v3527
  %v5792 = vpack.c.b16 %v3532, %v3528
  %v5793 = vpack.c.b16 %v3533, %v3529
  %v5794 = vpack.c.b16 %v3538, %v3534
  %v5795 = vpack.c.b16 %v3539, %v3535
  %v5796 = vpack.c.b16 %v3540, %v3536
  %v5797 = vpack.c.b16 %v3541, %v3537
  %v5798 = vpack.c.b16 %v3546, %v3542
  %v5799 = vpack.c.b16 %v3547, %v3543
  %v5800 = vpack.c.b16 %v3548, %v3544
  %v5801 = vpack.c.b16 %v3549, %v3545
  %v5802 = vpack.c.b16 %v3554, %v3550
  %v5803 = vpack.c.b16 %v3555, %v3551
  %v5804 = vpack.c.b16 %v3556, %v3552
  %v5805 = vpack.c.b16 %v3557, %v3553
  %v5806 = vpack.c.b16 %v3562, %v3558
  %v5807 = vpack.c.b16 %v3563, %v3559
  %v5808 = vpack.c.b16 %v3564, %v3560
  %v5809 = vpack.c.b16 %v3565, %v3561
  %v5810 = vpack.c.b16 %v3570, %v3566
  %v5811 = vpack.c.b16 %v3571, %v3567
  %v5812 = vpack.c.b16 %v3572, %v3568
  %v5813 = vpack.c.b16 %v3573, %v3569
  %v5814 = vpack.c.b16 %v3578, %v3574
  %v5815 = vpack.c.b16 %v3579, %v3575
  %v5816 = vpack.c.b16 %v3580, %v3576
  %v5817 = vpack.c.b16 %v3581, %v3577
  %v5818 = vpack.c.b16 %v3586, %v3582
  %v5819 = vpack.c.b16 %v3587, %v3583
  %v5820 = vpack.c.b16 %v3588, %v3584
  %v5821 = vpack.c.b16 %v3589, %v3585
  %v5822 = vpack.c.b16 %v3594, %v3590
  %v5823 = vpack.c.b16 %v3595, %v3591
  %v5824 = vpack.c.b16 %v3596, %v3592
  %v5825 = vpack.c.b16 %v3597, %v3593
  %v5826 = vpack.c.b16 %v3602, %v3598
  %v5827 = vpack.c.b16 %v3603, %v3599
  %v5828 = vpack.c.b16 %v3604, %v3600
  %v5829 = vpack.c.b16 %v3605, %v3601
  %v5830 = vpack.c.b16 %v3610, %v3606
  %v5831 = vpack.c.b16 %v3611, %v3607
  %v5832 = vpack.c.b16 %v3612, %v3608
  %v5833 = vpack.c.b16 %v3613, %v3609
  %v5834 = vpack.c.b16 %v3618, %v3614
  %v5835 = vpack.c.b16 %v3619, %v3615
  %v5836 = vpack.c.b16 %v3620, %v3616
  %v5837 = vpack.c.b16 %v3621, %v3617
  %v5838 = vpack.c.b16 %v3626, %v3622
  %v5839 = vpack.c.b16 %v3627, %v3623
  %v5840 = vpack.c.b16 %v3628, %v3624
  %v5841 = vpack.c.b16 %v3629, %v3625
  %v5842 = vpack.c.b16 %v3634, %v3630
  %v5843 = vpack.c.b16 %v3635, %v3631
  %v5844 = vpack.c.b16 %v3636, %v3632
  %v5845 = vpack.c.b16 %v3637, %v3633
  %v5846 = vpack.c.b16 %v3642, %v3638
  %v5847 = vpack.c.b16 %v3643, %v3639
  %v5848 = vpack.c.b16 %v3644, %v3640
  %v5849 = vpack.c.b16 %v3645, %v3641
  %v5850 = vpack.c.b16 %v3650, %v3646
  %v5851 = vpack.c.b16 %v3651, %v3647
  %v5852 = vpack.c.b16 %v3652, %v3648
  %v5853 = vpack.c.b16 %v3653, %v3649
  %v5854 = vpack.c.b16 %v3658, %v3654
  %v5855 = vpack.c.b16 %v3659, %v3655
  %v5856 = vpack.c.b16 %v3660, %v3656
  %v5857 = vpack.c.b16 %v3661, %v3657
  %v5858 = vpack.c.b16 %v3666, %v3662
  %v5859 = vpack.c.b16 %v3667, %v3663
  %v5860 = vpack.c.b16 %v3668, %v3664
  %v5861 = vpack.c.b16 %v3669, %v3665
  %v5862 = vpack.c.b16 %v3674, %v3670
  %v5863 = vpack.c.b16 %v3675, %v3671
  %v5864 = vpack.c.b16 %v3676, %v3672
  %v5865 = vpack.c.b16 %v3677, %v3673
  %v5866 = vpack.c.b16 %v3682, %v3678
  %v5867 = vpack.c.b16 %v3683, %v3679
  %v5868 = vpack.c.b16 %v3684, %v3680
  %v5869 = vpack.c.b16 %v3685, %v3681
  %v5870 = vpack.c.b16 %v3690, %v3686
  %v5871 = vpack.c.b16 %v3691, %v3687
  %v5872 = vpack.c.b16 %v3692, %v3688
  %v5873 = vpack.c.b16 %v3693, %v3689
  %v5874 = vpack.c.b16 %v3698, %v3694
  %v5875 = vpack.c.b16 %v3699, %v3695
  %v5876 = vpack.c.b16 %v3700, %v3696
  %v5877 = vpack.c.b16 %v3701, %v3697
  %v5878 = vpack.c.b16 %v3706, %v3702
  %v5879 = vpack.c.b16 %v3707, %v3703
  %v5880 = vpack.c.b16 %v3708, %v3704
  %v5881 = vpack.c.b16 %v3709, %v3705
  %v5882 = vpack.c.b16 %v3714, %v3710
  %v5883 = vpack.c.b16 %v3715, %v3711
  %v5884 = vpack.c.b16 %v3716, %v3712
  %v5885 = vpack.c.b16 %v3717, %v3713
  %v5886 = vpack.c.b16 %v3722, %v3718
  %v5887 = vpack.c.b16 %v3723, %v3719
  %v5888 = vpack.c.b16 %v3724, %v3720
  %v5889 = vpack.c.b16 %v3725, %v3721
  %v5890 = vpack.c.b16 %v3730, %v3726
  %v5891 = vpack.c.b16 %v3731, %v3727
  %v5892 = vpack.c.b16 %v3732, %v3728
  %v5893 = vpack.c.b16 %v3733, %v3729
  %v5894 = vpack.c.b16 %v3738, %v3734
  %v5895 = vpack.c.b16 %v3739, %v3735
  %v5896 = vpack.c.b16 %v3740, %v3736
  %v5897 = vpack.c.b16 %v3741, %v3737
  %v5898 = vpack.c.b16 %v3746, %v3742
  %v5899 = vpack.c.b16 %v3747, %v3743
  %v5900 = vpack.c.b16 %v3748, %v3744
  %v5901 = vpack.c.b16 %v3749, %v3745
  %v5902 = vpack.c.b16 %v3754, %v3750
  %v5903 = vpack.c.b16 %v3755, %v3751
  %v5904 = vpack.c.b16 %v3756, %v3752
  %v5905 = vpack.c.b16 %v3757, %v3753
  %v5906 = vpack.c.b16 %v3762, %v3758
  %v5907 = vpack.c.b16 %v3763, %v3759
  %v5908 = vpack.c.b16 %v3764, %v3760
  %v5909 = vpack.c.b16 %v3765, %v3761
  %v5910 = vpack.c.b16 %v3770, %v3766
  %v5911 = vpack.c.b16 %v3771, %v3767
  %v5912 = vpack.c.b16 %v3772, %v3768
  %v5913 = vpack.c.b16 %v3773, %v3769
  %v5914 = vpack.c.b16 %v3778, %v3774
  %v5915 = vpack.c.b16 %v3779, %v3775
  %v5916 = vpack.c.b16 %v3780, %v3776
  %v5917 = vpack.c.b16 %v3781, %v3777
  %v5918 = vpack.c.b16 %v3786, %v3782
  %v5919 = vpack.c.b16 %v3787, %v3783
  %v5920 = vpack.c.b16 %v3788, %v3784
  %v5921 = vpack.c.b16 %v3789, %v3785
  %v5922 = vpack.c.b16 %v3794, %v3790
  %v5923 = vpack.c.b16 %v3795, %v3791
  %v5924 = vpack.c.b16 %v3796, %v3792
  %v5925 = vpack.c.b16 %v3797, %v3793
  %v5926 = vpack.c.b16 %v3802, %v3798
  %v5927 = vpack.c.b16 %v3803, %v3799
  %v5928 = vpack.c.b16 %v3804, %v3800
  %v5929 = vpack.c.b16 %v3805, %v3801
  %v5930 = vpack.c.b16 %v3810, %v3806
  %v5931 = vpack.c.b16 %v3811, %v3807
  %v5932 = vpack.c.b16 %v3812, %v3808
  %v5933 = vpack.c.b16 %v3813, %v3809
  %v5934 = vpack.c.b16 %v3818, %v3814
  %v5935 = vpack.c.b16 %v3819, %v3815
  %v5936 = vpack.c.b16 %v3820, %v3816
  %v5937 = vpack.c.b16 %v3821, %v3817
  %v5938 = vpack.c.b16 %v3826, %v3822
  %v5939 = vpack.c.b16 %v3827, %v3823
  %v5940 = vpack.c.b16 %v3828, %v3824
  %v5941 = vpack.c.b16 %v3829, %v3825
  %v5942 = vpack.c.b16 %v3834, %v3830
  %v5943 = vpack.c.b16 %v3835, %v3831
  %v5944 = vpack.c.b16 %v3836, %v3832
  %v5945 = vpack.c.b16 %v3837, %v3833
  %v5946 = vpack.c.b16 %v3842, %v3838
  %v5947 = vpack.c.b16 %v3843, %v3839
  %v5948 = vpack.c.b16 %v3844, %v3840
  %v5949 = vpack.c.b16 %v3845, %v3841
  %v5950 = vpack.c.b16 %v3850, %v3846
  %v5951 = vpack.c.b16 %v3851, %v3847
  %v5952 = vpack.c.b16 %v3852, %v3848
  %v5953 = vpack.c.b16 %v3853, %v3849
  %v5954 = vpack.c.b16 %v3858, %v3854
  %v5955 = vpack.c.b16 %v3859, %v3855
  %v5956 = vpack.c.b16 %v3860, %v3856
  %v5957 = vpack.c.b16 %v3861, %v3857
  %v5958 = vpack.c.b16 %v3866, %v3862
  %v5959 = vpack.c.b16 %v3867, %v3863
  %v5960 = vpack.c.b16 %v3868, %v3864
  %v5961 = vpack.c.b16 %v3869, %v3865
  %v5962 = vpack.c.b16 %v3874, %v3870
  %v5963 = vpack.c.b16 %v3875, %v3871
  %v5964 = vpack.c.b16 %v3876, %v3872
  %v5965 = vpack.c.b16 %v3877, %v3873
  %v5966 = vpack.c.b16 %v3882, %v3878
  %v5967 = vpack.c.b16 %v3883, %v3879
  %v5968 = vpack.c.b16 %v3884, %v3880
  %v5969 = vpack.c.b16 %v3885, %v3881
  %v5970 = vpack.c.b16 %v3890, %v3886
  %v5971 = vpack.c.b16 %v3891, %v3887
  %v5972 = vpack.c.b16 %v3892, %v3888
  %v5973 = vpack.c.b16 %v3893, %v3889
  %v5974 = vpack.c.b16 %v3898, %v3894
  %v5975 = vpack.c.b16 %v3899, %v3895
  %v5976 = vpack.c.b16 %v3900, %v3896
  %v5977 = vpack.c.b16 %v3901, %v3897
  %v5978 = vpack.c.b16 %v3906, %v3902
  %v5979 = vpack.c.b16 %v3907, %v3903
  %v5980 = vpack.c.b16 %v3908, %v3904
  %v5981 = vpack.c.b16 %v3909, %v3905
  %v5982 = vpack.c.b16 %v3914, %v3910
  %v5983 = vpack.c.b16 %v3915, %v3911
  %v5984 = vpack.c.b16 %v3916, %v3912
  %v5985 = vpack.c.b16 %v3917, %v3913
  %v5986 = vpack.c.b16 %v3922, %v3918
  %v5987 = vpack.c.b16 %v3923, %v3919
  %v5988 = vpack.c.b16 %v3924, %v3920
  %v5989 = vpack.c.b16 %v3925, %v3921
  %v5990 = vpack.c.b16 %v3930, %v3926
  %v5991 = vpack.c.b16 %v3931, %v3927
  %v5992 = vpack.c.b16 %v3932, %v3928
  %v5993 = vpack.c.b16 %v3933, %v3929
  %v5994 = vpack.c.b16 %v3938, %v3934
  %v5995 = vpack.c.b16 %v3939, %v3935
  %v5996 = vpack.c.b16 %v3940, %v3936
  %v5997 = vpack.c.b16 %v3941, %v3937
  %v5998 = vpack.c.b16 %v3946, %v3942
  %v5999 = vpack.c.b16 %v3947, %v3943
  %v6000 = vpack.c.b16 %v3948, %v3944
  %v6001 = vpack.c.b16 %v3949, %v3945
  %v6002 = vpack.c.b16 %v3954, %v3950
  %v6003 = vpack.c.b16 %v3955, %v3951
  %v6004 = vpack.c.b16 %v3956, %v3952
  %v6005 = vpack.c.b16 %v3957, %v3953
  %v6006 = vpack.c.b16 %v3962, %v3958
  %v6007 = vpack.c.b16 %v3963, %v3959
  %v6008 = vpack.c.b16 %v3964, %v3960
  %v6009 = vpack.c.b16 %v3965, %v3961
  %v6010 = vpack.c.b16 %v3970, %v3966
  %v6011 = vpack.c.b16 %v3971, %v3967
  %v6012 = vpack.c.b16 %v3972, %v3968
  %v6013 = vpack.c.b16 %v3973, %v3969
  %v6014 = vpack.c.b16 %v3978, %v3974
  %v6015 = vpack.c.b16 %v3979, %v3975
  %v6016 = vpack.c.b16 %v3980, %v3976
  %v6017 = vpack.c.b16 %v3981, %v3977
  %v6018 = vpack.c.b16 %v3986, %v3982
  %v6019 = vpack.c.b16 %v3987, %v3983
  %v6020 = vpack.c.b16 %v3988, %v3984
  %v6021 = vpack.c.b16 %v3989, %v3985
  %v6022 = vpack.c.b16 %v3994, %v3990
  %v6023 = vpack.c.b16 %v3995, %v3991
  %v6024 = vpack.c.b16 %v3996, %v3992
  %v6025 = vpack.c.b16 %v3997, %v3993
  %v6026 = vpack.c.b16 %v4002, %v3998
  %v6027 = vpack.c.b16 %v4003, %v3999
  %v6028 = vpack.c.b16 %v4004, %v4000
  %v6029 = vpack.c.b16 %v4005, %v4001
  %v6030 = vpack.c.b16 %v4010, %v4006
  %v6031 = vpack.c.b16 %v4011, %v4007
  %v6032 = vpack.c.b16 %v4012, %v4008
  %v6033 = vpack.c.b16 %v4013, %v4009
  %v6034 = vpack.c.b16 %v4018, %v4014
  %v6035 = vpack.c.b16 %v4019, %v4015
  %v6036 = vpack.c.b16 %v4020, %v4016
  %v6037 = vpack.c.b16 %v4021, %v4017
  %v6038 = vpack.c.b16 %v4026, %v4022
  %v6039 = vpack.c.b16 %v4027, %v4023
  %v6040 = vpack.c.b16 %v4028, %v4024
  %v6041 = vpack.c.b16 %v4029, %v4025
  %v6042 = vpack.c.b16 %v4034, %v4030
  %v6043 = vpack.c.b16 %v4035, %v4031
  %v6044 = vpack.c.b16 %v4036, %v4032
  %v6045 = vpack.c.b16 %v4037, %v4033
  %v6046 = vpack.c.b16 %v4042, %v4038
  %v6047 = vpack.c.b16 %v4043, %v4039
  %v6048 = vpack.c.b16 %v4044, %v4040
  %v6049 = vpack.c.b16 %v4045, %v4041
  %v6050 = vpack.c.b16 %v4050, %v4046
  %v6051 = vpack.c.b16 %v4051, %v4047
  %v6052 = vpack.c.b16 %v4052, %v4048
  %v6053 = vpack.c.b16 %v4053, %v4049
  %v6054 = vpack.c.b16 %v4058, %v4054
  %v6055 = vpack.c.b16 %v4059, %v4055
  %v6056 = vpack.c.b16 %v4060, %v4056
  %v6057 = vpack.c.b16 %v4061, %v4057
  %v6058 = vpack.c.b16 %v4066, %v4062
  %v6059 = vpack.c.b16 %v4067, %v4063
  %v6060 = vpack.c.b16 %v4068, %v4064
  %v6061 = vpack.c.b16 %v4069, %v4065
  %v6062 = vpack.c.b16 %v4074, %v4070
  %v6063 = vpack.c.b16 %v4075, %v4071
  %v6064 = vpack.c.b16 %v4076, %v4072
  %v6065 = vpack.c.b16 %v4077, %v4073
  %v6066 = vpack.c.b16 %v4082, %v4078
  %v6067 = vpack.c.b16 %v4083, %v4079
  %v6068 = vpack.c.b16 %v4084, %v4080
  %v6069 = vpack.c.b16 %v4085, %v4081
  %v6070 = vpack.c.b16 %v4090, %v4086
  %v6071 = vpack.c.b16 %v4091, %v4087
  %v6072 = vpack.c.b16 %v4092, %v4088
  %v6073 = vpack.c.b16 %v4093, %v4089
  %v6074 = vpack.c.b16 %v4098, %v4094
  %v6075 = vpack.c.b16 %v4099, %v4095
  %v6076 = vpack.c.b16 %v4100, %v4096
  %v6077 = vpack.c.b16 %v4101, %v4097
  %v6078 = vpack.c.b16 %v4106, %v4102
  %v6079 = vpack.c.b16 %v4107, %v4103
  %v6080 = vpack.c.b16 %v4108, %v4104
  %v6081 = vpack.c.b16 %v4109, %v4105
  %v6082 = vpack.c.b16 %v4114, %v4110
  %v6083 = vpack.c.b16 %v4115, %v4111
  %v6084 = vpack.c.b16 %v4116, %v4112
  %v6085 = vpack.c.b16 %v4117, %v4113
  %v6086 = vpack.c.b16 %v4122, %v4118
  %v6087 = vpack.c.b16 %v4123, %v4119
  %v6088 = vpack.c.b16 %v4124, %v4120
  %v6089 = vpack.c.b16 %v4125, %v4121
  %v6090 = vpack.c.b16 %v4130, %v4126
  %v6091 = vpack.c.b16 %v4131, %v4127
  %v6092 = vpack.c.b16 %v4132, %v4128
  %v6093 = vpack.c.b16 %v4133, %v4129
  %v6094 = vpack.c.b16 %v4138, %v4134
  %v6095 = vpack.c.b16 %v4139, %v4135
  %v6096 = vpack.c.b16 %v4140, %v4136
  %v6097 = vpack.c.b16 %v4141, %v4137
  %v6098 = vpack.c.b16 %v4146, %v4142
  %v6099 = vpack.c.b16 %v4147, %v4143
  %v6100 = vpack.c.b16 %v4148, %v4144
  %v6101 = vpack.c.b16 %v4149, %v4145
  %v6102 = vpack.c.b16 %v4154, %v4150
  %v6103 = vpack.c.b16 %v4155, %v4151
  %v6104 = vpack.c.b16 %v4156, %v4152
  %v6105 = vpack.c.b16 %v4157, %v4153
  %v6106 = vpack.c.b16 %v4162, %v4158
  %v6107 = vpack.c.b16 %v4163, %v4159
  %v6108 = vpack.c.b16 %v4164, %v4160
  %v6109 = vpack.c.b16 %v4165, %v4161
  %v6110 = vpack.c.b16 %v4170, %v4166
  %v6111 = vpack.c.b16 %v4171, %v4167
  %v6112 = vpack.c.b16 %v4172, %v4168
  %v6113 = vpack.c.b16 %v4173, %v4169
  %v6114 = vpack.c.b16 %v4178, %v4174
  %v6115 = vpack.c.b16 %v4179, %v4175
  %v6116 = vpack.c.b16 %v4180, %v4176
  %v6117 = vpack.c.b16 %v4181, %v4177
  %v6118 = vpack.c.b16 %v4186, %v4182
  %v6119 = vpack.c.b16 %v4187, %v4183
  %v6120 = vpack.c.b16 %v4188, %v4184
  %v6121 = vpack.c.b16 %v4189, %v4185
  %v6122 = vpack.c.b16 %v4194, %v4190
  %v6123 = vpack.c.b16 %v4195, %v4191
  %v6124 = vpack.c.b16 %v4196, %v4192
  %v6125 = vpack.c.b16 %v4197, %v4193
  %v6126 = vpack.c.b16 %v4202, %v4198
  %v6127 = vpack.c.b16 %v4203, %v4199
  %v6128 = vpack.c.b16 %v4204, %v4200
  %v6129 = vpack.c.b16 %v4205, %v4201
  %v6130 = vpack.c.b16 %v4210, %v4206
  %v6131 = vpack.c.b16 %v4211, %v4207
  %v6132 = vpack.c.b16 %v4212, %v4208
  %v6133 = vpack.c.b16 %v4213, %v4209
  %v6134 = vpack.c.b16 %v4218, %v4214
  %v6135 = vpack.c.b16 %v4219, %v4215
  %v6136 = vpack.c.b16 %v4220, %v4216
  %v6137 = vpack.c.b16 %v4221, %v4217
  %v6138 = vpack.c.b16 %v4226, %v4222
  %v6139 = vpack.c.b16 %v4227, %v4223
  %v6140 = vpack.c.b16 %v4228, %v4224
  %v6141 = vpack.c.b16 %v4229, %v4225
  %v6142 = vpack.c.b16 %v4234, %v4230
  %v6143 = vpack.c.b16 %v4235, %v4231
  %v6144 = vpack.c.b16 %v4236, %v4232
  %v6145 = vpack.c.b16 %v4237, %v4233
  %v6146 = vpack.c.b16 %v4242, %v4238
  %v6147 = vpack.c.b16 %v4243, %v4239
  %v6148 = vpack.c.b16 %v4244, %v4240
  %v6149 = vpack.c.b16 %v4245, %v4241
  %v6150 = vpack.c.b16 %v4250, %v4246
  %v6151 = vpack.c.b16 %v4251, %v4247
  %v6152 = vpack.c.b16 %v4252, %v4248
  %v6153 = vpack.c.b16 %v4253, %v4249
  %v6154 = vpack.c.b16 %v4258, %v4254
  %v6155 = vpack.c.b16 %v4259, %v4255
  %v6156 = vpack.c.b16 %v4260, %v4256
  %v6157 = vpack.c.b16 %v4261, %v4257
  %v6158 = vpack.c.b16 %v4266, %v4262
  %v6159 = vpack.c.b16 %v4267, %v4263
  %v6160 = vpack.c.b16 %v4268, %v4264
  %v6161 = vpack.c.b16 %v4269, %v4265
  %v6162 = vpack.c.b16 %v4274, %v4270
  %v6163 = vpack.c.b16 %v4275, %v4271
  %v6164 = vpack.c.b16 %v4276, %v4272
  %v6165 = vpack.c.b16 %v4277, %v4273
  %v6166 = vpack.c.b16 %v4282, %v4278
  %v6167 = vpack.c.b16 %v4283, %v4279
  %v6168 = vpack.c.b16 %v4284, %v4280
  %v6169 = vpack.c.b16 %v4285, %v4281
  %v6170 = vpack.c.b16 %v4290, %v4286
  %v6171 = vpack.c.b16 %v4291, %v4287
  %v6172 = vpack.c.b16 %v4292, %v4288
  %v6173 = vpack.c.b16 %v4293, %v4289
  %v6174 = vpack.c.b16 %v4298, %v4294
  %v6175 = vpack.c.b16 %v4299, %v4295
  %v6176 = vpack.c.b16 %v4300, %v4296
  %v6177 = vpack.c.b16 %v4301, %v4297
  %v6178 = vpack.c.b16 %v4306, %v4302
  %v6179 = vpack.c.b16 %v4307, %v4303
  %v6180 = vpack.c.b16 %v4308, %v4304
  %v6181 = vpack.c.b16 %v4309, %v4305
  %v6182 = vpack.c.b16 %v4314, %v4310
  %v6183 = vpack.c.b16 %v4315, %v4311
  %v6184 = vpack.c.b16 %v4316, %v4312
  %v6185 = vpack.c.b16 %v4317, %v4313
  %v6186 = vpack.c.b16 %v4322, %v4318
  %v6187 = vpack.c.b16 %v4323, %v4319
  %v6188 = vpack.c.b16 %v4324, %v4320
  %v6189 = vpack.c.b16 %v4325, %v4321
  %v6190 = vpack.c.b16 %v4330, %v4326
  %v6191 = vpack.c.b16 %v4331, %v4327
  %v6192 = vpack.c.b16 %v4332, %v4328
  %v6193 = vpack.c.b16 %v4333, %v4329
  %v6194 = vpack.c.b16 %v4338, %v4334
  %v6195 = vpack.c.b16 %v4339, %v4335
  %v6196 = vpack.c.b16 %v4340, %v4336
  %v6197 = vpack.c.b16 %v4341, %v4337
  %v6198 = vpack.c.b16 %v4346, %v4342
  %v6199 = vpack.c.b16 %v4347, %v4343
  %v6200 = vpack.c.b16 %v4348, %v4344
  %v6201 = vpack.c.b16 %v4349, %v4345
  %v6202 = vpack.c.b16 %v4354, %v4350
  %v6203 = vpack.c.b16 %v4355, %v4351
  %v6204 = vpack.c.b16 %v4356, %v4352
  %v6205 = vpack.c.b16 %v4357, %v4353
  %v6206 = vpack.c.b16 %v4362, %v4358
  %v6207 = vpack.c.b16 %v4363, %v4359
  %v6208 = vpack.c.b16 %v4364, %v4360
  %v6209 = vpack.c.b16 %v4365, %v4361
  %v6210 = vpack.c.b16 %v4370, %v4366
  %v6211 = vpack.c.b16 %v4371, %v4367
  %v6212 = vpack.c.b16 %v4372, %v4368
  %v6213 = vpack.c.b16 %v4373, %v4369
  %v6214 = vpack.c.b16 %v4378, %v4374
  %v6215 = vpack.c.b16 %v4379, %v4375
  %v6216 = vpack.c.b16 %v4380, %v4376
  %v6217 = vpack.c.b16 %v4381, %v4377
  %v6218 = vpack.c.b16 %v4386, %v4382
  %v6219 = vpack.c.b16 %v4387, %v4383
  %v6220 = vpack.c.b16 %v4388, %v4384
  %v6221 = vpack.c.b16 %v4389, %v4385
  %v6222 = vpack.c.b16 %v4394, %v4390
  %v6223 = vpack.c.b16 %v4395, %v4391
  %v6224 = vpack.c.b16 %v4396, %v4392
  %v6225 = vpack.c.b16 %v4397, %v4393
  %v6226 = vpack.c.b16 %v4402, %v4398
  %v6227 = vpack.c.b16 %v4403, %v4399
  %v6228 = vpack.c.b16 %v4404, %v4400
  %v6229 = vpack.c.b16 %v4405, %v4401
  %v6230 = vpack.c.b16 %v4410, %v4406
  %v6231 = vpack.c.b16 %v4411, %v4407
  %v6232 = vpack.c.b16 %v4412, %v4408
  %v6233 = vpack.c.b16 %v4413, %v4409
  %v6234 = vpack.c.b16 %v4418, %v4414
  %v6235 = vpack.c.b16 %v4419, %v4415
  %v6236 = vpack.c.b16 %v4420, %v4416
  %v6237 = vpack.c.b16 %v4421, %v4417
  %v6238 = vpack.c.b16 %v4426, %v4422
  %v6239 = vpack.c.b16 %v4427, %v4423
  %v6240 = vpack.c.b16 %v4428, %v4424
  %v6241 = vpack.c.b16 %v4429, %v4425
  %v6242 = vpack.c.b16 %v4434, %v4430
  %v6243 = vpack.c.b16 %v4435, %v4431
  %v6244 = vpack.c.b16 %v4436, %v4432
  %v6245 = vpack.c.b16 %v4437, %v4433
  %v6246 = vpack.c.b16 %v4442, %v4438
  %v6247 = vpack.c.b16 %v4443, %v4439
  %v6248 = vpack.c.b16 %v4444, %v4440
  %v6249 = vpack.c.b16 %v4445, %v4441
  %v6250 = vpack.c.b16 %v4450, %v4446
  %v6251 = vpack.c.b16 %v4451, %v4447
  %v6252 = vpack.c.b16 %v4452, %v4448
  %v6253 = vpack.c.b16 %v4453, %v4449
  %v6254 = vpack.c.b16 %v4458, %v4454
  %v6255 = vpack.c.b16 %v4459, %v4455
  %v6256 = vpack.c.b16 %v4460, %v4456
  %v6257 = vpack.c.b16 %v4461, %v4457
  %v6258 = vpack.c.b16 %v4466, %v4462
  %v6259 = vpack.c.b16 %v4467, %v4463
  %v6260 = vpack.c.b16 %v4468, %v4464
  %v6261 = vpack.c.b16 %v4469, %v4465
  %v6262 = vpack.c.b16 %v4474, %v4470
  %v6263 = vpack.c.b16 %v4475, %v4471
  %v6264 = vpack.c.b16 %v4476, %v4472
  %v6265 = vpack.c.b16 %v4477, %v4473
  %v6266 = vpack.c.b16 %v4482, %v4478
  %v6267 = vpack.c.b16 %v4483, %v4479
  %v6268 = vpack.c.b16 %v4484, %v4480
  %v6269 = vpack.c.b16 %v4485, %v4481
  %v6270 = vpack.c.b16 %v4490, %v4486
  %v6271 = vpack.c.b16 %v4491, %v4487
  %v6272 = vpack.c.b16 %v4492, %v4488
  %v6273 = vpack.c.b16 %v4493, %v4489
  %v6274 = vpack.c.b16 %v4498, %v4494
  %v6275 = vpack.c.b16 %v4499, %v4495
  %v6276 = vpack.c.b16 %v4500, %v4496
  %v6277 = vpack.c.b16 %v4501, %v4497
  %v6278 = vpack.c.b16 %v4506, %v4502
  %v6279 = vpack.c.b16 %v4507, %v4503
  %v6280 = vpack.c.b16 %v4508, %v4504
  %v6281 = vpack.c.b16 %v4509, %v4505
  %v6282 = vpack.c.b16 %v4514, %v4510
  %v6283 = vpack.c.b16 %v4515, %v4511
  %v6284 = vpack.c.b16 %v4516, %v4512
  %v6285 = vpack.c.b16 %v4517, %v4513
  %v6286 = vpack.c.b16 %v4522, %v4518
  %v6287 = vpack.c.b16 %v4523, %v4519
  %v6288 = vpack.c.b16 %v4524, %v4520
  %v6289 = vpack.c.b16 %v4525, %v4521
  %v6290 = vpack.c.b16 %v4530, %v4526
  %v6291 = vpack.c.b16 %v4531, %v4527
  %v6292 = vpack.c.b16 %v4532, %v4528
  %v6293 = vpack.c.b16 %v4533, %v4529
  %v6294 = vpack.c.b16 %v4538, %v4534
  %v6295 = vpack.c.b16 %v4539, %v4535
  %v6296 = vpack.c.b16 %v4540, %v4536
  %v6297 = vpack.c.b16 %v4541, %v4537
  %v6298 = vpack.c.b16 %v4546, %v4542
  %v6299 = vpack.c.b16 %v4547, %v4543
  %v6300 = vpack.c.b16 %v4548, %v4544
  %v6301 = vpack.c.b16 %v4549, %v4545
  %v6302 = vpack.c.b16 %v4554, %v4550
  %v6303 = vpack.c.b16 %v4555, %v4551
  %v6304 = vpack.c.b16 %v4556, %v4552
  %v6305 = vpack.c.b16 %v4557, %v4553
  %v6306 = vpack.c.b16 %v4562, %v4558
  %v6307 = vpack.c.b16 %v4563, %v4559
  %v6308 = vpack.c.b16 %v4564, %v4560
  %v6309 = vpack.c.b16 %v4565, %v4561
  %v6310 = vpack.c.b16 %v4570, %v4566
  %v6311 = vpack.c.b16 %v4571, %v4567
  %v6312 = vpack.c.b16 %v4572, %v4568
  %v6313 = vpack.c.b16 %v4573, %v4569
  %v6314 = vpack.c.b16 %v4578, %v4574
  %v6315 = vpack.c.b16 %v4579, %v4575
  %v6316 = vpack.c.b16 %v4580, %v4576
  %v6317 = vpack.c.b16 %v4581, %v4577
  %v6318 = vpack.c.b16 %v4586, %v4582
  %v6319 = vpack.c.b16 %v4587, %v4583
  %v6320 = vpack.c.b16 %v4588, %v4584
  %v6321 = vpack.c.b16 %v4589, %v4585
  %v6322 = vpack.c.b16 %v4594, %v4590
  %v6323 = vpack.c.b16 %v4595, %v4591
  %v6324 = vpack.c.b16 %v4596, %v4592
  %v6325 = vpack.c.b16 %v4597, %v4593
  %v6326 = vpack.c.b16 %v4602, %v4598
  %v6327 = vpack.c.b16 %v4603, %v4599
  %v6328 = vpack.c.b16 %v4604, %v4600
  %v6329 = vpack.c.b16 %v4605, %v4601
  %v6330 = vpack.c.b16 %v4610, %v4606
  %v6331 = vpack.c.b16 %v4611, %v4607
  %v6332 = vpack.c.b16 %v4612, %v4608
  %v6333 = vpack.c.b16 %v4613, %v4609
  %v6334 = vpack.c.b16 %v4618, %v4614
  %v6335 = vpack.c.b16 %v4619, %v4615
  %v6336 = vpack.c.b16 %v4620, %v4616
  %v6337 = vpack.c.b16 %v4621, %v4617
  %v6338 = vpack.c.b16 %v4626, %v4622
  %v6339 = vpack.c.b16 %v4627, %v4623
  %v6340 = vpack.c.b16 %v4628, %v4624
  %v6341 = vpack.c.b16 %v4629, %v4625
  %v6342 = vpack.c.b16 %v4634, %v4630
  %v6343 = vpack.c.b16 %v4635, %v4631
  %v6344 = vpack.c.b16 %v4636, %v4632
  %v6345 = vpack.c.b16 %v4637, %v4633
  %v6346 = vpack.c.b16 %v4642, %v4638
  %v6347 = vpack.c.b16 %v4643, %v4639
  %v6348 = vpack.c.b16 %v4644, %v4640
  %v6349 = vpack.c.b16 %v4645, %v4641
  %v6350 = vpack.c.b16 %v4650, %v4646
  %v6351 = vpack.c.b16 %v4651, %v4647
  %v6352 = vpack.c.b16 %v4652, %v4648
  %v6353 = vpack.c.b16 %v4653, %v4649
  %v6354 = vpack.c.b16 %v4658, %v4654
  %v6355 = vpack.c.b16 %v4659, %v4655
  %v6356 = vpack.c.b16 %v4660, %v4656
  %v6357 = vpack.c.b16 %v4661, %v4657
  %v6358 = vpack.c.b16 %v4666, %v4662
  %v6359 = vpack.c.b16 %v4667, %v4663
  %v6360 = vpack.c.b16 %v4668, %v4664
  %v6361 = vpack.c.b16 %v4669, %v4665
  %v6362 = vpack.c.b16 %v4674, %v4670
  %v6363 = vpack.c.b16 %v4675, %v4671
  %v6364 = vpack.c.b16 %v4676, %v4672
  %v6365 = vpack.c.b16 %v4677, %v4673
  %v6366 = vpack.c.b16 %v4682, %v4678
  %v6367 = vpack.c.b16 %v4683, %v4679
  %v6368 = vpack.c.b16 %v4684, %v4680
  %v6369 = vpack.c.b16 %v4685, %v4681
  %v6370 = vpack.c.b16 %v4690, %v4686
  %v6371 = vpack.c.b16 %v4691, %v4687
  %v6372 = vpack.c.b16 %v4692, %v4688
  %v6373 = vpack.c.b16 %v4693, %v4689
  %v6374 = vpack.c.b16 %v4698, %v4694
  %v6375 = vpack.c.b16 %v4699, %v4695
  %v6376 = vpack.c.b16 %v4700, %v4696
  %v6377 = vpack.c.b16 %v4701, %v4697
  %v6378 = vpack.c.b16 %v4706, %v4702
  %v6379 = vpack.c.b16 %v4707, %v4703
  %v6380 = vpack.c.b16 %v4708, %v4704
  %v6381 = vpack.c.b16 %v4709, %v4705
  %v6382 = vpack.c.b16 %v4714, %v4710
  %v6383 = vpack.c.b16 %v4715, %v4711
  %v6384 = vpack.c.b16 %v4716, %v4712
  %v6385 = vpack.c.b16 %v4717, %v4713
  %v6386 = vpack.c.b16 %v4722, %v4718
  %v6387 = vpack.c.b16 %v4723, %v4719
  %v6388 = vpack.c.b16 %v4724, %v4720
  %v6389 = vpack.c.b16 %v4725, %v4721
  %v6390 = vpack.c.b16 %v4730, %v4726
  %v6391 = vpack.c.b16 %v4731, %v4727
  %v6392 = vpack.c.b16 %v4732, %v4728
  %v6393 = vpack.c.b16 %v4733, %v4729
  %v6394 = vpack.c.b16 %v4738, %v4734
  %v6395 = vpack.c.b16 %v4739, %v4735
  %v6396 = vpack.c.b16 %v4740, %v4736
  %v6397 = vpack.c.b16 %v4741, %v4737
  %v6398 = vpack.c.b16 %v4746, %v4742
  %v6399 = vpack.c.b16 %v4747, %v4743
  %v6400 = vpack.c.b16 %v4748, %v4744
  %v6401 = vpack.c.b16 %v4749, %v4745
  %v6402 = vpack.c.b16 %v4754, %v4750
  %v6403 = vpack.c.b16 %v4755, %v4751
  %v6404 = vpack.c.b16 %v4756, %v4752
  %v6405 = vpack.c.b16 %v4757, %v4753
  %v6406 = vpack.c.b16 %v4762, %v4758
  %v6407 = vpack.c.b16 %v4763, %v4759
  %v6408 = vpack.c.b16 %v4764, %v4760
  %v6409 = vpack.c.b16 %v4765, %v4761
  %v6410 = vpack.c.b16 %v4770, %v4766
  %v6411 = vpack.c.b16 %v4771, %v4767
  %v6412 = vpack.c.b16 %v4772, %v4768
  %v6413 = vpack.c.b16 %v4773, %v4769
  %v6414 = vpack.c.b16 %v4778, %v4774
  %v6415 = vpack.c.b16 %v4779, %v4775
  %v6416 = vpack.c.b16 %v4780, %v4776
  %v6417 = vpack.c.b16 %v4781, %v4777
  %v6418 = vpack.c.b16 %v4786, %v4782
  %v6419 = vpack.c.b16 %v4787, %v4783
  %v6420 = vpack.c.b16 %v4788, %v4784
  %v6421 = vpack.c.b16 %v4789, %v4785
  %v6422 = vpack.c.b16 %v4794, %v4790
  %v6423 = vpack.c.b16 %v4795, %v4791
  %v6424 = vpack.c.b16 %v4796, %v4792
  %v6425 = vpack.c.b16 %v4797, %v4793
  %v6426 = vpack.c.b16 %v4802, %v4798
  %v6427 = vpack.c.b16 %v4803, %v4799
  %v6428 = vpack.c.b16 %v4804, %v4800
  %v6429 = vpack.c.b16 %v4805, %v4801
  %v6430 = vpack.c.b16 %v4810, %v4806
  %v6431 = vpack.c.b16 %v4811, %v4807
  %v6432 = vpack.c.b16 %v4812, %v4808
  %v6433 = vpack.c.b16 %v4813, %v4809
  %v6434 = vpack.c.b16 %v4818, %v4814
  %v6435 = vpack.c.b16 %v4819, %v4815
  %v6436 = vpack.c.b16 %v4820, %v4816
  %v6437 = vpack.c.b16 %v4821, %v4817
  %v6438 = vpack.c.b16 %v4826, %v4822
  %v6439 = vpack.c.b16 %v4827, %v4823
  %v6440 = vpack.c.b16 %v4828, %v4824
  %v6441 = vpack.c.b16 %v4829, %v4825
  %v6442 = vpack.c.b16 %v4834, %v4830
  %v6443 = vpack.c.b16 %v4835, %v4831
  %v6444 = vpack.c.b16 %v4836, %v4832
  %v6445 = vpack.c.b16 %v4837, %v4833
  %v6446 = vpack.c.b16 %v4842, %v4838
  %v6447 = vpack.c.b16 %v4843, %v4839
  %v6448 = vpack.c.b16 %v4844, %v4840
  %v6449 = vpack.c.b16 %v4845, %v4841
  %v6450 = vpack.c.b16 %v4850, %v4846
  %v6451 = vpack.c.b16 %v4851, %v4847
  %v6452 = vpack.c.b16 %v4852, %v4848
  %v6453 = vpack.c.b16 %v4853, %v4849
  %v6454 = vpack.c.b16 %v4858, %v4854
  %v6455 = vpack.c.b16 %v4859, %v4855
  %v6456 = vpack.c.b16 %v4860, %v4856
  %v6457 = vpack.c.b16 %v4861, %v4857
  %v6458 = vpack.c.b16 %v4866, %v4862
  %v6459 = vpack.c.b16 %v4867, %v4863
  %v6460 = vpack.c.b16 %v4868, %v4864
  %v6461 = vpack.c.b16 %v4869, %v4865
  %v6462 = vpack.c.b16 %v4874, %v4870
  %v6463 = vpack.c.b16 %v4875, %v4871
  %v6464 = vpack.c.b16 %v4876, %v4872
  %v6465 = vpack.c.b16 %v4877, %v4873
  %v6466 = vpack.c.b16 %v4882, %v4878
  %v6467 = vpack.c.b16 %v4883, %v4879
  %v6468 = vpack.c.b16 %v4884, %v4880
  %v6469 = vpack.c.b16 %v4885, %v4881
  %v6470 = vpack.c.b16 %v4890, %v4886
  %v6471 = vpack.c.b16 %v4891, %v4887
  %v6472 = vpack.c.b16 %v4892, %v4888
  %v6473 = vpack.c.b16 %v4893, %v4889
  %v6474 = vpack.c.b16 %v4898, %v4894
  %v6475 = vpack.c.b16 %v4899, %v4895
  %v6476 = vpack.c.b16 %v4900, %v4896
  %v6477 = vpack.c.b16 %v4901, %v4897
  %v6478 = vpack.c.b16 %v4906, %v4902
  %v6479 = vpack.c.b16 %v4907, %v4903
  %v6480 = vpack.c.b16 %v4908, %v4904
  %v6481 = vpack.c.b16 %v4909, %v4905
  %v6482 = vpack.c.b16 %v4914, %v4910
  %v6483 = vpack.c.b16 %v4915, %v4911
  %v6484 = vpack.c.b16 %v4916, %v4912
  %v6485 = vpack.c.b16 %v4917, %v4913
  %v6486 = vpack.c.b16 %v4922, %v4918
  %v6487 = vpack.c.b16 %v4923, %v4919
  %v6488 = vpack.c.b16 %v4924, %v4920
  %v6489 = vpack.c.b16 %v4925, %v4921
  %v6490 = vpack.c.b16 %v4930, %v4926
  %v6491 = vpack.c.b16 %v4931, %v4927
  %v6492 = vpack.c.b16 %v4932, %v4928
  %v6493 = vpack.c.b16 %v4933, %v4929
  %v6494 = vpack.c.b16 %v4938, %v4934
  %v6495 = vpack.c.b16 %v4939, %v4935
  %v6496 = vpack.c.b16 %v4940, %v4936
  %v6497 = vpack.c.b16 %v4941, %v4937
  %v6498 = vpack.c.b16 %v4946, %v4942
  %v6499 = vpack.c.b16 %v4947, %v4943
  %v6500 = vpack.c.b16 %v4948, %v4944
  %v6501 = vpack.c.b16 %v4949, %v4945
  %v6502 = vpack.c.b16 %v4954, %v4950
  %v6503 = vpack.c.b16 %v4955, %v4951
  %v6504 = vpack.c.b16 %v4956, %v4952
  %v6505 = vpack.c.b16 %v4957, %v4953
  %v6506 = vpack.c.b16 %v4962, %v4958
  %v6507 = vpack.c.b16 %v4963, %v4959
  %v6508 = vpack.c.b16 %v4964, %v4960
  %v6509 = vpack.c.b16 %v4965, %v4961
  %v6510 = vpack.c.b16 %v4970, %v4966
  %v6511 = vpack.c.b16 %v4971, %v4967
  %v6512 = vpack.c.b16 %v4972, %v4968
  %v6513 = vpack.c.b16 %v4973, %v4969
  %v6514 = vpack.c.b16 %v4978, %v4974
  %v6515 = vpack.c.b16 %v4979, %v4975
  %v6516 = vpack.c.b16 %v4980, %v4976
  %v6517 = vpack.c.b16 %v4981, %v4977
  %v6518 = vpack.c.b16 %v4986, %v4982
  %v6519 = vpack.c.b16 %v4987, %v4983
  %v6520 = vpack.c.b16 %v4988, %v4984
  %v6521 = vpack.c.b16 %v4989, %v4985
  %v6522 = vpack.c.b16 %v4994, %v4990
  %v6523 = vpack.c.b16 %v4995, %v4991
  %v6524 = vpack.c.b16 %v4996, %v4992
  %v6525 = vpack.c.b16 %v4997, %v4993
  %v6526 = vpack.c.b16 %v5002, %v4998
  %v6527 = vpack.c.b16 %v5003, %v4999
  %v6528 = vpack.c.b16 %v5004, %v5000
  %v6529 = vpack.c.b16 %v5005, %v5001
  %v6530 = vpack.c.b16 %v5010, %v5006
  %v6531 = vpack.c.b16 %v5011, %v5007
  %v6532 = vpack.c.b16 %v5012, %v5008
  %v6533 = vpack.c.b16 %v5013, %v5009
  %v6534 = vpack.c.b16 %v5018, %v5014
  %v6535 = vpack.c.b16 %v5019, %v5015
  %v6536 = vpack.c.b16 %v5020, %v5016
  %v6537 = vpack.c.b16 %v5021, %v5017
  %v6538 = vpack.c.b16 %v5026, %v5022
  %v6539 = vpack.c.b16 %v5027, %v5023
  %v6540 = vpack.c.b16 %v5028, %v5024
  %v6541 = vpack.c.b16 %v5029, %v5025
  %v6542 = vpack.c.b16 %v5034, %v5030
  %v6543 = vpack.c.b16 %v5035, %v5031
  %v6544 = vpack.c.b16 %v5036, %v5032
  %v6545 = vpack.c.b16 %v5037, %v5033
  %v6546 = vpack.c.b16 %v5042, %v5038
  %v6547 = vpack.c.b16 %v5043, %v5039
  %v6548 = vpack.c.b16 %v5044, %v5040
  %v6549 = vpack.c.b16 %v5045, %v5041
  %v6550 = vpack.c.b16 %v5050, %v5046
  %v6551 = vpack.c.b16 %v5051, %v5047
  %v6552 = vpack.c.b16 %v5052, %v5048
  %v6553 = vpack.c.b16 %v5053, %v5049
  %v6554 = vpack.c.b16 %v5058, %v5054
  %v6555 = vpack.c.b16 %v5059, %v5055
  %v6556 = vpack.c.b16 %v5060, %v5056
  %v6557 = vpack.c.b16 %v5061, %v5057
  %v6558 = vpack.c.b16 %v5066, %v5062
  %v6559 = vpack.c.b16 %v5067, %v5063
  %v6560 = vpack.c.b16 %v5068, %v5064
  %v6561 = vpack.c.b16 %v5069, %v5065
  %v6562 = vpack.c.b16 %v5074, %v5070
  %v6563 = vpack.c.b16 %v5075, %v5071
  %v6564 = vpack.c.b16 %v5076, %v5072
  %v6565 = vpack.c.b16 %v5077, %v5073
  %v6566 = vpack.c.b16 %v5082, %v5078
  %v6567 = vpack.c.b16 %v5083, %v5079
  %v6568 = vpack.c.b16 %v5084, %v5080
  %v6569 = vpack.c.b16 %v5085, %v5081
  %v6570 = vpack.c.b16 %v5090, %v5086
  %v6571 = vpack.c.b16 %v5091, %v5087
  %v6572 = vpack.c.b16 %v5092, %v5088
  %v6573 = vpack.c.b16 %v5093, %v5089
  %v6574 = vpack.c.b16 %v5098, %v5094
  %v6575 = vpack.c.b16 %v5099, %v5095
  %v6576 = vpack.c.b16 %v5100, %v5096
  %v6577 = vpack.c.b16 %v5101, %v5097
  %v6578 = vpack.c.b16 %v5106, %v5102
  %v6579 = vpack.c.b16 %v5107, %v5103
  %v6580 = vpack.c.b16 %v5108, %v5104
  %v6581 = vpack.c.b16 %v5109, %v5105
  %v6582 = vpack.c.b16 %v5114, %v5110
  %v6583 = vpack.c.b16 %v5115, %v5111
  %v6584 = vpack.c.b16 %v5116, %v5112
  %v6585 = vpack.c.b16 %v5117, %v5113
  %v6586 = vpack.c.b16 %v5122, %v5118
  %v6587 = vpack.c.b16 %v5123, %v5119
  %v6588 = vpack.c.b16 %v5124, %v5120
  %v6589 = vpack.c.b16 %v5125, %v5121
  %v6590 = vpack.c.b16 %v5130, %v5126
  %v6591 = vpack.c.b16 %v5131, %v5127
  %v6592 = vpack.c.b16 %v5132, %v5128
  %v6593 = vpack.c.b16 %v5133, %v5129
  %v6594 = vpack.c.b16 %v5138, %v5134
  %v6595 = vpack.c.b16 %v5139, %v5135
  %v6596 = vpack.c.b16 %v5140, %v5136
  %v6597 = vpack.c.b16 %v5141, %v5137
  %v6598 = vpack.c.b16 %v5146, %v5142
  %v6599 = vpack.c.b16 %v5147, %v5143
  %v6600 = vpack.c.b16 %v5148, %v5144
  %v6601 = vpack.c.b16 %v5149, %v5145
  %v6602 = vpack.c.b16 %v5154, %v5150
  %v6603 = vpack.c.b16 %v5155, %v5151
  %v6604 = vpack.c.b16 %v5156, %v5152
  %v6605 = vpack.c.b16 %v5157, %v5153
  %v6606 = vpack.c.b16 %v5162, %v5158
  %v6607 = vpack.c.b16 %v5163, %v5159
  %v6608 = vpack.c.b16 %v5164, %v5160
  %v6609 = vpack.c.b16 %v5165, %v5161
  %v6610 = vpack.c.b16 %v5170, %v5166
  %v6611 = vpack.c.b16 %v5171, %v5167
  %v6612 = vpack.c.b16 %v5172, %v5168
  %v6613 = vpack.c.b16 %v5173, %v5169
  %v6614 = vpack.c.b16 %v5178, %v5174
  %v6615 = vpack.c.b16 %v5179, %v5175
  %v6616 = vpack.c.b16 %v5180, %v5176
  %v6617 = vpack.c.b16 %v5181, %v5177
  %v6618 = vpack.c.b16 %v5186, %v5182
  %v6619 = vpack.c.b16 %v5187, %v5183
  %v6620 = vpack.c.b16 %v5188, %v5184
  %v6621 = vpack.c.b16 %v5189, %v5185
  %v6622 = vpack.c.b16 %v5194, %v5190
  %v6623 = vpack.c.b16 %v5195, %v5191
  %v6624 = vpack.c.b16 %v5196, %v5192
  %v6625 = vpack.c.b16 %v5197, %v5193
  %v6626 = vpack.c.b16 %v5202, %v5198
  %v6627 = vpack.c.b16 %v5203, %v5199
  %v6628 = vpack.c.b16 %v5204, %v5200
  %v6629 = vpack.c.b16 %v5205, %v5201
  %v6630 = vpack.c.b16 %v5210, %v5206
  %v6631 = vpack.c.b16 %v5211, %v5207
  %v6632 = vpack.c.b16 %v5212, %v5208
  %v6633 = vpack.c.b16 %v5213, %v5209
  %v6634 = vpack.c.b16 %v5218, %v5214
  %v6635 = vpack.c.b16 %v5219, %v5215
  %v6636 = vpack.c.b16 %v5220, %v5216
  %v6637 = vpack.c.b16 %v5221, %v5217
  %v6638 = vpack.c.b16 %v5226, %v5222
  %v6639 = vpack.c.b16 %v5227, %v5223
  %v6640 = vpack.c.b16 %v5228, %v5224
  %v6641 = vpack.c.b16 %v5229, %v5225
  %v6642 = vpack.c.b16 %v5234, %v5230
  %v6643 = vpack.c.b16 %v5235, %v5231
  %v6644 = vpack.c.b16 %v5236, %v5232
  %v6645 = vpack.c.b16 %v5237, %v5233
  %v6646 = vpack.c.b16 %v5242, %v5238
  %v6647 = vpack.c.b16 %v5243, %v5239
  %v6648 = vpack.c.b16 %v5244, %v5240
  %v6649 = vpack.c.b16 %v5245, %v5241
  %v6650 = vpack.c.b16 %v5250, %v5246
  %v6651 = vpack.c.b16 %v5251, %v5247
  %v6652 = vpack.c.b16 %v5252, %v5248
  %v6653 = vpack.c.b16 %v5253, %v5249
  %v6654 = vpack.c.b16 %v5258, %v5254
  %v6655 = vpack.c.b16 %v5259, %v5255
  %v6656 = vpack.c.b16 %v5260, %v5256
  %v6657 = vpack.c.b16 %v5261, %v5257
  %v6658 = vpack.c.b16 %v5266, %v5262
  %v6659 = vpack.c.b16 %v5267, %v5263
  %v6660 = vpack.c.b16 %v5268, %v5264
  %v6661 = vpack.c.b16 %v5269, %v5265
  %v6662 = vpack.c.b16 %v5274, %v5270
  %v6663 = vpack.c.b16 %v5275, %v5271
  %v6664 = vpack.c.b16 %v5276, %v5272
  %v6665 = vpack.c.b16 %v5277, %v5273
  %v6666 = vpack.c.b16 %v5282, %v5278
  %v6667 = vpack.c.b16 %v5283, %v5279
  %v6668 = vpack.c.b16 %v5284, %v5280
  %v6669 = vpack.c.b16 %v5285, %v5281
  %v6670 = vpack.c.b16 %v5290, %v5286
  %v6671 = vpack.c.b16 %v5291, %v5287
  %v6672 = vpack.c.b16 %v5292, %v5288
  %v6673 = vpack.c.b16 %v5293, %v5289
  %v6674 = vpack.c.b16 %v5298, %v5294
  %v6675 = vpack.c.b16 %v5299, %v5295
  %v6676 = vpack.c.b16 %v5300, %v5296
  %v6677 = vpack.c.b16 %v5301, %v5297
  %v6678 = vpack.c.b16 %v5306, %v5302
  %v6679 = vpack.c.b16 %v5307, %v5303
  %v6680 = vpack.c.b16 %v5308, %v5304
  %v6681 = vpack.c.b16 %v5309, %v5305
  %v6682 = vpack.c.b16 %v5314, %v5310
  %v6683 = vpack.c.b16 %v5315, %v5311
  %v6684 = vpack.c.b16 %v5316, %v5312
  %v6685 = vpack.c.b16 %v5317, %v5313
  %v6686 = vpack.c.b16 %v5322, %v5318
  %v6687 = vpack.c.b16 %v5323, %v5319
  %v6688 = vpack.c.b16 %v5324, %v5320
  %v6689 = vpack.c.b16 %v5325, %v5321
  %v6690 = vpack.c.b16 %v5330, %v5326
  %v6691 = vpack.c.b16 %v5331, %v5327
  %v6692 = vpack.c.b16 %v5332, %v5328
  %v6693 = vpack.c.b16 %v5333, %v5329
  %v6694 = vpack.c.b16 %v5338, %v5334
  %v6695 = vpack.c.b16 %v5339, %v5335
  %v6696 = vpack.c.b16 %v5340, %v5336
  %v6697 = vpack.c.b16 %v5341, %v5337
  %v6698 = vpack.c.b16 %v5346, %v5342
  %v6699 = vpack.c.b16 %v5347, %v5343
  %v6700 = vpack.c.b16 %v5348, %v5344
  %v6701 = vpack.c.b16 %v5349, %v5345
  %v6702 = vpack.c.b16 %v5354, %v5350
  %v6703 = vpack.c.b16 %v5355, %v5351
  %v6704 = vpack.c.b16 %v5356, %v5352
  %v6705 = vpack.c.b16 %v5357, %v5353
  %v6706 = vpack.c.b16 %v5362, %v5358
  %v6707 = vpack.c.b16 %v5363, %v5359
  %v6708 = vpack.c.b16 %v5364, %v5360
  %v6709 = vpack.c.b16 %v5365, %v5361
  %v6710 = vpack.c.b16 %v5370, %v5366
  %v6711 = vpack.c.b16 %v5371, %v5367
  %v6712 = vpack.c.b16 %v5372, %v5368
  %v6713 = vpack.c.b16 %v5373, %v5369
  %v6714 = vpack.c.b16 %v5378, %v5374
  %v6715 = vpack.c.b16 %v5379, %v5375
  %v6716 = vpack.c.b16 %v5380, %v5376
  %v6717 = vpack.c.b16 %v5381, %v5377
  %v6718 = vpack.c.b16 %v5386, %v5382
  %v6719 = vpack.c.b16 %v5387, %v5383
  %v6720 = vpack.c.b16 %v5388, %v5384
  %v6721 = vpack.c.b16 %v5389, %v5385
  %v6722 = vpack.c.b16 %v5394, %v5390
  %v6723 = vpack.c.b16 %v5395, %v5391
  %v6724 = vpack.c.b16 %v5396, %v5392
  %v6725 = vpack.c.b16 %v5397, %v5393
  %v6726 = vpack.c.b16 %v5402, %v5398
  %v6727 = vpack.c.b16 %v5403, %v5399
  %v6728 = vpack.c.b16 %v5404, %v5400
  %v6729 = vpack.c.b16 %v5405, %v5401
  %v6730 = vpack.c.b16 %v5410, %v5406
  %v6731 = vpack.c.b16 %v5411, %v5407
  %v6732 = vpack.c.b16 %v5412, %v5408
  %v6733 = vpack.c.b16 %v5413, %v5409
  %v6734 = vpack.c.b16 %v5418, %v5414
  %v6735 = vpack.c.b16 %v5419, %v5415
  %v6736 = vpack.c.b16 %v5420, %v5416
  %v6737 = vpack.c.b16 %v5421, %v5417
  %v6738 = vpack.c.b16 %v5426, %v5422
  %v6739 = vpack.c.b16 %v5427, %v5423
  %v6740 = vpack.c.b16 %v5428, %v5424
  %v6741 = vpack.c.b16 %v5429, %v5425
  %v6742 = vpack.c.b16 %v5434, %v5430
  %v6743 = vpack.c.b16 %v5435, %v5431
  %v6744 = vpack.c.b16 %v5436, %v5432
  %v6745 = vpack.c.b16 %v5437, %v5433
  %v6746 = vpack.c.b16 %v5442, %v5438
  %v6747 = vpack.c.b16 %v5443, %v5439
  %v6748 = vpack.c.b16 %v5444, %v5440
  %v6749 = vpack.c.b16 %v5445, %v5441
  %v6750 = vpack.c.b16 %v5450, %v5446
  %v6751 = vpack.c.b16 %v5451, %v5447
  %v6752 = vpack.c.b16 %v5452, %v5448
  %v6753 = vpack.c.b16 %v5453, %v5449
  %v6754 = vpack.c.b16 %v5458, %v5454
  %v6755 = vpack.c.b16 %v5459, %v5455
  %v6756 = vpack.c.b16 %v5460, %v5456
  %v6757 = vpack.c.b16 %v5461, %v5457
  %vm8054 = vcmask 523264
  %v8056 = vsel %vm8054, %v1533, 0
  %8058 = vmatpush.bf16.msra.mxu0 %v5490
  %8059 = vmatpush.bf16.msra.mxu0 %v5486
  %8060 = vmatpush.bf16.msra.mxu0 %v5482
  %8061 = vmatpush.bf16.msra.mxu0 %v5478
  %8062 = vmatpush.bf16.msra.mxu0 %v5474
  %8063 = vmatpush.bf16.msra.mxu0 %v5470
  %8064 = vmatpush.bf16.msra.mxu0 %v5466
  %8065 = vmatpush.bf16.msra.mxu0 %v5462
  %8066 = vmatmul.bf16.gmra.mxu0 %v1493
  %v8067 = vpop.f32.mrf.mxu0
  %v8068 = vadd.f32 %v1361, %v8067
  %v8069 = vpop.f32.mrf.mxu0
  %v8070 = vadd.f32 %v1361, %v8069
  %8071 = vdwg.mxu0
  %8072 = vmatpush.bf16.msra.mxu0 %v5522
  %8073 = vmatpush.bf16.msra.mxu0 %v5518
  %8074 = vmatpush.bf16.msra.mxu0 %v5514
  %8075 = vmatpush.bf16.msra.mxu0 %v5510
  %8076 = vmatpush.bf16.msra.mxu0 %v5506
  %8077 = vmatpush.bf16.msra.mxu0 %v5502
  %8078 = vmatpush.bf16.msra.mxu0 %v5498
  %8079 = vmatpush.bf16.msra.mxu0 %v5494
  %8080 = vmatmul.bf16.gmra.mxu0 %v1494
  %v8081 = vpop.f32.mrf.mxu0
  %v8082 = vadd.f32 %v8068, %v8081
  %v8083 = vpop.f32.mrf.mxu0
  %v8084 = vadd.f32 %v8070, %v8083
  %8085 = vdwg.mxu0
  %8086 = vmatpush.bf16.msra.mxu0 %v5554
  %8087 = vmatpush.bf16.msra.mxu0 %v5550
  %8088 = vmatpush.bf16.msra.mxu0 %v5546
  %8089 = vmatpush.bf16.msra.mxu0 %v5542
  %8090 = vmatpush.bf16.msra.mxu0 %v5538
  %8091 = vmatpush.bf16.msra.mxu0 %v5534
  %8092 = vmatpush.bf16.msra.mxu0 %v5530
  %8093 = vmatpush.bf16.msra.mxu0 %v5526
  %8094 = vmatmul.bf16.gmra.mxu0 %v1495
  %v8095 = vpop.f32.mrf.mxu0
  %v8096 = vadd.f32 %v8082, %v8095
  %v8097 = vpop.f32.mrf.mxu0
  %v8098 = vadd.f32 %v8084, %v8097
  %8099 = vdwg.mxu0
  %8100 = vmatpush.bf16.msra.mxu0 %v5586
  %8101 = vmatpush.bf16.msra.mxu0 %v5582
  %8102 = vmatpush.bf16.msra.mxu0 %v5578
  %8103 = vmatpush.bf16.msra.mxu0 %v5574
  %8104 = vmatpush.bf16.msra.mxu0 %v5570
  %8105 = vmatpush.bf16.msra.mxu0 %v5566
  %8106 = vmatpush.bf16.msra.mxu0 %v5562
  %8107 = vmatpush.bf16.msra.mxu0 %v5558
  %8108 = vmatmul.bf16.gmra.mxu0 %v1496
  %v8109 = vpop.f32.mrf.mxu0
  %v8110 = vadd.f32 %v8096, %v8109
  %v8111 = vpop.f32.mrf.mxu0
  %v8112 = vadd.f32 %v8098, %v8111
  %8113 = vdwg.mxu0
  %8114 = vmatpush.bf16.msra.mxu0 %v5618
  %8115 = vmatpush.bf16.msra.mxu0 %v5614
  %8116 = vmatpush.bf16.msra.mxu0 %v5610
  %8117 = vmatpush.bf16.msra.mxu0 %v5606
  %8118 = vmatpush.bf16.msra.mxu0 %v5602
  %8119 = vmatpush.bf16.msra.mxu0 %v5598
  %8120 = vmatpush.bf16.msra.mxu0 %v5594
  %8121 = vmatpush.bf16.msra.mxu0 %v5590
  %8122 = vmatmul.bf16.gmra.mxu0 %v1497
  %v8123 = vpop.f32.mrf.mxu0
  %v8124 = vadd.f32 %v8110, %v8123
  %v8125 = vpop.f32.mrf.mxu0
  %v8126 = vadd.f32 %v8112, %v8125
  %8127 = vdwg.mxu0
  %8128 = vmatpush.bf16.msra.mxu0 %v5650
  %8129 = vmatpush.bf16.msra.mxu0 %v5646
  %8130 = vmatpush.bf16.msra.mxu0 %v5642
  %8131 = vmatpush.bf16.msra.mxu0 %v5638
  %8132 = vmatpush.bf16.msra.mxu0 %v5634
  %8133 = vmatpush.bf16.msra.mxu0 %v5630
  %8134 = vmatpush.bf16.msra.mxu0 %v5626
  %8135 = vmatpush.bf16.msra.mxu0 %v5622
  %8136 = vmatmul.bf16.gmra.mxu0 %v1498
  %v8137 = vpop.f32.mrf.mxu0
  %v8138 = vadd.f32 %v8124, %v8137
  %v8139 = vpop.f32.mrf.mxu0
  %v8140 = vadd.f32 %v8126, %v8139
  %8141 = vdwg.mxu0
  %8142 = vmatpush.bf16.msra.mxu0 %v5682
  %8143 = vmatpush.bf16.msra.mxu0 %v5678
  %8144 = vmatpush.bf16.msra.mxu0 %v5674
  %8145 = vmatpush.bf16.msra.mxu0 %v5670
  %8146 = vmatpush.bf16.msra.mxu0 %v5666
  %8147 = vmatpush.bf16.msra.mxu0 %v5662
  %8148 = vmatpush.bf16.msra.mxu0 %v5658
  %8149 = vmatpush.bf16.msra.mxu0 %v5654
  %8150 = vmatmul.bf16.gmra.mxu0 %v1499
  %v8151 = vpop.f32.mrf.mxu0
  %v8152 = vadd.f32 %v8138, %v8151
  %v8153 = vpop.f32.mrf.mxu0
  %v8154 = vadd.f32 %v8140, %v8153
  %8155 = vdwg.mxu0
  %8156 = vmatpush.bf16.msra.mxu0 %v5714
  %8157 = vmatpush.bf16.msra.mxu0 %v5710
  %8158 = vmatpush.bf16.msra.mxu0 %v5706
  %8159 = vmatpush.bf16.msra.mxu0 %v5702
  %8160 = vmatpush.bf16.msra.mxu0 %v5698
  %8161 = vmatpush.bf16.msra.mxu0 %v5694
  %8162 = vmatpush.bf16.msra.mxu0 %v5690
  %8163 = vmatpush.bf16.msra.mxu0 %v5686
  %8164 = vmatmul.bf16.gmra.mxu0 %v1500
  %v8165 = vpop.f32.mrf.mxu0
  %v8166 = vadd.f32 %v8152, %v8165
  %v8167 = vpop.f32.mrf.mxu0
  %v8168 = vadd.f32 %v8154, %v8167
  %8169 = vdwg.mxu0
  %8170 = vmatpush.bf16.msra.mxu0 %v5746
  %8171 = vmatpush.bf16.msra.mxu0 %v5742
  %8172 = vmatpush.bf16.msra.mxu0 %v5738
  %8173 = vmatpush.bf16.msra.mxu0 %v5734
  %8174 = vmatpush.bf16.msra.mxu0 %v5730
  %8175 = vmatpush.bf16.msra.mxu0 %v5726
  %8176 = vmatpush.bf16.msra.mxu0 %v5722
  %8177 = vmatpush.bf16.msra.mxu0 %v5718
  %8178 = vmatmul.bf16.gmra.mxu0 %v1501
  %v8179 = vpop.f32.mrf.mxu0
  %v8180 = vadd.f32 %v8166, %v8179
  %v8181 = vpop.f32.mrf.mxu0
  %v8182 = vadd.f32 %v8168, %v8181
  %8183 = vdwg.mxu0
  %8184 = vmatpush.bf16.msra.mxu0 %v5778
  %8185 = vmatpush.bf16.msra.mxu0 %v5774
  %8186 = vmatpush.bf16.msra.mxu0 %v5770
  %8187 = vmatpush.bf16.msra.mxu0 %v5766
  %8188 = vmatpush.bf16.msra.mxu0 %v5762
  %8189 = vmatpush.bf16.msra.mxu0 %v5758
  %8190 = vmatpush.bf16.msra.mxu0 %v5754
  %8191 = vmatpush.bf16.msra.mxu0 %v5750
  %8192 = vmatmul.bf16.gmra.mxu0 %v1502
  %v8193 = vpop.f32.mrf.mxu0
  %v8194 = vadd.f32 %v8180, %v8193
  %v8195 = vpop.f32.mrf.mxu0
  %v8196 = vadd.f32 %v8182, %v8195
  %8197 = vdwg.mxu0
  %8198 = vmatpush.bf16.msra.mxu0 %v5810
  %8199 = vmatpush.bf16.msra.mxu0 %v5806
  %8200 = vmatpush.bf16.msra.mxu0 %v5802
  %8201 = vmatpush.bf16.msra.mxu0 %v5798
  %8202 = vmatpush.bf16.msra.mxu0 %v5794
  %8203 = vmatpush.bf16.msra.mxu0 %v5790
  %8204 = vmatpush.bf16.msra.mxu0 %v5786
  %8205 = vmatpush.bf16.msra.mxu0 %v5782
  %8206 = vmatmul.bf16.gmra.mxu0 %v1503
  %v8207 = vpop.f32.mrf.mxu0
  %v8208 = vadd.f32 %v8194, %v8207
  %v8209 = vpop.f32.mrf.mxu0
  %v8210 = vadd.f32 %v8196, %v8209
  %8211 = vdwg.mxu0
  %8212 = vmatpush.bf16.msra.mxu0 %v5842
  %8213 = vmatpush.bf16.msra.mxu0 %v5838
  %8214 = vmatpush.bf16.msra.mxu0 %v5834
  %8215 = vmatpush.bf16.msra.mxu0 %v5830
  %8216 = vmatpush.bf16.msra.mxu0 %v5826
  %8217 = vmatpush.bf16.msra.mxu0 %v5822
  %8218 = vmatpush.bf16.msra.mxu0 %v5818
  %8219 = vmatpush.bf16.msra.mxu0 %v5814
  %8220 = vmatmul.bf16.gmra.mxu0 %v1504
  %v8221 = vpop.f32.mrf.mxu0
  %v8222 = vadd.f32 %v8208, %v8221
  %v8223 = vpop.f32.mrf.mxu0
  %v8224 = vadd.f32 %v8210, %v8223
  %8225 = vdwg.mxu0
  %8226 = vmatpush.bf16.msra.mxu0 %v5874
  %8227 = vmatpush.bf16.msra.mxu0 %v5870
  %8228 = vmatpush.bf16.msra.mxu0 %v5866
  %8229 = vmatpush.bf16.msra.mxu0 %v5862
  %8230 = vmatpush.bf16.msra.mxu0 %v5858
  %8231 = vmatpush.bf16.msra.mxu0 %v5854
  %8232 = vmatpush.bf16.msra.mxu0 %v5850
  %8233 = vmatpush.bf16.msra.mxu0 %v5846
  %8234 = vmatmul.bf16.gmra.mxu0 %v1505
  %v8235 = vpop.f32.mrf.mxu0
  %v8236 = vadd.f32 %v8222, %v8235
  %v8237 = vpop.f32.mrf.mxu0
  %v8238 = vadd.f32 %v8224, %v8237
  %8239 = vdwg.mxu0
  %8240 = vmatpush.bf16.msra.mxu0 %v5906
  %8241 = vmatpush.bf16.msra.mxu0 %v5902
  %8242 = vmatpush.bf16.msra.mxu0 %v5898
  %8243 = vmatpush.bf16.msra.mxu0 %v5894
  %8244 = vmatpush.bf16.msra.mxu0 %v5890
  %8245 = vmatpush.bf16.msra.mxu0 %v5886
  %8246 = vmatpush.bf16.msra.mxu0 %v5882
  %8247 = vmatpush.bf16.msra.mxu0 %v5878
  %8248 = vmatmul.bf16.gmra.mxu0 %v1506
  %v8249 = vpop.f32.mrf.mxu0
  %v8250 = vadd.f32 %v8236, %v8249
  %v8251 = vpop.f32.mrf.mxu0
  %v8252 = vadd.f32 %v8238, %v8251
  %8253 = vdwg.mxu0
  %8254 = vmatpush.bf16.msra.mxu0 %v5938
  %8255 = vmatpush.bf16.msra.mxu0 %v5934
  %8256 = vmatpush.bf16.msra.mxu0 %v5930
  %8257 = vmatpush.bf16.msra.mxu0 %v5926
  %8258 = vmatpush.bf16.msra.mxu0 %v5922
  %8259 = vmatpush.bf16.msra.mxu0 %v5918
  %8260 = vmatpush.bf16.msra.mxu0 %v5914
  %8261 = vmatpush.bf16.msra.mxu0 %v5910
  %8262 = vmatmul.bf16.gmra.mxu0 %v1507
  %v8263 = vpop.f32.mrf.mxu0
  %v8264 = vadd.f32 %v8250, %v8263
  %v8265 = vpop.f32.mrf.mxu0
  %v8266 = vadd.f32 %v8252, %v8265
  %8267 = vdwg.mxu0
  %8268 = vmatpush.bf16.msra.mxu0 %v5970
  %8269 = vmatpush.bf16.msra.mxu0 %v5966
  %8270 = vmatpush.bf16.msra.mxu0 %v5962
  %8271 = vmatpush.bf16.msra.mxu0 %v5958
  %8272 = vmatpush.bf16.msra.mxu0 %v5954
  %8273 = vmatpush.bf16.msra.mxu0 %v5950
  %8274 = vmatpush.bf16.msra.mxu0 %v5946
  %8275 = vmatpush.bf16.msra.mxu0 %v5942
  %8276 = vmatmul.bf16.gmra.mxu0 %v1508
  %v8277 = vpop.f32.mrf.mxu0
  %v8278 = vadd.f32 %v8264, %v8277
  %v8279 = vpop.f32.mrf.mxu0
  %v8280 = vadd.f32 %v8266, %v8279
  %8281 = vdwg.mxu0
  %8282 = vmatpush.bf16.msra.mxu0 %v6002
  %8283 = vmatpush.bf16.msra.mxu0 %v5998
  %8284 = vmatpush.bf16.msra.mxu0 %v5994
  %8285 = vmatpush.bf16.msra.mxu0 %v5990
  %8286 = vmatpush.bf16.msra.mxu0 %v5986
  %8287 = vmatpush.bf16.msra.mxu0 %v5982
  %8288 = vmatpush.bf16.msra.mxu0 %v5978
  %8289 = vmatpush.bf16.msra.mxu0 %v5974
  %8290 = vmatmul.bf16.gmra.mxu0 %v1509
  %v8291 = vpop.f32.mrf.mxu0
  %v8292 = vadd.f32 %v8278, %v8291
  %v8293 = vpop.f32.mrf.mxu0
  %v8294 = vadd.f32 %v8280, %v8293
  %8295 = vdwg.mxu0
  %8296 = vmatpush.bf16.msra.mxu0 %v6034
  %8297 = vmatpush.bf16.msra.mxu0 %v6030
  %8298 = vmatpush.bf16.msra.mxu0 %v6026
  %8299 = vmatpush.bf16.msra.mxu0 %v6022
  %8300 = vmatpush.bf16.msra.mxu0 %v6018
  %8301 = vmatpush.bf16.msra.mxu0 %v6014
  %8302 = vmatpush.bf16.msra.mxu0 %v6010
  %8303 = vmatpush.bf16.msra.mxu0 %v6006
  %8304 = vmatmul.bf16.gmra.mxu0 %v1510
  %v8305 = vpop.f32.mrf.mxu0
  %v8306 = vadd.f32 %v8292, %v8305
  %v8307 = vpop.f32.mrf.mxu0
  %v8308 = vadd.f32 %v8294, %v8307
  %8309 = vdwg.mxu0
  %8310 = vmatpush.bf16.msra.mxu0 %v6066
  %8311 = vmatpush.bf16.msra.mxu0 %v6062
  %8312 = vmatpush.bf16.msra.mxu0 %v6058
  %8313 = vmatpush.bf16.msra.mxu0 %v6054
  %8314 = vmatpush.bf16.msra.mxu0 %v6050
  %8315 = vmatpush.bf16.msra.mxu0 %v6046
  %8316 = vmatpush.bf16.msra.mxu0 %v6042
  %8317 = vmatpush.bf16.msra.mxu0 %v6038
  %8318 = vmatmul.bf16.gmra.mxu0 %v1511
  %v8319 = vpop.f32.mrf.mxu0
  %v8320 = vadd.f32 %v8306, %v8319
  %v8321 = vpop.f32.mrf.mxu0
  %v8322 = vadd.f32 %v8308, %v8321
  %8323 = vdwg.mxu0
  %8324 = vmatpush.bf16.msra.mxu0 %v6098
  %8325 = vmatpush.bf16.msra.mxu0 %v6094
  %8326 = vmatpush.bf16.msra.mxu0 %v6090
  %8327 = vmatpush.bf16.msra.mxu0 %v6086
  %8328 = vmatpush.bf16.msra.mxu0 %v6082
  %8329 = vmatpush.bf16.msra.mxu0 %v6078
  %8330 = vmatpush.bf16.msra.mxu0 %v6074
  %8331 = vmatpush.bf16.msra.mxu0 %v6070
  %8332 = vmatmul.bf16.gmra.mxu0 %v1512
  %v8333 = vpop.f32.mrf.mxu0
  %v8334 = vadd.f32 %v8320, %v8333
  %v8335 = vpop.f32.mrf.mxu0
  %v8336 = vadd.f32 %v8322, %v8335
  %8337 = vdwg.mxu0
  %8338 = vmatpush.bf16.msra.mxu0 %v6130
  %8339 = vmatpush.bf16.msra.mxu0 %v6126
  %8340 = vmatpush.bf16.msra.mxu0 %v6122
  %8341 = vmatpush.bf16.msra.mxu0 %v6118
  %8342 = vmatpush.bf16.msra.mxu0 %v6114
  %8343 = vmatpush.bf16.msra.mxu0 %v6110
  %8344 = vmatpush.bf16.msra.mxu0 %v6106
  %8345 = vmatpush.bf16.msra.mxu0 %v6102
  %8346 = vmatmul.bf16.gmra.mxu0 %v1513
  %v8347 = vpop.f32.mrf.mxu0
  %v8348 = vadd.f32 %v8334, %v8347
  %v8349 = vpop.f32.mrf.mxu0
  %v8350 = vadd.f32 %v8336, %v8349
  %8351 = vdwg.mxu0
  %8352 = vmatpush.bf16.msra.mxu0 %v6162
  %8353 = vmatpush.bf16.msra.mxu0 %v6158
  %8354 = vmatpush.bf16.msra.mxu0 %v6154
  %8355 = vmatpush.bf16.msra.mxu0 %v6150
  %8356 = vmatpush.bf16.msra.mxu0 %v6146
  %8357 = vmatpush.bf16.msra.mxu0 %v6142
  %8358 = vmatpush.bf16.msra.mxu0 %v6138
  %8359 = vmatpush.bf16.msra.mxu0 %v6134
  %8360 = vmatmul.bf16.gmra.mxu0 %v1514
  %v8361 = vpop.f32.mrf.mxu0
  %v8362 = vadd.f32 %v8348, %v8361
  %v8363 = vpop.f32.mrf.mxu0
  %v8364 = vadd.f32 %v8350, %v8363
  %8365 = vdwg.mxu0
  %8366 = vmatpush.bf16.msra.mxu0 %v6194
  %8367 = vmatpush.bf16.msra.mxu0 %v6190
  %8368 = vmatpush.bf16.msra.mxu0 %v6186
  %8369 = vmatpush.bf16.msra.mxu0 %v6182
  %8370 = vmatpush.bf16.msra.mxu0 %v6178
  %8371 = vmatpush.bf16.msra.mxu0 %v6174
  %8372 = vmatpush.bf16.msra.mxu0 %v6170
  %8373 = vmatpush.bf16.msra.mxu0 %v6166
  %8374 = vmatmul.bf16.gmra.mxu0 %v1515
  %v8375 = vpop.f32.mrf.mxu0
  %v8376 = vadd.f32 %v8362, %v8375
  %v8377 = vpop.f32.mrf.mxu0
  %v8378 = vadd.f32 %v8364, %v8377
  %8379 = vdwg.mxu0
  %8380 = vmatpush.bf16.msra.mxu0 %v6226
  %8381 = vmatpush.bf16.msra.mxu0 %v6222
  %8382 = vmatpush.bf16.msra.mxu0 %v6218
  %8383 = vmatpush.bf16.msra.mxu0 %v6214
  %8384 = vmatpush.bf16.msra.mxu0 %v6210
  %8385 = vmatpush.bf16.msra.mxu0 %v6206
  %8386 = vmatpush.bf16.msra.mxu0 %v6202
  %8387 = vmatpush.bf16.msra.mxu0 %v6198
  %8388 = vmatmul.bf16.gmra.mxu0 %v1516
  %v8389 = vpop.f32.mrf.mxu0
  %v8390 = vadd.f32 %v8376, %v8389
  %v8391 = vpop.f32.mrf.mxu0
  %v8392 = vadd.f32 %v8378, %v8391
  %8393 = vdwg.mxu0
  %8394 = vmatpush.bf16.msra.mxu0 %v6258
  %8395 = vmatpush.bf16.msra.mxu0 %v6254
  %8396 = vmatpush.bf16.msra.mxu0 %v6250
  %8397 = vmatpush.bf16.msra.mxu0 %v6246
  %8398 = vmatpush.bf16.msra.mxu0 %v6242
  %8399 = vmatpush.bf16.msra.mxu0 %v6238
  %8400 = vmatpush.bf16.msra.mxu0 %v6234
  %8401 = vmatpush.bf16.msra.mxu0 %v6230
  %8402 = vmatmul.bf16.gmra.mxu0 %v1517
  %v8403 = vpop.f32.mrf.mxu0
  %v8404 = vadd.f32 %v8390, %v8403
  %v8405 = vpop.f32.mrf.mxu0
  %v8406 = vadd.f32 %v8392, %v8405
  %8407 = vdwg.mxu0
  %8408 = vmatpush.bf16.msra.mxu0 %v6290
  %8409 = vmatpush.bf16.msra.mxu0 %v6286
  %8410 = vmatpush.bf16.msra.mxu0 %v6282
  %8411 = vmatpush.bf16.msra.mxu0 %v6278
  %8412 = vmatpush.bf16.msra.mxu0 %v6274
  %8413 = vmatpush.bf16.msra.mxu0 %v6270
  %8414 = vmatpush.bf16.msra.mxu0 %v6266
  %8415 = vmatpush.bf16.msra.mxu0 %v6262
  %8416 = vmatmul.bf16.gmra.mxu0 %v1518
  %v8417 = vpop.f32.mrf.mxu0
  %v8418 = vadd.f32 %v8404, %v8417
  %v8419 = vpop.f32.mrf.mxu0
  %v8420 = vadd.f32 %v8406, %v8419
  %8421 = vdwg.mxu0
  %8422 = vmatpush.bf16.msra.mxu0 %v6322
  %8423 = vmatpush.bf16.msra.mxu0 %v6318
  %8424 = vmatpush.bf16.msra.mxu0 %v6314
  %8425 = vmatpush.bf16.msra.mxu0 %v6310
  %8426 = vmatpush.bf16.msra.mxu0 %v6306
  %8427 = vmatpush.bf16.msra.mxu0 %v6302
  %8428 = vmatpush.bf16.msra.mxu0 %v6298
  %8429 = vmatpush.bf16.msra.mxu0 %v6294
  %8430 = vmatmul.bf16.gmra.mxu0 %v1519
  %v8431 = vpop.f32.mrf.mxu0
  %v8432 = vadd.f32 %v8418, %v8431
  %v8433 = vpop.f32.mrf.mxu0
  %v8434 = vadd.f32 %v8420, %v8433
  %8435 = vdwg.mxu0
  %8436 = vmatpush.bf16.msra.mxu0 %v6354
  %8437 = vmatpush.bf16.msra.mxu0 %v6350
  %8438 = vmatpush.bf16.msra.mxu0 %v6346
  %8439 = vmatpush.bf16.msra.mxu0 %v6342
  %8440 = vmatpush.bf16.msra.mxu0 %v6338
  %8441 = vmatpush.bf16.msra.mxu0 %v6334
  %8442 = vmatpush.bf16.msra.mxu0 %v6330
  %8443 = vmatpush.bf16.msra.mxu0 %v6326
  %8444 = vmatmul.bf16.gmra.mxu0 %v1520
  %v8445 = vpop.f32.mrf.mxu0
  %v8446 = vadd.f32 %v8432, %v8445
  %v8447 = vpop.f32.mrf.mxu0
  %v8448 = vadd.f32 %v8434, %v8447
  %8449 = vdwg.mxu0
  %8450 = vmatpush.bf16.msra.mxu0 %v6386
  %8451 = vmatpush.bf16.msra.mxu0 %v6382
  %8452 = vmatpush.bf16.msra.mxu0 %v6378
  %8453 = vmatpush.bf16.msra.mxu0 %v6374
  %8454 = vmatpush.bf16.msra.mxu0 %v6370
  %8455 = vmatpush.bf16.msra.mxu0 %v6366
  %8456 = vmatpush.bf16.msra.mxu0 %v6362
  %8457 = vmatpush.bf16.msra.mxu0 %v6358
  %8458 = vmatmul.bf16.gmra.mxu0 %v1521
  %v8459 = vpop.f32.mrf.mxu0
  %v8460 = vadd.f32 %v8446, %v8459
  %v8461 = vpop.f32.mrf.mxu0
  %v8462 = vadd.f32 %v8448, %v8461
  %8463 = vdwg.mxu0
  %8464 = vmatpush.bf16.msra.mxu0 %v6418
  %8465 = vmatpush.bf16.msra.mxu0 %v6414
  %8466 = vmatpush.bf16.msra.mxu0 %v6410
  %8467 = vmatpush.bf16.msra.mxu0 %v6406
  %8468 = vmatpush.bf16.msra.mxu0 %v6402
  %8469 = vmatpush.bf16.msra.mxu0 %v6398
  %8470 = vmatpush.bf16.msra.mxu0 %v6394
  %8471 = vmatpush.bf16.msra.mxu0 %v6390
  %8472 = vmatmul.bf16.gmra.mxu0 %v1522
  %v8473 = vpop.f32.mrf.mxu0
  %v8474 = vadd.f32 %v8460, %v8473
  %v8475 = vpop.f32.mrf.mxu0
  %v8476 = vadd.f32 %v8462, %v8475
  %8477 = vdwg.mxu0
  %8478 = vmatpush.bf16.msra.mxu0 %v6450
  %8479 = vmatpush.bf16.msra.mxu0 %v6446
  %8480 = vmatpush.bf16.msra.mxu0 %v6442
  %8481 = vmatpush.bf16.msra.mxu0 %v6438
  %8482 = vmatpush.bf16.msra.mxu0 %v6434
  %8483 = vmatpush.bf16.msra.mxu0 %v6430
  %8484 = vmatpush.bf16.msra.mxu0 %v6426
  %8485 = vmatpush.bf16.msra.mxu0 %v6422
  %8486 = vmatmul.bf16.gmra.mxu0 %v1523
  %v8487 = vpop.f32.mrf.mxu0
  %v8488 = vadd.f32 %v8474, %v8487
  %v8489 = vpop.f32.mrf.mxu0
  %v8490 = vadd.f32 %v8476, %v8489
  %8491 = vdwg.mxu0
  %8492 = vmatpush.bf16.msra.mxu0 %v6482
  %8493 = vmatpush.bf16.msra.mxu0 %v6478
  %8494 = vmatpush.bf16.msra.mxu0 %v6474
  %8495 = vmatpush.bf16.msra.mxu0 %v6470
  %8496 = vmatpush.bf16.msra.mxu0 %v6466
  %8497 = vmatpush.bf16.msra.mxu0 %v6462
  %8498 = vmatpush.bf16.msra.mxu0 %v6458
  %8499 = vmatpush.bf16.msra.mxu0 %v6454
  %8500 = vmatmul.bf16.gmra.mxu0 %v1524
  %v8501 = vpop.f32.mrf.mxu0
  %v8502 = vadd.f32 %v8488, %v8501
  %v8503 = vpop.f32.mrf.mxu0
  %v8504 = vadd.f32 %v8490, %v8503
  %8505 = vdwg.mxu0
  %8506 = vmatpush.bf16.msra.mxu0 %v6514
  %8507 = vmatpush.bf16.msra.mxu0 %v6510
  %8508 = vmatpush.bf16.msra.mxu0 %v6506
  %8509 = vmatpush.bf16.msra.mxu0 %v6502
  %8510 = vmatpush.bf16.msra.mxu0 %v6498
  %8511 = vmatpush.bf16.msra.mxu0 %v6494
  %8512 = vmatpush.bf16.msra.mxu0 %v6490
  %8513 = vmatpush.bf16.msra.mxu0 %v6486
  %8514 = vmatmul.bf16.gmra.mxu0 %v1525
  %v8515 = vpop.f32.mrf.mxu0
  %v8516 = vadd.f32 %v8502, %v8515
  %v8517 = vpop.f32.mrf.mxu0
  %v8518 = vadd.f32 %v8504, %v8517
  %8519 = vdwg.mxu0
  %8520 = vmatpush.bf16.msra.mxu0 %v6546
  %8521 = vmatpush.bf16.msra.mxu0 %v6542
  %8522 = vmatpush.bf16.msra.mxu0 %v6538
  %8523 = vmatpush.bf16.msra.mxu0 %v6534
  %8524 = vmatpush.bf16.msra.mxu0 %v6530
  %8525 = vmatpush.bf16.msra.mxu0 %v6526
  %8526 = vmatpush.bf16.msra.mxu0 %v6522
  %8527 = vmatpush.bf16.msra.mxu0 %v6518
  %8528 = vmatmul.bf16.gmra.mxu0 %v1526
  %v8529 = vpop.f32.mrf.mxu0
  %v8530 = vadd.f32 %v8516, %v8529
  %v8531 = vpop.f32.mrf.mxu0
  %v8532 = vadd.f32 %v8518, %v8531
  %8533 = vdwg.mxu0
  %8534 = vmatpush.bf16.msra.mxu0 %v6578
  %8535 = vmatpush.bf16.msra.mxu0 %v6574
  %8536 = vmatpush.bf16.msra.mxu0 %v6570
  %8537 = vmatpush.bf16.msra.mxu0 %v6566
  %8538 = vmatpush.bf16.msra.mxu0 %v6562
  %8539 = vmatpush.bf16.msra.mxu0 %v6558
  %8540 = vmatpush.bf16.msra.mxu0 %v6554
  %8541 = vmatpush.bf16.msra.mxu0 %v6550
  %8542 = vmatmul.bf16.gmra.mxu0 %v1527
  %v8543 = vpop.f32.mrf.mxu0
  %v8544 = vadd.f32 %v8530, %v8543
  %v8545 = vpop.f32.mrf.mxu0
  %v8546 = vadd.f32 %v8532, %v8545
  %8547 = vdwg.mxu0
  %8548 = vmatpush.bf16.msra.mxu0 %v6610
  %8549 = vmatpush.bf16.msra.mxu0 %v6606
  %8550 = vmatpush.bf16.msra.mxu0 %v6602
  %8551 = vmatpush.bf16.msra.mxu0 %v6598
  %8552 = vmatpush.bf16.msra.mxu0 %v6594
  %8553 = vmatpush.bf16.msra.mxu0 %v6590
  %8554 = vmatpush.bf16.msra.mxu0 %v6586
  %8555 = vmatpush.bf16.msra.mxu0 %v6582
  %8556 = vmatmul.bf16.gmra.mxu0 %v1528
  %v8557 = vpop.f32.mrf.mxu0
  %v8558 = vadd.f32 %v8544, %v8557
  %v8559 = vpop.f32.mrf.mxu0
  %v8560 = vadd.f32 %v8546, %v8559
  %8561 = vdwg.mxu0
  %8562 = vmatpush.bf16.msra.mxu0 %v6642
  %8563 = vmatpush.bf16.msra.mxu0 %v6638
  %8564 = vmatpush.bf16.msra.mxu0 %v6634
  %8565 = vmatpush.bf16.msra.mxu0 %v6630
  %8566 = vmatpush.bf16.msra.mxu0 %v6626
  %8567 = vmatpush.bf16.msra.mxu0 %v6622
  %8568 = vmatpush.bf16.msra.mxu0 %v6618
  %8569 = vmatpush.bf16.msra.mxu0 %v6614
  %8570 = vmatmul.bf16.gmra.mxu0 %v1529
  %v8571 = vpop.f32.mrf.mxu0
  %v8572 = vadd.f32 %v8558, %v8571
  %v8573 = vpop.f32.mrf.mxu0
  %v8574 = vadd.f32 %v8560, %v8573
  %8575 = vdwg.mxu0
  %8576 = vmatpush.bf16.msra.mxu0 %v6674
  %8577 = vmatpush.bf16.msra.mxu0 %v6670
  %8578 = vmatpush.bf16.msra.mxu0 %v6666
  %8579 = vmatpush.bf16.msra.mxu0 %v6662
  %8580 = vmatpush.bf16.msra.mxu0 %v6658
  %8581 = vmatpush.bf16.msra.mxu0 %v6654
  %8582 = vmatpush.bf16.msra.mxu0 %v6650
  %8583 = vmatpush.bf16.msra.mxu0 %v6646
  %8584 = vmatmul.bf16.gmra.mxu0 %v1530
  %v8585 = vpop.f32.mrf.mxu0
  %v8586 = vadd.f32 %v8572, %v8585
  %v8587 = vpop.f32.mrf.mxu0
  %v8588 = vadd.f32 %v8574, %v8587
  %8589 = vdwg.mxu0
  %8590 = vmatpush.bf16.msra.mxu0 %v6706
  %8591 = vmatpush.bf16.msra.mxu0 %v6702
  %8592 = vmatpush.bf16.msra.mxu0 %v6698
  %8593 = vmatpush.bf16.msra.mxu0 %v6694
  %8594 = vmatpush.bf16.msra.mxu0 %v6690
  %8595 = vmatpush.bf16.msra.mxu0 %v6686
  %8596 = vmatpush.bf16.msra.mxu0 %v6682
  %8597 = vmatpush.bf16.msra.mxu0 %v6678
  %8598 = vmatmul.bf16.gmra.mxu0 %v1531
  %v8599 = vpop.f32.mrf.mxu0
  %v8600 = vadd.f32 %v8586, %v8599
  %v8601 = vpop.f32.mrf.mxu0
  %v8602 = vadd.f32 %v8588, %v8601
  %8603 = vdwg.mxu0
  %8604 = vmatpush.bf16.msra.mxu0 %v6738
  %8605 = vmatpush.bf16.msra.mxu0 %v6734
  %8606 = vmatpush.bf16.msra.mxu0 %v6730
  %8607 = vmatpush.bf16.msra.mxu0 %v6726
  %8608 = vmatpush.bf16.msra.mxu0 %v6722
  %8609 = vmatpush.bf16.msra.mxu0 %v6718
  %8610 = vmatpush.bf16.msra.mxu0 %v6714
  %8611 = vmatpush.bf16.msra.mxu0 %v6710
  %8612 = vmatmul.bf16.gmra.mxu0 %v1532
  %v8613 = vpop.f32.mrf.mxu0
  %v8614 = vadd.f32 %v8600, %v8613
  %v8615 = vpop.f32.mrf.mxu0
  %v8616 = vadd.f32 %v8602, %v8615
  %8617 = vdwg.mxu0
  %8618 = vmatpush.bf16.msra.mxu0 0
  %8619 = vmatpush.bf16.msra.mxu0 0
  %8620 = vmatpush.bf16.msra.mxu0 0
  %8621 = vmatpush.bf16.msra.mxu0 0
  %8622 = vmatpush.bf16.msra.mxu0 %v6754
  %8623 = vmatpush.bf16.msra.mxu0 %v6750
  %8624 = vmatpush.bf16.msra.mxu0 %v6746
  %8625 = vmatpush.bf16.msra.mxu0 %v6742
  %8626 = vmatmul.bf16.gmra.mxu0 %v8056
  %v8627 = vpop.f32.mrf.mxu0
  %v8628 = vadd.f32 %v8614, %v8627
  %v8629 = vpop.f32.mrf.mxu0
  %v8630 = vadd.f32 %v8616, %v8629
  %8631 = vdwg.mxu0
  %8632 = vmatpush.bf16.msra.mxu0 %v5491
  %8633 = vmatpush.bf16.msra.mxu0 %v5487
  %8634 = vmatpush.bf16.msra.mxu0 %v5483
  %8635 = vmatpush.bf16.msra.mxu0 %v5479
  %8636 = vmatpush.bf16.msra.mxu0 %v5475
  %8637 = vmatpush.bf16.msra.mxu0 %v5471
  %8638 = vmatpush.bf16.msra.mxu0 %v5467
  %8639 = vmatpush.bf16.msra.mxu0 %v5463
  %8640 = vmatmul.bf16.gmra.mxu0 %v1493
  %v8641 = vpop.f32.mrf.mxu0
  %v8642 = vadd.f32 %v1362, %v8641
  %v8643 = vpop.f32.mrf.mxu0
  %v8644 = vadd.f32 %v1362, %v8643
  %8645 = vdwg.mxu0
  %8646 = vmatpush.bf16.msra.mxu0 %v5523
  %8647 = vmatpush.bf16.msra.mxu0 %v5519
  %8648 = vmatpush.bf16.msra.mxu0 %v5515
  %8649 = vmatpush.bf16.msra.mxu0 %v5511
  %8650 = vmatpush.bf16.msra.mxu0 %v5507
  %8651 = vmatpush.bf16.msra.mxu0 %v5503
  %8652 = vmatpush.bf16.msra.mxu0 %v5499
  %8653 = vmatpush.bf16.msra.mxu0 %v5495
  %8654 = vmatmul.bf16.gmra.mxu0 %v1494
  %v8655 = vpop.f32.mrf.mxu0
  %v8656 = vadd.f32 %v8642, %v8655
  %v8657 = vpop.f32.mrf.mxu0
  %v8658 = vadd.f32 %v8644, %v8657
  %8659 = vdwg.mxu0
  %8660 = vmatpush.bf16.msra.mxu0 %v5555
  %8661 = vmatpush.bf16.msra.mxu0 %v5551
  %8662 = vmatpush.bf16.msra.mxu0 %v5547
  %8663 = vmatpush.bf16.msra.mxu0 %v5543
  %8664 = vmatpush.bf16.msra.mxu0 %v5539
  %8665 = vmatpush.bf16.msra.mxu0 %v5535
  %8666 = vmatpush.bf16.msra.mxu0 %v5531
  %8667 = vmatpush.bf16.msra.mxu0 %v5527
  %8668 = vmatmul.bf16.gmra.mxu0 %v1495
  %v8669 = vpop.f32.mrf.mxu0
  %v8670 = vadd.f32 %v8656, %v8669
  %v8671 = vpop.f32.mrf.mxu0
  %v8672 = vadd.f32 %v8658, %v8671
  %8673 = vdwg.mxu0
  %8674 = vmatpush.bf16.msra.mxu0 %v5587
  %8675 = vmatpush.bf16.msra.mxu0 %v5583
  %8676 = vmatpush.bf16.msra.mxu0 %v5579
  %8677 = vmatpush.bf16.msra.mxu0 %v5575
  %8678 = vmatpush.bf16.msra.mxu0 %v5571
  %8679 = vmatpush.bf16.msra.mxu0 %v5567
  %8680 = vmatpush.bf16.msra.mxu0 %v5563
  %8681 = vmatpush.bf16.msra.mxu0 %v5559
  %8682 = vmatmul.bf16.gmra.mxu0 %v1496
  %v8683 = vpop.f32.mrf.mxu0
  %v8684 = vadd.f32 %v8670, %v8683
  %v8685 = vpop.f32.mrf.mxu0
  %v8686 = vadd.f32 %v8672, %v8685
  %8687 = vdwg.mxu0
  %8688 = vmatpush.bf16.msra.mxu0 %v5619
  %8689 = vmatpush.bf16.msra.mxu0 %v5615
  %8690 = vmatpush.bf16.msra.mxu0 %v5611
  %8691 = vmatpush.bf16.msra.mxu0 %v5607
  %8692 = vmatpush.bf16.msra.mxu0 %v5603
  %8693 = vmatpush.bf16.msra.mxu0 %v5599
  %8694 = vmatpush.bf16.msra.mxu0 %v5595
  %8695 = vmatpush.bf16.msra.mxu0 %v5591
  %8696 = vmatmul.bf16.gmra.mxu0 %v1497
  %v8697 = vpop.f32.mrf.mxu0
  %v8698 = vadd.f32 %v8684, %v8697
  %v8699 = vpop.f32.mrf.mxu0
  %v8700 = vadd.f32 %v8686, %v8699
  %8701 = vdwg.mxu0
  %8702 = vmatpush.bf16.msra.mxu0 %v5651
  %8703 = vmatpush.bf16.msra.mxu0 %v5647
  %8704 = vmatpush.bf16.msra.mxu0 %v5643
  %8705 = vmatpush.bf16.msra.mxu0 %v5639
  %8706 = vmatpush.bf16.msra.mxu0 %v5635
  %8707 = vmatpush.bf16.msra.mxu0 %v5631
  %8708 = vmatpush.bf16.msra.mxu0 %v5627
  %8709 = vmatpush.bf16.msra.mxu0 %v5623
  %8710 = vmatmul.bf16.gmra.mxu0 %v1498
  %v8711 = vpop.f32.mrf.mxu0
  %v8712 = vadd.f32 %v8698, %v8711
  %v8713 = vpop.f32.mrf.mxu0
  %v8714 = vadd.f32 %v8700, %v8713
  %8715 = vdwg.mxu0
  %8716 = vmatpush.bf16.msra.mxu0 %v5683
  %8717 = vmatpush.bf16.msra.mxu0 %v5679
  %8718 = vmatpush.bf16.msra.mxu0 %v5675
  %8719 = vmatpush.bf16.msra.mxu0 %v5671
  %8720 = vmatpush.bf16.msra.mxu0 %v5667
  %8721 = vmatpush.bf16.msra.mxu0 %v5663
  %8722 = vmatpush.bf16.msra.mxu0 %v5659
  %8723 = vmatpush.bf16.msra.mxu0 %v5655
  %8724 = vmatmul.bf16.gmra.mxu0 %v1499
  %v8725 = vpop.f32.mrf.mxu0
  %v8726 = vadd.f32 %v8712, %v8725
  %v8727 = vpop.f32.mrf.mxu0
  %v8728 = vadd.f32 %v8714, %v8727
  %8729 = vdwg.mxu0
  %8730 = vmatpush.bf16.msra.mxu0 %v5715
  %8731 = vmatpush.bf16.msra.mxu0 %v5711
  %8732 = vmatpush.bf16.msra.mxu0 %v5707
  %8733 = vmatpush.bf16.msra.mxu0 %v5703
  %8734 = vmatpush.bf16.msra.mxu0 %v5699
  %8735 = vmatpush.bf16.msra.mxu0 %v5695
  %8736 = vmatpush.bf16.msra.mxu0 %v5691
  %8737 = vmatpush.bf16.msra.mxu0 %v5687
  %8738 = vmatmul.bf16.gmra.mxu0 %v1500
  %v8739 = vpop.f32.mrf.mxu0
  %v8740 = vadd.f32 %v8726, %v8739
  %v8741 = vpop.f32.mrf.mxu0
  %v8742 = vadd.f32 %v8728, %v8741
  %8743 = vdwg.mxu0
  %8744 = vmatpush.bf16.msra.mxu0 %v5747
  %8745 = vmatpush.bf16.msra.mxu0 %v5743
  %8746 = vmatpush.bf16.msra.mxu0 %v5739
  %8747 = vmatpush.bf16.msra.mxu0 %v5735
  %8748 = vmatpush.bf16.msra.mxu0 %v5731
  %8749 = vmatpush.bf16.msra.mxu0 %v5727
  %8750 = vmatpush.bf16.msra.mxu0 %v5723
  %8751 = vmatpush.bf16.msra.mxu0 %v5719
  %8752 = vmatmul.bf16.gmra.mxu0 %v1501
  %v8753 = vpop.f32.mrf.mxu0
  %v8754 = vadd.f32 %v8740, %v8753
  %v8755 = vpop.f32.mrf.mxu0
  %v8756 = vadd.f32 %v8742, %v8755
  %8757 = vdwg.mxu0
  %8758 = vmatpush.bf16.msra.mxu0 %v5779
  %8759 = vmatpush.bf16.msra.mxu0 %v5775
  %8760 = vmatpush.bf16.msra.mxu0 %v5771
  %8761 = vmatpush.bf16.msra.mxu0 %v5767
  %8762 = vmatpush.bf16.msra.mxu0 %v5763
  %8763 = vmatpush.bf16.msra.mxu0 %v5759
  %8764 = vmatpush.bf16.msra.mxu0 %v5755
  %8765 = vmatpush.bf16.msra.mxu0 %v5751
  %8766 = vmatmul.bf16.gmra.mxu0 %v1502
  %v8767 = vpop.f32.mrf.mxu0
  %v8768 = vadd.f32 %v8754, %v8767
  %v8769 = vpop.f32.mrf.mxu0
  %v8770 = vadd.f32 %v8756, %v8769
  %8771 = vdwg.mxu0
  %8772 = vmatpush.bf16.msra.mxu0 %v5811
  %8773 = vmatpush.bf16.msra.mxu0 %v5807
  %8774 = vmatpush.bf16.msra.mxu0 %v5803
  %8775 = vmatpush.bf16.msra.mxu0 %v5799
  %8776 = vmatpush.bf16.msra.mxu0 %v5795
  %8777 = vmatpush.bf16.msra.mxu0 %v5791
  %8778 = vmatpush.bf16.msra.mxu0 %v5787
  %8779 = vmatpush.bf16.msra.mxu0 %v5783
  %8780 = vmatmul.bf16.gmra.mxu0 %v1503
  %v8781 = vpop.f32.mrf.mxu0
  %v8782 = vadd.f32 %v8768, %v8781
  %v8783 = vpop.f32.mrf.mxu0
  %v8784 = vadd.f32 %v8770, %v8783
  %8785 = vdwg.mxu0
  %8786 = vmatpush.bf16.msra.mxu0 %v5843
  %8787 = vmatpush.bf16.msra.mxu0 %v5839
  %8788 = vmatpush.bf16.msra.mxu0 %v5835
  %8789 = vmatpush.bf16.msra.mxu0 %v5831
  %8790 = vmatpush.bf16.msra.mxu0 %v5827
  %8791 = vmatpush.bf16.msra.mxu0 %v5823
  %8792 = vmatpush.bf16.msra.mxu0 %v5819
  %8793 = vmatpush.bf16.msra.mxu0 %v5815
  %8794 = vmatmul.bf16.gmra.mxu0 %v1504
  %v8795 = vpop.f32.mrf.mxu0
  %v8796 = vadd.f32 %v8782, %v8795
  %v8797 = vpop.f32.mrf.mxu0
  %v8798 = vadd.f32 %v8784, %v8797
  %8799 = vdwg.mxu0
  %8800 = vmatpush.bf16.msra.mxu0 %v5875
  %8801 = vmatpush.bf16.msra.mxu0 %v5871
  %8802 = vmatpush.bf16.msra.mxu0 %v5867
  %8803 = vmatpush.bf16.msra.mxu0 %v5863
  %8804 = vmatpush.bf16.msra.mxu0 %v5859
  %8805 = vmatpush.bf16.msra.mxu0 %v5855
  %8806 = vmatpush.bf16.msra.mxu0 %v5851
  %8807 = vmatpush.bf16.msra.mxu0 %v5847
  %8808 = vmatmul.bf16.gmra.mxu0 %v1505
  %v8809 = vpop.f32.mrf.mxu0
  %v8810 = vadd.f32 %v8796, %v8809
  %v8811 = vpop.f32.mrf.mxu0
  %v8812 = vadd.f32 %v8798, %v8811
  %8813 = vdwg.mxu0
  %8814 = vmatpush.bf16.msra.mxu0 %v5907
  %8815 = vmatpush.bf16.msra.mxu0 %v5903
  %8816 = vmatpush.bf16.msra.mxu0 %v5899
  %8817 = vmatpush.bf16.msra.mxu0 %v5895
  %8818 = vmatpush.bf16.msra.mxu0 %v5891
  %8819 = vmatpush.bf16.msra.mxu0 %v5887
  %8820 = vmatpush.bf16.msra.mxu0 %v5883
  %8821 = vmatpush.bf16.msra.mxu0 %v5879
  %8822 = vmatmul.bf16.gmra.mxu0 %v1506
  %v8823 = vpop.f32.mrf.mxu0
  %v8824 = vadd.f32 %v8810, %v8823
  %v8825 = vpop.f32.mrf.mxu0
  %v8826 = vadd.f32 %v8812, %v8825
  %8827 = vdwg.mxu0
  %8828 = vmatpush.bf16.msra.mxu0 %v5939
  %8829 = vmatpush.bf16.msra.mxu0 %v5935
  %8830 = vmatpush.bf16.msra.mxu0 %v5931
  %8831 = vmatpush.bf16.msra.mxu0 %v5927
  %8832 = vmatpush.bf16.msra.mxu0 %v5923
  %8833 = vmatpush.bf16.msra.mxu0 %v5919
  %8834 = vmatpush.bf16.msra.mxu0 %v5915
  %8835 = vmatpush.bf16.msra.mxu0 %v5911
  %8836 = vmatmul.bf16.gmra.mxu0 %v1507
  %v8837 = vpop.f32.mrf.mxu0
  %v8838 = vadd.f32 %v8824, %v8837
  %v8839 = vpop.f32.mrf.mxu0
  %v8840 = vadd.f32 %v8826, %v8839
  %8841 = vdwg.mxu0
  %8842 = vmatpush.bf16.msra.mxu0 %v5971
  %8843 = vmatpush.bf16.msra.mxu0 %v5967
  %8844 = vmatpush.bf16.msra.mxu0 %v5963
  %8845 = vmatpush.bf16.msra.mxu0 %v5959
  %8846 = vmatpush.bf16.msra.mxu0 %v5955
  %8847 = vmatpush.bf16.msra.mxu0 %v5951
  %8848 = vmatpush.bf16.msra.mxu0 %v5947
  %8849 = vmatpush.bf16.msra.mxu0 %v5943
  %8850 = vmatmul.bf16.gmra.mxu0 %v1508
  %v8851 = vpop.f32.mrf.mxu0
  %v8852 = vadd.f32 %v8838, %v8851
  %v8853 = vpop.f32.mrf.mxu0
  %v8854 = vadd.f32 %v8840, %v8853
  %8855 = vdwg.mxu0
  %8856 = vmatpush.bf16.msra.mxu0 %v6003
  %8857 = vmatpush.bf16.msra.mxu0 %v5999
  %8858 = vmatpush.bf16.msra.mxu0 %v5995
  %8859 = vmatpush.bf16.msra.mxu0 %v5991
  %8860 = vmatpush.bf16.msra.mxu0 %v5987
  %8861 = vmatpush.bf16.msra.mxu0 %v5983
  %8862 = vmatpush.bf16.msra.mxu0 %v5979
  %8863 = vmatpush.bf16.msra.mxu0 %v5975
  %8864 = vmatmul.bf16.gmra.mxu0 %v1509
  %v8865 = vpop.f32.mrf.mxu0
  %v8866 = vadd.f32 %v8852, %v8865
  %v8867 = vpop.f32.mrf.mxu0
  %v8868 = vadd.f32 %v8854, %v8867
  %8869 = vdwg.mxu0
  %8870 = vmatpush.bf16.msra.mxu0 %v6035
  %8871 = vmatpush.bf16.msra.mxu0 %v6031
  %8872 = vmatpush.bf16.msra.mxu0 %v6027
  %8873 = vmatpush.bf16.msra.mxu0 %v6023
  %8874 = vmatpush.bf16.msra.mxu0 %v6019
  %8875 = vmatpush.bf16.msra.mxu0 %v6015
  %8876 = vmatpush.bf16.msra.mxu0 %v6011
  %8877 = vmatpush.bf16.msra.mxu0 %v6007
  %8878 = vmatmul.bf16.gmra.mxu0 %v1510
  %v8879 = vpop.f32.mrf.mxu0
  %v8880 = vadd.f32 %v8866, %v8879
  %v8881 = vpop.f32.mrf.mxu0
  %v8882 = vadd.f32 %v8868, %v8881
  %8883 = vdwg.mxu0
  %8884 = vmatpush.bf16.msra.mxu0 %v6067
  %8885 = vmatpush.bf16.msra.mxu0 %v6063
  %8886 = vmatpush.bf16.msra.mxu0 %v6059
  %8887 = vmatpush.bf16.msra.mxu0 %v6055
  %8888 = vmatpush.bf16.msra.mxu0 %v6051
  %8889 = vmatpush.bf16.msra.mxu0 %v6047
  %8890 = vmatpush.bf16.msra.mxu0 %v6043
  %8891 = vmatpush.bf16.msra.mxu0 %v6039
  %8892 = vmatmul.bf16.gmra.mxu0 %v1511
  %v8893 = vpop.f32.mrf.mxu0
  %v8894 = vadd.f32 %v8880, %v8893
  %v8895 = vpop.f32.mrf.mxu0
  %v8896 = vadd.f32 %v8882, %v8895
  %8897 = vdwg.mxu0
  %8898 = vmatpush.bf16.msra.mxu0 %v6099
  %8899 = vmatpush.bf16.msra.mxu0 %v6095
  %8900 = vmatpush.bf16.msra.mxu0 %v6091
  %8901 = vmatpush.bf16.msra.mxu0 %v6087
  %8902 = vmatpush.bf16.msra.mxu0 %v6083
  %8903 = vmatpush.bf16.msra.mxu0 %v6079
  %8904 = vmatpush.bf16.msra.mxu0 %v6075
  %8905 = vmatpush.bf16.msra.mxu0 %v6071
  %8906 = vmatmul.bf16.gmra.mxu0 %v1512
  %v8907 = vpop.f32.mrf.mxu0
  %v8908 = vadd.f32 %v8894, %v8907
  %v8909 = vpop.f32.mrf.mxu0
  %v8910 = vadd.f32 %v8896, %v8909
  %8911 = vdwg.mxu0
  %8912 = vmatpush.bf16.msra.mxu0 %v6131
  %8913 = vmatpush.bf16.msra.mxu0 %v6127
  %8914 = vmatpush.bf16.msra.mxu0 %v6123
  %8915 = vmatpush.bf16.msra.mxu0 %v6119
  %8916 = vmatpush.bf16.msra.mxu0 %v6115
  %8917 = vmatpush.bf16.msra.mxu0 %v6111
  %8918 = vmatpush.bf16.msra.mxu0 %v6107
  %8919 = vmatpush.bf16.msra.mxu0 %v6103
  %8920 = vmatmul.bf16.gmra.mxu0 %v1513
  %v8921 = vpop.f32.mrf.mxu0
  %v8922 = vadd.f32 %v8908, %v8921
  %v8923 = vpop.f32.mrf.mxu0
  %v8924 = vadd.f32 %v8910, %v8923
  %8925 = vdwg.mxu0
  %8926 = vmatpush.bf16.msra.mxu0 %v6163
  %8927 = vmatpush.bf16.msra.mxu0 %v6159
  %8928 = vmatpush.bf16.msra.mxu0 %v6155
  %8929 = vmatpush.bf16.msra.mxu0 %v6151
  %8930 = vmatpush.bf16.msra.mxu0 %v6147
  %8931 = vmatpush.bf16.msra.mxu0 %v6143
  %8932 = vmatpush.bf16.msra.mxu0 %v6139
  %8933 = vmatpush.bf16.msra.mxu0 %v6135
  %8934 = vmatmul.bf16.gmra.mxu0 %v1514
  %v8935 = vpop.f32.mrf.mxu0
  %v8936 = vadd.f32 %v8922, %v8935
  %v8937 = vpop.f32.mrf.mxu0
  %v8938 = vadd.f32 %v8924, %v8937
  %8939 = vdwg.mxu0
  %8940 = vmatpush.bf16.msra.mxu0 %v6195
  %8941 = vmatpush.bf16.msra.mxu0 %v6191
  %8942 = vmatpush.bf16.msra.mxu0 %v6187
  %8943 = vmatpush.bf16.msra.mxu0 %v6183
  %8944 = vmatpush.bf16.msra.mxu0 %v6179
  %8945 = vmatpush.bf16.msra.mxu0 %v6175
  %8946 = vmatpush.bf16.msra.mxu0 %v6171
  %8947 = vmatpush.bf16.msra.mxu0 %v6167
  %8948 = vmatmul.bf16.gmra.mxu0 %v1515
  %v8949 = vpop.f32.mrf.mxu0
  %v8950 = vadd.f32 %v8936, %v8949
  %v8951 = vpop.f32.mrf.mxu0
  %v8952 = vadd.f32 %v8938, %v8951
  %8953 = vdwg.mxu0
  %8954 = vmatpush.bf16.msra.mxu0 %v6227
  %8955 = vmatpush.bf16.msra.mxu0 %v6223
  %8956 = vmatpush.bf16.msra.mxu0 %v6219
  %8957 = vmatpush.bf16.msra.mxu0 %v6215
  %8958 = vmatpush.bf16.msra.mxu0 %v6211
  %8959 = vmatpush.bf16.msra.mxu0 %v6207
  %8960 = vmatpush.bf16.msra.mxu0 %v6203
  %8961 = vmatpush.bf16.msra.mxu0 %v6199
  %8962 = vmatmul.bf16.gmra.mxu0 %v1516
  %v8963 = vpop.f32.mrf.mxu0
  %v8964 = vadd.f32 %v8950, %v8963
  %v8965 = vpop.f32.mrf.mxu0
  %v8966 = vadd.f32 %v8952, %v8965
  %8967 = vdwg.mxu0
  %8968 = vmatpush.bf16.msra.mxu0 %v6259
  %8969 = vmatpush.bf16.msra.mxu0 %v6255
  %8970 = vmatpush.bf16.msra.mxu0 %v6251
  %8971 = vmatpush.bf16.msra.mxu0 %v6247
  %8972 = vmatpush.bf16.msra.mxu0 %v6243
  %8973 = vmatpush.bf16.msra.mxu0 %v6239
  %8974 = vmatpush.bf16.msra.mxu0 %v6235
  %8975 = vmatpush.bf16.msra.mxu0 %v6231
  %8976 = vmatmul.bf16.gmra.mxu0 %v1517
  %v8977 = vpop.f32.mrf.mxu0
  %v8978 = vadd.f32 %v8964, %v8977
  %v8979 = vpop.f32.mrf.mxu0
  %v8980 = vadd.f32 %v8966, %v8979
  %8981 = vdwg.mxu0
  %8982 = vmatpush.bf16.msra.mxu0 %v6291
  %8983 = vmatpush.bf16.msra.mxu0 %v6287
  %8984 = vmatpush.bf16.msra.mxu0 %v6283
  %8985 = vmatpush.bf16.msra.mxu0 %v6279
  %8986 = vmatpush.bf16.msra.mxu0 %v6275
  %8987 = vmatpush.bf16.msra.mxu0 %v6271
  %8988 = vmatpush.bf16.msra.mxu0 %v6267
  %8989 = vmatpush.bf16.msra.mxu0 %v6263
  %8990 = vmatmul.bf16.gmra.mxu0 %v1518
  %v8991 = vpop.f32.mrf.mxu0
  %v8992 = vadd.f32 %v8978, %v8991
  %v8993 = vpop.f32.mrf.mxu0
  %v8994 = vadd.f32 %v8980, %v8993
  %8995 = vdwg.mxu0
  %8996 = vmatpush.bf16.msra.mxu0 %v6323
  %8997 = vmatpush.bf16.msra.mxu0 %v6319
  %8998 = vmatpush.bf16.msra.mxu0 %v6315
  %8999 = vmatpush.bf16.msra.mxu0 %v6311
  %9000 = vmatpush.bf16.msra.mxu0 %v6307
  %9001 = vmatpush.bf16.msra.mxu0 %v6303
  %9002 = vmatpush.bf16.msra.mxu0 %v6299
  %9003 = vmatpush.bf16.msra.mxu0 %v6295
  %9004 = vmatmul.bf16.gmra.mxu0 %v1519
  %v9005 = vpop.f32.mrf.mxu0
  %v9006 = vadd.f32 %v8992, %v9005
  %v9007 = vpop.f32.mrf.mxu0
  %v9008 = vadd.f32 %v8994, %v9007
  %9009 = vdwg.mxu0
  %9010 = vmatpush.bf16.msra.mxu0 %v6355
  %9011 = vmatpush.bf16.msra.mxu0 %v6351
  %9012 = vmatpush.bf16.msra.mxu0 %v6347
  %9013 = vmatpush.bf16.msra.mxu0 %v6343
  %9014 = vmatpush.bf16.msra.mxu0 %v6339
  %9015 = vmatpush.bf16.msra.mxu0 %v6335
  %9016 = vmatpush.bf16.msra.mxu0 %v6331
  %9017 = vmatpush.bf16.msra.mxu0 %v6327
  %9018 = vmatmul.bf16.gmra.mxu0 %v1520
  %v9019 = vpop.f32.mrf.mxu0
  %v9020 = vadd.f32 %v9006, %v9019
  %v9021 = vpop.f32.mrf.mxu0
  %v9022 = vadd.f32 %v9008, %v9021
  %9023 = vdwg.mxu0
  %9024 = vmatpush.bf16.msra.mxu0 %v6387
  %9025 = vmatpush.bf16.msra.mxu0 %v6383
  %9026 = vmatpush.bf16.msra.mxu0 %v6379
  %9027 = vmatpush.bf16.msra.mxu0 %v6375
  %9028 = vmatpush.bf16.msra.mxu0 %v6371
  %9029 = vmatpush.bf16.msra.mxu0 %v6367
  %9030 = vmatpush.bf16.msra.mxu0 %v6363
  %9031 = vmatpush.bf16.msra.mxu0 %v6359
  %9032 = vmatmul.bf16.gmra.mxu0 %v1521
  %v9033 = vpop.f32.mrf.mxu0
  %v9034 = vadd.f32 %v9020, %v9033
  %v9035 = vpop.f32.mrf.mxu0
  %v9036 = vadd.f32 %v9022, %v9035
  %9037 = vdwg.mxu0
  %9038 = vmatpush.bf16.msra.mxu0 %v6419
  %9039 = vmatpush.bf16.msra.mxu0 %v6415
  %9040 = vmatpush.bf16.msra.mxu0 %v6411
  %9041 = vmatpush.bf16.msra.mxu0 %v6407
  %9042 = vmatpush.bf16.msra.mxu0 %v6403
  %9043 = vmatpush.bf16.msra.mxu0 %v6399
  %9044 = vmatpush.bf16.msra.mxu0 %v6395
  %9045 = vmatpush.bf16.msra.mxu0 %v6391
  %9046 = vmatmul.bf16.gmra.mxu0 %v1522
  %v9047 = vpop.f32.mrf.mxu0
  %v9048 = vadd.f32 %v9034, %v9047
  %v9049 = vpop.f32.mrf.mxu0
  %v9050 = vadd.f32 %v9036, %v9049
  %9051 = vdwg.mxu0
  %9052 = vmatpush.bf16.msra.mxu0 %v6451
  %9053 = vmatpush.bf16.msra.mxu0 %v6447
  %9054 = vmatpush.bf16.msra.mxu0 %v6443
  %9055 = vmatpush.bf16.msra.mxu0 %v6439
  %9056 = vmatpush.bf16.msra.mxu0 %v6435
  %9057 = vmatpush.bf16.msra.mxu0 %v6431
  %9058 = vmatpush.bf16.msra.mxu0 %v6427
  %9059 = vmatpush.bf16.msra.mxu0 %v6423
  %9060 = vmatmul.bf16.gmra.mxu0 %v1523
  %v9061 = vpop.f32.mrf.mxu0
  %v9062 = vadd.f32 %v9048, %v9061
  %v9063 = vpop.f32.mrf.mxu0
  %v9064 = vadd.f32 %v9050, %v9063
  %9065 = vdwg.mxu0
  %9066 = vmatpush.bf16.msra.mxu0 %v6483
  %9067 = vmatpush.bf16.msra.mxu0 %v6479
  %9068 = vmatpush.bf16.msra.mxu0 %v6475
  %9069 = vmatpush.bf16.msra.mxu0 %v6471
  %9070 = vmatpush.bf16.msra.mxu0 %v6467
  %9071 = vmatpush.bf16.msra.mxu0 %v6463
  %9072 = vmatpush.bf16.msra.mxu0 %v6459
  %9073 = vmatpush.bf16.msra.mxu0 %v6455
  %9074 = vmatmul.bf16.gmra.mxu0 %v1524
  %v9075 = vpop.f32.mrf.mxu0
  %v9076 = vadd.f32 %v9062, %v9075
  %v9077 = vpop.f32.mrf.mxu0
  %v9078 = vadd.f32 %v9064, %v9077
  %9079 = vdwg.mxu0
  %9080 = vmatpush.bf16.msra.mxu0 %v6515
  %9081 = vmatpush.bf16.msra.mxu0 %v6511
  %9082 = vmatpush.bf16.msra.mxu0 %v6507
  %9083 = vmatpush.bf16.msra.mxu0 %v6503
  %9084 = vmatpush.bf16.msra.mxu0 %v6499
  %9085 = vmatpush.bf16.msra.mxu0 %v6495
  %9086 = vmatpush.bf16.msra.mxu0 %v6491
  %9087 = vmatpush.bf16.msra.mxu0 %v6487
  %9088 = vmatmul.bf16.gmra.mxu0 %v1525
  %v9089 = vpop.f32.mrf.mxu0
  %v9090 = vadd.f32 %v9076, %v9089
  %v9091 = vpop.f32.mrf.mxu0
  %v9092 = vadd.f32 %v9078, %v9091
  %9093 = vdwg.mxu0
  %9094 = vmatpush.bf16.msra.mxu0 %v6547
  %9095 = vmatpush.bf16.msra.mxu0 %v6543
  %9096 = vmatpush.bf16.msra.mxu0 %v6539
  %9097 = vmatpush.bf16.msra.mxu0 %v6535
  %9098 = vmatpush.bf16.msra.mxu0 %v6531
  %9099 = vmatpush.bf16.msra.mxu0 %v6527
  %9100 = vmatpush.bf16.msra.mxu0 %v6523
  %9101 = vmatpush.bf16.msra.mxu0 %v6519
  %9102 = vmatmul.bf16.gmra.mxu0 %v1526
  %v9103 = vpop.f32.mrf.mxu0
  %v9104 = vadd.f32 %v9090, %v9103
  %v9105 = vpop.f32.mrf.mxu0
  %v9106 = vadd.f32 %v9092, %v9105
  %9107 = vdwg.mxu0
  %9108 = vmatpush.bf16.msra.mxu0 %v6579
  %9109 = vmatpush.bf16.msra.mxu0 %v6575
  %9110 = vmatpush.bf16.msra.mxu0 %v6571
  %9111 = vmatpush.bf16.msra.mxu0 %v6567
  %9112 = vmatpush.bf16.msra.mxu0 %v6563
  %9113 = vmatpush.bf16.msra.mxu0 %v6559
  %9114 = vmatpush.bf16.msra.mxu0 %v6555
  %9115 = vmatpush.bf16.msra.mxu0 %v6551
  %9116 = vmatmul.bf16.gmra.mxu0 %v1527
  %v9117 = vpop.f32.mrf.mxu0
  %v9118 = vadd.f32 %v9104, %v9117
  %v9119 = vpop.f32.mrf.mxu0
  %v9120 = vadd.f32 %v9106, %v9119
  %9121 = vdwg.mxu0
  %9122 = vmatpush.bf16.msra.mxu0 %v6611
  %9123 = vmatpush.bf16.msra.mxu0 %v6607
  %9124 = vmatpush.bf16.msra.mxu0 %v6603
  %9125 = vmatpush.bf16.msra.mxu0 %v6599
  %9126 = vmatpush.bf16.msra.mxu0 %v6595
  %9127 = vmatpush.bf16.msra.mxu0 %v6591
  %9128 = vmatpush.bf16.msra.mxu0 %v6587
  %9129 = vmatpush.bf16.msra.mxu0 %v6583
  %9130 = vmatmul.bf16.gmra.mxu0 %v1528
  %v9131 = vpop.f32.mrf.mxu0
  %v9132 = vadd.f32 %v9118, %v9131
  %v9133 = vpop.f32.mrf.mxu0
  %v9134 = vadd.f32 %v9120, %v9133
  %9135 = vdwg.mxu0
  %9136 = vmatpush.bf16.msra.mxu0 %v6643
  %9137 = vmatpush.bf16.msra.mxu0 %v6639
  %9138 = vmatpush.bf16.msra.mxu0 %v6635
  %9139 = vmatpush.bf16.msra.mxu0 %v6631
  %9140 = vmatpush.bf16.msra.mxu0 %v6627
  %9141 = vmatpush.bf16.msra.mxu0 %v6623
  %9142 = vmatpush.bf16.msra.mxu0 %v6619
  %9143 = vmatpush.bf16.msra.mxu0 %v6615
  %9144 = vmatmul.bf16.gmra.mxu0 %v1529
  %v9145 = vpop.f32.mrf.mxu0
  %v9146 = vadd.f32 %v9132, %v9145
  %v9147 = vpop.f32.mrf.mxu0
  %v9148 = vadd.f32 %v9134, %v9147
  %9149 = vdwg.mxu0
  %9150 = vmatpush.bf16.msra.mxu0 %v6675
  %9151 = vmatpush.bf16.msra.mxu0 %v6671
  %9152 = vmatpush.bf16.msra.mxu0 %v6667
  %9153 = vmatpush.bf16.msra.mxu0 %v6663
  %9154 = vmatpush.bf16.msra.mxu0 %v6659
  %9155 = vmatpush.bf16.msra.mxu0 %v6655
  %9156 = vmatpush.bf16.msra.mxu0 %v6651
  %9157 = vmatpush.bf16.msra.mxu0 %v6647
  %9158 = vmatmul.bf16.gmra.mxu0 %v1530
  %v9159 = vpop.f32.mrf.mxu0
  %v9160 = vadd.f32 %v9146, %v9159
  %v9161 = vpop.f32.mrf.mxu0
  %v9162 = vadd.f32 %v9148, %v9161
  %9163 = vdwg.mxu0
  %9164 = vmatpush.bf16.msra.mxu0 %v6707
  %9165 = vmatpush.bf16.msra.mxu0 %v6703
  %9166 = vmatpush.bf16.msra.mxu0 %v6699
  %9167 = vmatpush.bf16.msra.mxu0 %v6695
  %9168 = vmatpush.bf16.msra.mxu0 %v6691
  %9169 = vmatpush.bf16.msra.mxu0 %v6687
  %9170 = vmatpush.bf16.msra.mxu0 %v6683
  %9171 = vmatpush.bf16.msra.mxu0 %v6679
  %9172 = vmatmul.bf16.gmra.mxu0 %v1531
  %v9173 = vpop.f32.mrf.mxu0
  %v9174 = vadd.f32 %v9160, %v9173
  %v9175 = vpop.f32.mrf.mxu0
  %v9176 = vadd.f32 %v9162, %v9175
  %9177 = vdwg.mxu0
  %9178 = vmatpush.bf16.msra.mxu0 %v6739
  %9179 = vmatpush.bf16.msra.mxu0 %v6735
  %9180 = vmatpush.bf16.msra.mxu0 %v6731
  %9181 = vmatpush.bf16.msra.mxu0 %v6727
  %9182 = vmatpush.bf16.msra.mxu0 %v6723
  %9183 = vmatpush.bf16.msra.mxu0 %v6719
  %9184 = vmatpush.bf16.msra.mxu0 %v6715
  %9185 = vmatpush.bf16.msra.mxu0 %v6711
  %9186 = vmatmul.bf16.gmra.mxu0 %v1532
  %v9187 = vpop.f32.mrf.mxu0
  %v9188 = vadd.f32 %v9174, %v9187
  %v9189 = vpop.f32.mrf.mxu0
  %v9190 = vadd.f32 %v9176, %v9189
  %9191 = vdwg.mxu0
  %9192 = vmatpush.bf16.msra.mxu0 0
  %9193 = vmatpush.bf16.msra.mxu0 0
  %9194 = vmatpush.bf16.msra.mxu0 0
  %9195 = vmatpush.bf16.msra.mxu0 0
  %9196 = vmatpush.bf16.msra.mxu0 %v6755
  %9197 = vmatpush.bf16.msra.mxu0 %v6751
  %9198 = vmatpush.bf16.msra.mxu0 %v6747
  %9199 = vmatpush.bf16.msra.mxu0 %v6743
  %9200 = vmatmul.bf16.gmra.mxu0 %v8056
  %v9201 = vpop.f32.mrf.mxu0
  %v9202 = vadd.f32 %v9188, %v9201
  %v9203 = vpop.f32.mrf.mxu0
  %v9204 = vadd.f32 %v9190, %v9203
  %9205 = vdwg.mxu0
  %9206 = vmatpush.bf16.msra.mxu0 %v5492
  %9207 = vmatpush.bf16.msra.mxu0 %v5488
  %9208 = vmatpush.bf16.msra.mxu0 %v5484
  %9209 = vmatpush.bf16.msra.mxu0 %v5480
  %9210 = vmatpush.bf16.msra.mxu0 %v5476
  %9211 = vmatpush.bf16.msra.mxu0 %v5472
  %9212 = vmatpush.bf16.msra.mxu0 %v5468
  %9213 = vmatpush.bf16.msra.mxu0 %v5464
  %9214 = vmatmul.bf16.gmra.mxu0 %v1493
  %v9215 = vpop.f32.mrf.mxu0
  %v9216 = vadd.f32 %v1363, %v9215
  %v9217 = vpop.f32.mrf.mxu0
  %v9218 = vadd.f32 %v1363, %v9217
  %9219 = vdwg.mxu0
  %9220 = vmatpush.bf16.msra.mxu0 %v5524
  %9221 = vmatpush.bf16.msra.mxu0 %v5520
  %9222 = vmatpush.bf16.msra.mxu0 %v5516
  %9223 = vmatpush.bf16.msra.mxu0 %v5512
  %9224 = vmatpush.bf16.msra.mxu0 %v5508
  %9225 = vmatpush.bf16.msra.mxu0 %v5504
  %9226 = vmatpush.bf16.msra.mxu0 %v5500
  %9227 = vmatpush.bf16.msra.mxu0 %v5496
  %9228 = vmatmul.bf16.gmra.mxu0 %v1494
  %v9229 = vpop.f32.mrf.mxu0
  %v9230 = vadd.f32 %v9216, %v9229
  %v9231 = vpop.f32.mrf.mxu0
  %v9232 = vadd.f32 %v9218, %v9231
  %9233 = vdwg.mxu0
  %9234 = vmatpush.bf16.msra.mxu0 %v5556
  %9235 = vmatpush.bf16.msra.mxu0 %v5552
  %9236 = vmatpush.bf16.msra.mxu0 %v5548
  %9237 = vmatpush.bf16.msra.mxu0 %v5544
  %9238 = vmatpush.bf16.msra.mxu0 %v5540
  %9239 = vmatpush.bf16.msra.mxu0 %v5536
  %9240 = vmatpush.bf16.msra.mxu0 %v5532
  %9241 = vmatpush.bf16.msra.mxu0 %v5528
  %9242 = vmatmul.bf16.gmra.mxu0 %v1495
  %v9243 = vpop.f32.mrf.mxu0
  %v9244 = vadd.f32 %v9230, %v9243
  %v9245 = vpop.f32.mrf.mxu0
  %v9246 = vadd.f32 %v9232, %v9245
  %9247 = vdwg.mxu0
  %9248 = vmatpush.bf16.msra.mxu0 %v5588
  %9249 = vmatpush.bf16.msra.mxu0 %v5584
  %9250 = vmatpush.bf16.msra.mxu0 %v5580
  %9251 = vmatpush.bf16.msra.mxu0 %v5576
  %9252 = vmatpush.bf16.msra.mxu0 %v5572
  %9253 = vmatpush.bf16.msra.mxu0 %v5568
  %9254 = vmatpush.bf16.msra.mxu0 %v5564
  %9255 = vmatpush.bf16.msra.mxu0 %v5560
  %9256 = vmatmul.bf16.gmra.mxu0 %v1496
  %v9257 = vpop.f32.mrf.mxu0
  %v9258 = vadd.f32 %v9244, %v9257
  %v9259 = vpop.f32.mrf.mxu0
  %v9260 = vadd.f32 %v9246, %v9259
  %9261 = vdwg.mxu0
  %9262 = vmatpush.bf16.msra.mxu0 %v5620
  %9263 = vmatpush.bf16.msra.mxu0 %v5616
  %9264 = vmatpush.bf16.msra.mxu0 %v5612
  %9265 = vmatpush.bf16.msra.mxu0 %v5608
  %9266 = vmatpush.bf16.msra.mxu0 %v5604
  %9267 = vmatpush.bf16.msra.mxu0 %v5600
  %9268 = vmatpush.bf16.msra.mxu0 %v5596
  %9269 = vmatpush.bf16.msra.mxu0 %v5592
  %9270 = vmatmul.bf16.gmra.mxu0 %v1497
  %v9271 = vpop.f32.mrf.mxu0
  %v9272 = vadd.f32 %v9258, %v9271
  %v9273 = vpop.f32.mrf.mxu0
  %v9274 = vadd.f32 %v9260, %v9273
  %9275 = vdwg.mxu0
  %9276 = vmatpush.bf16.msra.mxu0 %v5652
  %9277 = vmatpush.bf16.msra.mxu0 %v5648
  %9278 = vmatpush.bf16.msra.mxu0 %v5644
  %9279 = vmatpush.bf16.msra.mxu0 %v5640
  %9280 = vmatpush.bf16.msra.mxu0 %v5636
  %9281 = vmatpush.bf16.msra.mxu0 %v5632
  %9282 = vmatpush.bf16.msra.mxu0 %v5628
  %9283 = vmatpush.bf16.msra.mxu0 %v5624
  %9284 = vmatmul.bf16.gmra.mxu0 %v1498
  %v9285 = vpop.f32.mrf.mxu0
  %v9286 = vadd.f32 %v9272, %v9285
  %v9287 = vpop.f32.mrf.mxu0
  %v9288 = vadd.f32 %v9274, %v9287
  %9289 = vdwg.mxu0
  %9290 = vmatpush.bf16.msra.mxu0 %v5684
  %9291 = vmatpush.bf16.msra.mxu0 %v5680
  %9292 = vmatpush.bf16.msra.mxu0 %v5676
  %9293 = vmatpush.bf16.msra.mxu0 %v5672
  %9294 = vmatpush.bf16.msra.mxu0 %v5668
  %9295 = vmatpush.bf16.msra.mxu0 %v5664
  %9296 = vmatpush.bf16.msra.mxu0 %v5660
  %9297 = vmatpush.bf16.msra.mxu0 %v5656
  %9298 = vmatmul.bf16.gmra.mxu0 %v1499
  %v9299 = vpop.f32.mrf.mxu0
  %v9300 = vadd.f32 %v9286, %v9299
  %v9301 = vpop.f32.mrf.mxu0
  %v9302 = vadd.f32 %v9288, %v9301
  %9303 = vdwg.mxu0
  %9304 = vmatpush.bf16.msra.mxu0 %v5716
  %9305 = vmatpush.bf16.msra.mxu0 %v5712
  %9306 = vmatpush.bf16.msra.mxu0 %v5708
  %9307 = vmatpush.bf16.msra.mxu0 %v5704
  %9308 = vmatpush.bf16.msra.mxu0 %v5700
  %9309 = vmatpush.bf16.msra.mxu0 %v5696
  %9310 = vmatpush.bf16.msra.mxu0 %v5692
  %9311 = vmatpush.bf16.msra.mxu0 %v5688
  %9312 = vmatmul.bf16.gmra.mxu0 %v1500
  %v9313 = vpop.f32.mrf.mxu0
  %v9314 = vadd.f32 %v9300, %v9313
  %v9315 = vpop.f32.mrf.mxu0
  %v9316 = vadd.f32 %v9302, %v9315
  %9317 = vdwg.mxu0
  %9318 = vmatpush.bf16.msra.mxu0 %v5748
  %9319 = vmatpush.bf16.msra.mxu0 %v5744
  %9320 = vmatpush.bf16.msra.mxu0 %v5740
  %9321 = vmatpush.bf16.msra.mxu0 %v5736
  %9322 = vmatpush.bf16.msra.mxu0 %v5732
  %9323 = vmatpush.bf16.msra.mxu0 %v5728
  %9324 = vmatpush.bf16.msra.mxu0 %v5724
  %9325 = vmatpush.bf16.msra.mxu0 %v5720
  %9326 = vmatmul.bf16.gmra.mxu0 %v1501
  %v9327 = vpop.f32.mrf.mxu0
  %v9328 = vadd.f32 %v9314, %v9327
  %v9329 = vpop.f32.mrf.mxu0
  %v9330 = vadd.f32 %v9316, %v9329
  %9331 = vdwg.mxu0
  %9332 = vmatpush.bf16.msra.mxu0 %v5780
  %9333 = vmatpush.bf16.msra.mxu0 %v5776
  %9334 = vmatpush.bf16.msra.mxu0 %v5772
  %9335 = vmatpush.bf16.msra.mxu0 %v5768
  %9336 = vmatpush.bf16.msra.mxu0 %v5764
  %9337 = vmatpush.bf16.msra.mxu0 %v5760
  %9338 = vmatpush.bf16.msra.mxu0 %v5756
  %9339 = vmatpush.bf16.msra.mxu0 %v5752
  %9340 = vmatmul.bf16.gmra.mxu0 %v1502
  %v9341 = vpop.f32.mrf.mxu0
  %v9342 = vadd.f32 %v9328, %v9341
  %v9343 = vpop.f32.mrf.mxu0
  %v9344 = vadd.f32 %v9330, %v9343
  %9345 = vdwg.mxu0
  %9346 = vmatpush.bf16.msra.mxu0 %v5812
  %9347 = vmatpush.bf16.msra.mxu0 %v5808
  %9348 = vmatpush.bf16.msra.mxu0 %v5804
  %9349 = vmatpush.bf16.msra.mxu0 %v5800
  %9350 = vmatpush.bf16.msra.mxu0 %v5796
  %9351 = vmatpush.bf16.msra.mxu0 %v5792
  %9352 = vmatpush.bf16.msra.mxu0 %v5788
  %9353 = vmatpush.bf16.msra.mxu0 %v5784
  %9354 = vmatmul.bf16.gmra.mxu0 %v1503
  %v9355 = vpop.f32.mrf.mxu0
  %v9356 = vadd.f32 %v9342, %v9355
  %v9357 = vpop.f32.mrf.mxu0
  %v9358 = vadd.f32 %v9344, %v9357
  %9359 = vdwg.mxu0
  %9360 = vmatpush.bf16.msra.mxu0 %v5844
  %9361 = vmatpush.bf16.msra.mxu0 %v5840
  %9362 = vmatpush.bf16.msra.mxu0 %v5836
  %9363 = vmatpush.bf16.msra.mxu0 %v5832
  %9364 = vmatpush.bf16.msra.mxu0 %v5828
  %9365 = vmatpush.bf16.msra.mxu0 %v5824
  %9366 = vmatpush.bf16.msra.mxu0 %v5820
  %9367 = vmatpush.bf16.msra.mxu0 %v5816
  %9368 = vmatmul.bf16.gmra.mxu0 %v1504
  %v9369 = vpop.f32.mrf.mxu0
  %v9370 = vadd.f32 %v9356, %v9369
  %v9371 = vpop.f32.mrf.mxu0
  %v9372 = vadd.f32 %v9358, %v9371
  %9373 = vdwg.mxu0
  %9374 = vmatpush.bf16.msra.mxu0 %v5876
  %9375 = vmatpush.bf16.msra.mxu0 %v5872
  %9376 = vmatpush.bf16.msra.mxu0 %v5868
  %9377 = vmatpush.bf16.msra.mxu0 %v5864
  %9378 = vmatpush.bf16.msra.mxu0 %v5860
  %9379 = vmatpush.bf16.msra.mxu0 %v5856
  %9380 = vmatpush.bf16.msra.mxu0 %v5852
  %9381 = vmatpush.bf16.msra.mxu0 %v5848
  %9382 = vmatmul.bf16.gmra.mxu0 %v1505
  %v9383 = vpop.f32.mrf.mxu0
  %v9384 = vadd.f32 %v9370, %v9383
  %v9385 = vpop.f32.mrf.mxu0
  %v9386 = vadd.f32 %v9372, %v9385
  %9387 = vdwg.mxu0
  %9388 = vmatpush.bf16.msra.mxu0 %v5908
  %9389 = vmatpush.bf16.msra.mxu0 %v5904
  %9390 = vmatpush.bf16.msra.mxu0 %v5900
  %9391 = vmatpush.bf16.msra.mxu0 %v5896
  %9392 = vmatpush.bf16.msra.mxu0 %v5892
  %9393 = vmatpush.bf16.msra.mxu0 %v5888
  %9394 = vmatpush.bf16.msra.mxu0 %v5884
  %9395 = vmatpush.bf16.msra.mxu0 %v5880
  %9396 = vmatmul.bf16.gmra.mxu0 %v1506
  %v9397 = vpop.f32.mrf.mxu0
  %v9398 = vadd.f32 %v9384, %v9397
  %v9399 = vpop.f32.mrf.mxu0
  %v9400 = vadd.f32 %v9386, %v9399
  %9401 = vdwg.mxu0
  %9402 = vmatpush.bf16.msra.mxu0 %v5940
  %9403 = vmatpush.bf16.msra.mxu0 %v5936
  %9404 = vmatpush.bf16.msra.mxu0 %v5932
  %9405 = vmatpush.bf16.msra.mxu0 %v5928
  %9406 = vmatpush.bf16.msra.mxu0 %v5924
  %9407 = vmatpush.bf16.msra.mxu0 %v5920
  %9408 = vmatpush.bf16.msra.mxu0 %v5916
  %9409 = vmatpush.bf16.msra.mxu0 %v5912
  %9410 = vmatmul.bf16.gmra.mxu0 %v1507
  %v9411 = vpop.f32.mrf.mxu0
  %v9412 = vadd.f32 %v9398, %v9411
  %v9413 = vpop.f32.mrf.mxu0
  %v9414 = vadd.f32 %v9400, %v9413
  %9415 = vdwg.mxu0
  %9416 = vmatpush.bf16.msra.mxu0 %v5972
  %9417 = vmatpush.bf16.msra.mxu0 %v5968
  %9418 = vmatpush.bf16.msra.mxu0 %v5964
  %9419 = vmatpush.bf16.msra.mxu0 %v5960
  %9420 = vmatpush.bf16.msra.mxu0 %v5956
  %9421 = vmatpush.bf16.msra.mxu0 %v5952
  %9422 = vmatpush.bf16.msra.mxu0 %v5948
  %9423 = vmatpush.bf16.msra.mxu0 %v5944
  %9424 = vmatmul.bf16.gmra.mxu0 %v1508
  %v9425 = vpop.f32.mrf.mxu0
  %v9426 = vadd.f32 %v9412, %v9425
  %v9427 = vpop.f32.mrf.mxu0
  %v9428 = vadd.f32 %v9414, %v9427
  %9429 = vdwg.mxu0
  %9430 = vmatpush.bf16.msra.mxu0 %v6004
  %9431 = vmatpush.bf16.msra.mxu0 %v6000
  %9432 = vmatpush.bf16.msra.mxu0 %v5996
  %9433 = vmatpush.bf16.msra.mxu0 %v5992
  %9434 = vmatpush.bf16.msra.mxu0 %v5988
  %9435 = vmatpush.bf16.msra.mxu0 %v5984
  %9436 = vmatpush.bf16.msra.mxu0 %v5980
  %9437 = vmatpush.bf16.msra.mxu0 %v5976
  %9438 = vmatmul.bf16.gmra.mxu0 %v1509
  %v9439 = vpop.f32.mrf.mxu0
  %v9440 = vadd.f32 %v9426, %v9439
  %v9441 = vpop.f32.mrf.mxu0
  %v9442 = vadd.f32 %v9428, %v9441
  %9443 = vdwg.mxu0
  %9444 = vmatpush.bf16.msra.mxu0 %v6036
  %9445 = vmatpush.bf16.msra.mxu0 %v6032
  %9446 = vmatpush.bf16.msra.mxu0 %v6028
  %9447 = vmatpush.bf16.msra.mxu0 %v6024
  %9448 = vmatpush.bf16.msra.mxu0 %v6020
  %9449 = vmatpush.bf16.msra.mxu0 %v6016
  %9450 = vmatpush.bf16.msra.mxu0 %v6012
  %9451 = vmatpush.bf16.msra.mxu0 %v6008
  %9452 = vmatmul.bf16.gmra.mxu0 %v1510
  %v9453 = vpop.f32.mrf.mxu0
  %v9454 = vadd.f32 %v9440, %v9453
  %v9455 = vpop.f32.mrf.mxu0
  %v9456 = vadd.f32 %v9442, %v9455
  %9457 = vdwg.mxu0
  %9458 = vmatpush.bf16.msra.mxu0 %v6068
  %9459 = vmatpush.bf16.msra.mxu0 %v6064
  %9460 = vmatpush.bf16.msra.mxu0 %v6060
  %9461 = vmatpush.bf16.msra.mxu0 %v6056
  %9462 = vmatpush.bf16.msra.mxu0 %v6052
  %9463 = vmatpush.bf16.msra.mxu0 %v6048
  %9464 = vmatpush.bf16.msra.mxu0 %v6044
  %9465 = vmatpush.bf16.msra.mxu0 %v6040
  %9466 = vmatmul.bf16.gmra.mxu0 %v1511
  %v9467 = vpop.f32.mrf.mxu0
  %v9468 = vadd.f32 %v9454, %v9467
  %v9469 = vpop.f32.mrf.mxu0
  %v9470 = vadd.f32 %v9456, %v9469
  %9471 = vdwg.mxu0
  %9472 = vmatpush.bf16.msra.mxu0 %v6100
  %9473 = vmatpush.bf16.msra.mxu0 %v6096
  %9474 = vmatpush.bf16.msra.mxu0 %v6092
  %9475 = vmatpush.bf16.msra.mxu0 %v6088
  %9476 = vmatpush.bf16.msra.mxu0 %v6084
  %9477 = vmatpush.bf16.msra.mxu0 %v6080
  %9478 = vmatpush.bf16.msra.mxu0 %v6076
  %9479 = vmatpush.bf16.msra.mxu0 %v6072
  %9480 = vmatmul.bf16.gmra.mxu0 %v1512
  %v9481 = vpop.f32.mrf.mxu0
  %v9482 = vadd.f32 %v9468, %v9481
  %v9483 = vpop.f32.mrf.mxu0
  %v9484 = vadd.f32 %v9470, %v9483
  %9485 = vdwg.mxu0
  %9486 = vmatpush.bf16.msra.mxu0 %v6132
  %9487 = vmatpush.bf16.msra.mxu0 %v6128
  %9488 = vmatpush.bf16.msra.mxu0 %v6124
  %9489 = vmatpush.bf16.msra.mxu0 %v6120
  %9490 = vmatpush.bf16.msra.mxu0 %v6116
  %9491 = vmatpush.bf16.msra.mxu0 %v6112
  %9492 = vmatpush.bf16.msra.mxu0 %v6108
  %9493 = vmatpush.bf16.msra.mxu0 %v6104
  %9494 = vmatmul.bf16.gmra.mxu0 %v1513
  %v9495 = vpop.f32.mrf.mxu0
  %v9496 = vadd.f32 %v9482, %v9495
  %v9497 = vpop.f32.mrf.mxu0
  %v9498 = vadd.f32 %v9484, %v9497
  %9499 = vdwg.mxu0
  %9500 = vmatpush.bf16.msra.mxu0 %v6164
  %9501 = vmatpush.bf16.msra.mxu0 %v6160
  %9502 = vmatpush.bf16.msra.mxu0 %v6156
  %9503 = vmatpush.bf16.msra.mxu0 %v6152
  %9504 = vmatpush.bf16.msra.mxu0 %v6148
  %9505 = vmatpush.bf16.msra.mxu0 %v6144
  %9506 = vmatpush.bf16.msra.mxu0 %v6140
  %9507 = vmatpush.bf16.msra.mxu0 %v6136
  %9508 = vmatmul.bf16.gmra.mxu0 %v1514
  %v9509 = vpop.f32.mrf.mxu0
  %v9510 = vadd.f32 %v9496, %v9509
  %v9511 = vpop.f32.mrf.mxu0
  %v9512 = vadd.f32 %v9498, %v9511
  %9513 = vdwg.mxu0
  %9514 = vmatpush.bf16.msra.mxu0 %v6196
  %9515 = vmatpush.bf16.msra.mxu0 %v6192
  %9516 = vmatpush.bf16.msra.mxu0 %v6188
  %9517 = vmatpush.bf16.msra.mxu0 %v6184
  %9518 = vmatpush.bf16.msra.mxu0 %v6180
  %9519 = vmatpush.bf16.msra.mxu0 %v6176
  %9520 = vmatpush.bf16.msra.mxu0 %v6172
  %9521 = vmatpush.bf16.msra.mxu0 %v6168
  %9522 = vmatmul.bf16.gmra.mxu0 %v1515
  %v9523 = vpop.f32.mrf.mxu0
  %v9524 = vadd.f32 %v9510, %v9523
  %v9525 = vpop.f32.mrf.mxu0
  %v9526 = vadd.f32 %v9512, %v9525
  %9527 = vdwg.mxu0
  %9528 = vmatpush.bf16.msra.mxu0 %v6228
  %9529 = vmatpush.bf16.msra.mxu0 %v6224
  %9530 = vmatpush.bf16.msra.mxu0 %v6220
  %9531 = vmatpush.bf16.msra.mxu0 %v6216
  %9532 = vmatpush.bf16.msra.mxu0 %v6212
  %9533 = vmatpush.bf16.msra.mxu0 %v6208
  %9534 = vmatpush.bf16.msra.mxu0 %v6204
  %9535 = vmatpush.bf16.msra.mxu0 %v6200
  %9536 = vmatmul.bf16.gmra.mxu0 %v1516
  %v9537 = vpop.f32.mrf.mxu0
  %v9538 = vadd.f32 %v9524, %v9537
  %v9539 = vpop.f32.mrf.mxu0
  %v9540 = vadd.f32 %v9526, %v9539
  %9541 = vdwg.mxu0
  %9542 = vmatpush.bf16.msra.mxu0 %v6260
  %9543 = vmatpush.bf16.msra.mxu0 %v6256
  %9544 = vmatpush.bf16.msra.mxu0 %v6252
  %9545 = vmatpush.bf16.msra.mxu0 %v6248
  %9546 = vmatpush.bf16.msra.mxu0 %v6244
  %9547 = vmatpush.bf16.msra.mxu0 %v6240
  %9548 = vmatpush.bf16.msra.mxu0 %v6236
  %9549 = vmatpush.bf16.msra.mxu0 %v6232
  %9550 = vmatmul.bf16.gmra.mxu0 %v1517
  %v9551 = vpop.f32.mrf.mxu0
  %v9552 = vadd.f32 %v9538, %v9551
  %v9553 = vpop.f32.mrf.mxu0
  %v9554 = vadd.f32 %v9540, %v9553
  %9555 = vdwg.mxu0
  %9556 = vmatpush.bf16.msra.mxu0 %v6292
  %9557 = vmatpush.bf16.msra.mxu0 %v6288
  %9558 = vmatpush.bf16.msra.mxu0 %v6284
  %9559 = vmatpush.bf16.msra.mxu0 %v6280
  %9560 = vmatpush.bf16.msra.mxu0 %v6276
  %9561 = vmatpush.bf16.msra.mxu0 %v6272
  %9562 = vmatpush.bf16.msra.mxu0 %v6268
  %9563 = vmatpush.bf16.msra.mxu0 %v6264
  %9564 = vmatmul.bf16.gmra.mxu0 %v1518
  %v9565 = vpop.f32.mrf.mxu0
  %v9566 = vadd.f32 %v9552, %v9565
  %v9567 = vpop.f32.mrf.mxu0
  %v9568 = vadd.f32 %v9554, %v9567
  %9569 = vdwg.mxu0
  %9570 = vmatpush.bf16.msra.mxu0 %v6324
  %9571 = vmatpush.bf16.msra.mxu0 %v6320
  %9572 = vmatpush.bf16.msra.mxu0 %v6316
  %9573 = vmatpush.bf16.msra.mxu0 %v6312
  %9574 = vmatpush.bf16.msra.mxu0 %v6308
  %9575 = vmatpush.bf16.msra.mxu0 %v6304
  %9576 = vmatpush.bf16.msra.mxu0 %v6300
  %9577 = vmatpush.bf16.msra.mxu0 %v6296
  %9578 = vmatmul.bf16.gmra.mxu0 %v1519
  %v9579 = vpop.f32.mrf.mxu0
  %v9580 = vadd.f32 %v9566, %v9579
  %v9581 = vpop.f32.mrf.mxu0
  %v9582 = vadd.f32 %v9568, %v9581
  %9583 = vdwg.mxu0
  %9584 = vmatpush.bf16.msra.mxu0 %v6356
  %9585 = vmatpush.bf16.msra.mxu0 %v6352
  %9586 = vmatpush.bf16.msra.mxu0 %v6348
  %9587 = vmatpush.bf16.msra.mxu0 %v6344
  %9588 = vmatpush.bf16.msra.mxu0 %v6340
  %9589 = vmatpush.bf16.msra.mxu0 %v6336
  %9590 = vmatpush.bf16.msra.mxu0 %v6332
  %9591 = vmatpush.bf16.msra.mxu0 %v6328
  %9592 = vmatmul.bf16.gmra.mxu0 %v1520
  %v9593 = vpop.f32.mrf.mxu0
  %v9594 = vadd.f32 %v9580, %v9593
  %v9595 = vpop.f32.mrf.mxu0
  %v9596 = vadd.f32 %v9582, %v9595
  %9597 = vdwg.mxu0
  %9598 = vmatpush.bf16.msra.mxu0 %v6388
  %9599 = vmatpush.bf16.msra.mxu0 %v6384
  %9600 = vmatpush.bf16.msra.mxu0 %v6380
  %9601 = vmatpush.bf16.msra.mxu0 %v6376
  %9602 = vmatpush.bf16.msra.mxu0 %v6372
  %9603 = vmatpush.bf16.msra.mxu0 %v6368
  %9604 = vmatpush.bf16.msra.mxu0 %v6364
  %9605 = vmatpush.bf16.msra.mxu0 %v6360
  %9606 = vmatmul.bf16.gmra.mxu0 %v1521
  %v9607 = vpop.f32.mrf.mxu0
  %v9608 = vadd.f32 %v9594, %v9607
  %v9609 = vpop.f32.mrf.mxu0
  %v9610 = vadd.f32 %v9596, %v9609
  %9611 = vdwg.mxu0
  %9612 = vmatpush.bf16.msra.mxu0 %v6420
  %9613 = vmatpush.bf16.msra.mxu0 %v6416
  %9614 = vmatpush.bf16.msra.mxu0 %v6412
  %9615 = vmatpush.bf16.msra.mxu0 %v6408
  %9616 = vmatpush.bf16.msra.mxu0 %v6404
  %9617 = vmatpush.bf16.msra.mxu0 %v6400
  %9618 = vmatpush.bf16.msra.mxu0 %v6396
  %9619 = vmatpush.bf16.msra.mxu0 %v6392
  %9620 = vmatmul.bf16.gmra.mxu0 %v1522
  %v9621 = vpop.f32.mrf.mxu0
  %v9622 = vadd.f32 %v9608, %v9621
  %v9623 = vpop.f32.mrf.mxu0
  %v9624 = vadd.f32 %v9610, %v9623
  %9625 = vdwg.mxu0
  %9626 = vmatpush.bf16.msra.mxu0 %v6452
  %9627 = vmatpush.bf16.msra.mxu0 %v6448
  %9628 = vmatpush.bf16.msra.mxu0 %v6444
  %9629 = vmatpush.bf16.msra.mxu0 %v6440
  %9630 = vmatpush.bf16.msra.mxu0 %v6436
  %9631 = vmatpush.bf16.msra.mxu0 %v6432
  %9632 = vmatpush.bf16.msra.mxu0 %v6428
  %9633 = vmatpush.bf16.msra.mxu0 %v6424
  %9634 = vmatmul.bf16.gmra.mxu0 %v1523
  %v9635 = vpop.f32.mrf.mxu0
  %v9636 = vadd.f32 %v9622, %v9635
  %v9637 = vpop.f32.mrf.mxu0
  %v9638 = vadd.f32 %v9624, %v9637
  %9639 = vdwg.mxu0
  %9640 = vmatpush.bf16.msra.mxu0 %v6484
  %9641 = vmatpush.bf16.msra.mxu0 %v6480
  %9642 = vmatpush.bf16.msra.mxu0 %v6476
  %9643 = vmatpush.bf16.msra.mxu0 %v6472
  %9644 = vmatpush.bf16.msra.mxu0 %v6468
  %9645 = vmatpush.bf16.msra.mxu0 %v6464
  %9646 = vmatpush.bf16.msra.mxu0 %v6460
  %9647 = vmatpush.bf16.msra.mxu0 %v6456
  %9648 = vmatmul.bf16.gmra.mxu0 %v1524
  %v9649 = vpop.f32.mrf.mxu0
  %v9650 = vadd.f32 %v9636, %v9649
  %v9651 = vpop.f32.mrf.mxu0
  %v9652 = vadd.f32 %v9638, %v9651
  %9653 = vdwg.mxu0
  %9654 = vmatpush.bf16.msra.mxu0 %v6516
  %9655 = vmatpush.bf16.msra.mxu0 %v6512
  %9656 = vmatpush.bf16.msra.mxu0 %v6508
  %9657 = vmatpush.bf16.msra.mxu0 %v6504
  %9658 = vmatpush.bf16.msra.mxu0 %v6500
  %9659 = vmatpush.bf16.msra.mxu0 %v6496
  %9660 = vmatpush.bf16.msra.mxu0 %v6492
  %9661 = vmatpush.bf16.msra.mxu0 %v6488
  %9662 = vmatmul.bf16.gmra.mxu0 %v1525
  %v9663 = vpop.f32.mrf.mxu0
  %v9664 = vadd.f32 %v9650, %v9663
  %v9665 = vpop.f32.mrf.mxu0
  %v9666 = vadd.f32 %v9652, %v9665
  %9667 = vdwg.mxu0
  %9668 = vmatpush.bf16.msra.mxu0 %v6548
  %9669 = vmatpush.bf16.msra.mxu0 %v6544
  %9670 = vmatpush.bf16.msra.mxu0 %v6540
  %9671 = vmatpush.bf16.msra.mxu0 %v6536
  %9672 = vmatpush.bf16.msra.mxu0 %v6532
  %9673 = vmatpush.bf16.msra.mxu0 %v6528
  %9674 = vmatpush.bf16.msra.mxu0 %v6524
  %9675 = vmatpush.bf16.msra.mxu0 %v6520
  %9676 = vmatmul.bf16.gmra.mxu0 %v1526
  %v9677 = vpop.f32.mrf.mxu0
  %v9678 = vadd.f32 %v9664, %v9677
  %v9679 = vpop.f32.mrf.mxu0
  %v9680 = vadd.f32 %v9666, %v9679
  %9681 = vdwg.mxu0
  %9682 = vmatpush.bf16.msra.mxu0 %v6580
  %9683 = vmatpush.bf16.msra.mxu0 %v6576
  %9684 = vmatpush.bf16.msra.mxu0 %v6572
  %9685 = vmatpush.bf16.msra.mxu0 %v6568
  %9686 = vmatpush.bf16.msra.mxu0 %v6564
  %9687 = vmatpush.bf16.msra.mxu0 %v6560
  %9688 = vmatpush.bf16.msra.mxu0 %v6556
  %9689 = vmatpush.bf16.msra.mxu0 %v6552
  %9690 = vmatmul.bf16.gmra.mxu0 %v1527
  %v9691 = vpop.f32.mrf.mxu0
  %v9692 = vadd.f32 %v9678, %v9691
  %v9693 = vpop.f32.mrf.mxu0
  %v9694 = vadd.f32 %v9680, %v9693
  %9695 = vdwg.mxu0
  %9696 = vmatpush.bf16.msra.mxu0 %v6612
  %9697 = vmatpush.bf16.msra.mxu0 %v6608
  %9698 = vmatpush.bf16.msra.mxu0 %v6604
  %9699 = vmatpush.bf16.msra.mxu0 %v6600
  %9700 = vmatpush.bf16.msra.mxu0 %v6596
  %9701 = vmatpush.bf16.msra.mxu0 %v6592
  %9702 = vmatpush.bf16.msra.mxu0 %v6588
  %9703 = vmatpush.bf16.msra.mxu0 %v6584
  %9704 = vmatmul.bf16.gmra.mxu0 %v1528
  %v9705 = vpop.f32.mrf.mxu0
  %v9706 = vadd.f32 %v9692, %v9705
  %v9707 = vpop.f32.mrf.mxu0
  %v9708 = vadd.f32 %v9694, %v9707
  %9709 = vdwg.mxu0
  %9710 = vmatpush.bf16.msra.mxu0 %v6644
  %9711 = vmatpush.bf16.msra.mxu0 %v6640
  %9712 = vmatpush.bf16.msra.mxu0 %v6636
  %9713 = vmatpush.bf16.msra.mxu0 %v6632
  %9714 = vmatpush.bf16.msra.mxu0 %v6628
  %9715 = vmatpush.bf16.msra.mxu0 %v6624
  %9716 = vmatpush.bf16.msra.mxu0 %v6620
  %9717 = vmatpush.bf16.msra.mxu0 %v6616
  %9718 = vmatmul.bf16.gmra.mxu0 %v1529
  %v9719 = vpop.f32.mrf.mxu0
  %v9720 = vadd.f32 %v9706, %v9719
  %v9721 = vpop.f32.mrf.mxu0
  %v9722 = vadd.f32 %v9708, %v9721
  %9723 = vdwg.mxu0
  %9724 = vmatpush.bf16.msra.mxu0 %v6676
  %9725 = vmatpush.bf16.msra.mxu0 %v6672
  %9726 = vmatpush.bf16.msra.mxu0 %v6668
  %9727 = vmatpush.bf16.msra.mxu0 %v6664
  %9728 = vmatpush.bf16.msra.mxu0 %v6660
  %9729 = vmatpush.bf16.msra.mxu0 %v6656
  %9730 = vmatpush.bf16.msra.mxu0 %v6652
  %9731 = vmatpush.bf16.msra.mxu0 %v6648
  %9732 = vmatmul.bf16.gmra.mxu0 %v1530
  %v9733 = vpop.f32.mrf.mxu0
  %v9734 = vadd.f32 %v9720, %v9733
  %v9735 = vpop.f32.mrf.mxu0
  %v9736 = vadd.f32 %v9722, %v9735
  %9737 = vdwg.mxu0
  %9738 = vmatpush.bf16.msra.mxu0 %v6708
  %9739 = vmatpush.bf16.msra.mxu0 %v6704
  %9740 = vmatpush.bf16.msra.mxu0 %v6700
  %9741 = vmatpush.bf16.msra.mxu0 %v6696
  %9742 = vmatpush.bf16.msra.mxu0 %v6692
  %9743 = vmatpush.bf16.msra.mxu0 %v6688
  %9744 = vmatpush.bf16.msra.mxu0 %v6684
  %9745 = vmatpush.bf16.msra.mxu0 %v6680
  %9746 = vmatmul.bf16.gmra.mxu0 %v1531
  %v9747 = vpop.f32.mrf.mxu0
  %v9748 = vadd.f32 %v9734, %v9747
  %v9749 = vpop.f32.mrf.mxu0
  %v9750 = vadd.f32 %v9736, %v9749
  %9751 = vdwg.mxu0
  %9752 = vmatpush.bf16.msra.mxu0 %v6740
  %9753 = vmatpush.bf16.msra.mxu0 %v6736
  %9754 = vmatpush.bf16.msra.mxu0 %v6732
  %9755 = vmatpush.bf16.msra.mxu0 %v6728
  %9756 = vmatpush.bf16.msra.mxu0 %v6724
  %9757 = vmatpush.bf16.msra.mxu0 %v6720
  %9758 = vmatpush.bf16.msra.mxu0 %v6716
  %9759 = vmatpush.bf16.msra.mxu0 %v6712
  %9760 = vmatmul.bf16.gmra.mxu0 %v1532
  %v9761 = vpop.f32.mrf.mxu0
  %v9762 = vadd.f32 %v9748, %v9761
  %v9763 = vpop.f32.mrf.mxu0
  %v9764 = vadd.f32 %v9750, %v9763
  %9765 = vdwg.mxu0
  %9766 = vmatpush.bf16.msra.mxu0 0
  %9767 = vmatpush.bf16.msra.mxu0 0
  %9768 = vmatpush.bf16.msra.mxu0 0
  %9769 = vmatpush.bf16.msra.mxu0 0
  %9770 = vmatpush.bf16.msra.mxu0 %v6756
  %9771 = vmatpush.bf16.msra.mxu0 %v6752
  %9772 = vmatpush.bf16.msra.mxu0 %v6748
  %9773 = vmatpush.bf16.msra.mxu0 %v6744
  %9774 = vmatmul.bf16.gmra.mxu0 %v8056
  %v9775 = vpop.f32.mrf.mxu0
  %v9776 = vadd.f32 %v9762, %v9775
  %v9777 = vpop.f32.mrf.mxu0
  %v9778 = vadd.f32 %v9764, %v9777
  %9779 = vdwg.mxu0
  %9780 = vmatpush.bf16.msra.mxu0 %v5493
  %9781 = vmatpush.bf16.msra.mxu0 %v5489
  %9782 = vmatpush.bf16.msra.mxu0 %v5485
  %9783 = vmatpush.bf16.msra.mxu0 %v5481
  %9784 = vmatpush.bf16.msra.mxu0 %v5477
  %9785 = vmatpush.bf16.msra.mxu0 %v5473
  %9786 = vmatpush.bf16.msra.mxu0 %v5469
  %9787 = vmatpush.bf16.msra.mxu0 %v5465
  %9788 = vmatmul.bf16.gmra.mxu0 %v1493
  %v9789 = vpop.f32.mrf.mxu0
  %v9790 = vadd.f32 %v1364, %v9789
  %v9791 = vpop.f32.mrf.mxu0
  %v9792 = vadd.f32 %v1364, %v9791
  %9793 = vdwg.mxu0
  %9794 = vmatpush.bf16.msra.mxu0 %v5525
  %9795 = vmatpush.bf16.msra.mxu0 %v5521
  %9796 = vmatpush.bf16.msra.mxu0 %v5517
  %9797 = vmatpush.bf16.msra.mxu0 %v5513
  %9798 = vmatpush.bf16.msra.mxu0 %v5509
  %9799 = vmatpush.bf16.msra.mxu0 %v5505
  %9800 = vmatpush.bf16.msra.mxu0 %v5501
  %9801 = vmatpush.bf16.msra.mxu0 %v5497
  %9802 = vmatmul.bf16.gmra.mxu0 %v1494
  %v9803 = vpop.f32.mrf.mxu0
  %v9804 = vadd.f32 %v9790, %v9803
  %v9805 = vpop.f32.mrf.mxu0
  %v9806 = vadd.f32 %v9792, %v9805
  %9807 = vdwg.mxu0
  %9808 = vmatpush.bf16.msra.mxu0 %v5557
  %9809 = vmatpush.bf16.msra.mxu0 %v5553
  %9810 = vmatpush.bf16.msra.mxu0 %v5549
  %9811 = vmatpush.bf16.msra.mxu0 %v5545
  %9812 = vmatpush.bf16.msra.mxu0 %v5541
  %9813 = vmatpush.bf16.msra.mxu0 %v5537
  %9814 = vmatpush.bf16.msra.mxu0 %v5533
  %9815 = vmatpush.bf16.msra.mxu0 %v5529
  %9816 = vmatmul.bf16.gmra.mxu0 %v1495
  %v9817 = vpop.f32.mrf.mxu0
  %v9818 = vadd.f32 %v9804, %v9817
  %v9819 = vpop.f32.mrf.mxu0
  %v9820 = vadd.f32 %v9806, %v9819
  %9821 = vdwg.mxu0
  %9822 = vmatpush.bf16.msra.mxu0 %v5589
  %9823 = vmatpush.bf16.msra.mxu0 %v5585
  %9824 = vmatpush.bf16.msra.mxu0 %v5581
  %9825 = vmatpush.bf16.msra.mxu0 %v5577
  %9826 = vmatpush.bf16.msra.mxu0 %v5573
  %9827 = vmatpush.bf16.msra.mxu0 %v5569
  %9828 = vmatpush.bf16.msra.mxu0 %v5565
  %9829 = vmatpush.bf16.msra.mxu0 %v5561
  %9830 = vmatmul.bf16.gmra.mxu0 %v1496
  %v9831 = vpop.f32.mrf.mxu0
  %v9832 = vadd.f32 %v9818, %v9831
  %v9833 = vpop.f32.mrf.mxu0
  %v9834 = vadd.f32 %v9820, %v9833
  %9835 = vdwg.mxu0
  %9836 = vmatpush.bf16.msra.mxu0 %v5621
  %9837 = vmatpush.bf16.msra.mxu0 %v5617
  %9838 = vmatpush.bf16.msra.mxu0 %v5613
  %9839 = vmatpush.bf16.msra.mxu0 %v5609
  %9840 = vmatpush.bf16.msra.mxu0 %v5605
  %9841 = vmatpush.bf16.msra.mxu0 %v5601
  %9842 = vmatpush.bf16.msra.mxu0 %v5597
  %9843 = vmatpush.bf16.msra.mxu0 %v5593
  %9844 = vmatmul.bf16.gmra.mxu0 %v1497
  %v9845 = vpop.f32.mrf.mxu0
  %v9846 = vadd.f32 %v9832, %v9845
  %v9847 = vpop.f32.mrf.mxu0
  %v9848 = vadd.f32 %v9834, %v9847
  %9849 = vdwg.mxu0
  %9850 = vmatpush.bf16.msra.mxu0 %v5653
  %9851 = vmatpush.bf16.msra.mxu0 %v5649
  %9852 = vmatpush.bf16.msra.mxu0 %v5645
  %9853 = vmatpush.bf16.msra.mxu0 %v5641
  %9854 = vmatpush.bf16.msra.mxu0 %v5637
  %9855 = vmatpush.bf16.msra.mxu0 %v5633
  %9856 = vmatpush.bf16.msra.mxu0 %v5629
  %9857 = vmatpush.bf16.msra.mxu0 %v5625
  %9858 = vmatmul.bf16.gmra.mxu0 %v1498
  %v9859 = vpop.f32.mrf.mxu0
  %v9860 = vadd.f32 %v9846, %v9859
  %v9861 = vpop.f32.mrf.mxu0
  %v9862 = vadd.f32 %v9848, %v9861
  %9863 = vdwg.mxu0
  %9864 = vmatpush.bf16.msra.mxu0 %v5685
  %9865 = vmatpush.bf16.msra.mxu0 %v5681
  %9866 = vmatpush.bf16.msra.mxu0 %v5677
  %9867 = vmatpush.bf16.msra.mxu0 %v5673
  %9868 = vmatpush.bf16.msra.mxu0 %v5669
  %9869 = vmatpush.bf16.msra.mxu0 %v5665
  %9870 = vmatpush.bf16.msra.mxu0 %v5661
  %9871 = vmatpush.bf16.msra.mxu0 %v5657
  %9872 = vmatmul.bf16.gmra.mxu0 %v1499
  %v9873 = vpop.f32.mrf.mxu0
  %v9874 = vadd.f32 %v9860, %v9873
  %v9875 = vpop.f32.mrf.mxu0
  %v9876 = vadd.f32 %v9862, %v9875
  %9877 = vdwg.mxu0
  %9878 = vmatpush.bf16.msra.mxu0 %v5717
  %9879 = vmatpush.bf16.msra.mxu0 %v5713
  %9880 = vmatpush.bf16.msra.mxu0 %v5709
  %9881 = vmatpush.bf16.msra.mxu0 %v5705
  %9882 = vmatpush.bf16.msra.mxu0 %v5701
  %9883 = vmatpush.bf16.msra.mxu0 %v5697
  %9884 = vmatpush.bf16.msra.mxu0 %v5693
  %9885 = vmatpush.bf16.msra.mxu0 %v5689
  %9886 = vmatmul.bf16.gmra.mxu0 %v1500
  %v9887 = vpop.f32.mrf.mxu0
  %v9888 = vadd.f32 %v9874, %v9887
  %v9889 = vpop.f32.mrf.mxu0
  %v9890 = vadd.f32 %v9876, %v9889
  %9891 = vdwg.mxu0
  %9892 = vmatpush.bf16.msra.mxu0 %v5749
  %9893 = vmatpush.bf16.msra.mxu0 %v5745
  %9894 = vmatpush.bf16.msra.mxu0 %v5741
  %9895 = vmatpush.bf16.msra.mxu0 %v5737
  %9896 = vmatpush.bf16.msra.mxu0 %v5733
  %9897 = vmatpush.bf16.msra.mxu0 %v5729
  %9898 = vmatpush.bf16.msra.mxu0 %v5725
  %9899 = vmatpush.bf16.msra.mxu0 %v5721
  %9900 = vmatmul.bf16.gmra.mxu0 %v1501
  %v9901 = vpop.f32.mrf.mxu0
  %v9902 = vadd.f32 %v9888, %v9901
  %v9903 = vpop.f32.mrf.mxu0
  %v9904 = vadd.f32 %v9890, %v9903
  %9905 = vdwg.mxu0
  %9906 = vmatpush.bf16.msra.mxu0 %v5781
  %9907 = vmatpush.bf16.msra.mxu0 %v5777
  %9908 = vmatpush.bf16.msra.mxu0 %v5773
  %9909 = vmatpush.bf16.msra.mxu0 %v5769
  %9910 = vmatpush.bf16.msra.mxu0 %v5765
  %9911 = vmatpush.bf16.msra.mxu0 %v5761
  %9912 = vmatpush.bf16.msra.mxu0 %v5757
  %9913 = vmatpush.bf16.msra.mxu0 %v5753
  %9914 = vmatmul.bf16.gmra.mxu0 %v1502
  %v9915 = vpop.f32.mrf.mxu0
  %v9916 = vadd.f32 %v9902, %v9915
  %v9917 = vpop.f32.mrf.mxu0
  %v9918 = vadd.f32 %v9904, %v9917
  %9919 = vdwg.mxu0
  %9920 = vmatpush.bf16.msra.mxu0 %v5813
  %9921 = vmatpush.bf16.msra.mxu0 %v5809
  %9922 = vmatpush.bf16.msra.mxu0 %v5805
  %9923 = vmatpush.bf16.msra.mxu0 %v5801
  %9924 = vmatpush.bf16.msra.mxu0 %v5797
  %9925 = vmatpush.bf16.msra.mxu0 %v5793
  %9926 = vmatpush.bf16.msra.mxu0 %v5789
  %9927 = vmatpush.bf16.msra.mxu0 %v5785
  %9928 = vmatmul.bf16.gmra.mxu0 %v1503
  %v9929 = vpop.f32.mrf.mxu0
  %v9930 = vadd.f32 %v9916, %v9929
  %v9931 = vpop.f32.mrf.mxu0
  %v9932 = vadd.f32 %v9918, %v9931
  %9933 = vdwg.mxu0
  %9934 = vmatpush.bf16.msra.mxu0 %v5845
  %9935 = vmatpush.bf16.msra.mxu0 %v5841
  %9936 = vmatpush.bf16.msra.mxu0 %v5837
  %9937 = vmatpush.bf16.msra.mxu0 %v5833
  %9938 = vmatpush.bf16.msra.mxu0 %v5829
  %9939 = vmatpush.bf16.msra.mxu0 %v5825
  %9940 = vmatpush.bf16.msra.mxu0 %v5821
  %9941 = vmatpush.bf16.msra.mxu0 %v5817
  %9942 = vmatmul.bf16.gmra.mxu0 %v1504
  %v9943 = vpop.f32.mrf.mxu0
  %v9944 = vadd.f32 %v9930, %v9943
  %v9945 = vpop.f32.mrf.mxu0
  %v9946 = vadd.f32 %v9932, %v9945
  %9947 = vdwg.mxu0
  %9948 = vmatpush.bf16.msra.mxu0 %v5877
  %9949 = vmatpush.bf16.msra.mxu0 %v5873
  %9950 = vmatpush.bf16.msra.mxu0 %v5869
  %9951 = vmatpush.bf16.msra.mxu0 %v5865
  %9952 = vmatpush.bf16.msra.mxu0 %v5861
  %9953 = vmatpush.bf16.msra.mxu0 %v5857
  %9954 = vmatpush.bf16.msra.mxu0 %v5853
  %9955 = vmatpush.bf16.msra.mxu0 %v5849
  %9956 = vmatmul.bf16.gmra.mxu0 %v1505
  %v9957 = vpop.f32.mrf.mxu0
  %v9958 = vadd.f32 %v9944, %v9957
  %v9959 = vpop.f32.mrf.mxu0
  %v9960 = vadd.f32 %v9946, %v9959
  %9961 = vdwg.mxu0
  %9962 = vmatpush.bf16.msra.mxu0 %v5909
  %9963 = vmatpush.bf16.msra.mxu0 %v5905
  %9964 = vmatpush.bf16.msra.mxu0 %v5901
  %9965 = vmatpush.bf16.msra.mxu0 %v5897
  %9966 = vmatpush.bf16.msra.mxu0 %v5893
  %9967 = vmatpush.bf16.msra.mxu0 %v5889
  %9968 = vmatpush.bf16.msra.mxu0 %v5885
  %9969 = vmatpush.bf16.msra.mxu0 %v5881
  %9970 = vmatmul.bf16.gmra.mxu0 %v1506
  %v9971 = vpop.f32.mrf.mxu0
  %v9972 = vadd.f32 %v9958, %v9971
  %v9973 = vpop.f32.mrf.mxu0
  %v9974 = vadd.f32 %v9960, %v9973
  %9975 = vdwg.mxu0
  %9976 = vmatpush.bf16.msra.mxu0 %v5941
  %9977 = vmatpush.bf16.msra.mxu0 %v5937
  %9978 = vmatpush.bf16.msra.mxu0 %v5933
  %9979 = vmatpush.bf16.msra.mxu0 %v5929
  %9980 = vmatpush.bf16.msra.mxu0 %v5925
  %9981 = vmatpush.bf16.msra.mxu0 %v5921
  %9982 = vmatpush.bf16.msra.mxu0 %v5917
  %9983 = vmatpush.bf16.msra.mxu0 %v5913
  %9984 = vmatmul.bf16.gmra.mxu0 %v1507
  %v9985 = vpop.f32.mrf.mxu0
  %v9986 = vadd.f32 %v9972, %v9985
  %v9987 = vpop.f32.mrf.mxu0
  %v9988 = vadd.f32 %v9974, %v9987
  %9989 = vdwg.mxu0
  %9990 = vmatpush.bf16.msra.mxu0 %v5973
  %9991 = vmatpush.bf16.msra.mxu0 %v5969
  %9992 = vmatpush.bf16.msra.mxu0 %v5965
  %9993 = vmatpush.bf16.msra.mxu0 %v5961
  %9994 = vmatpush.bf16.msra.mxu0 %v5957
  %9995 = vmatpush.bf16.msra.mxu0 %v5953
  %9996 = vmatpush.bf16.msra.mxu0 %v5949
  %9997 = vmatpush.bf16.msra.mxu0 %v5945
  %9998 = vmatmul.bf16.gmra.mxu0 %v1508
  %v9999 = vpop.f32.mrf.mxu0
  %v10000 = vadd.f32 %v9986, %v9999
  %v10001 = vpop.f32.mrf.mxu0
  %v10002 = vadd.f32 %v9988, %v10001
  %10003 = vdwg.mxu0
  %10004 = vmatpush.bf16.msra.mxu0 %v6005
  %10005 = vmatpush.bf16.msra.mxu0 %v6001
  %10006 = vmatpush.bf16.msra.mxu0 %v5997
  %10007 = vmatpush.bf16.msra.mxu0 %v5993
  %10008 = vmatpush.bf16.msra.mxu0 %v5989
  %10009 = vmatpush.bf16.msra.mxu0 %v5985
  %10010 = vmatpush.bf16.msra.mxu0 %v5981
  %10011 = vmatpush.bf16.msra.mxu0 %v5977
  %10012 = vmatmul.bf16.gmra.mxu0 %v1509
  %v10013 = vpop.f32.mrf.mxu0
  %v10014 = vadd.f32 %v10000, %v10013
  %v10015 = vpop.f32.mrf.mxu0
  %v10016 = vadd.f32 %v10002, %v10015
  %10017 = vdwg.mxu0
  %10018 = vmatpush.bf16.msra.mxu0 %v6037
  %10019 = vmatpush.bf16.msra.mxu0 %v6033
  %10020 = vmatpush.bf16.msra.mxu0 %v6029
  %10021 = vmatpush.bf16.msra.mxu0 %v6025
  %10022 = vmatpush.bf16.msra.mxu0 %v6021
  %10023 = vmatpush.bf16.msra.mxu0 %v6017
  %10024 = vmatpush.bf16.msra.mxu0 %v6013
  %10025 = vmatpush.bf16.msra.mxu0 %v6009
  %10026 = vmatmul.bf16.gmra.mxu0 %v1510
  %v10027 = vpop.f32.mrf.mxu0
  %v10028 = vadd.f32 %v10014, %v10027
  %v10029 = vpop.f32.mrf.mxu0
  %v10030 = vadd.f32 %v10016, %v10029
  %10031 = vdwg.mxu0
  %10032 = vmatpush.bf16.msra.mxu0 %v6069
  %10033 = vmatpush.bf16.msra.mxu0 %v6065
  %10034 = vmatpush.bf16.msra.mxu0 %v6061
  %10035 = vmatpush.bf16.msra.mxu0 %v6057
  %10036 = vmatpush.bf16.msra.mxu0 %v6053
  %10037 = vmatpush.bf16.msra.mxu0 %v6049
  %10038 = vmatpush.bf16.msra.mxu0 %v6045
  %10039 = vmatpush.bf16.msra.mxu0 %v6041
  %10040 = vmatmul.bf16.gmra.mxu0 %v1511
  %v10041 = vpop.f32.mrf.mxu0
  %v10042 = vadd.f32 %v10028, %v10041
  %v10043 = vpop.f32.mrf.mxu0
  %v10044 = vadd.f32 %v10030, %v10043
  %10045 = vdwg.mxu0
  %10046 = vmatpush.bf16.msra.mxu0 %v6101
  %10047 = vmatpush.bf16.msra.mxu0 %v6097
  %10048 = vmatpush.bf16.msra.mxu0 %v6093
  %10049 = vmatpush.bf16.msra.mxu0 %v6089
  %10050 = vmatpush.bf16.msra.mxu0 %v6085
  %10051 = vmatpush.bf16.msra.mxu0 %v6081
  %10052 = vmatpush.bf16.msra.mxu0 %v6077
  %10053 = vmatpush.bf16.msra.mxu0 %v6073
  %10054 = vmatmul.bf16.gmra.mxu0 %v1512
  %v10055 = vpop.f32.mrf.mxu0
  %v10056 = vadd.f32 %v10042, %v10055
  %v10057 = vpop.f32.mrf.mxu0
  %v10058 = vadd.f32 %v10044, %v10057
  %10059 = vdwg.mxu0
  %10060 = vmatpush.bf16.msra.mxu0 %v6133
  %10061 = vmatpush.bf16.msra.mxu0 %v6129
  %10062 = vmatpush.bf16.msra.mxu0 %v6125
  %10063 = vmatpush.bf16.msra.mxu0 %v6121
  %10064 = vmatpush.bf16.msra.mxu0 %v6117
  %10065 = vmatpush.bf16.msra.mxu0 %v6113
  %10066 = vmatpush.bf16.msra.mxu0 %v6109
  %10067 = vmatpush.bf16.msra.mxu0 %v6105
  %10068 = vmatmul.bf16.gmra.mxu0 %v1513
  %v10069 = vpop.f32.mrf.mxu0
  %v10070 = vadd.f32 %v10056, %v10069
  %v10071 = vpop.f32.mrf.mxu0
  %v10072 = vadd.f32 %v10058, %v10071
  %10073 = vdwg.mxu0
  %10074 = vmatpush.bf16.msra.mxu0 %v6165
  %10075 = vmatpush.bf16.msra.mxu0 %v6161
  %10076 = vmatpush.bf16.msra.mxu0 %v6157
  %10077 = vmatpush.bf16.msra.mxu0 %v6153
  %10078 = vmatpush.bf16.msra.mxu0 %v6149
  %10079 = vmatpush.bf16.msra.mxu0 %v6145
  %10080 = vmatpush.bf16.msra.mxu0 %v6141
  %10081 = vmatpush.bf16.msra.mxu0 %v6137
  %10082 = vmatmul.bf16.gmra.mxu0 %v1514
  %v10083 = vpop.f32.mrf.mxu0
  %v10084 = vadd.f32 %v10070, %v10083
  %v10085 = vpop.f32.mrf.mxu0
  %v10086 = vadd.f32 %v10072, %v10085
  %10087 = vdwg.mxu0
  %10088 = vmatpush.bf16.msra.mxu0 %v6197
  %10089 = vmatpush.bf16.msra.mxu0 %v6193
  %10090 = vmatpush.bf16.msra.mxu0 %v6189
  %10091 = vmatpush.bf16.msra.mxu0 %v6185
  %10092 = vmatpush.bf16.msra.mxu0 %v6181
  %10093 = vmatpush.bf16.msra.mxu0 %v6177
  %10094 = vmatpush.bf16.msra.mxu0 %v6173
  %10095 = vmatpush.bf16.msra.mxu0 %v6169
  %10096 = vmatmul.bf16.gmra.mxu0 %v1515
  %v10097 = vpop.f32.mrf.mxu0
  %v10098 = vadd.f32 %v10084, %v10097
  %v10099 = vpop.f32.mrf.mxu0
  %v10100 = vadd.f32 %v10086, %v10099
  %10101 = vdwg.mxu0
  %10102 = vmatpush.bf16.msra.mxu0 %v6229
  %10103 = vmatpush.bf16.msra.mxu0 %v6225
  %10104 = vmatpush.bf16.msra.mxu0 %v6221
  %10105 = vmatpush.bf16.msra.mxu0 %v6217
  %10106 = vmatpush.bf16.msra.mxu0 %v6213
  %10107 = vmatpush.bf16.msra.mxu0 %v6209
  %10108 = vmatpush.bf16.msra.mxu0 %v6205
  %10109 = vmatpush.bf16.msra.mxu0 %v6201
  %10110 = vmatmul.bf16.gmra.mxu0 %v1516
  %v10111 = vpop.f32.mrf.mxu0
  %v10112 = vadd.f32 %v10098, %v10111
  %v10113 = vpop.f32.mrf.mxu0
  %v10114 = vadd.f32 %v10100, %v10113
  %10115 = vdwg.mxu0
  %10116 = vmatpush.bf16.msra.mxu0 %v6261
  %10117 = vmatpush.bf16.msra.mxu0 %v6257
  %10118 = vmatpush.bf16.msra.mxu0 %v6253
  %10119 = vmatpush.bf16.msra.mxu0 %v6249
  %10120 = vmatpush.bf16.msra.mxu0 %v6245
  %10121 = vmatpush.bf16.msra.mxu0 %v6241
  %10122 = vmatpush.bf16.msra.mxu0 %v6237
  %10123 = vmatpush.bf16.msra.mxu0 %v6233
  %10124 = vmatmul.bf16.gmra.mxu0 %v1517
  %v10125 = vpop.f32.mrf.mxu0
  %v10126 = vadd.f32 %v10112, %v10125
  %v10127 = vpop.f32.mrf.mxu0
  %v10128 = vadd.f32 %v10114, %v10127
  %10129 = vdwg.mxu0
  %10130 = vmatpush.bf16.msra.mxu0 %v6293
  %10131 = vmatpush.bf16.msra.mxu0 %v6289
  %10132 = vmatpush.bf16.msra.mxu0 %v6285
  %10133 = vmatpush.bf16.msra.mxu0 %v6281
  %10134 = vmatpush.bf16.msra.mxu0 %v6277
  %10135 = vmatpush.bf16.msra.mxu0 %v6273
  %10136 = vmatpush.bf16.msra.mxu0 %v6269
  %10137 = vmatpush.bf16.msra.mxu0 %v6265
  %10138 = vmatmul.bf16.gmra.mxu0 %v1518
  %v10139 = vpop.f32.mrf.mxu0
  %v10140 = vadd.f32 %v10126, %v10139
  %v10141 = vpop.f32.mrf.mxu0
  %v10142 = vadd.f32 %v10128, %v10141
  %10143 = vdwg.mxu0
  %10144 = vmatpush.bf16.msra.mxu0 %v6325
  %10145 = vmatpush.bf16.msra.mxu0 %v6321
  %10146 = vmatpush.bf16.msra.mxu0 %v6317
  %10147 = vmatpush.bf16.msra.mxu0 %v6313
  %10148 = vmatpush.bf16.msra.mxu0 %v6309
  %10149 = vmatpush.bf16.msra.mxu0 %v6305
  %10150 = vmatpush.bf16.msra.mxu0 %v6301
  %10151 = vmatpush.bf16.msra.mxu0 %v6297
  %10152 = vmatmul.bf16.gmra.mxu0 %v1519
  %v10153 = vpop.f32.mrf.mxu0
  %v10154 = vadd.f32 %v10140, %v10153
  %v10155 = vpop.f32.mrf.mxu0
  %v10156 = vadd.f32 %v10142, %v10155
  %10157 = vdwg.mxu0
  %10158 = vmatpush.bf16.msra.mxu0 %v6357
  %10159 = vmatpush.bf16.msra.mxu0 %v6353
  %10160 = vmatpush.bf16.msra.mxu0 %v6349
  %10161 = vmatpush.bf16.msra.mxu0 %v6345
  %10162 = vmatpush.bf16.msra.mxu0 %v6341
  %10163 = vmatpush.bf16.msra.mxu0 %v6337
  %10164 = vmatpush.bf16.msra.mxu0 %v6333
  %10165 = vmatpush.bf16.msra.mxu0 %v6329
  %10166 = vmatmul.bf16.gmra.mxu0 %v1520
  %v10167 = vpop.f32.mrf.mxu0
  %v10168 = vadd.f32 %v10154, %v10167
  %v10169 = vpop.f32.mrf.mxu0
  %v10170 = vadd.f32 %v10156, %v10169
  %10171 = vdwg.mxu0
  %10172 = vmatpush.bf16.msra.mxu0 %v6389
  %10173 = vmatpush.bf16.msra.mxu0 %v6385
  %10174 = vmatpush.bf16.msra.mxu0 %v6381
  %10175 = vmatpush.bf16.msra.mxu0 %v6377
  %10176 = vmatpush.bf16.msra.mxu0 %v6373
  %10177 = vmatpush.bf16.msra.mxu0 %v6369
  %10178 = vmatpush.bf16.msra.mxu0 %v6365
  %10179 = vmatpush.bf16.msra.mxu0 %v6361
  %10180 = vmatmul.bf16.gmra.mxu0 %v1521
  %v10181 = vpop.f32.mrf.mxu0
  %v10182 = vadd.f32 %v10168, %v10181
  %v10183 = vpop.f32.mrf.mxu0
  %v10184 = vadd.f32 %v10170, %v10183
  %10185 = vdwg.mxu0
  %10186 = vmatpush.bf16.msra.mxu0 %v6421
  %10187 = vmatpush.bf16.msra.mxu0 %v6417
  %10188 = vmatpush.bf16.msra.mxu0 %v6413
  %10189 = vmatpush.bf16.msra.mxu0 %v6409
  %10190 = vmatpush.bf16.msra.mxu0 %v6405
  %10191 = vmatpush.bf16.msra.mxu0 %v6401
  %10192 = vmatpush.bf16.msra.mxu0 %v6397
  %10193 = vmatpush.bf16.msra.mxu0 %v6393
  %10194 = vmatmul.bf16.gmra.mxu0 %v1522
  %v10195 = vpop.f32.mrf.mxu0
  %v10196 = vadd.f32 %v10182, %v10195
  %v10197 = vpop.f32.mrf.mxu0
  %v10198 = vadd.f32 %v10184, %v10197
  %10199 = vdwg.mxu0
  %10200 = vmatpush.bf16.msra.mxu0 %v6453
  %10201 = vmatpush.bf16.msra.mxu0 %v6449
  %10202 = vmatpush.bf16.msra.mxu0 %v6445
  %10203 = vmatpush.bf16.msra.mxu0 %v6441
  %10204 = vmatpush.bf16.msra.mxu0 %v6437
  %10205 = vmatpush.bf16.msra.mxu0 %v6433
  %10206 = vmatpush.bf16.msra.mxu0 %v6429
  %10207 = vmatpush.bf16.msra.mxu0 %v6425
  %10208 = vmatmul.bf16.gmra.mxu0 %v1523
  %v10209 = vpop.f32.mrf.mxu0
  %v10210 = vadd.f32 %v10196, %v10209
  %v10211 = vpop.f32.mrf.mxu0
  %v10212 = vadd.f32 %v10198, %v10211
  %10213 = vdwg.mxu0
  %10214 = vmatpush.bf16.msra.mxu0 %v6485
  %10215 = vmatpush.bf16.msra.mxu0 %v6481
  %10216 = vmatpush.bf16.msra.mxu0 %v6477
  %10217 = vmatpush.bf16.msra.mxu0 %v6473
  %10218 = vmatpush.bf16.msra.mxu0 %v6469
  %10219 = vmatpush.bf16.msra.mxu0 %v6465
  %10220 = vmatpush.bf16.msra.mxu0 %v6461
  %10221 = vmatpush.bf16.msra.mxu0 %v6457
  %10222 = vmatmul.bf16.gmra.mxu0 %v1524
  %v10223 = vpop.f32.mrf.mxu0
  %v10224 = vadd.f32 %v10210, %v10223
  %v10225 = vpop.f32.mrf.mxu0
  %v10226 = vadd.f32 %v10212, %v10225
  %10227 = vdwg.mxu0
  %10228 = vmatpush.bf16.msra.mxu0 %v6517
  %10229 = vmatpush.bf16.msra.mxu0 %v6513
  %10230 = vmatpush.bf16.msra.mxu0 %v6509
  %10231 = vmatpush.bf16.msra.mxu0 %v6505
  %10232 = vmatpush.bf16.msra.mxu0 %v6501
  %10233 = vmatpush.bf16.msra.mxu0 %v6497
  %10234 = vmatpush.bf16.msra.mxu0 %v6493
  %10235 = vmatpush.bf16.msra.mxu0 %v6489
  %10236 = vmatmul.bf16.gmra.mxu0 %v1525
  %v10237 = vpop.f32.mrf.mxu0
  %v10238 = vadd.f32 %v10224, %v10237
  %v10239 = vpop.f32.mrf.mxu0
  %v10240 = vadd.f32 %v10226, %v10239
  %10241 = vdwg.mxu0
  %10242 = vmatpush.bf16.msra.mxu0 %v6549
  %10243 = vmatpush.bf16.msra.mxu0 %v6545
  %10244 = vmatpush.bf16.msra.mxu0 %v6541
  %10245 = vmatpush.bf16.msra.mxu0 %v6537
  %10246 = vmatpush.bf16.msra.mxu0 %v6533
  %10247 = vmatpush.bf16.msra.mxu0 %v6529
  %10248 = vmatpush.bf16.msra.mxu0 %v6525
  %10249 = vmatpush.bf16.msra.mxu0 %v6521
  %10250 = vmatmul.bf16.gmra.mxu0 %v1526
  %v10251 = vpop.f32.mrf.mxu0
  %v10252 = vadd.f32 %v10238, %v10251
  %v10253 = vpop.f32.mrf.mxu0
  %v10254 = vadd.f32 %v10240, %v10253
  %10255 = vdwg.mxu0
  %10256 = vmatpush.bf16.msra.mxu0 %v6581
  %10257 = vmatpush.bf16.msra.mxu0 %v6577
  %10258 = vmatpush.bf16.msra.mxu0 %v6573
  %10259 = vmatpush.bf16.msra.mxu0 %v6569
  %10260 = vmatpush.bf16.msra.mxu0 %v6565
  %10261 = vmatpush.bf16.msra.mxu0 %v6561
  %10262 = vmatpush.bf16.msra.mxu0 %v6557
  %10263 = vmatpush.bf16.msra.mxu0 %v6553
  %10264 = vmatmul.bf16.gmra.mxu0 %v1527
  %v10265 = vpop.f32.mrf.mxu0
  %v10266 = vadd.f32 %v10252, %v10265
  %v10267 = vpop.f32.mrf.mxu0
  %v10268 = vadd.f32 %v10254, %v10267
  %10269 = vdwg.mxu0
  %10270 = vmatpush.bf16.msra.mxu0 %v6613
  %10271 = vmatpush.bf16.msra.mxu0 %v6609
  %10272 = vmatpush.bf16.msra.mxu0 %v6605
  %10273 = vmatpush.bf16.msra.mxu0 %v6601
  %10274 = vmatpush.bf16.msra.mxu0 %v6597
  %10275 = vmatpush.bf16.msra.mxu0 %v6593
  %10276 = vmatpush.bf16.msra.mxu0 %v6589
  %10277 = vmatpush.bf16.msra.mxu0 %v6585
  %10278 = vmatmul.bf16.gmra.mxu0 %v1528
  %v10279 = vpop.f32.mrf.mxu0
  %v10280 = vadd.f32 %v10266, %v10279
  %v10281 = vpop.f32.mrf.mxu0
  %v10282 = vadd.f32 %v10268, %v10281
  %10283 = vdwg.mxu0
  %10284 = vmatpush.bf16.msra.mxu0 %v6645
  %10285 = vmatpush.bf16.msra.mxu0 %v6641
  %10286 = vmatpush.bf16.msra.mxu0 %v6637
  %10287 = vmatpush.bf16.msra.mxu0 %v6633
  %10288 = vmatpush.bf16.msra.mxu0 %v6629
  %10289 = vmatpush.bf16.msra.mxu0 %v6625
  %10290 = vmatpush.bf16.msra.mxu0 %v6621
  %10291 = vmatpush.bf16.msra.mxu0 %v6617
  %10292 = vmatmul.bf16.gmra.mxu0 %v1529
  %v10293 = vpop.f32.mrf.mxu0
  %v10294 = vadd.f32 %v10280, %v10293
  %v10295 = vpop.f32.mrf.mxu0
  %v10296 = vadd.f32 %v10282, %v10295
  %10297 = vdwg.mxu0
  %10298 = vmatpush.bf16.msra.mxu0 %v6677
  %10299 = vmatpush.bf16.msra.mxu0 %v6673
  %10300 = vmatpush.bf16.msra.mxu0 %v6669
  %10301 = vmatpush.bf16.msra.mxu0 %v6665
  %10302 = vmatpush.bf16.msra.mxu0 %v6661
  %10303 = vmatpush.bf16.msra.mxu0 %v6657
  %10304 = vmatpush.bf16.msra.mxu0 %v6653
  %10305 = vmatpush.bf16.msra.mxu0 %v6649
  %10306 = vmatmul.bf16.gmra.mxu0 %v1530
  %v10307 = vpop.f32.mrf.mxu0
  %v10308 = vadd.f32 %v10294, %v10307
  %v10309 = vpop.f32.mrf.mxu0
  %v10310 = vadd.f32 %v10296, %v10309
  %10311 = vdwg.mxu0
  %10312 = vmatpush.bf16.msra.mxu0 %v6709
  %10313 = vmatpush.bf16.msra.mxu0 %v6705
  %10314 = vmatpush.bf16.msra.mxu0 %v6701
  %10315 = vmatpush.bf16.msra.mxu0 %v6697
  %10316 = vmatpush.bf16.msra.mxu0 %v6693
  %10317 = vmatpush.bf16.msra.mxu0 %v6689
  %10318 = vmatpush.bf16.msra.mxu0 %v6685
  %10319 = vmatpush.bf16.msra.mxu0 %v6681
  %10320 = vmatmul.bf16.gmra.mxu0 %v1531
  %v10321 = vpop.f32.mrf.mxu0
  %v10322 = vadd.f32 %v10308, %v10321
  %v10323 = vpop.f32.mrf.mxu0
  %v10324 = vadd.f32 %v10310, %v10323
  %10325 = vdwg.mxu0
  %10326 = vmatpush.bf16.msra.mxu0 %v6741
  %10327 = vmatpush.bf16.msra.mxu0 %v6737
  %10328 = vmatpush.bf16.msra.mxu0 %v6733
  %10329 = vmatpush.bf16.msra.mxu0 %v6729
  %10330 = vmatpush.bf16.msra.mxu0 %v6725
  %10331 = vmatpush.bf16.msra.mxu0 %v6721
  %10332 = vmatpush.bf16.msra.mxu0 %v6717
  %10333 = vmatpush.bf16.msra.mxu0 %v6713
  %10334 = vmatmul.bf16.gmra.mxu0 %v1532
  %v10335 = vpop.f32.mrf.mxu0
  %v10336 = vadd.f32 %v10322, %v10335
  %v10337 = vpop.f32.mrf.mxu0
  %v10338 = vadd.f32 %v10324, %v10337
  %10339 = vdwg.mxu0
  %10340 = vmatpush.bf16.msra.mxu0 0
  %10341 = vmatpush.bf16.msra.mxu0 0
  %10342 = vmatpush.bf16.msra.mxu0 0
  %10343 = vmatpush.bf16.msra.mxu0 0
  %10344 = vmatpush.bf16.msra.mxu0 %v6757
  %10345 = vmatpush.bf16.msra.mxu0 %v6753
  %10346 = vmatpush.bf16.msra.mxu0 %v6749
  %10347 = vmatpush.bf16.msra.mxu0 %v6745
  %10348 = vmatmul.bf16.gmra.mxu0 %v8056
  %v10349 = vpop.f32.mrf.mxu0
  %v10350 = vadd.f32 %v10336, %v10349
  %v10351 = vpop.f32.mrf.mxu0
  %v10352 = vadd.f32 %v10338, %v10351
  %10353 = vdwg.mxu0
  %v10354 = vmax.f32 %v8628, 0.0
  %v10355 = vmax.f32 %v9202, 0.0
  %v10356 = vmax.f32 %v9776, 0.0
  %v10357 = vmax.f32 %v10350, 0.0
  %v10358 = vmax.f32 %v8630, 0.0
  %v10359 = vmax.f32 %v9204, 0.0
  %v10360 = vmax.f32 %v9778, 0.0
  %v10361 = vmax.f32 %v10352, 0.0
  %v10362 = vpack.c.bf16 %v10358, %v10354
  %v10363 = vpack.c.bf16 %v10359, %v10355
  %v10364 = vpack.c.bf16 %v10360, %v10356
  %v10365 = vpack.c.bf16 %v10361, %v10357
  %v10366 = vld [vmem:[%s3] sm:$0xf]
  %v10367 = vld [vmem:[%s3 + $0x4] sm:$0xf]
  %v10368 = vld [vmem:[%s3 + $0x8] sm:$0xf]
  %v10369 = vld [vmem:[%s3 + $0xc] sm:$0xf]
  %v10370 = vld [vmem:[%s3 + $0x10] sm:$0xf]
  %v10371 = vld [vmem:[%s3 + $0x14] sm:$0xf]
  %v10372 = vld [vmem:[%s3 + $0x18] sm:$0xf]
  %v10373 = vld [vmem:[%s3 + $0x1c] sm:$0xf]
  %v10374 = vld [vmem:[%s3 + $0x20] sm:$0xf]
  %v10375 = vld [vmem:[%s3 + $0x24] sm:$0xf]
  %v10376 = vld [vmem:[%s3 + $0x28] sm:$0xf]
  %v10377 = vld [vmem:[%s3 + $0x2c] sm:$0xf]
  %v10378 = vld [vmem:[%s3 + $0x30] sm:$0xf]
  %v10379 = vld [vmem:[%s3 + $0x34] sm:$0xf]
  %v10380 = vld [vmem:[%s3 + $0x38] sm:$0xf]
  %v10381 = vld [vmem:[%s3 + $0x3c] sm:$0xf]
  %v10382 = vld [vmem:[%s3 + $0x40] sm:$0xf]
  %v10383 = vld [vmem:[%s3 + $0x44] sm:$0xf]
  %v10384 = vld [vmem:[%s3 + $0x48] sm:$0xf]
  %v10385 = vld [vmem:[%s3 + $0x4c] sm:$0xf]
  %v10386 = vld [vmem:[%s3 + $0x50] sm:$0xf]
  %v10387 = vld [vmem:[%s3 + $0x54] sm:$0xf]
  %v10388 = vld [vmem:[%s3 + $0x58] sm:$0xf]
  %v10389 = vld [vmem:[%s3 + $0x5c] sm:$0xf]
  %v10390 = vld [vmem:[%s3 + $0x60] sm:$0xf]
  %v10391 = vld [vmem:[%s3 + $0x64] sm:$0xf]
  %v10392 = vld [vmem:[%s3 + $0x68] sm:$0xf]
  %v10393 = vld [vmem:[%s3 + $0x6c] sm:$0xf]
  %v10394 = vld [vmem:[%s3 + $0x70] sm:$0xf]
  %v10395 = vld [vmem:[%s3 + $0x74] sm:$0xf]
  %v10396 = vld [vmem:[%s3 + $0x78] sm:$0xf]
  %v10397 = vld [vmem:[%s3 + $0x7c] sm:$0xf]
  %v10398 = vld [vmem:[%s3 + $0x80] sm:$0xf]
  %v10399 = vld [vmem:[%s3 + $0x84] sm:$0xf]
  %v10400 = vld [vmem:[%s3 + $0x88] sm:$0xf]
  %v10401 = vld [vmem:[%s3 + $0x8c] sm:$0xf]
  %v10402 = vld [vmem:[%s3 + $0x90] sm:$0xf]
  %v10403 = vld [vmem:[%s3 + $0x94] sm:$0xf]
  %v10404 = vld [vmem:[%s3 + $0x98] sm:$0xf]
  %v10405 = vld [vmem:[%s3 + $0x9c] sm:$0xf]
  %v10406 = vld [vmem:[%s3 + $0xa0] sm:$0xf]
  %v10407 = vld [vmem:[%s3 + $0xa4] sm:$0xf]
  %v10408 = vld [vmem:[%s3 + $0xa8] sm:$0xf]
  %v10409 = vld [vmem:[%s3 + $0xac] sm:$0xf]
  %v10410 = vld [vmem:[%s3 + $0xb0] sm:$0xf]
  %v10411 = vld [vmem:[%s3 + $0xb4] sm:$0xf]
  %v10412 = vld [vmem:[%s3 + $0xb8] sm:$0xf]
  %v10413 = vld [vmem:[%s3 + $0xbc] sm:$0xf]
  %v10414 = vld [vmem:[%s3 + $0xc0] sm:$0xf]
  %v10415 = vld [vmem:[%s3 + $0xc4] sm:$0xf]
  %v10416 = vld [vmem:[%s3 + $0xc8] sm:$0xf]
  %v10417 = vld [vmem:[%s3 + $0xcc] sm:$0xf]
  %v10418 = vld [vmem:[%s3 + $0xd0] sm:$0xf]
  %v10419 = vld [vmem:[%s3 + $0xd4] sm:$0xf]
  %v10420 = vld [vmem:[%s3 + $0xd8] sm:$0xf]
  %v10421 = vld [vmem:[%s3 + $0xdc] sm:$0xf]
  %v10422 = vld [vmem:[%s3 + $0xe0] sm:$0xf]
  %v10423 = vld [vmem:[%s3 + $0xe4] sm:$0xf]
  %v10424 = vld [vmem:[%s3 + $0xe8] sm:$0xf]
  %v10425 = vld [vmem:[%s3 + $0xec] sm:$0xf]
  %v10426 = vld [vmem:[%s3 + $0xf0] sm:$0xf]
  %v10427 = vld [vmem:[%s3 + $0xf4] sm:$0xf]
  %v10428 = vld [vmem:[%s3 + $0xf8] sm:$0xf]
  %v10429 = vld [vmem:[%s3 + $0xfc] sm:$0xf]
  %v10430 = vld [vmem:[%s4] sm:$0x1]
  %v10432 = vperm.slane %v10430, 0
  %v10498 = vunpack.c.l.b16 %v10366
  %v10499 = vunpack.c.l.b16 %v10367
  %v10500 = vunpack.c.l.b16 %v10368
  %v10501 = vunpack.c.l.b16 %v10369
  %v10502 = vunpack.c.l.b16 %v10370
  %v10503 = vunpack.c.l.b16 %v10371
  %v10504 = vunpack.c.l.b16 %v10372
  %v10505 = vunpack.c.l.b16 %v10373
  %v10506 = vunpack.c.l.b16 %v10374
  %v10507 = vunpack.c.l.b16 %v10375
  %v10508 = vunpack.c.l.b16 %v10376
  %v10509 = vunpack.c.l.b16 %v10377
  %v10510 = vunpack.c.l.b16 %v10378
  %v10511 = vunpack.c.l.b16 %v10379
  %v10512 = vunpack.c.l.b16 %v10380
  %v10513 = vunpack.c.l.b16 %v10381
  %v10514 = vunpack.c.l.b16 %v10382
  %v10515 = vunpack.c.l.b16 %v10383
  %v10516 = vunpack.c.l.b16 %v10384
  %v10517 = vunpack.c.l.b16 %v10385
  %v10518 = vunpack.c.l.b16 %v10386
  %v10519 = vunpack.c.l.b16 %v10387
  %v10520 = vunpack.c.l.b16 %v10388
  %v10521 = vunpack.c.l.b16 %v10389
  %v10522 = vunpack.c.l.b16 %v10390
  %v10523 = vunpack.c.l.b16 %v10391
  %v10524 = vunpack.c.l.b16 %v10392
  %v10525 = vunpack.c.l.b16 %v10393
  %v10526 = vunpack.c.l.b16 %v10394
  %v10527 = vunpack.c.l.b16 %v10395
  %v10528 = vunpack.c.l.b16 %v10396
  %v10529 = vunpack.c.l.b16 %v10397
  %v10530 = vunpack.c.l.b16 %v10398
  %v10531 = vunpack.c.l.b16 %v10399
  %v10532 = vunpack.c.l.b16 %v10400
  %v10533 = vunpack.c.l.b16 %v10401
  %v10534 = vunpack.c.l.b16 %v10402
  %v10535 = vunpack.c.l.b16 %v10403
  %v10536 = vunpack.c.l.b16 %v10404
  %v10537 = vunpack.c.l.b16 %v10405
  %v10538 = vunpack.c.l.b16 %v10406
  %v10539 = vunpack.c.l.b16 %v10407
  %v10540 = vunpack.c.l.b16 %v10408
  %v10541 = vunpack.c.l.b16 %v10409
  %v10542 = vunpack.c.l.b16 %v10410
  %v10543 = vunpack.c.l.b16 %v10411
  %v10544 = vunpack.c.l.b16 %v10412
  %v10545 = vunpack.c.l.b16 %v10413
  %v10546 = vunpack.c.l.b16 %v10414
  %v10547 = vunpack.c.l.b16 %v10415
  %v10548 = vunpack.c.l.b16 %v10416
  %v10549 = vunpack.c.l.b16 %v10417
  %v10550 = vunpack.c.l.b16 %v10418
  %v10551 = vunpack.c.l.b16 %v10419
  %v10552 = vunpack.c.l.b16 %v10420
  %v10553 = vunpack.c.l.b16 %v10421
  %v10554 = vunpack.c.l.b16 %v10422
  %v10555 = vunpack.c.l.b16 %v10423
  %v10556 = vunpack.c.l.b16 %v10424
  %v10557 = vunpack.c.l.b16 %v10425
  %v10558 = vunpack.c.l.b16 %v10426
  %v10559 = vunpack.c.l.b16 %v10427
  %v10560 = vunpack.c.l.b16 %v10428
  %v10561 = vunpack.c.l.b16 %v10429
  %v10562 = vpack.c.b16 %v10499, %v10498
  %v10563 = vpack.c.b16 %v10501, %v10500
  %v10564 = vpack.c.b16 %v10503, %v10502
  %v10565 = vpack.c.b16 %v10505, %v10504
  %v10566 = vpack.c.b16 %v10507, %v10506
  %v10567 = vpack.c.b16 %v10509, %v10508
  %v10568 = vpack.c.b16 %v10511, %v10510
  %v10569 = vpack.c.b16 %v10513, %v10512
  %v10570 = vpack.c.b16 %v10515, %v10514
  %v10571 = vpack.c.b16 %v10517, %v10516
  %v10572 = vpack.c.b16 %v10519, %v10518
  %v10573 = vpack.c.b16 %v10521, %v10520
  %v10574 = vpack.c.b16 %v10523, %v10522
  %v10575 = vpack.c.b16 %v10525, %v10524
  %v10576 = vpack.c.b16 %v10527, %v10526
  %v10577 = vpack.c.b16 %v10529, %v10528
  %v10578 = vpack.c.b16 %v10531, %v10530
  %v10579 = vpack.c.b16 %v10533, %v10532
  %v10580 = vpack.c.b16 %v10535, %v10534
  %v10581 = vpack.c.b16 %v10537, %v10536
  %v10582 = vpack.c.b16 %v10539, %v10538
  %v10583 = vpack.c.b16 %v10541, %v10540
  %v10584 = vpack.c.b16 %v10543, %v10542
  %v10585 = vpack.c.b16 %v10545, %v10544
  %v10586 = vpack.c.b16 %v10547, %v10546
  %v10587 = vpack.c.b16 %v10549, %v10548
  %v10588 = vpack.c.b16 %v10551, %v10550
  %v10589 = vpack.c.b16 %v10553, %v10552
  %v10590 = vpack.c.b16 %v10555, %v10554
  %v10591 = vpack.c.b16 %v10557, %v10556
  %v10592 = vpack.c.b16 %v10559, %v10558
  %v10593 = vpack.c.b16 %v10561, %v10560
  %10626 = vmatpush.bf16.msra.mxu0 %v10569
  %10627 = vmatpush.bf16.msra.mxu0 %v10568
  %10628 = vmatpush.bf16.msra.mxu0 %v10567
  %10629 = vmatpush.bf16.msra.mxu0 %v10566
  %10630 = vmatpush.bf16.msra.mxu0 %v10565
  %10631 = vmatpush.bf16.msra.mxu0 %v10564
  %10632 = vmatpush.bf16.msra.mxu0 %v10563
  %10633 = vmatpush.bf16.msra.mxu0 %v10562
  %10634 = vmatmul.bf16.gmra.mxu0 %v10362
  %v10635 = vpop.f32.mrf.mxu0
  %v10636 = vadd.f32 %v10432, %v10635
  %v10637 = vpop.f32.mrf.mxu0
  %v10638 = vadd.f32 %v10432, %v10637
  %10639 = vdwg.mxu0
  %10640 = vmatpush.bf16.msra.mxu0 %v10577
  %10641 = vmatpush.bf16.msra.mxu0 %v10576
  %10642 = vmatpush.bf16.msra.mxu0 %v10575
  %10643 = vmatpush.bf16.msra.mxu0 %v10574
  %10644 = vmatpush.bf16.msra.mxu0 %v10573
  %10645 = vmatpush.bf16.msra.mxu0 %v10572
  %10646 = vmatpush.bf16.msra.mxu0 %v10571
  %10647 = vmatpush.bf16.msra.mxu0 %v10570
  %10648 = vmatmul.bf16.gmra.mxu0 %v10363
  %v10649 = vpop.f32.mrf.mxu0
  %v10650 = vadd.f32 %v10636, %v10649
  %v10651 = vpop.f32.mrf.mxu0
  %v10652 = vadd.f32 %v10638, %v10651
  %10653 = vdwg.mxu0
  %10654 = vmatpush.bf16.msra.mxu0 %v10585
  %10655 = vmatpush.bf16.msra.mxu0 %v10584
  %10656 = vmatpush.bf16.msra.mxu0 %v10583
  %10657 = vmatpush.bf16.msra.mxu0 %v10582
  %10658 = vmatpush.bf16.msra.mxu0 %v10581
  %10659 = vmatpush.bf16.msra.mxu0 %v10580
  %10660 = vmatpush.bf16.msra.mxu0 %v10579
  %10661 = vmatpush.bf16.msra.mxu0 %v10578
  %10662 = vmatmul.bf16.gmra.mxu0 %v10364
  %v10663 = vpop.f32.mrf.mxu0
  %v10664 = vadd.f32 %v10650, %v10663
  %v10665 = vpop.f32.mrf.mxu0
  %v10666 = vadd.f32 %v10652, %v10665
  %10667 = vdwg.mxu0
  %10668 = vmatpush.bf16.msra.mxu0 %v10593
  %10669 = vmatpush.bf16.msra.mxu0 %v10592
  %10670 = vmatpush.bf16.msra.mxu0 %v10591
  %10671 = vmatpush.bf16.msra.mxu0 %v10590
  %10672 = vmatpush.bf16.msra.mxu0 %v10589
  %10673 = vmatpush.bf16.msra.mxu0 %v10588
  %10674 = vmatpush.bf16.msra.mxu0 %v10587
  %10675 = vmatpush.bf16.msra.mxu0 %v10586
  %10676 = vmatmul.bf16.gmra.mxu0 %v10365
  %v10677 = vpop.f32.mrf.mxu0
  %v10678 = vadd.f32 %v10664, %v10677
  %v10679 = vpop.f32.mrf.mxu0
  %v10680 = vadd.f32 %v10666, %v10679
  %10681 = vdwg.mxu0
  %10682 = vst [vmem:[%s5] sm:$0xff] %v10678
  %10683 = vst [vmem:[%s5 + $0x8] sm:$0xff] %v10680
  // Predicated region
  $region22: #{dqn_forward.5} parent=0 // pred_check
    _
  $region23: #{dqn_forward.5} parent=0 // pred_check_branch
    %10685 = sbr.rel (0) target = $region25
  $region24: #{dqn_forward.5} parent=0 // pred_region
    _
  $region25: #{dqn_forward.5} parent=0 // pred_fallthru
    _
  // Predicated region
  $region26: #{dqn_forward.5} parent=0 // pred_check
    _
  $region27: #{dqn_forward.5} parent=0 // pred_check_branch
    %10687 = sbr.rel (0) target = $region29
  $region28: #{dqn_forward.5} parent=0 // pred_region
    _
  $region29: #{dqn_forward.5} parent=0 // pred_fallthru
    _

</llo_original>
